<compile_context>
chip_gen: v7x
topology: tpu7x:2x2x1
jax: 0.10.0
libtpu: 0.0.40
codegen_flags: <defaults>
</compile_context>

<pallas_src>
import math

import jax
import jax.numpy as jnp
import numpy as np
from jax.experimental import pallas as pl
from jax.experimental.pallas import tpu as pltpu

# ---- hyperparameters (GraphTCNForMLGCPipeline defaults) ----
NODE_INDIM = 7
EDGE_INDIM = 4
H_DIM = 5
E_DIM = 4
H_OUTDIM = 2
HIDDEN = 40
L_HC = 3
ALPHA_HC = 0.5
EPS = 1e-6

D = 128                      # padded feature width (lane dim)
E_OFF = 2 * H_DIM            # lane offset where edge features live (10:14)
SA = math.sqrt(ALPHA_HC)
SB = math.sqrt(1.0 - ALPHA_HC)


# --------------------------------------------------------------------------
# Pallas kernel
# --------------------------------------------------------------------------
def _graph_tcn_kernel(x_ref, ea_ref, src_ref, dstc_ref, dstr_ref,
                      w_ref, b_ref, norm_ref, out_ref):
    relu = lambda v: jnp.maximum(v, 0.0)
    f32, bf16 = jnp.float32, jnp.bfloat16
    W = lambda i: w_ref[i]           # (128, 128) bf16 weight slab
    B = lambda i: b_ref[i]           # (1, 128) f32 bias row

    def bdot(a, w):                  # single-pass bf16 MXU matmul, f32 accumulate
        return jnp.dot(a.astype(bf16), w, preferred_element_type=f32)

    n_pad = x_ref.shape[0]
    e_pad = ea_ref.shape[0]

    # ---- hc_node_encoder (ResFCNN depth=1, alpha=0, bias=False) + outer ReLU ----
    h = relu(bdot(x_ref[...], W(0)))
    h = relu(bdot(h, W(1)))
    h = relu(bdot(h, W(2)))                     # h lives in lanes 0:H_DIM

    # ---- hc_edge_encoder (MLP L=2, bias=False) + outer ReLU ----
    e = relu(bdot(ea_ref[...], W(3)))
    e = relu(bdot(e, W(4)))                     # e lives in lanes E_OFF:E_OFF+E_DIM

    # ---- incidence one-hots, built once (0/1 exact in bf16) ----
    node_lane = jax.lax.broadcasted_iota(jnp.int32, (e_pad, n_pad), 1)
    src_oh = (node_lane == src_ref[...]).astype(f32).astype(bf16)    # (E, N)
    dst_oh = (node_lane == dstc_ref[...]).astype(f32).astype(bf16)   # (E, N)
    node_sub = jax.lax.broadcasted_iota(jnp.int32, (n_pad, e_pad), 0)
    dst_ohT = (node_sub == dstr_ref[...]).astype(f32).astype(bf16)   # (N, E)

    # ---- ResIN: L_HC interaction-network layers with node residuals ----
    for l in range(L_HC):
        wi = 5 + 6 * l
        bi = 6 * l
        h16 = h.astype(bf16)
        # roll h (N rows) once per layer instead of the gathered x_j (E rows):
        # roll along lanes commutes with the row-mixing one-hot gather, so
        # src_oh @ roll(h) == roll(x_j); cheaper XLU work since E > N.
        h16_shift = pltpu.roll(h, H_DIM, axis=1).astype(bf16)

        x_i = jnp.dot(dst_oh, h16, preferred_element_type=f32)        # lanes 0:5
        x_j_shift = jnp.dot(src_oh, h16_shift, preferred_element_type=f32)

        # lane-packed relational input [x_i | x_j | .. | e] -> one fused matmul
        rel_in = x_i + x_j_shift + e
        r = relu(bdot(rel_in, W(wi + 0)) + B(bi + 0))
        r = relu(bdot(r, W(wi + 1)) + B(bi + 1))
        e_new = bdot(r, W(wi + 2)) + B(bi + 2)                   # lanes E_OFF:E_OFF+4

        # scatter-add messages onto target nodes: near-exact hi/lo bf16 split,
        # using the pre-transposed one-hot (plain lane contraction, no relayout)
        e_hi = e_new.astype(bf16)
        e_lo = (e_new - e_hi.astype(f32)).astype(bf16)
        aggr = (jnp.dot(dst_ohT, e_hi, preferred_element_type=f32)
                + jnp.dot(dst_ohT, e_lo, preferred_element_type=f32))

        # lane-packed object input [h | .. | aggr] -> one fused matmul (no roll)
        o = relu(bdot(h + aggr, W(wi + 3)) + B(bi + 3))
        o = relu(bdot(o, W(wi + 4)) + B(bi + 4))
        delta = bdot(o, W(wi + 5)) + B(bi + 5)

        h = SA * h + SB * relu(delta)
        e = e_new

    # ---- fused p_beta / p_cluster heads (column-packed + block-diagonal) ----
    hw = 5 + 6 * L_HC
    hb = 6 * L_HC
    t = relu(bdot(h, W(hw + 0)) + B(hb + 0))    # lanes 0:40 beta path, 40:80 cluster
    t = relu(bdot(t, W(hw + 1)) + B(hb + 1))    # block-diagonal second layer
    z = bdot(t, W(hw + 2)) + B(hb + 2)          # lane 0: beta logit, lanes 1:3: cluster

    beta = EPS + (1.0 - 2.0 * EPS) * jax.nn.sigmoid(z)
    lane = jax.lax.broadcasted_iota(jnp.int32, z.shape, 1)
    # single lane-dense output: lane 0 = beta, lanes 1:1+H_OUTDIM = H * latent_norm
    out_ref[...] = jnp.where(lane == 0, beta, z * norm_ref[0, 0])


# --------------------------------------------------------------------------
# Parameter construction (deterministic, synthetic)
# --------------------------------------------------------------------------
def init_params(key):
    keys = iter(jax.random.split(key, 128))

    def lin(kin, kout):
        return (jax.random.normal(next(keys), (kin, kout), jnp.float32)
                / jnp.sqrt(jnp.float32(kin)))

    def bias(kout):
        return 0.1 * jax.random.normal(next(keys), (kout,), jnp.float32)

    p = {}
    p["node_W"] = [lin(NODE_INDIM, HIDDEN), lin(HIDDEN, HIDDEN), lin(HIDDEN, H_DIM)]
    p["edge_W"] = [lin(EDGE_INDIM, HIDDEN), lin(HIDDEN, E_DIM)]
    p["in"] = []
    rel_in = 2 * H_DIM + E_DIM
    obj_in = H_DIM + E_DIM
    for _ in range(L_HC):
        p["in"].append(dict(
            Wr0=lin(rel_in, HIDDEN), br0=bias(HIDDEN),
            Wr1=lin(HIDDEN, HIDDEN), br1=bias(HIDDEN),
            Wr2=lin(HIDDEN, E_DIM), br2=bias(E_DIM),
            Wo0=lin(obj_in, HIDDEN), bo0=bias(HIDDEN),
            Wo1=lin(HIDDEN, HIDDEN), bo1=bias(HIDDEN),
            Wo2=lin(HIDDEN, H_DIM), bo2=bias(H_DIM),
        ))
    p["Wb"] = [lin(H_DIM, HIDDEN), lin(HIDDEN, HIDDEN), lin(HIDDEN, 1)]
    p["bb"] = [bias(HIDDEN), bias(HIDDEN), bias(1)]
    p["Wc"] = [lin(H_DIM, HIDDEN), lin(HIDDEN, HIDDEN), lin(HIDDEN, H_OUTDIM)]
    p["bc"] = [bias(HIDDEN), bias(HIDDEN), bias(H_OUTDIM)]
    p["latent_norm"] = jnp.ones((), jnp.float32)  # nn.Parameter([1.0])
    return p


def _slab(blocks):
    s = jnp.zeros((D, D), jnp.float32)
    for r0, c0, m in blocks:
        s = s.at[r0:r0 + m.shape[0], c0:c0 + m.shape[1]].set(m)
    return s


def _bvec(blocks):
    s = jnp.zeros((1, D), jnp.float32)
    for c0, v in blocks:
        s = s.at[0, c0:c0 + v.shape[0]].set(v)
    return s


def stack_params(p):
    """Pack all weights into 26 bf16 (128,128) slabs + 21 f32 bias rows.

    Called once (hoisted out of the per-forward path).  Lane layout: node
    features at lanes 0:5, edge features at lanes 10:14, heads use output
    lanes 0:40 (beta path) / 40:80 (cluster path).
    """
    ws = [
        _slab([(0, 0, p["node_W"][0])]),
        _slab([(0, 0, p["node_W"][1])]),
        _slab([(0, 0, p["node_W"][2])]),
        _slab([(0, 0, p["edge_W"][0])]),
        _slab([(0, E_OFF, p["edge_W"][1])]),        # edge embedding -> lanes 10:14
    ]
    bs = []
    for l in range(L_HC):
        q = p["in"][l]
        # Relational first layer: rows 0:5 (x_i), 5:10 (x_j), 10:14 (e).  The
        # x_j block is mirrored at the circular wrap-around rows (D-5:D) so the
        # packing is valid for either roll-direction convention; exactly one of
        # the two copies ever contracts against non-zero lanes.
        ws += [
            _slab([(0, 0, q["Wr0"][:H_DIM]),
                   (H_DIM, 0, q["Wr0"][H_DIM:2 * H_DIM]),
                   (D - H_DIM, 0, q["Wr0"][H_DIM:2 * H_DIM]),
                   (E_OFF, 0, q["Wr0"][2 * H_DIM:])]),
            _slab([(0, 0, q["Wr1"])]),
            _slab([(0, E_OFF, q["Wr2"])]),          # e_new written to lanes 10:14
            _slab([(0, 0, q["Wo0"][:H_DIM]),        # object model: rows 0:5 = h,
                   (E_OFF, 0, q["Wo0"][H_DIM:])]),  # rows 10:14 = aggregated msgs
            _slab([(0, 0, q["Wo1"])]),
            _slab([(0, 0, q["Wo2"])]),
        ]
        bs += [
            _bvec([(0, q["br0"])]),
            _bvec([(0, q["br1"])]),
            _bvec([(E_OFF, q["br2"])]),
            _bvec([(0, q["bo0"])]),
            _bvec([(0, q["bo1"])]),
            _bvec([(0, q["bo2"])]),
        ]
    # fused p_beta (cols 0:40, output lane 0) + p_cluster (cols 40:80, lanes 1:3)
    ws += [
        _slab([(0, 0, p["Wb"][0]), (0, HIDDEN, p["Wc"][0])]),
        _slab([(0, 0, p["Wb"][1]), (HIDDEN, HIDDEN, p["Wc"][1])]),
        _slab([(0, 0, p["Wb"][2]), (HIDDEN, 1, p["Wc"][2])]),
    ]
    bs += [
        _bvec([(0, p["bb"][0]), (HIDDEN, p["bc"][0])]),
        _bvec([(0, p["bb"][1]), (HIDDEN, p["bc"][1])]),
        _bvec([(0, p["bb"][2]), (1, p["bc"][2])]),
    ]
    W_all = jnp.stack(ws).astype(jnp.bfloat16)      # (26, 128, 128) bf16, ~832 KiB
    b_all = jnp.stack(bs)                           # (21, 1, 128) f32
    norm = p["latent_norm"].reshape(1, 1).astype(jnp.float32)
    return W_all, b_all, norm


# --------------------------------------------------------------------------
# Wrapper
# --------------------------------------------------------------------------
def _pallas_forward(x, edge_attr, edge_index, W_all, b_all, norm):
    n, e = x.shape[0], edge_attr.shape[0]
    n_pad = max(16, -(-n // 16) * 16)
    e_pad = max(16, -(-e // 16) * 16)

    x_pad = jnp.zeros((n_pad, D), jnp.float32).at[:n, :x.shape[1]].set(x)
    ea_pad = jnp.zeros((e_pad, D), jnp.float32).at[:e, :edge_attr.shape[1]].set(edge_attr)
    # padded edges get index -1 -> all-zero one-hot rows / columns
    src_col = jnp.full((e_pad, 1), -1, jnp.int32).at[:e, 0].set(edge_index[0])
    dst_col = jnp.full((e_pad, 1), -1, jnp.int32).at[:e, 0].set(edge_index[1])
    dst_row = jnp.full((1, e_pad), -1, jnp.int32).at[0, :e].set(edge_index[1])

    vmem = pl.BlockSpec(memory_space=pltpu.MemorySpace.VMEM)
    out = pl.pallas_call(
        _graph_tcn_kernel,
        out_shape=jax.ShapeDtypeStruct((n_pad, D), jnp.float32),
        in_specs=[vmem, vmem, vmem, vmem, vmem, vmem, vmem,
                  pl.BlockSpec(memory_space=pltpu.MemorySpace.SMEM)],
        out_specs=pl.BlockSpec(memory_space=pltpu.MemorySpace.VMEM),
        compiler_params=pltpu.CompilerParams(vmem_limit_bytes=32 << 20),
    )(x_pad, ea_pad, src_col, dst_col, dst_row, W_all, b_all, norm)
    return out


_pallas_forward_jit = jax.jit(_pallas_forward)


def graph_tcn_forward(x, edge_attr, edge_index, packed):
    W_all, b_all, norm = packed
    out = _pallas_forward_jit(x, edge_attr, edge_index, W_all, b_all, norm)
    n = x.shape[0]
    return {
        "W": None,
        "H": out[:n, 1:1 + H_OUTDIM],
        "B": out[:n, 0],
        "ec_hit_mask": None,
        "ec_edge_mask": None,
    }


# --------------------------------------------------------------------------
# Pure-JAX reference (mirrors the PyTorch forward; matmuls use the same
# bf16-operand / f32-accumulate arithmetic as the TPU MXU path so the check
# isolates wiring errors rather than expected low-precision rounding)
# --------------------------------------------------------------------------
def ref_forward(params, x, edge_attr, edge_index):
    relu = jax.nn.relu

    def mm(a, b):
        return jnp.dot(a.astype(jnp.bfloat16), b.astype(jnp.bfloat16),
                       preferred_element_type=jnp.float32)

    src, dst = edge_index[0], edge_index[1]

    h = relu(mm(x, params["node_W"][0]))
    h = relu(mm(h, params["node_W"][1]))
    h = relu(mm(h, params["node_W"][2]))

    e = relu(mm(edge_attr, params["edge_W"][0]))
    e = relu(mm(e, params["edge_W"][1]))

    for layer in range(L_HC):
        q = params["in"][layer]
        x_i, x_j = h[dst], h[src]
        r = relu(mm(jnp.concatenate([x_i, x_j, e], 1), q["Wr0"]) + q["br0"])
        r = relu(mm(r, q["Wr1"]) + q["br1"])
        e_new = mm(r, q["Wr2"]) + q["br2"]
        aggr = jnp.zeros((h.shape[0], e_new.shape[1]), jnp.float32).at[dst].add(e_new)
        o = relu(mm(jnp.concatenate([h, aggr], 1), q["Wo0"]) + q["bo0"])
        o = relu(mm(o, q["Wo1"]) + q["bo1"])
        delta = mm(o, q["Wo2"]) + q["bo2"]
        h = SA * h + SB * relu(delta)
        e = e_new

    pb = relu(mm(h, params["Wb"][0]) + params["bb"][0])
    pb = relu(mm(pb, params["Wb"][1]) + params["bb"][1])
    beta = jax.nn.sigmoid(mm(pb, params["Wb"][2]) + params["bb"][2])
    beta = EPS + (1.0 - 2.0 * EPS) * beta

    pc = relu(mm(h, params["Wc"][0]) + params["bc"][0])
    pc = relu(mm(pc, params["Wc"][1]) + params["bc"][1])
    hout = (mm(pc, params["Wc"][2]) + params["bc"][2]) * params["latent_norm"]
    return hout, beta[:, 0]


# --------------------------------------------------------------------------
if __name__ == "__main__":
    key = jax.random.PRNGKey(0)
    k_x, k_ea, k_src, k_dst, k_par = jax.random.split(key, 5)

    N, E = 56, 120
    x = jax.random.normal(k_x, (N, NODE_INDIM), jnp.float32)
    edge_attr = jax.random.normal(k_ea, (E, EDGE_INDIM), jnp.float32)
    edge_index = jnp.stack([
        jax.random.randint(k_src, (E,), 0, N, jnp.int32),
        jax.random.randint(k_dst, (E,), 0, N, jnp.int32),
    ])

    params = init_params(k_par)
    packed = stack_params(params)   # hoisted: weights packed/padded once, reused

    out = graph_tcn_forward(x, edge_attr, edge_index, packed)
    jax.block_until_ready(out["H"])
    jax.block_until_ready(out["B"])

    h_ref, beta_ref = ref_forward(params, x, edge_attr, edge_index)
    assert out["H"].shape == (N, H_OUTDIM)
    assert out["B"].shape == (N,)
    np.testing.assert_allclose(np.asarray(out["H"]), np.asarray(h_ref),
                               rtol=5e-3, atol=5e-3)
    np.testing.assert_allclose(np.asarray(out["B"]), np.asarray(beta_ref),
                               rtol=5e-3, atol=5e-3)
    print("KERNEL_OK")
</pallas_src>

<mosaic_0001>
module attributes {stable_mosaic.version = 11 : i64} {
  func.func @_graph_tcn_kernel(%arg0: memref<64x128xf32, #tpu.memory_space<vmem>>, %arg1: memref<128x128xf32, #tpu.memory_space<vmem>>, %arg2: memref<128x1xi32, #tpu.memory_space<vmem>>, %arg3: memref<128x1xi32, #tpu.memory_space<vmem>>, %arg4: memref<1x128xi32, #tpu.memory_space<vmem>>, %arg5: memref<26x128x128xbf16, #tpu.memory_space<vmem>>, %arg6: memref<21x1x128xf32, #tpu.memory_space<vmem>>, %arg7: memref<1x1xf32, #tpu.memory_space<smem>>, %arg8: memref<64x128xf32, #tpu.memory_space<vmem>>) attributes {dimension_semantics = [], scalar_prefetch = 0 : i64, scratch_operands = 0 : i64, tpu.core_type = #tpu.core_type<tc>} {
    %c0 = arith.constant 0 : index
    %c0_0 = arith.constant 0 : index
    %0 = vector.load %arg0[%c0, %c0_0] : memref<64x128xf32, #tpu.memory_space<vmem>>, vector<64x128xf32>
    %c0_1 = arith.constant 0 : index
    %c0_2 = arith.constant 0 : index
    %c0_3 = arith.constant 0 : index
    %1 = vector.load %arg5[%c0_1, %c0_2, %c0_3] : memref<26x128x128xbf16, #tpu.memory_space<vmem>>, vector<1x128x128xbf16>
    %2 = vector.shape_cast %1 : vector<1x128x128xbf16> to vector<128x128xbf16>
    %3 = arith.truncf %0 : vector<64x128xf32> to vector<64x128xbf16>
    %cst = arith.constant dense<0.000000e+00> : vector<64x128xf32>
    %4 = tpu.matmul %3, %2, %cst {dimension_numbers = #tpu.dot_dimension_numbers<[1], [0], [0], [1], [0, 0, 1, 1], [], []>} : vector<64x128xbf16>, vector<128x128xbf16>, vector<64x128xf32> -> vector<64x128xf32>
    %cst_4 = arith.constant 0.000000e+00 : f32
    %5 = vector.broadcast %cst_4 : f32 to vector<64x128xf32>
    %6 = arith.maximumf %4, %5 : vector<64x128xf32>
    %c1 = arith.constant 1 : index
    %c0_5 = arith.constant 0 : index
    %c0_6 = arith.constant 0 : index
    %7 = vector.load %arg5[%c1, %c0_5, %c0_6] : memref<26x128x128xbf16, #tpu.memory_space<vmem>>, vector<1x128x128xbf16>
    %8 = vector.shape_cast %7 : vector<1x128x128xbf16> to vector<128x128xbf16>
    %9 = arith.truncf %6 : vector<64x128xf32> to vector<64x128xbf16>
    %cst_7 = arith.constant dense<0.000000e+00> : vector<64x128xf32>
    %10 = tpu.matmul %9, %8, %cst_7 {dimension_numbers = #tpu.dot_dimension_numbers<[1], [0], [0], [1], [0, 0, 1, 1], [], []>} : vector<64x128xbf16>, vector<128x128xbf16>, vector<64x128xf32> -> vector<64x128xf32>
    %cst_8 = arith.constant 0.000000e+00 : f32
    %11 = vector.broadcast %cst_8 : f32 to vector<64x128xf32>
    %12 = arith.maximumf %10, %11 : vector<64x128xf32>
    %c2 = arith.constant 2 : index
    %c0_9 = arith.constant 0 : index
    %c0_10 = arith.constant 0 : index
    %13 = vector.load %arg5[%c2, %c0_9, %c0_10] : memref<26x128x128xbf16, #tpu.memory_space<vmem>>, vector<1x128x128xbf16>
    %14 = vector.shape_cast %13 : vector<1x128x128xbf16> to vector<128x128xbf16>
    %15 = arith.truncf %12 : vector<64x128xf32> to vector<64x128xbf16>
    %cst_11 = arith.constant dense<0.000000e+00> : vector<64x128xf32>
    %16 = tpu.matmul %15, %14, %cst_11 {dimension_numbers = #tpu.dot_dimension_numbers<[1], [0], [0], [1], [0, 0, 1, 1], [], []>} : vector<64x128xbf16>, vector<128x128xbf16>, vector<64x128xf32> -> vector<64x128xf32>
    %cst_12 = arith.constant 0.000000e+00 : f32
    %17 = vector.broadcast %cst_12 : f32 to vector<64x128xf32>
    %18 = arith.maximumf %16, %17 : vector<64x128xf32>
    %c0_13 = arith.constant 0 : index
    %c0_14 = arith.constant 0 : index
    %19 = vector.load %arg1[%c0_13, %c0_14] : memref<128x128xf32, #tpu.memory_space<vmem>>, vector<128x128xf32>
    %c3 = arith.constant 3 : index
    %c0_15 = arith.constant 0 : index
    %c0_16 = arith.constant 0 : index
    %20 = vector.load %arg5[%c3, %c0_15, %c0_16] : memref<26x128x128xbf16, #tpu.memory_space<vmem>>, vector<1x128x128xbf16>
    %21 = vector.shape_cast %20 : vector<1x128x128xbf16> to vector<128x128xbf16>
    %22 = arith.truncf %19 : vector<128x128xf32> to vector<128x128xbf16>
    %cst_17 = arith.constant dense<0.000000e+00> : vector<128x128xf32>
    %23 = tpu.matmul %22, %21, %cst_17 {dimension_numbers = #tpu.dot_dimension_numbers<[1], [0], [0], [1], [0, 0, 1, 1], [], []>} : vector<128x128xbf16>, vector<128x128xbf16>, vector<128x128xf32> -> vector<128x128xf32>
    %cst_18 = arith.constant 0.000000e+00 : f32
    %24 = vector.broadcast %cst_18 : f32 to vector<128x128xf32>
    %25 = arith.maximumf %23, %24 : vector<128x128xf32>
    %c4 = arith.constant 4 : index
    %c0_19 = arith.constant 0 : index
    %c0_20 = arith.constant 0 : index
    %26 = vector.load %arg5[%c4, %c0_19, %c0_20] : memref<26x128x128xbf16, #tpu.memory_space<vmem>>, vector<1x128x128xbf16>
    %27 = vector.shape_cast %26 : vector<1x128x128xbf16> to vector<128x128xbf16>
    %28 = arith.truncf %25 : vector<128x128xf32> to vector<128x128xbf16>
    %cst_21 = arith.constant dense<0.000000e+00> : vector<128x128xf32>
    %29 = tpu.matmul %28, %27, %cst_21 {dimension_numbers = #tpu.dot_dimension_numbers<[1], [0], [0], [1], [0, 0, 1, 1], [], []>} : vector<128x128xbf16>, vector<128x128xbf16>, vector<128x128xf32> -> vector<128x128xf32>
    %cst_22 = arith.constant 0.000000e+00 : f32
    %30 = vector.broadcast %cst_22 : f32 to vector<128x128xf32>
    %31 = arith.maximumf %29, %30 : vector<128x128xf32>
    %32 = tpu.iota {dimensions = array<i32: 1>} : vector<128x64xi32>
    %c0_23 = arith.constant 0 : index
    %c0_24 = arith.constant 0 : index
    %33 = vector.load %arg2[%c0_23, %c0_24] : memref<128x1xi32, #tpu.memory_space<vmem>>, vector<128x1xi32>
    %34 = vector.broadcast %33 : vector<128x1xi32> to vector<128x64xi32>
    %35 = arith.cmpi eq, %32, %34 : vector<128x64xi32>
    %36 = arith.extui %35 : vector<128x64xi1> to vector<128x64xi32>
    %37 = arith.sitofp %36 : vector<128x64xi32> to vector<128x64xf32>
    %38 = arith.truncf %37 : vector<128x64xf32> to vector<128x64xbf16>
    %c0_25 = arith.constant 0 : index
    %c0_26 = arith.constant 0 : index
    %39 = vector.load %arg3[%c0_25, %c0_26] : memref<128x1xi32, #tpu.memory_space<vmem>>, vector<128x1xi32>
    %40 = vector.broadcast %39 : vector<128x1xi32> to vector<128x64xi32>
    %41 = arith.cmpi eq, %32, %40 : vector<128x64xi32>
    %42 = arith.extui %41 : vector<128x64xi1> to vector<128x64xi32>
    %43 = arith.sitofp %42 : vector<128x64xi32> to vector<128x64xf32>
    %44 = arith.truncf %43 : vector<128x64xf32> to vector<128x64xbf16>
    %45 = tpu.iota {dimensions = array<i32: 0>} : vector<64x128xi32>
    %c0_27 = arith.constant 0 : index
    %c0_28 = arith.constant 0 : index
    %46 = vector.load %arg4[%c0_27, %c0_28] : memref<1x128xi32, #tpu.memory_space<vmem>>, vector<1x128xi32>
    %47 = vector.broadcast %46 : vector<1x128xi32> to vector<64x128xi32>
    %48 = arith.cmpi eq, %45, %47 : vector<64x128xi32>
    %49 = arith.extui %48 : vector<64x128xi1> to vector<64x128xi32>
    %50 = arith.sitofp %49 : vector<64x128xi32> to vector<64x128xf32>
    %51 = arith.truncf %50 : vector<64x128xf32> to vector<64x128xbf16>
    %52 = arith.truncf %18 : vector<64x128xf32> to vector<64x128xbf16>
    %c5_i32 = arith.constant 5 : i32
    %53 = tpu.dynamic_rotate %18 by %c5_i32 dim 1 : vector<64x128xf32>, i32 -> vector<64x128xf32>
    %54 = arith.truncf %53 : vector<64x128xf32> to vector<64x128xbf16>
    %cst_29 = arith.constant dense<0.000000e+00> : vector<128x128xf32>
    %55 = tpu.matmul %44, %52, %cst_29 {dimension_numbers = #tpu.dot_dimension_numbers<[1], [0], [0], [1], [0, 0, 1, 1], [], []>} : vector<128x64xbf16>, vector<64x128xbf16>, vector<128x128xf32> -> vector<128x128xf32>
    %cst_30 = arith.constant dense<0.000000e+00> : vector<128x128xf32>
    %56 = tpu.matmul %38, %54, %cst_30 {dimension_numbers = #tpu.dot_dimension_numbers<[1], [0], [0], [1], [0, 0, 1, 1], [], []>} : vector<128x64xbf16>, vector<64x128xbf16>, vector<128x128xf32> -> vector<128x128xf32>
    %57 = arith.addf %55, %56 : vector<128x128xf32>
    %58 = arith.addf %57, %31 : vector<128x128xf32>
    %c5 = arith.constant 5 : index
    %c0_31 = arith.constant 0 : index
    %c0_32 = arith.constant 0 : index
    %59 = vector.load %arg5[%c5, %c0_31, %c0_32] : memref<26x128x128xbf16, #tpu.memory_space<vmem>>, vector<1x128x128xbf16>
    %60 = vector.shape_cast %59 : vector<1x128x128xbf16> to vector<128x128xbf16>
    %61 = arith.truncf %58 : vector<128x128xf32> to vector<128x128xbf16>
    %cst_33 = arith.constant dense<0.000000e+00> : vector<128x128xf32>
    %62 = tpu.matmul %61, %60, %cst_33 {dimension_numbers = #tpu.dot_dimension_numbers<[1], [0], [0], [1], [0, 0, 1, 1], [], []>} : vector<128x128xbf16>, vector<128x128xbf16>, vector<128x128xf32> -> vector<128x128xf32>
    %c0_34 = arith.constant 0 : index
    %c0_35 = arith.constant 0 : index
    %c0_36 = arith.constant 0 : index
    %63 = vector.load %arg6[%c0_34, %c0_35, %c0_36] : memref<21x1x128xf32, #tpu.memory_space<vmem>>, vector<1x1x128xf32>
    %64 = vector.shape_cast %63 : vector<1x1x128xf32> to vector<1x128xf32>
    %65 = vector.broadcast %64 : vector<1x128xf32> to vector<128x128xf32>
    %66 = arith.addf %62, %65 : vector<128x128xf32>
    %cst_37 = arith.constant 0.000000e+00 : f32
    %67 = vector.broadcast %cst_37 : f32 to vector<128x128xf32>
    %68 = arith.maximumf %66, %67 : vector<128x128xf32>
    %c6 = arith.constant 6 : index
    %c0_38 = arith.constant 0 : index
    %c0_39 = arith.constant 0 : index
    %69 = vector.load %arg5[%c6, %c0_38, %c0_39] : memref<26x128x128xbf16, #tpu.memory_space<vmem>>, vector<1x128x128xbf16>
    %70 = vector.shape_cast %69 : vector<1x128x128xbf16> to vector<128x128xbf16>
    %71 = arith.truncf %68 : vector<128x128xf32> to vector<128x128xbf16>
    %cst_40 = arith.constant dense<0.000000e+00> : vector<128x128xf32>
    %72 = tpu.matmul %71, %70, %cst_40 {dimension_numbers = #tpu.dot_dimension_numbers<[1], [0], [0], [1], [0, 0, 1, 1], [], []>} : vector<128x128xbf16>, vector<128x128xbf16>, vector<128x128xf32> -> vector<128x128xf32>
    %c1_41 = arith.constant 1 : index
    %c0_42 = arith.constant 0 : index
    %c0_43 = arith.constant 0 : index
    %73 = vector.load %arg6[%c1_41, %c0_42, %c0_43] : memref<21x1x128xf32, #tpu.memory_space<vmem>>, vector<1x1x128xf32>
    %74 = vector.shape_cast %73 : vector<1x1x128xf32> to vector<1x128xf32>
    %75 = vector.broadcast %74 : vector<1x128xf32> to vector<128x128xf32>
    %76 = arith.addf %72, %75 : vector<128x128xf32>
    %cst_44 = arith.constant 0.000000e+00 : f32
    %77 = vector.broadcast %cst_44 : f32 to vector<128x128xf32>
    %78 = arith.maximumf %76, %77 : vector<128x128xf32>
    %c7 = arith.constant 7 : index
    %c0_45 = arith.constant 0 : index
    %c0_46 = arith.constant 0 : index
    %79 = vector.load %arg5[%c7, %c0_45, %c0_46] : memref<26x128x128xbf16, #tpu.memory_space<vmem>>, vector<1x128x128xbf16>
    %80 = vector.shape_cast %79 : vector<1x128x128xbf16> to vector<128x128xbf16>
    %81 = arith.truncf %78 : vector<128x128xf32> to vector<128x128xbf16>
    %cst_47 = arith.constant dense<0.000000e+00> : vector<128x128xf32>
    %82 = tpu.matmul %81, %80, %cst_47 {dimension_numbers = #tpu.dot_dimension_numbers<[1], [0], [0], [1], [0, 0, 1, 1], [], []>} : vector<128x128xbf16>, vector<128x128xbf16>, vector<128x128xf32> -> vector<128x128xf32>
    %c2_48 = arith.constant 2 : index
    %c0_49 = arith.constant 0 : index
    %c0_50 = arith.constant 0 : index
    %83 = vector.load %arg6[%c2_48, %c0_49, %c0_50] : memref<21x1x128xf32, #tpu.memory_space<vmem>>, vector<1x1x128xf32>
    %84 = vector.shape_cast %83 : vector<1x1x128xf32> to vector<1x128xf32>
    %85 = vector.broadcast %84 : vector<1x128xf32> to vector<128x128xf32>
    %86 = arith.addf %82, %85 : vector<128x128xf32>
    %87 = arith.truncf %86 : vector<128x128xf32> to vector<128x128xbf16>
    %88 = arith.extf %87 : vector<128x128xbf16> to vector<128x128xf32>
    %89 = arith.subf %86, %88 : vector<128x128xf32>
    %90 = arith.truncf %89 : vector<128x128xf32> to vector<128x128xbf16>
    %cst_51 = arith.constant dense<0.000000e+00> : vector<64x128xf32>
    %91 = tpu.matmul %51, %87, %cst_51 {dimension_numbers = #tpu.dot_dimension_numbers<[1], [0], [0], [1], [0, 0, 1, 1], [], []>} : vector<64x128xbf16>, vector<128x128xbf16>, vector<64x128xf32> -> vector<64x128xf32>
    %cst_52 = arith.constant dense<0.000000e+00> : vector<64x128xf32>
    %92 = tpu.matmul %51, %90, %cst_52 {dimension_numbers = #tpu.dot_dimension_numbers<[1], [0], [0], [1], [0, 0, 1, 1], [], []>} : vector<64x128xbf16>, vector<128x128xbf16>, vector<64x128xf32> -> vector<64x128xf32>
    %93 = arith.addf %91, %92 : vector<64x128xf32>
    %94 = arith.addf %18, %93 : vector<64x128xf32>
    %c8 = arith.constant 8 : index
    %c0_53 = arith.constant 0 : index
    %c0_54 = arith.constant 0 : index
    %95 = vector.load %arg5[%c8, %c0_53, %c0_54] : memref<26x128x128xbf16, #tpu.memory_space<vmem>>, vector<1x128x128xbf16>
    %96 = vector.shape_cast %95 : vector<1x128x128xbf16> to vector<128x128xbf16>
    %97 = arith.truncf %94 : vector<64x128xf32> to vector<64x128xbf16>
    %cst_55 = arith.constant dense<0.000000e+00> : vector<64x128xf32>
    %98 = tpu.matmul %97, %96, %cst_55 {dimension_numbers = #tpu.dot_dimension_numbers<[1], [0], [0], [1], [0, 0, 1, 1], [], []>} : vector<64x128xbf16>, vector<128x128xbf16>, vector<64x128xf32> -> vector<64x128xf32>
    %c3_56 = arith.constant 3 : index
    %c0_57 = arith.constant 0 : index
    %c0_58 = arith.constant 0 : index
    %99 = vector.load %arg6[%c3_56, %c0_57, %c0_58] : memref<21x1x128xf32, #tpu.memory_space<vmem>>, vector<1x1x128xf32>
    %100 = vector.shape_cast %99 : vector<1x1x128xf32> to vector<1x128xf32>
    %101 = vector.broadcast %100 : vector<1x128xf32> to vector<64x128xf32>
    %102 = arith.addf %98, %101 : vector<64x128xf32>
    %cst_59 = arith.constant 0.000000e+00 : f32
    %103 = vector.broadcast %cst_59 : f32 to vector<64x128xf32>
    %104 = arith.maximumf %102, %103 : vector<64x128xf32>
    %c9 = arith.constant 9 : index
    %c0_60 = arith.constant 0 : index
    %c0_61 = arith.constant 0 : index
    %105 = vector.load %arg5[%c9, %c0_60, %c0_61] : memref<26x128x128xbf16, #tpu.memory_space<vmem>>, vector<1x128x128xbf16>
    %106 = vector.shape_cast %105 : vector<1x128x128xbf16> to vector<128x128xbf16>
    %107 = arith.truncf %104 : vector<64x128xf32> to vector<64x128xbf16>
    %cst_62 = arith.constant dense<0.000000e+00> : vector<64x128xf32>
    %108 = tpu.matmul %107, %106, %cst_62 {dimension_numbers = #tpu.dot_dimension_numbers<[1], [0], [0], [1], [0, 0, 1, 1], [], []>} : vector<64x128xbf16>, vector<128x128xbf16>, vector<64x128xf32> -> vector<64x128xf32>
    %c4_63 = arith.constant 4 : index
    %c0_64 = arith.constant 0 : index
    %c0_65 = arith.constant 0 : index
    %109 = vector.load %arg6[%c4_63, %c0_64, %c0_65] : memref<21x1x128xf32, #tpu.memory_space<vmem>>, vector<1x1x128xf32>
    %110 = vector.shape_cast %109 : vector<1x1x128xf32> to vector<1x128xf32>
    %111 = vector.broadcast %110 : vector<1x128xf32> to vector<64x128xf32>
    %112 = arith.addf %108, %111 : vector<64x128xf32>
    %cst_66 = arith.constant 0.000000e+00 : f32
    %113 = vector.broadcast %cst_66 : f32 to vector<64x128xf32>
    %114 = arith.maximumf %112, %113 : vector<64x128xf32>
    %c10 = arith.constant 10 : index
    %c0_67 = arith.constant 0 : index
    %c0_68 = arith.constant 0 : index
    %115 = vector.load %arg5[%c10, %c0_67, %c0_68] : memref<26x128x128xbf16, #tpu.memory_space<vmem>>, vector<1x128x128xbf16>
    %116 = vector.shape_cast %115 : vector<1x128x128xbf16> to vector<128x128xbf16>
    %117 = arith.truncf %114 : vector<64x128xf32> to vector<64x128xbf16>
    %cst_69 = arith.constant dense<0.000000e+00> : vector<64x128xf32>
    %118 = tpu.matmul %117, %116, %cst_69 {dimension_numbers = #tpu.dot_dimension_numbers<[1], [0], [0], [1], [0, 0, 1, 1], [], []>} : vector<64x128xbf16>, vector<128x128xbf16>, vector<64x128xf32> -> vector<64x128xf32>
    %c5_70 = arith.constant 5 : index
    %c0_71 = arith.constant 0 : index
    %c0_72 = arith.constant 0 : index
    %119 = vector.load %arg6[%c5_70, %c0_71, %c0_72] : memref<21x1x128xf32, #tpu.memory_space<vmem>>, vector<1x1x128xf32>
    %120 = vector.shape_cast %119 : vector<1x1x128xf32> to vector<1x128xf32>
    %121 = vector.broadcast %120 : vector<1x128xf32> to vector<64x128xf32>
    %122 = arith.addf %118, %121 : vector<64x128xf32>
    %cst_73 = arith.constant 0.707106769 : f32
    %123 = vector.broadcast %cst_73 : f32 to vector<64x128xf32>
    %124 = arith.mulf %123, %18 : vector<64x128xf32>
    %cst_74 = arith.constant 0.000000e+00 : f32
    %125 = vector.broadcast %cst_74 : f32 to vector<64x128xf32>
    %126 = arith.maximumf %122, %125 : vector<64x128xf32>
    %cst_75 = arith.constant 0.707106769 : f32
    %127 = vector.broadcast %cst_75 : f32 to vector<64x128xf32>
    %128 = arith.mulf %127, %126 : vector<64x128xf32>
    %129 = arith.addf %124, %128 : vector<64x128xf32>
    %130 = arith.truncf %129 : vector<64x128xf32> to vector<64x128xbf16>
    %c5_i32_76 = arith.constant 5 : i32
    %131 = tpu.dynamic_rotate %129 by %c5_i32_76 dim 1 : vector<64x128xf32>, i32 -> vector<64x128xf32>
    %132 = arith.truncf %131 : vector<64x128xf32> to vector<64x128xbf16>
    %cst_77 = arith.constant dense<0.000000e+00> : vector<128x128xf32>
    %133 = tpu.matmul %44, %130, %cst_77 {dimension_numbers = #tpu.dot_dimension_numbers<[1], [0], [0], [1], [0, 0, 1, 1], [], []>} : vector<128x64xbf16>, vector<64x128xbf16>, vector<128x128xf32> -> vector<128x128xf32>
    %cst_78 = arith.constant dense<0.000000e+00> : vector<128x128xf32>
    %134 = tpu.matmul %38, %132, %cst_78 {dimension_numbers = #tpu.dot_dimension_numbers<[1], [0], [0], [1], [0, 0, 1, 1], [], []>} : vector<128x64xbf16>, vector<64x128xbf16>, vector<128x128xf32> -> vector<128x128xf32>
    %135 = arith.addf %133, %134 : vector<128x128xf32>
    %136 = arith.addf %135, %86 : vector<128x128xf32>
    %c11 = arith.constant 11 : index
    %c0_79 = arith.constant 0 : index
    %c0_80 = arith.constant 0 : index
    %137 = vector.load %arg5[%c11, %c0_79, %c0_80] : memref<26x128x128xbf16, #tpu.memory_space<vmem>>, vector<1x128x128xbf16>
    %138 = vector.shape_cast %137 : vector<1x128x128xbf16> to vector<128x128xbf16>
    %139 = arith.truncf %136 : vector<128x128xf32> to vector<128x128xbf16>
    %cst_81 = arith.constant dense<0.000000e+00> : vector<128x128xf32>
    %140 = tpu.matmul %139, %138, %cst_81 {dimension_numbers = #tpu.dot_dimension_numbers<[1], [0], [0], [1], [0, 0, 1, 1], [], []>} : vector<128x128xbf16>, vector<128x128xbf16>, vector<128x128xf32> -> vector<128x128xf32>
    %c6_82 = arith.constant 6 : index
    %c0_83 = arith.constant 0 : index
    %c0_84 = arith.constant 0 : index
    %141 = vector.load %arg6[%c6_82, %c0_83, %c0_84] : memref<21x1x128xf32, #tpu.memory_space<vmem>>, vector<1x1x128xf32>
    %142 = vector.shape_cast %141 : vector<1x1x128xf32> to vector<1x128xf32>
    %143 = vector.broadcast %142 : vector<1x128xf32> to vector<128x128xf32>
    %144 = arith.addf %140, %143 : vector<128x128xf32>
    %cst_85 = arith.constant 0.000000e+00 : f32
    %145 = vector.broadcast %cst_85 : f32 to vector<128x128xf32>
    %146 = arith.maximumf %144, %145 : vector<128x128xf32>
    %c12 = arith.constant 12 : index
    %c0_86 = arith.constant 0 : index
    %c0_87 = arith.constant 0 : index
    %147 = vector.load %arg5[%c12, %c0_86, %c0_87] : memref<26x128x128xbf16, #tpu.memory_space<vmem>>, vector<1x128x128xbf16>
    %148 = vector.shape_cast %147 : vector<1x128x128xbf16> to vector<128x128xbf16>
    %149 = arith.truncf %146 : vector<128x128xf32> to vector<128x128xbf16>
    %cst_88 = arith.constant dense<0.000000e+00> : vector<128x128xf32>
    %150 = tpu.matmul %149, %148, %cst_88 {dimension_numbers = #tpu.dot_dimension_numbers<[1], [0], [0], [1], [0, 0, 1, 1], [], []>} : vector<128x128xbf16>, vector<128x128xbf16>, vector<128x128xf32> -> vector<128x128xf32>
    %c7_89 = arith.constant 7 : index
    %c0_90 = arith.constant 0 : index
    %c0_91 = arith.constant 0 : index
    %151 = vector.load %arg6[%c7_89, %c0_90, %c0_91] : memref<21x1x128xf32, #tpu.memory_space<vmem>>, vector<1x1x128xf32>
    %152 = vector.shape_cast %151 : vector<1x1x128xf32> to vector<1x128xf32>
    %153 = vector.broadcast %152 : vector<1x128xf32> to vector<128x128xf32>
    %154 = arith.addf %150, %153 : vector<128x128xf32>
    %cst_92 = arith.constant 0.000000e+00 : f32
    %155 = vector.broadcast %cst_92 : f32 to vector<128x128xf32>
    %156 = arith.maximumf %154, %155 : vector<128x128xf32>
    %c13 = arith.constant 13 : index
    %c0_93 = arith.constant 0 : index
    %c0_94 = arith.constant 0 : index
    %157 = vector.load %arg5[%c13, %c0_93, %c0_94] : memref<26x128x128xbf16, #tpu.memory_space<vmem>>, vector<1x128x128xbf16>
    %158 = vector.shape_cast %157 : vector<1x128x128xbf16> to vector<128x128xbf16>
    %159 = arith.truncf %156 : vector<128x128xf32> to vector<128x128xbf16>
    %cst_95 = arith.constant dense<0.000000e+00> : vector<128x128xf32>
    %160 = tpu.matmul %159, %158, %cst_95 {dimension_numbers = #tpu.dot_dimension_numbers<[1], [0], [0], [1], [0, 0, 1, 1], [], []>} : vector<128x128xbf16>, vector<128x128xbf16>, vector<128x128xf32> -> vector<128x128xf32>
    %c8_96 = arith.constant 8 : index
    %c0_97 = arith.constant 0 : index
    %c0_98 = arith.constant 0 : index
    %161 = vector.load %arg6[%c8_96, %c0_97, %c0_98] : memref<21x1x128xf32, #tpu.memory_space<vmem>>, vector<1x1x128xf32>
    %162 = vector.shape_cast %161 : vector<1x1x128xf32> to vector<1x128xf32>
    %163 = vector.broadcast %162 : vector<1x128xf32> to vector<128x128xf32>
    %164 = arith.addf %160, %163 : vector<128x128xf32>
    %165 = arith.truncf %164 : vector<128x128xf32> to vector<128x128xbf16>
    %166 = arith.extf %165 : vector<128x128xbf16> to vector<128x128xf32>
    %167 = arith.subf %164, %166 : vector<128x128xf32>
    %168 = arith.truncf %167 : vector<128x128xf32> to vector<128x128xbf16>
    %cst_99 = arith.constant dense<0.000000e+00> : vector<64x128xf32>
    %169 = tpu.matmul %51, %165, %cst_99 {dimension_numbers = #tpu.dot_dimension_numbers<[1], [0], [0], [1], [0, 0, 1, 1], [], []>} : vector<64x128xbf16>, vector<128x128xbf16>, vector<64x128xf32> -> vector<64x128xf32>
    %cst_100 = arith.constant dense<0.000000e+00> : vector<64x128xf32>
    %170 = tpu.matmul %51, %168, %cst_100 {dimension_numbers = #tpu.dot_dimension_numbers<[1], [0], [0], [1], [0, 0, 1, 1], [], []>} : vector<64x128xbf16>, vector<128x128xbf16>, vector<64x128xf32> -> vector<64x128xf32>
    %171 = arith.addf %169, %170 : vector<64x128xf32>
    %172 = arith.addf %129, %171 : vector<64x128xf32>
    %c14 = arith.constant 14 : index
    %c0_101 = arith.constant 0 : index
    %c0_102 = arith.constant 0 : index
    %173 = vector.load %arg5[%c14, %c0_101, %c0_102] : memref<26x128x128xbf16, #tpu.memory_space<vmem>>, vector<1x128x128xbf16>
    %174 = vector.shape_cast %173 : vector<1x128x128xbf16> to vector<128x128xbf16>
    %175 = arith.truncf %172 : vector<64x128xf32> to vector<64x128xbf16>
    %cst_103 = arith.constant dense<0.000000e+00> : vector<64x128xf32>
    %176 = tpu.matmul %175, %174, %cst_103 {dimension_numbers = #tpu.dot_dimension_numbers<[1], [0], [0], [1], [0, 0, 1, 1], [], []>} : vector<64x128xbf16>, vector<128x128xbf16>, vector<64x128xf32> -> vector<64x128xf32>
    %c9_104 = arith.constant 9 : index
    %c0_105 = arith.constant 0 : index
    %c0_106 = arith.constant 0 : index
    %177 = vector.load %arg6[%c9_104, %c0_105, %c0_106] : memref<21x1x128xf32, #tpu.memory_space<vmem>>, vector<1x1x128xf32>
    %178 = vector.shape_cast %177 : vector<1x1x128xf32> to vector<1x128xf32>
    %179 = vector.broadcast %178 : vector<1x128xf32> to vector<64x128xf32>
    %180 = arith.addf %176, %179 : vector<64x128xf32>
    %cst_107 = arith.constant 0.000000e+00 : f32
    %181 = vector.broadcast %cst_107 : f32 to vector<64x128xf32>
    %182 = arith.maximumf %180, %181 : vector<64x128xf32>
    %c15 = arith.constant 15 : index
    %c0_108 = arith.constant 0 : index
    %c0_109 = arith.constant 0 : index
    %183 = vector.load %arg5[%c15, %c0_108, %c0_109] : memref<26x128x128xbf16, #tpu.memory_space<vmem>>, vector<1x128x128xbf16>
    %184 = vector.shape_cast %183 : vector<1x128x128xbf16> to vector<128x128xbf16>
    %185 = arith.truncf %182 : vector<64x128xf32> to vector<64x128xbf16>
    %cst_110 = arith.constant dense<0.000000e+00> : vector<64x128xf32>
    %186 = tpu.matmul %185, %184, %cst_110 {dimension_numbers = #tpu.dot_dimension_numbers<[1], [0], [0], [1], [0, 0, 1, 1], [], []>} : vector<64x128xbf16>, vector<128x128xbf16>, vector<64x128xf32> -> vector<64x128xf32>
    %c10_111 = arith.constant 10 : index
    %c0_112 = arith.constant 0 : index
    %c0_113 = arith.constant 0 : index
    %187 = vector.load %arg6[%c10_111, %c0_112, %c0_113] : memref<21x1x128xf32, #tpu.memory_space<vmem>>, vector<1x1x128xf32>
    %188 = vector.shape_cast %187 : vector<1x1x128xf32> to vector<1x128xf32>
    %189 = vector.broadcast %188 : vector<1x128xf32> to vector<64x128xf32>
    %190 = arith.addf %186, %189 : vector<64x128xf32>
    %cst_114 = arith.constant 0.000000e+00 : f32
    %191 = vector.broadcast %cst_114 : f32 to vector<64x128xf32>
    %192 = arith.maximumf %190, %191 : vector<64x128xf32>
    %c16 = arith.constant 16 : index
    %c0_115 = arith.constant 0 : index
    %c0_116 = arith.constant 0 : index
    %193 = vector.load %arg5[%c16, %c0_115, %c0_116] : memref<26x128x128xbf16, #tpu.memory_space<vmem>>, vector<1x128x128xbf16>
    %194 = vector.shape_cast %193 : vector<1x128x128xbf16> to vector<128x128xbf16>
    %195 = arith.truncf %192 : vector<64x128xf32> to vector<64x128xbf16>
    %cst_117 = arith.constant dense<0.000000e+00> : vector<64x128xf32>
    %196 = tpu.matmul %195, %194, %cst_117 {dimension_numbers = #tpu.dot_dimension_numbers<[1], [0], [0], [1], [0, 0, 1, 1], [], []>} : vector<64x128xbf16>, vector<128x128xbf16>, vector<64x128xf32> -> vector<64x128xf32>
    %c11_118 = arith.constant 11 : index
    %c0_119 = arith.constant 0 : index
    %c0_120 = arith.constant 0 : index
    %197 = vector.load %arg6[%c11_118, %c0_119, %c0_120] : memref<21x1x128xf32, #tpu.memory_space<vmem>>, vector<1x1x128xf32>
    %198 = vector.shape_cast %197 : vector<1x1x128xf32> to vector<1x128xf32>
    %199 = vector.broadcast %198 : vector<1x128xf32> to vector<64x128xf32>
    %200 = arith.addf %196, %199 : vector<64x128xf32>
    %cst_121 = arith.constant 0.707106769 : f32
    %201 = vector.broadcast %cst_121 : f32 to vector<64x128xf32>
    %202 = arith.mulf %201, %129 : vector<64x128xf32>
    %cst_122 = arith.constant 0.000000e+00 : f32
    %203 = vector.broadcast %cst_122 : f32 to vector<64x128xf32>
    %204 = arith.maximumf %200, %203 : vector<64x128xf32>
    %cst_123 = arith.constant 0.707106769 : f32
    %205 = vector.broadcast %cst_123 : f32 to vector<64x128xf32>
    %206 = arith.mulf %205, %204 : vector<64x128xf32>
    %207 = arith.addf %202, %206 : vector<64x128xf32>
    %208 = arith.truncf %207 : vector<64x128xf32> to vector<64x128xbf16>
    %c5_i32_124 = arith.constant 5 : i32
    %209 = tpu.dynamic_rotate %207 by %c5_i32_124 dim 1 : vector<64x128xf32>, i32 -> vector<64x128xf32>
    %210 = arith.truncf %209 : vector<64x128xf32> to vector<64x128xbf16>
    %cst_125 = arith.constant dense<0.000000e+00> : vector<128x128xf32>
    %211 = tpu.matmul %44, %208, %cst_125 {dimension_numbers = #tpu.dot_dimension_numbers<[1], [0], [0], [1], [0, 0, 1, 1], [], []>} : vector<128x64xbf16>, vector<64x128xbf16>, vector<128x128xf32> -> vector<128x128xf32>
    %cst_126 = arith.constant dense<0.000000e+00> : vector<128x128xf32>
    %212 = tpu.matmul %38, %210, %cst_126 {dimension_numbers = #tpu.dot_dimension_numbers<[1], [0], [0], [1], [0, 0, 1, 1], [], []>} : vector<128x64xbf16>, vector<64x128xbf16>, vector<128x128xf32> -> vector<128x128xf32>
    %213 = arith.addf %211, %212 : vector<128x128xf32>
    %214 = arith.addf %213, %164 : vector<128x128xf32>
    %c17 = arith.constant 17 : index
    %c0_127 = arith.constant 0 : index
    %c0_128 = arith.constant 0 : index
    %215 = vector.load %arg5[%c17, %c0_127, %c0_128] : memref<26x128x128xbf16, #tpu.memory_space<vmem>>, vector<1x128x128xbf16>
    %216 = vector.shape_cast %215 : vector<1x128x128xbf16> to vector<128x128xbf16>
    %217 = arith.truncf %214 : vector<128x128xf32> to vector<128x128xbf16>
    %cst_129 = arith.constant dense<0.000000e+00> : vector<128x128xf32>
    %218 = tpu.matmul %217, %216, %cst_129 {dimension_numbers = #tpu.dot_dimension_numbers<[1], [0], [0], [1], [0, 0, 1, 1], [], []>} : vector<128x128xbf16>, vector<128x128xbf16>, vector<128x128xf32> -> vector<128x128xf32>
    %c12_130 = arith.constant 12 : index
    %c0_131 = arith.constant 0 : index
    %c0_132 = arith.constant 0 : index
    %219 = vector.load %arg6[%c12_130, %c0_131, %c0_132] : memref<21x1x128xf32, #tpu.memory_space<vmem>>, vector<1x1x128xf32>
    %220 = vector.shape_cast %219 : vector<1x1x128xf32> to vector<1x128xf32>
    %221 = vector.broadcast %220 : vector<1x128xf32> to vector<128x128xf32>
    %222 = arith.addf %218, %221 : vector<128x128xf32>
    %cst_133 = arith.constant 0.000000e+00 : f32
    %223 = vector.broadcast %cst_133 : f32 to vector<128x128xf32>
    %224 = arith.maximumf %222, %223 : vector<128x128xf32>
    %c18 = arith.constant 18 : index
    %c0_134 = arith.constant 0 : index
    %c0_135 = arith.constant 0 : index
    %225 = vector.load %arg5[%c18, %c0_134, %c0_135] : memref<26x128x128xbf16, #tpu.memory_space<vmem>>, vector<1x128x128xbf16>
    %226 = vector.shape_cast %225 : vector<1x128x128xbf16> to vector<128x128xbf16>
    %227 = arith.truncf %224 : vector<128x128xf32> to vector<128x128xbf16>
    %cst_136 = arith.constant dense<0.000000e+00> : vector<128x128xf32>
    %228 = tpu.matmul %227, %226, %cst_136 {dimension_numbers = #tpu.dot_dimension_numbers<[1], [0], [0], [1], [0, 0, 1, 1], [], []>} : vector<128x128xbf16>, vector<128x128xbf16>, vector<128x128xf32> -> vector<128x128xf32>
    %c13_137 = arith.constant 13 : index
    %c0_138 = arith.constant 0 : index
    %c0_139 = arith.constant 0 : index
    %229 = vector.load %arg6[%c13_137, %c0_138, %c0_139] : memref<21x1x128xf32, #tpu.memory_space<vmem>>, vector<1x1x128xf32>
    %230 = vector.shape_cast %229 : vector<1x1x128xf32> to vector<1x128xf32>
    %231 = vector.broadcast %230 : vector<1x128xf32> to vector<128x128xf32>
    %232 = arith.addf %228, %231 : vector<128x128xf32>
    %cst_140 = arith.constant 0.000000e+00 : f32
    %233 = vector.broadcast %cst_140 : f32 to vector<128x128xf32>
    %234 = arith.maximumf %232, %233 : vector<128x128xf32>
    %c19 = arith.constant 19 : index
    %c0_141 = arith.constant 0 : index
    %c0_142 = arith.constant 0 : index
    %235 = vector.load %arg5[%c19, %c0_141, %c0_142] : memref<26x128x128xbf16, #tpu.memory_space<vmem>>, vector<1x128x128xbf16>
    %236 = vector.shape_cast %235 : vector<1x128x128xbf16> to vector<128x128xbf16>
    %237 = arith.truncf %234 : vector<128x128xf32> to vector<128x128xbf16>
    %cst_143 = arith.constant dense<0.000000e+00> : vector<128x128xf32>
    %238 = tpu.matmul %237, %236, %cst_143 {dimension_numbers = #tpu.dot_dimension_numbers<[1], [0], [0], [1], [0, 0, 1, 1], [], []>} : vector<128x128xbf16>, vector<128x128xbf16>, vector<128x128xf32> -> vector<128x128xf32>
    %c14_144 = arith.constant 14 : index
    %c0_145 = arith.constant 0 : index
    %c0_146 = arith.constant 0 : index
    %239 = vector.load %arg6[%c14_144, %c0_145, %c0_146] : memref<21x1x128xf32, #tpu.memory_space<vmem>>, vector<1x1x128xf32>
    %240 = vector.shape_cast %239 : vector<1x1x128xf32> to vector<1x128xf32>
    %241 = vector.broadcast %240 : vector<1x128xf32> to vector<128x128xf32>
    %242 = arith.addf %238, %241 : vector<128x128xf32>
    %243 = arith.truncf %242 : vector<128x128xf32> to vector<128x128xbf16>
    %244 = arith.extf %243 : vector<128x128xbf16> to vector<128x128xf32>
    %245 = arith.subf %242, %244 : vector<128x128xf32>
    %246 = arith.truncf %245 : vector<128x128xf32> to vector<128x128xbf16>
    %cst_147 = arith.constant dense<0.000000e+00> : vector<64x128xf32>
    %247 = tpu.matmul %51, %243, %cst_147 {dimension_numbers = #tpu.dot_dimension_numbers<[1], [0], [0], [1], [0, 0, 1, 1], [], []>} : vector<64x128xbf16>, vector<128x128xbf16>, vector<64x128xf32> -> vector<64x128xf32>
    %cst_148 = arith.constant dense<0.000000e+00> : vector<64x128xf32>
    %248 = tpu.matmul %51, %246, %cst_148 {dimension_numbers = #tpu.dot_dimension_numbers<[1], [0], [0], [1], [0, 0, 1, 1], [], []>} : vector<64x128xbf16>, vector<128x128xbf16>, vector<64x128xf32> -> vector<64x128xf32>
    %249 = arith.addf %247, %248 : vector<64x128xf32>
    %250 = arith.addf %207, %249 : vector<64x128xf32>
    %c20 = arith.constant 20 : index
    %c0_149 = arith.constant 0 : index
    %c0_150 = arith.constant 0 : index
    %251 = vector.load %arg5[%c20, %c0_149, %c0_150] : memref<26x128x128xbf16, #tpu.memory_space<vmem>>, vector<1x128x128xbf16>
    %252 = vector.shape_cast %251 : vector<1x128x128xbf16> to vector<128x128xbf16>
    %253 = arith.truncf %250 : vector<64x128xf32> to vector<64x128xbf16>
    %cst_151 = arith.constant dense<0.000000e+00> : vector<64x128xf32>
    %254 = tpu.matmul %253, %252, %cst_151 {dimension_numbers = #tpu.dot_dimension_numbers<[1], [0], [0], [1], [0, 0, 1, 1], [], []>} : vector<64x128xbf16>, vector<128x128xbf16>, vector<64x128xf32> -> vector<64x128xf32>
    %c15_152 = arith.constant 15 : index
    %c0_153 = arith.constant 0 : index
    %c0_154 = arith.constant 0 : index
    %255 = vector.load %arg6[%c15_152, %c0_153, %c0_154] : memref<21x1x128xf32, #tpu.memory_space<vmem>>, vector<1x1x128xf32>
    %256 = vector.shape_cast %255 : vector<1x1x128xf32> to vector<1x128xf32>
    %257 = vector.broadcast %256 : vector<1x128xf32> to vector<64x128xf32>
    %258 = arith.addf %254, %257 : vector<64x128xf32>
    %cst_155 = arith.constant 0.000000e+00 : f32
    %259 = vector.broadcast %cst_155 : f32 to vector<64x128xf32>
    %260 = arith.maximumf %258, %259 : vector<64x128xf32>
    %c21 = arith.constant 21 : index
    %c0_156 = arith.constant 0 : index
    %c0_157 = arith.constant 0 : index
    %261 = vector.load %arg5[%c21, %c0_156, %c0_157] : memref<26x128x128xbf16, #tpu.memory_space<vmem>>, vector<1x128x128xbf16>
    %262 = vector.shape_cast %261 : vector<1x128x128xbf16> to vector<128x128xbf16>
    %263 = arith.truncf %260 : vector<64x128xf32> to vector<64x128xbf16>
    %cst_158 = arith.constant dense<0.000000e+00> : vector<64x128xf32>
    %264 = tpu.matmul %263, %262, %cst_158 {dimension_numbers = #tpu.dot_dimension_numbers<[1], [0], [0], [1], [0, 0, 1, 1], [], []>} : vector<64x128xbf16>, vector<128x128xbf16>, vector<64x128xf32> -> vector<64x128xf32>
    %c16_159 = arith.constant 16 : index
    %c0_160 = arith.constant 0 : index
    %c0_161 = arith.constant 0 : index
    %265 = vector.load %arg6[%c16_159, %c0_160, %c0_161] : memref<21x1x128xf32, #tpu.memory_space<vmem>>, vector<1x1x128xf32>
    %266 = vector.shape_cast %265 : vector<1x1x128xf32> to vector<1x128xf32>
    %267 = vector.broadcast %266 : vector<1x128xf32> to vector<64x128xf32>
    %268 = arith.addf %264, %267 : vector<64x128xf32>
    %cst_162 = arith.constant 0.000000e+00 : f32
    %269 = vector.broadcast %cst_162 : f32 to vector<64x128xf32>
    %270 = arith.maximumf %268, %269 : vector<64x128xf32>
    %c22 = arith.constant 22 : index
    %c0_163 = arith.constant 0 : index
    %c0_164 = arith.constant 0 : index
    %271 = vector.load %arg5[%c22, %c0_163, %c0_164] : memref<26x128x128xbf16, #tpu.memory_space<vmem>>, vector<1x128x128xbf16>
    %272 = vector.shape_cast %271 : vector<1x128x128xbf16> to vector<128x128xbf16>
    %273 = arith.truncf %270 : vector<64x128xf32> to vector<64x128xbf16>
    %cst_165 = arith.constant dense<0.000000e+00> : vector<64x128xf32>
    %274 = tpu.matmul %273, %272, %cst_165 {dimension_numbers = #tpu.dot_dimension_numbers<[1], [0], [0], [1], [0, 0, 1, 1], [], []>} : vector<64x128xbf16>, vector<128x128xbf16>, vector<64x128xf32> -> vector<64x128xf32>
    %c17_166 = arith.constant 17 : index
    %c0_167 = arith.constant 0 : index
    %c0_168 = arith.constant 0 : index
    %275 = vector.load %arg6[%c17_166, %c0_167, %c0_168] : memref<21x1x128xf32, #tpu.memory_space<vmem>>, vector<1x1x128xf32>
    %276 = vector.shape_cast %275 : vector<1x1x128xf32> to vector<1x128xf32>
    %277 = vector.broadcast %276 : vector<1x128xf32> to vector<64x128xf32>
    %278 = arith.addf %274, %277 : vector<64x128xf32>
    %cst_169 = arith.constant 0.707106769 : f32
    %279 = vector.broadcast %cst_169 : f32 to vector<64x128xf32>
    %280 = arith.mulf %279, %207 : vector<64x128xf32>
    %cst_170 = arith.constant 0.000000e+00 : f32
    %281 = vector.broadcast %cst_170 : f32 to vector<64x128xf32>
    %282 = arith.maximumf %278, %281 : vector<64x128xf32>
    %cst_171 = arith.constant 0.707106769 : f32
    %283 = vector.broadcast %cst_171 : f32 to vector<64x128xf32>
    %284 = arith.mulf %283, %282 : vector<64x128xf32>
    %285 = arith.addf %280, %284 : vector<64x128xf32>
    %c23 = arith.constant 23 : index
    %c0_172 = arith.constant 0 : index
    %c0_173 = arith.constant 0 : index
    %286 = vector.load %arg5[%c23, %c0_172, %c0_173] : memref<26x128x128xbf16, #tpu.memory_space<vmem>>, vector<1x128x128xbf16>
    %287 = vector.shape_cast %286 : vector<1x128x128xbf16> to vector<128x128xbf16>
    %288 = arith.truncf %285 : vector<64x128xf32> to vector<64x128xbf16>
    %cst_174 = arith.constant dense<0.000000e+00> : vector<64x128xf32>
    %289 = tpu.matmul %288, %287, %cst_174 {dimension_numbers = #tpu.dot_dimension_numbers<[1], [0], [0], [1], [0, 0, 1, 1], [], []>} : vector<64x128xbf16>, vector<128x128xbf16>, vector<64x128xf32> -> vector<64x128xf32>
    %c18_175 = arith.constant 18 : index
    %c0_176 = arith.constant 0 : index
    %c0_177 = arith.constant 0 : index
    %290 = vector.load %arg6[%c18_175, %c0_176, %c0_177] : memref<21x1x128xf32, #tpu.memory_space<vmem>>, vector<1x1x128xf32>
    %291 = vector.shape_cast %290 : vector<1x1x128xf32> to vector<1x128xf32>
    %292 = vector.broadcast %291 : vector<1x128xf32> to vector<64x128xf32>
    %293 = arith.addf %289, %292 : vector<64x128xf32>
    %cst_178 = arith.constant 0.000000e+00 : f32
    %294 = vector.broadcast %cst_178 : f32 to vector<64x128xf32>
    %295 = arith.maximumf %293, %294 : vector<64x128xf32>
    %c24 = arith.constant 24 : index
    %c0_179 = arith.constant 0 : index
    %c0_180 = arith.constant 0 : index
    %296 = vector.load %arg5[%c24, %c0_179, %c0_180] : memref<26x128x128xbf16, #tpu.memory_space<vmem>>, vector<1x128x128xbf16>
    %297 = vector.shape_cast %296 : vector<1x128x128xbf16> to vector<128x128xbf16>
    %298 = arith.truncf %295 : vector<64x128xf32> to vector<64x128xbf16>
    %cst_181 = arith.constant dense<0.000000e+00> : vector<64x128xf32>
    %299 = tpu.matmul %298, %297, %cst_181 {dimension_numbers = #tpu.dot_dimension_numbers<[1], [0], [0], [1], [0, 0, 1, 1], [], []>} : vector<64x128xbf16>, vector<128x128xbf16>, vector<64x128xf32> -> vector<64x128xf32>
    %c19_182 = arith.constant 19 : index
    %c0_183 = arith.constant 0 : index
    %c0_184 = arith.constant 0 : index
    %300 = vector.load %arg6[%c19_182, %c0_183, %c0_184] : memref<21x1x128xf32, #tpu.memory_space<vmem>>, vector<1x1x128xf32>
    %301 = vector.shape_cast %300 : vector<1x1x128xf32> to vector<1x128xf32>
    %302 = vector.broadcast %301 : vector<1x128xf32> to vector<64x128xf32>
    %303 = arith.addf %299, %302 : vector<64x128xf32>
    %cst_185 = arith.constant 0.000000e+00 : f32
    %304 = vector.broadcast %cst_185 : f32 to vector<64x128xf32>
    %305 = arith.maximumf %303, %304 : vector<64x128xf32>
    %c25 = arith.constant 25 : index
    %c0_186 = arith.constant 0 : index
    %c0_187 = arith.constant 0 : index
    %306 = vector.load %arg5[%c25, %c0_186, %c0_187] : memref<26x128x128xbf16, #tpu.memory_space<vmem>>, vector<1x128x128xbf16>
    %307 = vector.shape_cast %306 : vector<1x128x128xbf16> to vector<128x128xbf16>
    %308 = arith.truncf %305 : vector<64x128xf32> to vector<64x128xbf16>
    %cst_188 = arith.constant dense<0.000000e+00> : vector<64x128xf32>
    %309 = tpu.matmul %308, %307, %cst_188 {dimension_numbers = #tpu.dot_dimension_numbers<[1], [0], [0], [1], [0, 0, 1, 1], [], []>} : vector<64x128xbf16>, vector<128x128xbf16>, vector<64x128xf32> -> vector<64x128xf32>
    %c20_189 = arith.constant 20 : index
    %c0_190 = arith.constant 0 : index
    %c0_191 = arith.constant 0 : index
    %310 = vector.load %arg6[%c20_189, %c0_190, %c0_191] : memref<21x1x128xf32, #tpu.memory_space<vmem>>, vector<1x1x128xf32>
    %311 = vector.shape_cast %310 : vector<1x1x128xf32> to vector<1x128xf32>
    %312 = vector.broadcast %311 : vector<1x128xf32> to vector<64x128xf32>
    %313 = arith.addf %309, %312 : vector<64x128xf32>
    %314 = arith.negf %313 : vector<64x128xf32>
    %315 = math.exp %314 : vector<64x128xf32>
    %cst_192 = arith.constant 1.000000e+00 : f32
    %316 = vector.broadcast %cst_192 : f32 to vector<64x128xf32>
    %317 = arith.addf %316, %315 : vector<64x128xf32>
    %318 = arith.divf %316, %317 : vector<64x128xf32>
    %cst_193 = arith.constant 0.999997973 : f32
    %319 = vector.broadcast %cst_193 : f32 to vector<64x128xf32>
    %320 = arith.mulf %319, %318 : vector<64x128xf32>
    %cst_194 = arith.constant 9.99999997E-7 : f32
    %321 = vector.broadcast %cst_194 : f32 to vector<64x128xf32>
    %322 = arith.addf %321, %320 : vector<64x128xf32>
    %323 = tpu.iota {dimensions = array<i32: 1>} : vector<64x128xi32>
    %c0_i32 = arith.constant 0 : i32
    %324 = vector.broadcast %c0_i32 : i32 to vector<64x128xi32>
    %325 = arith.cmpi eq, %323, %324 : vector<64x128xi32>
    %c0_195 = arith.constant 0 : index
    %c0_196 = arith.constant 0 : index
    %326 = memref.load %arg7[%c0_195, %c0_196] : memref<1x1xf32, #tpu.memory_space<smem>>
    %327 = vector.broadcast %326 : f32 to vector<64x128xf32>
    %328 = arith.mulf %313, %327 : vector<64x128xf32>
    %329 = arith.select %325, %322, %328 : vector<64x128xi1>, vector<64x128xf32>
    %c0_197 = arith.constant 0 : index
    %c0_198 = arith.constant 0 : index
    %330 = vector.load %arg8[%c0_197, %c0_198] : memref<64x128xf32, #tpu.memory_space<vmem>>, vector<64x128xf32>
    tpu.vector_store %arg8[%c0_197, %c0_198], %329 {strides = array<i32>} : memref<64x128xf32, #tpu.memory_space<vmem>>, vector<64x128xf32>,
    return
  }
}

</mosaic_0001>

<llo_original>
// kernel: _pallas_forward.1
$region0: #{_pallas_forward.1}
  #allocation0 [shape = 'u32[]', space=smem, size = 0x4, offset = 0x4, fixed_abs, tag = 'smem constant byte address 0x4 - core index']
  #allocation1 [shape = 'u32[144,128]{1,0:T(1,128)}', space=vmem, size = 0x12000, scoped, tag = 'internal scratch']
  #allocation2 [shape = 'f32[1,1]{1,0:T(1,128)S(6)}', space=smem, size = 0x200, scoped, tag = 'scoped memory for _pallas_forward.1']
  %s0 = inlined_call_operand.vmem [shape: f32[64,128], index: 0, kind: input, shape index: {}]
  %s1 = inlined_call_operand.vmem [shape: f32[128,128], index: 1, kind: input, shape index: {}]
  %s2 = inlined_call_operand.vmem [shape: s32[128,1], index: 2, kind: input, shape index: {}]
  %s3 = inlined_call_operand.vmem [shape: s32[128,1], index: 3, kind: input, shape index: {}]
  %s4 = inlined_call_operand.vmem [shape: s32[1,128], index: 4, kind: input, shape index: {}]
  %s5 = inlined_call_operand.hbm [shape: bf16[26,128,128], index: 5, kind: input, shape index: {}]
  %s6 = inlined_call_operand.vmem [shape: f32[21,1,128], index: 6, kind: input, shape index: {}]
  %s7 = inlined_call_operand.<no memory space> [shape: f32[1,1], index: 7, kind: input, shape index: {}]
  %s8 = inlined_call_operand.hbm [shape: f32[64,128], index: 8, kind: output, shape index: {}]
  %s9 = sld [smem:[#allocation0]]
  $region46: #{_pallas_forward.1} parent=0
    _
  %s11 = ssub.s32 1, %s9
  %s12 = scalar_select 0, %s11, %s9
  %13 = sst [smem:[#allocation2]] %s7
  $region1: #{_pallas_forward.1} parent=0
    #allocation3 [shape = 'u8[851968]{0}', space=vmem, size = 0xd0000, scoped, tag = 'input window, operand 5, single buffered']
    #allocation4 [shape = 's32[1]{0}', space=sflag, size = 0x4, scoped, tag = 'scoped memory for _pallas_forward.1']
    #allocation5 [shape = 's32[1]{0}', space=sflag, size = 0x4, scoped, tag = 'scoped memory for _pallas_forward.1']
    #allocation6 [shape = 'u8[32768]{0}', space=vmem, size = 0x8000, scoped, tag = 'output window, operand 0, single buffered']
    %14 = vsyncpa [#allocation4], 0
    %15 = vsyncpa [#allocation5], 0
    // Predicated region
    $region2: #{_pallas_forward.1} parent=1 // pred_check
      _
    $region3: #{_pallas_forward.1} parent=1 // pred_check_branch
      %17 = sbr.rel (0) target = $region5
    $region4: #{_pallas_forward.1} parent=1 // pred_region
      _
    $region5: #{_pallas_forward.1} parent=1 // pred_fallthru
      _
    // Predicated region
    $region6: #{_pallas_forward.1} parent=1 // pred_check
      _
    $region7: #{_pallas_forward.1} parent=1 // pred_check_branch
      %19 = sbr.rel (0) target = $region9
    $region8: #{_pallas_forward.1} parent=1 // pred_region
      _
    $region9: #{_pallas_forward.1} parent=1 // pred_fallthru
      _
    // Predicated region
    $region10: #{_pallas_forward.1} parent=1 // pred_check
      _
    $region11: #{_pallas_forward.1} parent=1 // pred_check_branch
      %21 = sbr.rel (0) target = $region13
    $region12: #{_pallas_forward.1} parent=1 // pred_region
      _
    $region13: #{_pallas_forward.1} parent=1 // pred_fallthru
      _
    // Predicated region
    $region14: #{_pallas_forward.1} parent=1 // pred_check
      _
    $region15: #{_pallas_forward.1} parent=1 // pred_check_branch
      %23 = sbr.rel (0) target = $region17
    $region16: #{_pallas_forward.1} parent=1 // pred_region
      _
    $region17: #{_pallas_forward.1} parent=1 // pred_fallthru
      _
    // Predicated region
    $region18: #{_pallas_forward.1} parent=1 // pred_check
      _
    $region19: #{_pallas_forward.1} parent=1 // pred_check_branch
      %25 = sbr.rel (0) target = $region21
    $region20: #{_pallas_forward.1} parent=1 // pred_region
      _
    $region21: #{_pallas_forward.1} parent=1 // pred_fallthru
      _
    // Predicated region
    $region22: #{_pallas_forward.1} parent=1 // pred_check
      _
    $region23: #{_pallas_forward.1} parent=1 // pred_check_branch
      %27 = sbr.rel (0) target = $region25
    $region24: #{_pallas_forward.1} parent=1 // pred_region
      %s29 = ssub.s32 26624, 26624
      %30 = vsyncadd [#allocation4], %s29
      %s31 = sshll.u32 [#allocation3], 4
      %s32 = int_to_ptr.vmem [resolvable:$true] %s31
      %37 = dma.hbm_to_vmem [thread:$0]  %s5, 26624, %s32, [#allocation4], 64, 64, 4
    $region25: #{_pallas_forward.1} parent=1 // pred_fallthru
      _
    // Predicated region
    $region26: #{_pallas_forward.1} parent=1 // pred_check
      _
    $region27: #{_pallas_forward.1} parent=1 // pred_check_branch
      %39 = sbr.rel (0) target = $region29
    $region28: #{_pallas_forward.1} parent=1 // pred_region
      _
    $region29: #{_pallas_forward.1} parent=1 // pred_fallthru
      _
    // Predicated region
    $region30: #{_pallas_forward.1} parent=1 // pred_check
      _
    $region31: #{_pallas_forward.1} parent=1 // pred_check_branch
      %41 = sbr.rel (0) target = $region33
    $region32: #{_pallas_forward.1} parent=1 // pred_region
      _
    $region33: #{_pallas_forward.1} parent=1 // pred_fallthru
      _
    // Predicated region
    $region34: #{_pallas_forward.1} parent=1 // pred_check
      _
    $region35: #{_pallas_forward.1} parent=1 // pred_check_branch
      %43 = sbr.rel (0) target = $region37
    $region36: #{_pallas_forward.1} parent=1 // pred_region
      %44 = dma.done [#allocation4], 26624
    $region37: #{_pallas_forward.1} parent=1 // pred_fallthru
      _
    %v46 = vld [vmem:[%s0] sm:$0xff]
    %v47 = vld [vmem:[%s0 + $0x8] sm:$0xff]
    %v48 = vld [vmem:[%s0 + $0x10] sm:$0xff]
    %v49 = vld [vmem:[%s0 + $0x18] sm:$0xff]
    %v50 = vld [vmem:[%s0 + $0x20] sm:$0xff]
    %v51 = vld [vmem:[%s0 + $0x28] sm:$0xff]
    %v52 = vld [vmem:[%s0 + $0x30] sm:$0xff]
    %v53 = vld [vmem:[%s0 + $0x38] sm:$0xff]
    %v54 = vld [vmem:[#allocation3] sm:$0xf]
    %v55 = vld [vmem:[#allocation3 + $0x4] sm:$0xf]
    %v56 = vld [vmem:[#allocation3 + $0x8] sm:$0xf]
    %v57 = vld [vmem:[#allocation3 + $0xc] sm:$0xf]
    %v58 = vld [vmem:[#allocation3 + $0x10] sm:$0xf]
    %v59 = vld [vmem:[#allocation3 + $0x14] sm:$0xf]
    %v60 = vld [vmem:[#allocation3 + $0x18] sm:$0xf]
    %v61 = vld [vmem:[#allocation3 + $0x1c] sm:$0xf]
    %v62 = vld [vmem:[#allocation3 + $0x20] sm:$0xf]
    %v63 = vld [vmem:[#allocation3 + $0x24] sm:$0xf]
    %v64 = vld [vmem:[#allocation3 + $0x28] sm:$0xf]
    %v65 = vld [vmem:[#allocation3 + $0x2c] sm:$0xf]
    %v66 = vld [vmem:[#allocation3 + $0x30] sm:$0xf]
    %v67 = vld [vmem:[#allocation3 + $0x34] sm:$0xf]
    %v68 = vld [vmem:[#allocation3 + $0x38] sm:$0xf]
    %v69 = vld [vmem:[#allocation3 + $0x3c] sm:$0xf]
    %v70 = vpack.c.bf16 %v47, %v46
    %v71 = vpack.c.bf16 %v49, %v48
    %v72 = vpack.c.bf16 %v51, %v50
    %v73 = vpack.c.bf16 %v53, %v52
    %v90 = vunpack.c.l.b16 %v54
    %v91 = vunpack.c.l.b16 %v55
    %v92 = vunpack.c.l.b16 %v56
    %v93 = vunpack.c.l.b16 %v57
    %v94 = vunpack.c.l.b16 %v58
    %v95 = vunpack.c.l.b16 %v59
    %v96 = vunpack.c.l.b16 %v60
    %v97 = vunpack.c.l.b16 %v61
    %v98 = vunpack.c.l.b16 %v62
    %v99 = vunpack.c.l.b16 %v63
    %v100 = vunpack.c.l.b16 %v64
    %v101 = vunpack.c.l.b16 %v65
    %v102 = vunpack.c.l.b16 %v66
    %v103 = vunpack.c.l.b16 %v67
    %v104 = vunpack.c.l.b16 %v68
    %v105 = vunpack.c.l.b16 %v69
    %v106 = vpack.c.b16 %v91, %v90
    %v107 = vpack.c.b16 %v93, %v92
    %v108 = vpack.c.b16 %v95, %v94
    %v109 = vpack.c.b16 %v97, %v96
    %v110 = vpack.c.b16 %v99, %v98
    %v111 = vpack.c.b16 %v101, %v100
    %v112 = vpack.c.b16 %v103, %v102
    %v113 = vpack.c.b16 %v105, %v104
    %122 = vmatprep.subr.bf16.mxu0 0
    %123 = vmatpush1.bf16.msra.mxu0 %v106
    %124 = vmatprep.subr.bf16.mxu0 0
    %125 = vmatpush1.bf16.msra.mxu0 %v107
    %126 = vmatprep.subr.bf16.mxu0 0
    %127 = vmatpush1.bf16.msra.mxu0 %v108
    %128 = vmatprep.subr.bf16.mxu0 0
    %129 = vmatpush1.bf16.msra.mxu0 %v109
    %130 = vmatprep.subr.bf16.mxu0 0
    %131 = vmatpush1.bf16.msra.mxu0 %v110
    %132 = vmatprep.subr.bf16.mxu0 0
    %133 = vmatpush1.bf16.msra.mxu0 %v111
    %134 = vmatprep.subr.bf16.mxu0 0
    %135 = vmatpush1.bf16.msra.mxu0 %v112
    %136 = vmatprep.subr.bf16.mxu0 0
    %137 = vmatpush1.bf16.msra.mxu0 %v113
    %138 = vmatprep.subr.bf16.mxu0 0
    %139 = vmatpush1.bf16.msra.mxu0 0
    %140 = vmatprep.subr.bf16.mxu0 0
    %141 = vmatpush1.bf16.msra.mxu0 0
    %142 = vmatprep.subr.bf16.mxu0 0
    %143 = vmatpush1.bf16.msra.mxu0 0
    %144 = vmatprep.subr.bf16.mxu0 0
    %145 = vmatpush1.bf16.msra.mxu0 0
    %146 = vmatprep.subr.bf16.mxu0 0
    %147 = vmatpush1.bf16.msra.mxu0 0
    %148 = vmatprep.subr.bf16.mxu0 0
    %149 = vmatpush1.bf16.msra.mxu0 0
    %150 = vmatprep.subr.bf16.mxu0 0
    %151 = vmatpush1.bf16.msra.mxu0 0
    %152 = vmatprep.subr.bf16.mxu0 0
    %153 = vmatpush1.bf16.msra.mxu0 0
    %154 = vmatprep.mubr.bf16.mxu0 0
    %155 = vmatmul.mubr.bf16.gmra.mrb[0].mxu0 %v70
    %v156 = vpop.f32.mrb[0].mxu0
    %v157 = vadd.f32 0.0, %v156
    %v158 = vpop.f32.mrb[0].mxu0
    %v159 = vpop.f32.mrb[0].mxu0
    %v160 = vadd.f32 0.0, %v159
    %v161 = vpop.f32.mrb[0].mxu0
    %162 = vmatprep.mubr.bf16.mxu0 0
    %163 = vmatmul.mubr.bf16.gmra.mrb[0].mxu0 %v71
    %v164 = vpop.f32.mrb[0].mxu0
    %v165 = vadd.f32 0.0, %v164
    %v166 = vpop.f32.mrb[0].mxu0
    %v167 = vpop.f32.mrb[0].mxu0
    %v168 = vadd.f32 0.0, %v167
    %v169 = vpop.f32.mrb[0].mxu0
    %170 = vmatprep.mubr.bf16.mxu0 0
    %171 = vmatmul.mubr.bf16.gmra.mrb[0].mxu0 %v72
    %v172 = vpop.f32.mrb[0].mxu0
    %v173 = vadd.f32 0.0, %v172
    %v174 = vpop.f32.mrb[0].mxu0
    %v175 = vpop.f32.mrb[0].mxu0
    %v176 = vadd.f32 0.0, %v175
    %v177 = vpop.f32.mrb[0].mxu0
    %178 = vmatprep.mubr.bf16.mxu0 0
    %179 = vmatmul.mubr.bf16.gmra.mrb[0].mxu0 %v73
    %v180 = vpop.f32.mrb[0].mxu0
    %v181 = vadd.f32 0.0, %v180
    %v182 = vpop.f32.mrb[0].mxu0
    %v183 = vpop.f32.mrb[0].mxu0
    %v184 = vadd.f32 0.0, %v183
    %v185 = vpop.f32.mrb[0].mxu0
    %186 = vdwg.mxu0
    %v187 = vmax.f32 %v157, 0.0
    %v188 = vmax.f32 %v160, 0.0
    %v189 = vmax.f32 %v165, 0.0
    %v190 = vmax.f32 %v168, 0.0
    %v191 = vmax.f32 %v173, 0.0
    %v192 = vmax.f32 %v176, 0.0
    %v193 = vmax.f32 %v181, 0.0
    %v194 = vmax.f32 %v184, 0.0
    %s195 = scalar_lea.vmem [#allocation3], 64
    %v196 = vld [vmem:[%s195] sm:$0xf]
    %v197 = vld [vmem:[%s195 + $0x4] sm:$0xf]
    %v198 = vld [vmem:[%s195 + $0x8] sm:$0xf]
    %v199 = vld [vmem:[%s195 + $0xc] sm:$0xf]
    %v200 = vld [vmem:[%s195 + $0x10] sm:$0xf]
    %v201 = vld [vmem:[%s195 + $0x14] sm:$0xf]
    %v202 = vld [vmem:[%s195 + $0x18] sm:$0xf]
    %v203 = vld [vmem:[%s195 + $0x1c] sm:$0xf]
    %v204 = vld [vmem:[%s195 + $0x20] sm:$0xf]
    %v205 = vld [vmem:[%s195 + $0x24] sm:$0xf]
    %v206 = vld [vmem:[%s195 + $0x28] sm:$0xf]
    %v207 = vld [vmem:[%s195 + $0x2c] sm:$0xf]
    %v208 = vld [vmem:[%s195 + $0x30] sm:$0xf]
    %v209 = vld [vmem:[%s195 + $0x34] sm:$0xf]
    %v210 = vld [vmem:[%s195 + $0x38] sm:$0xf]
    %v211 = vld [vmem:[%s195 + $0x3c] sm:$0xf]
    %v212 = vpack.c.bf16 %v188, %v187
    %v213 = vpack.c.bf16 %v190, %v189
    %v214 = vpack.c.bf16 %v192, %v191
    %v215 = vpack.c.bf16 %v194, %v193
    %v232 = vunpack.c.l.b16 %v196
    %v233 = vunpack.c.l.b16 %v197
    %v234 = vunpack.c.l.b16 %v198
    %v235 = vunpack.c.l.b16 %v199
    %v236 = vunpack.c.l.b16 %v200
    %v237 = vunpack.c.l.b16 %v201
    %v238 = vunpack.c.l.b16 %v202
    %v239 = vunpack.c.l.b16 %v203
    %v240 = vunpack.c.l.b16 %v204
    %v241 = vunpack.c.l.b16 %v205
    %v242 = vunpack.c.l.b16 %v206
    %v243 = vunpack.c.l.b16 %v207
    %v244 = vunpack.c.l.b16 %v208
    %v245 = vunpack.c.l.b16 %v209
    %v246 = vunpack.c.l.b16 %v210
    %v247 = vunpack.c.l.b16 %v211
    %v248 = vpack.c.b16 %v233, %v232
    %v249 = vpack.c.b16 %v235, %v234
    %v250 = vpack.c.b16 %v237, %v236
    %v251 = vpack.c.b16 %v239, %v238
    %v252 = vpack.c.b16 %v241, %v240
    %v253 = vpack.c.b16 %v243, %v242
    %v254 = vpack.c.b16 %v245, %v244
    %v255 = vpack.c.b16 %v247, %v246
    %264 = vmatprep.subr.bf16.mxu0 0
    %265 = vmatpush1.bf16.msra.mxu0 %v248
    %266 = vmatprep.subr.bf16.mxu0 0
    %267 = vmatpush1.bf16.msra.mxu0 %v249
    %268 = vmatprep.subr.bf16.mxu0 0
    %269 = vmatpush1.bf16.msra.mxu0 %v250
    %270 = vmatprep.subr.bf16.mxu0 0
    %271 = vmatpush1.bf16.msra.mxu0 %v251
    %272 = vmatprep.subr.bf16.mxu0 0
    %273 = vmatpush1.bf16.msra.mxu0 %v252
    %274 = vmatprep.subr.bf16.mxu0 0
    %275 = vmatpush1.bf16.msra.mxu0 %v253
    %276 = vmatprep.subr.bf16.mxu0 0
    %277 = vmatpush1.bf16.msra.mxu0 %v254
    %278 = vmatprep.subr.bf16.mxu0 0
    %279 = vmatpush1.bf16.msra.mxu0 %v255
    %280 = vmatprep.subr.bf16.mxu0 0
    %281 = vmatpush1.bf16.msra.mxu0 0
    %282 = vmatprep.subr.bf16.mxu0 0
    %283 = vmatpush1.bf16.msra.mxu0 0
    %284 = vmatprep.subr.bf16.mxu0 0
    %285 = vmatpush1.bf16.msra.mxu0 0
    %286 = vmatprep.subr.bf16.mxu0 0
    %287 = vmatpush1.bf16.msra.mxu0 0
    %288 = vmatprep.subr.bf16.mxu0 0
    %289 = vmatpush1.bf16.msra.mxu0 0
    %290 = vmatprep.subr.bf16.mxu0 0
    %291 = vmatpush1.bf16.msra.mxu0 0
    %292 = vmatprep.subr.bf16.mxu0 0
    %293 = vmatpush1.bf16.msra.mxu0 0
    %294 = vmatprep.subr.bf16.mxu0 0
    %295 = vmatpush1.bf16.msra.mxu0 0
    %296 = vmatprep.mubr.bf16.mxu0 0
    %297 = vmatmul.mubr.bf16.gmra.mrb[0].mxu0 %v212
    %v298 = vpop.f32.mrb[0].mxu0
    %v299 = vadd.f32 0.0, %v298
    %v300 = vpop.f32.mrb[0].mxu0
    %v301 = vpop.f32.mrb[0].mxu0
    %v302 = vadd.f32 0.0, %v301
    %v303 = vpop.f32.mrb[0].mxu0
    %304 = vmatprep.mubr.bf16.mxu0 0
    %305 = vmatmul.mubr.bf16.gmra.mrb[0].mxu0 %v213
    %v306 = vpop.f32.mrb[0].mxu0
    %v307 = vadd.f32 0.0, %v306
    %v308 = vpop.f32.mrb[0].mxu0
    %v309 = vpop.f32.mrb[0].mxu0
    %v310 = vadd.f32 0.0, %v309
    %v311 = vpop.f32.mrb[0].mxu0
    %312 = vmatprep.mubr.bf16.mxu0 0
    %313 = vmatmul.mubr.bf16.gmra.mrb[0].mxu0 %v214
    %v314 = vpop.f32.mrb[0].mxu0
    %v315 = vadd.f32 0.0, %v314
    %v316 = vpop.f32.mrb[0].mxu0
    %v317 = vpop.f32.mrb[0].mxu0
    %v318 = vadd.f32 0.0, %v317
    %v319 = vpop.f32.mrb[0].mxu0
    %320 = vmatprep.mubr.bf16.mxu0 0
    %321 = vmatmul.mubr.bf16.gmra.mrb[0].mxu0 %v215
    %v322 = vpop.f32.mrb[0].mxu0
    %v323 = vadd.f32 0.0, %v322
    %v324 = vpop.f32.mrb[0].mxu0
    %v325 = vpop.f32.mrb[0].mxu0
    %v326 = vadd.f32 0.0, %v325
    %v327 = vpop.f32.mrb[0].mxu0
    %328 = vdwg.mxu0
    %v329 = vmax.f32 %v299, 0.0
    %v330 = vmax.f32 %v302, 0.0
    %v331 = vmax.f32 %v307, 0.0
    %v332 = vmax.f32 %v310, 0.0
    %v333 = vmax.f32 %v315, 0.0
    %v334 = vmax.f32 %v318, 0.0
    %v335 = vmax.f32 %v323, 0.0
    %v336 = vmax.f32 %v326, 0.0
    %s337 = scalar_lea.vmem [#allocation3], 128
    %v338 = vld [vmem:[%s337] sm:$0xf]
    %v339 = vld [vmem:[%s337 + $0x4] sm:$0xf]
    %v340 = vld [vmem:[%s337 + $0x8] sm:$0xf]
    %v341 = vld [vmem:[%s337 + $0xc] sm:$0xf]
    %v342 = vld [vmem:[%s337 + $0x10] sm:$0xf]
    %v343 = vld [vmem:[%s337 + $0x14] sm:$0xf]
    %v344 = vld [vmem:[%s337 + $0x18] sm:$0xf]
    %v345 = vld [vmem:[%s337 + $0x1c] sm:$0xf]
    %v346 = vld [vmem:[%s337 + $0x20] sm:$0xf]
    %v347 = vld [vmem:[%s337 + $0x24] sm:$0xf]
    %v348 = vld [vmem:[%s337 + $0x28] sm:$0xf]
    %v349 = vld [vmem:[%s337 + $0x2c] sm:$0xf]
    %v350 = vld [vmem:[%s337 + $0x30] sm:$0xf]
    %v351 = vld [vmem:[%s337 + $0x34] sm:$0xf]
    %v352 = vld [vmem:[%s337 + $0x38] sm:$0xf]
    %v353 = vld [vmem:[%s337 + $0x3c] sm:$0xf]
    %v354 = vpack.c.bf16 %v330, %v329
    %v355 = vpack.c.bf16 %v332, %v331
    %v356 = vpack.c.bf16 %v334, %v333
    %v357 = vpack.c.bf16 %v336, %v335
    %v374 = vunpack.c.l.b16 %v338
    %v375 = vunpack.c.l.b16 %v339
    %v376 = vunpack.c.l.b16 %v340
    %v377 = vunpack.c.l.b16 %v341
    %v378 = vunpack.c.l.b16 %v342
    %v379 = vunpack.c.l.b16 %v343
    %v380 = vunpack.c.l.b16 %v344
    %v381 = vunpack.c.l.b16 %v345
    %v382 = vunpack.c.l.b16 %v346
    %v383 = vunpack.c.l.b16 %v347
    %v384 = vunpack.c.l.b16 %v348
    %v385 = vunpack.c.l.b16 %v349
    %v386 = vunpack.c.l.b16 %v350
    %v387 = vunpack.c.l.b16 %v351
    %v388 = vunpack.c.l.b16 %v352
    %v389 = vunpack.c.l.b16 %v353
    %v390 = vpack.c.b16 %v375, %v374
    %v391 = vpack.c.b16 %v377, %v376
    %v392 = vpack.c.b16 %v379, %v378
    %v393 = vpack.c.b16 %v381, %v380
    %v394 = vpack.c.b16 %v383, %v382
    %v395 = vpack.c.b16 %v385, %v384
    %v396 = vpack.c.b16 %v387, %v386
    %v397 = vpack.c.b16 %v389, %v388
    %406 = vmatprep.subr.bf16.mxu0 0
    %407 = vmatpush1.bf16.msra.mxu0 %v390
    %408 = vmatprep.subr.bf16.mxu0 0
    %409 = vmatpush1.bf16.msra.mxu0 %v391
    %410 = vmatprep.subr.bf16.mxu0 0
    %411 = vmatpush1.bf16.msra.mxu0 %v392
    %412 = vmatprep.subr.bf16.mxu0 0
    %413 = vmatpush1.bf16.msra.mxu0 %v393
    %414 = vmatprep.subr.bf16.mxu0 0
    %415 = vmatpush1.bf16.msra.mxu0 %v394
    %416 = vmatprep.subr.bf16.mxu0 0
    %417 = vmatpush1.bf16.msra.mxu0 %v395
    %418 = vmatprep.subr.bf16.mxu0 0
    %419 = vmatpush1.bf16.msra.mxu0 %v396
    %420 = vmatprep.subr.bf16.mxu0 0
    %421 = vmatpush1.bf16.msra.mxu0 %v397
    %422 = vmatprep.subr.bf16.mxu0 0
    %423 = vmatpush1.bf16.msra.mxu0 0
    %424 = vmatprep.subr.bf16.mxu0 0
    %425 = vmatpush1.bf16.msra.mxu0 0
    %426 = vmatprep.subr.bf16.mxu0 0
    %427 = vmatpush1.bf16.msra.mxu0 0
    %428 = vmatprep.subr.bf16.mxu0 0
    %429 = vmatpush1.bf16.msra.mxu0 0
    %430 = vmatprep.subr.bf16.mxu0 0
    %431 = vmatpush1.bf16.msra.mxu0 0
    %432 = vmatprep.subr.bf16.mxu0 0
    %433 = vmatpush1.bf16.msra.mxu0 0
    %434 = vmatprep.subr.bf16.mxu0 0
    %435 = vmatpush1.bf16.msra.mxu0 0
    %436 = vmatprep.subr.bf16.mxu0 0
    %437 = vmatpush1.bf16.msra.mxu0 0
    %438 = vmatprep.mubr.bf16.mxu0 0
    %439 = vmatmul.mubr.bf16.gmra.mrb[0].mxu0 %v354
    %v440 = vpop.f32.mrb[0].mxu0
    %v441 = vadd.f32 0.0, %v440
    %v442 = vpop.f32.mrb[0].mxu0
    %v443 = vpop.f32.mrb[0].mxu0
    %v444 = vadd.f32 0.0, %v443
    %v445 = vpop.f32.mrb[0].mxu0
    %446 = vmatprep.mubr.bf16.mxu0 0
    %447 = vmatmul.mubr.bf16.gmra.mrb[0].mxu0 %v355
    %v448 = vpop.f32.mrb[0].mxu0
    %v449 = vadd.f32 0.0, %v448
    %v450 = vpop.f32.mrb[0].mxu0
    %v451 = vpop.f32.mrb[0].mxu0
    %v452 = vadd.f32 0.0, %v451
    %v453 = vpop.f32.mrb[0].mxu0
    %454 = vmatprep.mubr.bf16.mxu0 0
    %455 = vmatmul.mubr.bf16.gmra.mrb[0].mxu0 %v356
    %v456 = vpop.f32.mrb[0].mxu0
    %v457 = vadd.f32 0.0, %v456
    %v458 = vpop.f32.mrb[0].mxu0
    %v459 = vpop.f32.mrb[0].mxu0
    %v460 = vadd.f32 0.0, %v459
    %v461 = vpop.f32.mrb[0].mxu0
    %462 = vmatprep.mubr.bf16.mxu0 0
    %463 = vmatmul.mubr.bf16.gmra.mrb[0].mxu0 %v357
    %v464 = vpop.f32.mrb[0].mxu0
    %v465 = vadd.f32 0.0, %v464
    %v466 = vpop.f32.mrb[0].mxu0
    %v467 = vpop.f32.mrb[0].mxu0
    %v468 = vadd.f32 0.0, %v467
    %v469 = vpop.f32.mrb[0].mxu0
    %470 = vdwg.mxu0
    %v471 = vmax.f32 %v441, 0.0
    %v472 = vmax.f32 %v444, 0.0
    %v473 = vmax.f32 %v449, 0.0
    %v474 = vmax.f32 %v452, 0.0
    %v475 = vmax.f32 %v457, 0.0
    %v476 = vmax.f32 %v460, 0.0
    %v477 = vmax.f32 %v465, 0.0
    %v478 = vmax.f32 %v468, 0.0
    %v479 = vld [vmem:[%s1] sm:$0xff]
    %v480 = vld [vmem:[%s1 + $0x8] sm:$0xff]
    %v481 = vld [vmem:[%s1 + $0x10] sm:$0xff]
    %v482 = vld [vmem:[%s1 + $0x18] sm:$0xff]
    %v483 = vld [vmem:[%s1 + $0x20] sm:$0xff]
    %v484 = vld [vmem:[%s1 + $0x28] sm:$0xff]
    %v485 = vld [vmem:[%s1 + $0x30] sm:$0xff]
    %v486 = vld [vmem:[%s1 + $0x38] sm:$0xff]
    %v487 = vld [vmem:[%s1 + $0x40] sm:$0xff]
    %v488 = vld [vmem:[%s1 + $0x48] sm:$0xff]
    %v489 = vld [vmem:[%s1 + $0x50] sm:$0xff]
    %v490 = vld [vmem:[%s1 + $0x58] sm:$0xff]
    %v491 = vld [vmem:[%s1 + $0x60] sm:$0xff]
    %v492 = vld [vmem:[%s1 + $0x68] sm:$0xff]
    %v493 = vld [vmem:[%s1 + $0x70] sm:$0xff]
    %v494 = vld [vmem:[%s1 + $0x78] sm:$0xff]
    %s495 = scalar_lea.vmem [#allocation3], 192
    %v496 = vld [vmem:[%s495] sm:$0xf]
    %v497 = vld [vmem:[%s495 + $0x4] sm:$0xf]
    %v498 = vld [vmem:[%s495 + $0x8] sm:$0xf]
    %v499 = vld [vmem:[%s495 + $0xc] sm:$0xf]
    %v500 = vld [vmem:[%s495 + $0x10] sm:$0xf]
    %v501 = vld [vmem:[%s495 + $0x14] sm:$0xf]
    %v502 = vld [vmem:[%s495 + $0x18] sm:$0xf]
    %v503 = vld [vmem:[%s495 + $0x1c] sm:$0xf]
    %v504 = vld [vmem:[%s495 + $0x20] sm:$0xf]
    %v505 = vld [vmem:[%s495 + $0x24] sm:$0xf]
    %v506 = vld [vmem:[%s495 + $0x28] sm:$0xf]
    %v507 = vld [vmem:[%s495 + $0x2c] sm:$0xf]
    %v508 = vld [vmem:[%s495 + $0x30] sm:$0xf]
    %v509 = vld [vmem:[%s495 + $0x34] sm:$0xf]
    %v510 = vld [vmem:[%s495 + $0x38] sm:$0xf]
    %v511 = vld [vmem:[%s495 + $0x3c] sm:$0xf]
    %v512 = vpack.c.bf16 %v480, %v479
    %v513 = vpack.c.bf16 %v482, %v481
    %v514 = vpack.c.bf16 %v484, %v483
    %v515 = vpack.c.bf16 %v486, %v485
    %v516 = vpack.c.bf16 %v488, %v487
    %v517 = vpack.c.bf16 %v490, %v489
    %v518 = vpack.c.bf16 %v492, %v491
    %v519 = vpack.c.bf16 %v494, %v493
    %v536 = vunpack.c.l.b16 %v496
    %v537 = vunpack.c.l.b16 %v497
    %v538 = vunpack.c.l.b16 %v498
    %v539 = vunpack.c.l.b16 %v499
    %v540 = vunpack.c.l.b16 %v500
    %v541 = vunpack.c.l.b16 %v501
    %v542 = vunpack.c.l.b16 %v502
    %v543 = vunpack.c.l.b16 %v503
    %v544 = vunpack.c.l.b16 %v504
    %v545 = vunpack.c.l.b16 %v505
    %v546 = vunpack.c.l.b16 %v506
    %v547 = vunpack.c.l.b16 %v507
    %v548 = vunpack.c.l.b16 %v508
    %v549 = vunpack.c.l.b16 %v509
    %v550 = vunpack.c.l.b16 %v510
    %v551 = vunpack.c.l.b16 %v511
    %v552 = vpack.c.b16 %v537, %v536
    %v553 = vpack.c.b16 %v539, %v538
    %v554 = vpack.c.b16 %v541, %v540
    %v555 = vpack.c.b16 %v543, %v542
    %v556 = vpack.c.b16 %v545, %v544
    %v557 = vpack.c.b16 %v547, %v546
    %v558 = vpack.c.b16 %v549, %v548
    %v559 = vpack.c.b16 %v551, %v550
    %568 = vmatprep.subr.bf16.mxu0 0
    %569 = vmatpush1.bf16.msra.mxu0 %v552
    %570 = vmatprep.subr.bf16.mxu0 0
    %571 = vmatpush1.bf16.msra.mxu0 %v553
    %572 = vmatprep.subr.bf16.mxu0 0
    %573 = vmatpush1.bf16.msra.mxu0 %v554
    %574 = vmatprep.subr.bf16.mxu0 0
    %575 = vmatpush1.bf16.msra.mxu0 %v555
    %576 = vmatprep.subr.bf16.mxu0 0
    %577 = vmatpush1.bf16.msra.mxu0 %v556
    %578 = vmatprep.subr.bf16.mxu0 0
    %579 = vmatpush1.bf16.msra.mxu0 %v557
    %580 = vmatprep.subr.bf16.mxu0 0
    %581 = vmatpush1.bf16.msra.mxu0 %v558
    %582 = vmatprep.subr.bf16.mxu0 0
    %583 = vmatpush1.bf16.msra.mxu0 %v559
    %584 = vmatprep.subr.bf16.mxu0 0
    %585 = vmatpush1.bf16.msra.mxu0 0
    %586 = vmatprep.subr.bf16.mxu0 0
    %587 = vmatpush1.bf16.msra.mxu0 0
    %588 = vmatprep.subr.bf16.mxu0 0
    %589 = vmatpush1.bf16.msra.mxu0 0
    %590 = vmatprep.subr.bf16.mxu0 0
    %591 = vmatpush1.bf16.msra.mxu0 0
    %592 = vmatprep.subr.bf16.mxu0 0
    %593 = vmatpush1.bf16.msra.mxu0 0
    %594 = vmatprep.subr.bf16.mxu0 0
    %595 = vmatpush1.bf16.msra.mxu0 0
    %596 = vmatprep.subr.bf16.mxu0 0
    %597 = vmatpush1.bf16.msra.mxu0 0
    %598 = vmatprep.subr.bf16.mxu0 0
    %599 = vmatpush1.bf16.msra.mxu0 0
    %600 = vmatprep.mubr.bf16.mxu0 0
    %601 = vmatmul.mubr.bf16.gmra.mrb[0].mxu0 %v512
    %v602 = vpop.f32.mrb[0].mxu0
    %v603 = vadd.f32 0.0, %v602
    %v604 = vpop.f32.mrb[0].mxu0
    %v605 = vpop.f32.mrb[0].mxu0
    %v606 = vadd.f32 0.0, %v605
    %v607 = vpop.f32.mrb[0].mxu0
    %608 = vmatprep.mubr.bf16.mxu0 0
    %609 = vmatmul.mubr.bf16.gmra.mrb[0].mxu0 %v513
    %v610 = vpop.f32.mrb[0].mxu0
    %v611 = vadd.f32 0.0, %v610
    %v612 = vpop.f32.mrb[0].mxu0
    %v613 = vpop.f32.mrb[0].mxu0
    %v614 = vadd.f32 0.0, %v613
    %v615 = vpop.f32.mrb[0].mxu0
    %616 = vmatprep.mubr.bf16.mxu0 0
    %617 = vmatmul.mubr.bf16.gmra.mrb[0].mxu0 %v514
    %v618 = vpop.f32.mrb[0].mxu0
    %v619 = vadd.f32 0.0, %v618
    %v620 = vpop.f32.mrb[0].mxu0
    %v621 = vpop.f32.mrb[0].mxu0
    %v622 = vadd.f32 0.0, %v621
    %v623 = vpop.f32.mrb[0].mxu0
    %624 = vmatprep.mubr.bf16.mxu0 0
    %625 = vmatmul.mubr.bf16.gmra.mrb[0].mxu0 %v515
    %v626 = vpop.f32.mrb[0].mxu0
    %v627 = vadd.f32 0.0, %v626
    %v628 = vpop.f32.mrb[0].mxu0
    %v629 = vpop.f32.mrb[0].mxu0
    %v630 = vadd.f32 0.0, %v629
    %v631 = vpop.f32.mrb[0].mxu0
    %632 = vmatprep.mubr.bf16.mxu0 0
    %633 = vmatmul.mubr.bf16.gmra.mrb[0].mxu0 %v516
    %v634 = vpop.f32.mrb[0].mxu0
    %v635 = vadd.f32 0.0, %v634
    %v636 = vpop.f32.mrb[0].mxu0
    %v637 = vpop.f32.mrb[0].mxu0
    %v638 = vadd.f32 0.0, %v637
    %v639 = vpop.f32.mrb[0].mxu0
    %640 = vmatprep.mubr.bf16.mxu0 0
    %641 = vmatmul.mubr.bf16.gmra.mrb[0].mxu0 %v517
    %v642 = vpop.f32.mrb[0].mxu0
    %v643 = vadd.f32 0.0, %v642
    %v644 = vpop.f32.mrb[0].mxu0
    %v645 = vpop.f32.mrb[0].mxu0
    %v646 = vadd.f32 0.0, %v645
    %v647 = vpop.f32.mrb[0].mxu0
    %648 = vmatprep.mubr.bf16.mxu0 0
    %649 = vmatmul.mubr.bf16.gmra.mrb[0].mxu0 %v518
    %v650 = vpop.f32.mrb[0].mxu0
    %v651 = vadd.f32 0.0, %v650
    %v652 = vpop.f32.mrb[0].mxu0
    %v653 = vpop.f32.mrb[0].mxu0
    %v654 = vadd.f32 0.0, %v653
    %v655 = vpop.f32.mrb[0].mxu0
    %656 = vmatprep.mubr.bf16.mxu0 0
    %657 = vmatmul.mubr.bf16.gmra.mrb[0].mxu0 %v519
    %v658 = vpop.f32.mrb[0].mxu0
    %v659 = vadd.f32 0.0, %v658
    %v660 = vpop.f32.mrb[0].mxu0
    %v661 = vpop.f32.mrb[0].mxu0
    %v662 = vadd.f32 0.0, %v661
    %v663 = vpop.f32.mrb[0].mxu0
    %664 = vdwg.mxu0
    %v665 = vmax.f32 %v603, 0.0
    %v666 = vmax.f32 %v606, 0.0
    %v667 = vmax.f32 %v611, 0.0
    %v668 = vmax.f32 %v614, 0.0
    %v669 = vmax.f32 %v619, 0.0
    %v670 = vmax.f32 %v622, 0.0
    %v671 = vmax.f32 %v627, 0.0
    %v672 = vmax.f32 %v630, 0.0
    %v673 = vmax.f32 %v635, 0.0
    %v674 = vmax.f32 %v638, 0.0
    %v675 = vmax.f32 %v643, 0.0
    %v676 = vmax.f32 %v646, 0.0
    %v677 = vmax.f32 %v651, 0.0
    %v678 = vmax.f32 %v654, 0.0
    %v679 = vmax.f32 %v659, 0.0
    %v680 = vmax.f32 %v662, 0.0
    %s681 = scalar_lea.vmem [#allocation3], 256
    %v682 = vld [vmem:[%s681] sm:$0xf]
    %v683 = vld [vmem:[%s681 + $0x4] sm:$0xf]
    %v684 = vld [vmem:[%s681 + $0x8] sm:$0xf]
    %v685 = vld [vmem:[%s681 + $0xc] sm:$0xf]
    %v686 = vld [vmem:[%s681 + $0x10] sm:$0xf]
    %v687 = vld [vmem:[%s681 + $0x14] sm:$0xf]
    %v688 = vld [vmem:[%s681 + $0x18] sm:$0xf]
    %v689 = vld [vmem:[%s681 + $0x1c] sm:$0xf]
    %v690 = vld [vmem:[%s681 + $0x20] sm:$0xf]
    %v691 = vld [vmem:[%s681 + $0x24] sm:$0xf]
    %v692 = vld [vmem:[%s681 + $0x28] sm:$0xf]
    %v693 = vld [vmem:[%s681 + $0x2c] sm:$0xf]
    %v694 = vld [vmem:[%s681 + $0x30] sm:$0xf]
    %v695 = vld [vmem:[%s681 + $0x34] sm:$0xf]
    %v696 = vld [vmem:[%s681 + $0x38] sm:$0xf]
    %v697 = vld [vmem:[%s681 + $0x3c] sm:$0xf]
    %v698 = vpack.c.bf16 %v666, %v665
    %v699 = vpack.c.bf16 %v668, %v667
    %v700 = vpack.c.bf16 %v670, %v669
    %v701 = vpack.c.bf16 %v672, %v671
    %v702 = vpack.c.bf16 %v674, %v673
    %v703 = vpack.c.bf16 %v676, %v675
    %v704 = vpack.c.bf16 %v678, %v677
    %v705 = vpack.c.bf16 %v680, %v679
    %v722 = vunpack.c.l.b16 %v682
    %v723 = vunpack.c.l.b16 %v683
    %v724 = vunpack.c.l.b16 %v684
    %v725 = vunpack.c.l.b16 %v685
    %v726 = vunpack.c.l.b16 %v686
    %v727 = vunpack.c.l.b16 %v687
    %v728 = vunpack.c.l.b16 %v688
    %v729 = vunpack.c.l.b16 %v689
    %v730 = vunpack.c.l.b16 %v690
    %v731 = vunpack.c.l.b16 %v691
    %v732 = vunpack.c.l.b16 %v692
    %v733 = vunpack.c.l.b16 %v693
    %v734 = vunpack.c.l.b16 %v694
    %v735 = vunpack.c.l.b16 %v695
    %v736 = vunpack.c.l.b16 %v696
    %v737 = vunpack.c.l.b16 %v697
    %v738 = vpack.c.b16 %v723, %v722
    %v739 = vpack.c.b16 %v725, %v724
    %v740 = vpack.c.b16 %v727, %v726
    %v741 = vpack.c.b16 %v729, %v728
    %v742 = vpack.c.b16 %v731, %v730
    %v743 = vpack.c.b16 %v733, %v732
    %v744 = vpack.c.b16 %v735, %v734
    %v745 = vpack.c.b16 %v737, %v736
    %754 = vmatprep.subr.bf16.mxu0 0
    %755 = vmatpush1.bf16.msra.mxu0 %v738
    %756 = vmatprep.subr.bf16.mxu0 0
    %757 = vmatpush1.bf16.msra.mxu0 %v739
    %758 = vmatprep.subr.bf16.mxu0 0
    %759 = vmatpush1.bf16.msra.mxu0 %v740
    %760 = vmatprep.subr.bf16.mxu0 0
    %761 = vmatpush1.bf16.msra.mxu0 %v741
    %762 = vmatprep.subr.bf16.mxu0 0
    %763 = vmatpush1.bf16.msra.mxu0 %v742
    %764 = vmatprep.subr.bf16.mxu0 0
    %765 = vmatpush1.bf16.msra.mxu0 %v743
    %766 = vmatprep.subr.bf16.mxu0 0
    %767 = vmatpush1.bf16.msra.mxu0 %v744
    %768 = vmatprep.subr.bf16.mxu0 0
    %769 = vmatpush1.bf16.msra.mxu0 %v745
    %770 = vmatprep.subr.bf16.mxu0 0
    %771 = vmatpush1.bf16.msra.mxu0 0
    %772 = vmatprep.subr.bf16.mxu0 0
    %773 = vmatpush1.bf16.msra.mxu0 0
    %774 = vmatprep.subr.bf16.mxu0 0
    %775 = vmatpush1.bf16.msra.mxu0 0
    %776 = vmatprep.subr.bf16.mxu0 0
    %777 = vmatpush1.bf16.msra.mxu0 0
    %778 = vmatprep.subr.bf16.mxu0 0
    %779 = vmatpush1.bf16.msra.mxu0 0
    %780 = vmatprep.subr.bf16.mxu0 0
    %781 = vmatpush1.bf16.msra.mxu0 0
    %782 = vmatprep.subr.bf16.mxu0 0
    %783 = vmatpush1.bf16.msra.mxu0 0
    %784 = vmatprep.subr.bf16.mxu0 0
    %785 = vmatpush1.bf16.msra.mxu0 0
    %786 = vmatprep.mubr.bf16.mxu0 0
    %787 = vmatmul.mubr.bf16.gmra.mrb[0].mxu0 %v698
    %v788 = vpop.f32.mrb[0].mxu0
    %v789 = vadd.f32 0.0, %v788
    %v790 = vpop.f32.mrb[0].mxu0
    %v791 = vpop.f32.mrb[0].mxu0
    %v792 = vadd.f32 0.0, %v791
    %v793 = vpop.f32.mrb[0].mxu0
    %794 = vmatprep.mubr.bf16.mxu0 0
    %795 = vmatmul.mubr.bf16.gmra.mrb[0].mxu0 %v699
    %v796 = vpop.f32.mrb[0].mxu0
    %v797 = vadd.f32 0.0, %v796
    %v798 = vpop.f32.mrb[0].mxu0
    %v799 = vpop.f32.mrb[0].mxu0
    %v800 = vadd.f32 0.0, %v799
    %v801 = vpop.f32.mrb[0].mxu0
    %802 = vmatprep.mubr.bf16.mxu0 0
    %803 = vmatmul.mubr.bf16.gmra.mrb[0].mxu0 %v700
    %v804 = vpop.f32.mrb[0].mxu0
    %v805 = vadd.f32 0.0, %v804
    %v806 = vpop.f32.mrb[0].mxu0
    %v807 = vpop.f32.mrb[0].mxu0
    %v808 = vadd.f32 0.0, %v807
    %v809 = vpop.f32.mrb[0].mxu0
    %810 = vmatprep.mubr.bf16.mxu0 0
    %811 = vmatmul.mubr.bf16.gmra.mrb[0].mxu0 %v701
    %v812 = vpop.f32.mrb[0].mxu0
    %v813 = vadd.f32 0.0, %v812
    %v814 = vpop.f32.mrb[0].mxu0
    %v815 = vpop.f32.mrb[0].mxu0
    %v816 = vadd.f32 0.0, %v815
    %v817 = vpop.f32.mrb[0].mxu0
    %818 = vmatprep.mubr.bf16.mxu0 0
    %819 = vmatmul.mubr.bf16.gmra.mrb[0].mxu0 %v702
    %v820 = vpop.f32.mrb[0].mxu0
    %v821 = vadd.f32 0.0, %v820
    %v822 = vpop.f32.mrb[0].mxu0
    %v823 = vpop.f32.mrb[0].mxu0
    %v824 = vadd.f32 0.0, %v823
    %v825 = vpop.f32.mrb[0].mxu0
    %826 = vmatprep.mubr.bf16.mxu0 0
    %827 = vmatmul.mubr.bf16.gmra.mrb[0].mxu0 %v703
    %v828 = vpop.f32.mrb[0].mxu0
    %v829 = vadd.f32 0.0, %v828
    %v830 = vpop.f32.mrb[0].mxu0
    %v831 = vpop.f32.mrb[0].mxu0
    %v832 = vadd.f32 0.0, %v831
    %v833 = vpop.f32.mrb[0].mxu0
    %834 = vmatprep.mubr.bf16.mxu0 0
    %835 = vmatmul.mubr.bf16.gmra.mrb[0].mxu0 %v704
    %v836 = vpop.f32.mrb[0].mxu0
    %v837 = vadd.f32 0.0, %v836
    %v838 = vpop.f32.mrb[0].mxu0
    %v839 = vpop.f32.mrb[0].mxu0
    %v840 = vadd.f32 0.0, %v839
    %v841 = vpop.f32.mrb[0].mxu0
    %842 = vmatprep.mubr.bf16.mxu0 0
    %843 = vmatmul.mubr.bf16.gmra.mrb[0].mxu0 %v705
    %v844 = vpop.f32.mrb[0].mxu0
    %v845 = vadd.f32 0.0, %v844
    %v846 = vpop.f32.mrb[0].mxu0
    %v847 = vpop.f32.mrb[0].mxu0
    %v848 = vadd.f32 0.0, %v847
    %v849 = vpop.f32.mrb[0].mxu0
    %850 = vdwg.mxu0
    %v851 = vmax.f32 %v789, 0.0
    %v852 = vmax.f32 %v792, 0.0
    %v853 = vmax.f32 %v797, 0.0
    %v854 = vmax.f32 %v800, 0.0
    %v855 = vmax.f32 %v805, 0.0
    %v856 = vmax.f32 %v808, 0.0
    %v857 = vmax.f32 %v813, 0.0
    %v858 = vmax.f32 %v816, 0.0
    %v859 = vmax.f32 %v821, 0.0
    %v860 = vmax.f32 %v824, 0.0
    %v861 = vmax.f32 %v829, 0.0
    %v862 = vmax.f32 %v832, 0.0
    %v863 = vmax.f32 %v837, 0.0
    %v864 = vmax.f32 %v840, 0.0
    %v865 = vmax.f32 %v845, 0.0
    %v866 = vmax.f32 %v848, 0.0
    %v867 = vlaneseq
    %v868 = vand.u32 %v867, 127
    %v869 = vld [vmem:[%s2] sm:$0xff]
    %v870 = vld [vmem:[%s2 + $0x8] sm:$0xff]
    %v871 = vld [vmem:[%s2 + $0x10] sm:$0xff]
    %v872 = vld [vmem:[%s2 + $0x18] sm:$0xff]
    %v873 = vld [vmem:[%s2 + $0x20] sm:$0xff]
    %v874 = vld [vmem:[%s2 + $0x28] sm:$0xff]
    %v875 = vld [vmem:[%s2 + $0x30] sm:$0xff]
    %v876 = vld [vmem:[%s2 + $0x38] sm:$0xff]
    %v877 = vld [vmem:[%s2 + $0x40] sm:$0xff]
    %v878 = vld [vmem:[%s2 + $0x48] sm:$0xff]
    %v879 = vld [vmem:[%s2 + $0x50] sm:$0xff]
    %v880 = vld [vmem:[%s2 + $0x58] sm:$0xff]
    %v881 = vld [vmem:[%s2 + $0x60] sm:$0xff]
    %v882 = vld [vmem:[%s2 + $0x68] sm:$0xff]
    %v883 = vld [vmem:[%s2 + $0x70] sm:$0xff]
    %v884 = vld [vmem:[%s2 + $0x78] sm:$0xff]
    %885 = vset.pattern.permute.xlu0 0
    %886 = vperm.xlu0 %885, %v869
    %v887 = vpop.permute.xlu0 %886
    %888 = vset.pattern.permute.xlu0 0
    %889 = vperm.xlu0 %888, %v870
    %v890 = vpop.permute.xlu0 %889
    %891 = vset.pattern.permute.xlu0 0
    %892 = vperm.xlu0 %891, %v871
    %v893 = vpop.permute.xlu0 %892
    %894 = vset.pattern.permute.xlu0 0
    %895 = vperm.xlu0 %894, %v872
    %v896 = vpop.permute.xlu0 %895
    %897 = vset.pattern.permute.xlu0 0
    %898 = vperm.xlu0 %897, %v873
    %v899 = vpop.permute.xlu0 %898
    %900 = vset.pattern.permute.xlu0 0
    %901 = vperm.xlu0 %900, %v874
    %v902 = vpop.permute.xlu0 %901
    %903 = vset.pattern.permute.xlu0 0
    %904 = vperm.xlu0 %903, %v875
    %v905 = vpop.permute.xlu0 %904
    %906 = vset.pattern.permute.xlu0 0
    %907 = vperm.xlu0 %906, %v876
    %v908 = vpop.permute.xlu0 %907
    %909 = vset.pattern.permute.xlu0 0
    %910 = vperm.xlu0 %909, %v877
    %v911 = vpop.permute.xlu0 %910
    %912 = vset.pattern.permute.xlu0 0
    %913 = vperm.xlu0 %912, %v878
    %v914 = vpop.permute.xlu0 %913
    %915 = vset.pattern.permute.xlu0 0
    %916 = vperm.xlu0 %915, %v879
    %v917 = vpop.permute.xlu0 %916
    %918 = vset.pattern.permute.xlu0 0
    %919 = vperm.xlu0 %918, %v880
    %v920 = vpop.permute.xlu0 %919
    %921 = vset.pattern.permute.xlu0 0
    %922 = vperm.xlu0 %921, %v881
    %v923 = vpop.permute.xlu0 %922
    %924 = vset.pattern.permute.xlu0 0
    %925 = vperm.xlu0 %924, %v882
    %v926 = vpop.permute.xlu0 %925
    %927 = vset.pattern.permute.xlu0 0
    %928 = vperm.xlu0 %927, %v883
    %v929 = vpop.permute.xlu0 %928
    %930 = vset.pattern.permute.xlu0 0
    %931 = vperm.xlu0 %930, %v884
    %v932 = vpop.permute.xlu0 %931
    %vm933 = vcmp.eq.s32.totalorder %v868, %v887
    %vm934 = vcmp.eq.s32.totalorder %v868, %v890
    %vm935 = vcmp.eq.s32.totalorder %v868, %v893
    %vm936 = vcmp.eq.s32.totalorder %v868, %v896
    %vm937 = vcmp.eq.s32.totalorder %v868, %v899
    %vm938 = vcmp.eq.s32.totalorder %v868, %v902
    %vm939 = vcmp.eq.s32.totalorder %v868, %v905
    %vm940 = vcmp.eq.s32.totalorder %v868, %v908
    %vm941 = vcmp.eq.s32.totalorder %v868, %v911
    %vm942 = vcmp.eq.s32.totalorder %v868, %v914
    %vm943 = vcmp.eq.s32.totalorder %v868, %v917
    %vm944 = vcmp.eq.s32.totalorder %v868, %v920
    %vm945 = vcmp.eq.s32.totalorder %v868, %v923
    %vm946 = vcmp.eq.s32.totalorder %v868, %v926
    %vm947 = vcmp.eq.s32.totalorder %v868, %v929
    %vm948 = vcmp.eq.s32.totalorder %v868, %v932
    %v949 = vsel %vm933, 1, 0
    %v950 = vsel %vm934, 1, 0
    %v951 = vsel %vm935, 1, 0
    %v952 = vsel %vm936, 1, 0
    %v953 = vsel %vm937, 1, 0
    %v954 = vsel %vm938, 1, 0
    %v955 = vsel %vm939, 1, 0
    %v956 = vsel %vm940, 1, 0
    %v957 = vsel %vm941, 1, 0
    %v958 = vsel %vm942, 1, 0
    %v959 = vsel %vm943, 1, 0
    %v960 = vsel %vm944, 1, 0
    %v961 = vsel %vm945, 1, 0
    %v962 = vsel %vm946, 1, 0
    %v963 = vsel %vm947, 1, 0
    %v964 = vsel %vm948, 1, 0
    %v965 = vcvt.s32.f32 %v949
    %v966 = vcvt.s32.f32 %v950
    %v967 = vcvt.s32.f32 %v951
    %v968 = vcvt.s32.f32 %v952
    %v969 = vcvt.s32.f32 %v953
    %v970 = vcvt.s32.f32 %v954
    %v971 = vcvt.s32.f32 %v955
    %v972 = vcvt.s32.f32 %v956
    %v973 = vcvt.s32.f32 %v957
    %v974 = vcvt.s32.f32 %v958
    %v975 = vcvt.s32.f32 %v959
    %v976 = vcvt.s32.f32 %v960
    %v977 = vcvt.s32.f32 %v961
    %v978 = vcvt.s32.f32 %v962
    %v979 = vcvt.s32.f32 %v963
    %v980 = vcvt.s32.f32 %v964
    %v981 = vpack.c.bf16 %v966, %v965
    %v982 = vpack.c.bf16 %v968, %v967
    %v983 = vpack.c.bf16 %v970, %v969
    %v984 = vpack.c.bf16 %v972, %v971
    %v985 = vpack.c.bf16 %v974, %v973
    %v986 = vpack.c.bf16 %v976, %v975
    %v987 = vpack.c.bf16 %v978, %v977
    %v988 = vpack.c.bf16 %v980, %v979
    %v989 = vld [vmem:[%s3] sm:$0xff]
    %v990 = vld [vmem:[%s3 + $0x8] sm:$0xff]
    %v991 = vld [vmem:[%s3 + $0x10] sm:$0xff]
    %v992 = vld [vmem:[%s3 + $0x18] sm:$0xff]
    %v993 = vld [vmem:[%s3 + $0x20] sm:$0xff]
    %v994 = vld [vmem:[%s3 + $0x28] sm:$0xff]
    %v995 = vld [vmem:[%s3 + $0x30] sm:$0xff]
    %v996 = vld [vmem:[%s3 + $0x38] sm:$0xff]
    %v997 = vld [vmem:[%s3 + $0x40] sm:$0xff]
    %v998 = vld [vmem:[%s3 + $0x48] sm:$0xff]
    %v999 = vld [vmem:[%s3 + $0x50] sm:$0xff]
    %v1000 = vld [vmem:[%s3 + $0x58] sm:$0xff]
    %v1001 = vld [vmem:[%s3 + $0x60] sm:$0xff]
    %v1002 = vld [vmem:[%s3 + $0x68] sm:$0xff]
    %v1003 = vld [vmem:[%s3 + $0x70] sm:$0xff]
    %v1004 = vld [vmem:[%s3 + $0x78] sm:$0xff]
    %1005 = vset.pattern.permute.xlu0 0
    %1006 = vperm.xlu0 %1005, %v989
    %v1007 = vpop.permute.xlu0 %1006
    %1008 = vset.pattern.permute.xlu0 0
    %1009 = vperm.xlu0 %1008, %v990
    %v1010 = vpop.permute.xlu0 %1009
    %1011 = vset.pattern.permute.xlu0 0
    %1012 = vperm.xlu0 %1011, %v991
    %v1013 = vpop.permute.xlu0 %1012
    %1014 = vset.pattern.permute.xlu0 0
    %1015 = vperm.xlu0 %1014, %v992
    %v1016 = vpop.permute.xlu0 %1015
    %1017 = vset.pattern.permute.xlu0 0
    %1018 = vperm.xlu0 %1017, %v993
    %v1019 = vpop.permute.xlu0 %1018
    %1020 = vset.pattern.permute.xlu0 0
    %1021 = vperm.xlu0 %1020, %v994
    %v1022 = vpop.permute.xlu0 %1021
    %1023 = vset.pattern.permute.xlu0 0
    %1024 = vperm.xlu0 %1023, %v995
    %v1025 = vpop.permute.xlu0 %1024
    %1026 = vset.pattern.permute.xlu0 0
    %1027 = vperm.xlu0 %1026, %v996
    %v1028 = vpop.permute.xlu0 %1027
    %1029 = vset.pattern.permute.xlu0 0
    %1030 = vperm.xlu0 %1029, %v997
    %v1031 = vpop.permute.xlu0 %1030
    %1032 = vset.pattern.permute.xlu0 0
    %1033 = vperm.xlu0 %1032, %v998
    %v1034 = vpop.permute.xlu0 %1033
    %1035 = vset.pattern.permute.xlu0 0
    %1036 = vperm.xlu0 %1035, %v999
    %v1037 = vpop.permute.xlu0 %1036
    %1038 = vset.pattern.permute.xlu0 0
    %1039 = vperm.xlu0 %1038, %v1000
    %v1040 = vpop.permute.xlu0 %1039
    %1041 = vset.pattern.permute.xlu0 0
    %1042 = vperm.xlu0 %1041, %v1001
    %v1043 = vpop.permute.xlu0 %1042
    %1044 = vset.pattern.permute.xlu0 0
    %1045 = vperm.xlu0 %1044, %v1002
    %v1046 = vpop.permute.xlu0 %1045
    %1047 = vset.pattern.permute.xlu0 0
    %1048 = vperm.xlu0 %1047, %v1003
    %v1049 = vpop.permute.xlu0 %1048
    %1050 = vset.pattern.permute.xlu0 0
    %1051 = vperm.xlu0 %1050, %v1004
    %v1052 = vpop.permute.xlu0 %1051
    %vm1053 = vcmp.eq.s32.totalorder %v868, %v1007
    %vm1054 = vcmp.eq.s32.totalorder %v868, %v1010
    %vm1055 = vcmp.eq.s32.totalorder %v868, %v1013
    %vm1056 = vcmp.eq.s32.totalorder %v868, %v1016
    %vm1057 = vcmp.eq.s32.totalorder %v868, %v1019
    %vm1058 = vcmp.eq.s32.totalorder %v868, %v1022
    %vm1059 = vcmp.eq.s32.totalorder %v868, %v1025
    %vm1060 = vcmp.eq.s32.totalorder %v868, %v1028
    %vm1061 = vcmp.eq.s32.totalorder %v868, %v1031
    %vm1062 = vcmp.eq.s32.totalorder %v868, %v1034
    %vm1063 = vcmp.eq.s32.totalorder %v868, %v1037
    %vm1064 = vcmp.eq.s32.totalorder %v868, %v1040
    %vm1065 = vcmp.eq.s32.totalorder %v868, %v1043
    %vm1066 = vcmp.eq.s32.totalorder %v868, %v1046
    %vm1067 = vcmp.eq.s32.totalorder %v868, %v1049
    %vm1068 = vcmp.eq.s32.totalorder %v868, %v1052
    %v1069 = vsel %vm1053, 1, 0
    %v1070 = vsel %vm1054, 1, 0
    %v1071 = vsel %vm1055, 1, 0
    %v1072 = vsel %vm1056, 1, 0
    %v1073 = vsel %vm1057, 1, 0
    %v1074 = vsel %vm1058, 1, 0
    %v1075 = vsel %vm1059, 1, 0
    %v1076 = vsel %vm1060, 1, 0
    %v1077 = vsel %vm1061, 1, 0
    %v1078 = vsel %vm1062, 1, 0
    %v1079 = vsel %vm1063, 1, 0
    %v1080 = vsel %vm1064, 1, 0
    %v1081 = vsel %vm1065, 1, 0
    %v1082 = vsel %vm1066, 1, 0
    %v1083 = vsel %vm1067, 1, 0
    %v1084 = vsel %vm1068, 1, 0
    %v1085 = vcvt.s32.f32 %v1069
    %v1086 = vcvt.s32.f32 %v1070
    %v1087 = vcvt.s32.f32 %v1071
    %v1088 = vcvt.s32.f32 %v1072
    %v1089 = vcvt.s32.f32 %v1073
    %v1090 = vcvt.s32.f32 %v1074
    %v1091 = vcvt.s32.f32 %v1075
    %v1092 = vcvt.s32.f32 %v1076
    %v1093 = vcvt.s32.f32 %v1077
    %v1094 = vcvt.s32.f32 %v1078
    %v1095 = vcvt.s32.f32 %v1079
    %v1096 = vcvt.s32.f32 %v1080
    %v1097 = vcvt.s32.f32 %v1081
    %v1098 = vcvt.s32.f32 %v1082
    %v1099 = vcvt.s32.f32 %v1083
    %v1100 = vcvt.s32.f32 %v1084
    %v1101 = vpack.c.bf16 %v1086, %v1085
    %v1102 = vpack.c.bf16 %v1088, %v1087
    %v1103 = vpack.c.bf16 %v1090, %v1089
    %v1104 = vpack.c.bf16 %v1092, %v1091
    %v1105 = vpack.c.bf16 %v1094, %v1093
    %v1106 = vpack.c.bf16 %v1096, %v1095
    %v1107 = vpack.c.bf16 %v1098, %v1097
    %v1108 = vpack.c.bf16 %v1100, %v1099
    %v1109 = vlaneseq
    %v1110 = vshrl.u32 %v1109, 7
    %v1111 = vadd.s32 %v1110, 8
    %v1112 = vadd.s32 %v1110, 16
    %v1113 = vadd.s32 %v1110, 24
    %v1114 = vadd.s32 %v1110, 32
    %v1115 = vadd.s32 %v1110, 40
    %v1116 = vadd.s32 %v1110, 48
    %v1117 = vadd.s32 %v1110, 56
    %v1118 = vld [vmem:[%s4] sm:$0x1]
    %v1119 = vlaneseq
    %v1120 = vshrl.u32 %v1119, 7
    %v1121 = vsub.s32 0, %v1120
    %v1122 = vrot.slane %v1118, %v1121
    %vm1123 = vcmp.eq.s32.totalorder %v1110, %v1122
    %vm1124 = vcmp.eq.s32.totalorder %v1111, %v1122
    %vm1125 = vcmp.eq.s32.totalorder %v1112, %v1122
    %vm1126 = vcmp.eq.s32.totalorder %v1113, %v1122
    %vm1127 = vcmp.eq.s32.totalorder %v1114, %v1122
    %vm1128 = vcmp.eq.s32.totalorder %v1115, %v1122
    %vm1129 = vcmp.eq.s32.totalorder %v1116, %v1122
    %vm1130 = vcmp.eq.s32.totalorder %v1117, %v1122
    %v1131 = vsel %vm1123, 1, 0
    %v1132 = vsel %vm1124, 1, 0
    %v1133 = vsel %vm1125, 1, 0
    %v1134 = vsel %vm1126, 1, 0
    %v1135 = vsel %vm1127, 1, 0
    %v1136 = vsel %vm1128, 1, 0
    %v1137 = vsel %vm1129, 1, 0
    %v1138 = vsel %vm1130, 1, 0
    %v1139 = vcvt.s32.f32 %v1131
    %v1140 = vcvt.s32.f32 %v1132
    %v1141 = vcvt.s32.f32 %v1133
    %v1142 = vcvt.s32.f32 %v1134
    %v1143 = vcvt.s32.f32 %v1135
    %v1144 = vcvt.s32.f32 %v1136
    %v1145 = vcvt.s32.f32 %v1137
    %v1146 = vcvt.s32.f32 %v1138
    %v1147 = vpack.c.bf16 %v1140, %v1139
    %v1148 = vpack.c.bf16 %v1142, %v1141
    %v1149 = vpack.c.bf16 %v1144, %v1143
    %v1150 = vpack.c.bf16 %v1146, %v1145
    %v1151 = vpack.c.bf16 %v472, %v471
    %v1152 = vpack.c.bf16 %v474, %v473
    %v1153 = vpack.c.bf16 %v476, %v475
    %v1154 = vpack.c.bf16 %v478, %v477
    %1155 = vrot.lane.b32.xlu0 %v471, 5
    %v1156 = vpop.permute.xlu0 %1155
    %1157 = vrot.lane.b32.xlu0 %v472, 5
    %v1158 = vpop.permute.xlu0 %1157
    %1159 = vrot.lane.b32.xlu0 %v473, 5
    %v1160 = vpop.permute.xlu0 %1159
    %1161 = vrot.lane.b32.xlu0 %v474, 5
    %v1162 = vpop.permute.xlu0 %1161
    %1163 = vrot.lane.b32.xlu0 %v475, 5
    %v1164 = vpop.permute.xlu0 %1163
    %1165 = vrot.lane.b32.xlu0 %v476, 5
    %v1166 = vpop.permute.xlu0 %1165
    %1167 = vrot.lane.b32.xlu0 %v477, 5
    %v1168 = vpop.permute.xlu0 %1167
    %1169 = vrot.lane.b32.xlu0 %v478, 5
    %v1170 = vpop.permute.xlu0 %1169
    %v1171 = vpack.c.bf16 %v1158, %v1156
    %v1172 = vpack.c.bf16 %v1162, %v1160
    %v1173 = vpack.c.bf16 %v1166, %v1164
    %v1174 = vpack.c.bf16 %v1170, %v1168
    %vm1175 = vcmask 523264
    %v1177 = vsel %vm1175, %v981, 0
    %v1180 = vsel %vm1175, %v982, 0
    %v1183 = vsel %vm1175, %v983, 0
    %v1186 = vsel %vm1175, %v984, 0
    %v1189 = vsel %vm1175, %v985, 0
    %v1192 = vsel %vm1175, %v986, 0
    %v1195 = vsel %vm1175, %v987, 0
    %v1198 = vsel %vm1175, %v988, 0
    %1200 = vmatprep.subr.bf16.mxu0 0
    %1201 = vmatpush1.bf16.msra.mxu0 %v1171
    %1202 = vmatprep.subr.bf16.mxu0 0
    %1203 = vmatpush1.bf16.msra.mxu0 %v1172
    %1204 = vmatprep.subr.bf16.mxu0 0
    %1205 = vmatpush1.bf16.msra.mxu0 %v1173
    %1206 = vmatprep.subr.bf16.mxu0 0
    %1207 = vmatpush1.bf16.msra.mxu0 %v1174
    %1208 = vmatprep.subr.bf16.mxu0 0
    %1209 = vmatpush1.bf16.msra.mxu0 0
    %1210 = vmatprep.subr.bf16.mxu0 0
    %1211 = vmatpush1.bf16.msra.mxu0 0
    %1212 = vmatprep.subr.bf16.mxu0 0
    %1213 = vmatpush1.bf16.msra.mxu0 0
    %1214 = vmatprep.subr.bf16.mxu0 0
    %1215 = vmatpush1.bf16.msra.mxu0 0
    %1216 = vmatprep.subr.bf16.mxu0 0
    %1217 = vmatpush1.bf16.msra.mxu0 0
    %1218 = vmatprep.subr.bf16.mxu0 0
    %1219 = vmatpush1.bf16.msra.mxu0 0
    %1220 = vmatprep.subr.bf16.mxu0 0
    %1221 = vmatpush1.bf16.msra.mxu0 0
    %1222 = vmatprep.subr.bf16.mxu0 0
    %1223 = vmatpush1.bf16.msra.mxu0 0
    %1224 = vmatprep.subr.bf16.mxu0 0
    %1225 = vmatpush1.bf16.msra.mxu0 0
    %1226 = vmatprep.subr.bf16.mxu0 0
    %1227 = vmatpush1.bf16.msra.mxu0 0
    %1228 = vmatprep.subr.bf16.mxu0 0
    %1229 = vmatpush1.bf16.msra.mxu0 0
    %1230 = vmatprep.subr.bf16.mxu0 0
    %1231 = vmatpush1.bf16.msra.mxu0 0
    %1232 = vmatprep.mubr.bf16.mxu0 0
    %1233 = vmatmul.mubr.bf16.gmra.mrb[0].mxu0 %v1177
    %v1234 = vpop.f32.mrb[0].mxu0
    %v1235 = vadd.f32 0.0, %v1234
    %v1236 = vpop.f32.mrb[0].mxu0
    %v1237 = vpop.f32.mrb[0].mxu0
    %v1238 = vadd.f32 0.0, %v1237
    %v1239 = vpop.f32.mrb[0].mxu0
    %1240 = vmatprep.mubr.bf16.mxu0 0
    %1241 = vmatmul.mubr.bf16.gmra.mrb[0].mxu0 %v1180
    %v1242 = vpop.f32.mrb[0].mxu0
    %v1243 = vadd.f32 0.0, %v1242
    %v1244 = vpop.f32.mrb[0].mxu0
    %v1245 = vpop.f32.mrb[0].mxu0
    %v1246 = vadd.f32 0.0, %v1245
    %v1247 = vpop.f32.mrb[0].mxu0
    %1248 = vmatprep.mubr.bf16.mxu0 0
    %1249 = vmatmul.mubr.bf16.gmra.mrb[0].mxu0 %v1183
    %v1250 = vpop.f32.mrb[0].mxu0
    %v1251 = vadd.f32 0.0, %v1250
    %v1252 = vpop.f32.mrb[0].mxu0
    %v1253 = vpop.f32.mrb[0].mxu0
    %v1254 = vadd.f32 0.0, %v1253
    %v1255 = vpop.f32.mrb[0].mxu0
    %1256 = vmatprep.mubr.bf16.mxu0 0
    %1257 = vmatmul.mubr.bf16.gmra.mrb[0].mxu0 %v1186
    %v1258 = vpop.f32.mrb[0].mxu0
    %v1259 = vadd.f32 0.0, %v1258
    %v1260 = vpop.f32.mrb[0].mxu0
    %v1261 = vpop.f32.mrb[0].mxu0
    %v1262 = vadd.f32 0.0, %v1261
    %v1263 = vpop.f32.mrb[0].mxu0
    %1264 = vmatprep.mubr.bf16.mxu0 0
    %1265 = vmatmul.mubr.bf16.gmra.mrb[0].mxu0 %v1189
    %v1266 = vpop.f32.mrb[0].mxu0
    %v1267 = vadd.f32 0.0, %v1266
    %v1268 = vpop.f32.mrb[0].mxu0
    %v1269 = vpop.f32.mrb[0].mxu0
    %v1270 = vadd.f32 0.0, %v1269
    %v1271 = vpop.f32.mrb[0].mxu0
    %1272 = vmatprep.mubr.bf16.mxu0 0
    %1273 = vmatmul.mubr.bf16.gmra.mrb[0].mxu0 %v1192
    %v1274 = vpop.f32.mrb[0].mxu0
    %v1275 = vadd.f32 0.0, %v1274
    %v1276 = vpop.f32.mrb[0].mxu0
    %v1277 = vpop.f32.mrb[0].mxu0
    %v1278 = vadd.f32 0.0, %v1277
    %v1279 = vpop.f32.mrb[0].mxu0
    %1280 = vmatprep.mubr.bf16.mxu0 0
    %1281 = vmatmul.mubr.bf16.gmra.mrb[0].mxu0 %v1195
    %v1282 = vpop.f32.mrb[0].mxu0
    %v1283 = vadd.f32 0.0, %v1282
    %v1284 = vpop.f32.mrb[0].mxu0
    %v1285 = vpop.f32.mrb[0].mxu0
    %v1286 = vadd.f32 0.0, %v1285
    %v1287 = vpop.f32.mrb[0].mxu0
    %1288 = vmatprep.mubr.bf16.mxu0 0
    %1289 = vmatmul.mubr.bf16.gmra.mrb[0].mxu0 %v1198
    %v1290 = vpop.f32.mrb[0].mxu0
    %v1291 = vadd.f32 0.0, %v1290
    %v1292 = vpop.f32.mrb[0].mxu0
    %v1293 = vpop.f32.mrb[0].mxu0
    %v1294 = vadd.f32 0.0, %v1293
    %v1295 = vpop.f32.mrb[0].mxu0
    %1296 = vdwg.mxu0
    %v1298 = vsel %vm1175, %v1101, 0
    %v1301 = vsel %vm1175, %v1102, 0
    %v1304 = vsel %vm1175, %v1103, 0
    %v1307 = vsel %vm1175, %v1104, 0
    %v1310 = vsel %vm1175, %v1105, 0
    %v1313 = vsel %vm1175, %v1106, 0
    %v1316 = vsel %vm1175, %v1107, 0
    %v1319 = vsel %vm1175, %v1108, 0
    %1321 = vmatprep.subr.bf16.mxu0 0
    %1322 = vmatpush1.bf16.msra.mxu0 %v1151
    %1323 = vmatprep.subr.bf16.mxu0 0
    %1324 = vmatpush1.bf16.msra.mxu0 %v1152
    %1325 = vmatprep.subr.bf16.mxu0 0
    %1326 = vmatpush1.bf16.msra.mxu0 %v1153
    %1327 = vmatprep.subr.bf16.mxu0 0
    %1328 = vmatpush1.bf16.msra.mxu0 %v1154
    %1329 = vmatprep.subr.bf16.mxu0 0
    %1330 = vmatpush1.bf16.msra.mxu0 0
    %1331 = vmatprep.subr.bf16.mxu0 0
    %1332 = vmatpush1.bf16.msra.mxu0 0
    %1333 = vmatprep.subr.bf16.mxu0 0
    %1334 = vmatpush1.bf16.msra.mxu0 0
    %1335 = vmatprep.subr.bf16.mxu0 0
    %1336 = vmatpush1.bf16.msra.mxu0 0
    %1337 = vmatprep.subr.bf16.mxu0 0
    %1338 = vmatpush1.bf16.msra.mxu0 0
    %1339 = vmatprep.subr.bf16.mxu0 0
    %1340 = vmatpush1.bf16.msra.mxu0 0
    %1341 = vmatprep.subr.bf16.mxu0 0
    %1342 = vmatpush1.bf16.msra.mxu0 0
    %1343 = vmatprep.subr.bf16.mxu0 0
    %1344 = vmatpush1.bf16.msra.mxu0 0
    %1345 = vmatprep.subr.bf16.mxu0 0
    %1346 = vmatpush1.bf16.msra.mxu0 0
    %1347 = vmatprep.subr.bf16.mxu0 0
    %1348 = vmatpush1.bf16.msra.mxu0 0
    %1349 = vmatprep.subr.bf16.mxu0 0
    %1350 = vmatpush1.bf16.msra.mxu0 0
    %1351 = vmatprep.subr.bf16.mxu0 0
    %1352 = vmatpush1.bf16.msra.mxu0 0
    %1353 = vmatprep.mubr.bf16.mxu0 0
    %1354 = vmatmul.mubr.bf16.gmra.mrb[0].mxu0 %v1298
    %v1355 = vpop.f32.mrb[0].mxu0
    %v1356 = vadd.f32 %v1235, %v1355
    %v1357 = vpop.f32.mrb[0].mxu0
    %v1358 = vpop.f32.mrb[0].mxu0
    %v1359 = vadd.f32 %v1238, %v1358
    %v1360 = vpop.f32.mrb[0].mxu0
    %1361 = vmatprep.mubr.bf16.mxu0 0
    %1362 = vmatmul.mubr.bf16.gmra.mrb[0].mxu0 %v1301
    %v1363 = vpop.f32.mrb[0].mxu0
    %v1364 = vadd.f32 %v1243, %v1363
    %v1365 = vpop.f32.mrb[0].mxu0
    %v1366 = vpop.f32.mrb[0].mxu0
    %v1367 = vadd.f32 %v1246, %v1366
    %v1368 = vpop.f32.mrb[0].mxu0
    %1369 = vmatprep.mubr.bf16.mxu0 0
    %1370 = vmatmul.mubr.bf16.gmra.mrb[0].mxu0 %v1304
    %v1371 = vpop.f32.mrb[0].mxu0
    %v1372 = vadd.f32 %v1251, %v1371
    %v1373 = vpop.f32.mrb[0].mxu0
    %v1374 = vpop.f32.mrb[0].mxu0
    %v1375 = vadd.f32 %v1254, %v1374
    %v1376 = vpop.f32.mrb[0].mxu0
    %1377 = vmatprep.mubr.bf16.mxu0 0
    %1378 = vmatmul.mubr.bf16.gmra.mrb[0].mxu0 %v1307
    %v1379 = vpop.f32.mrb[0].mxu0
    %v1380 = vadd.f32 %v1259, %v1379
    %v1381 = vpop.f32.mrb[0].mxu0
    %v1382 = vpop.f32.mrb[0].mxu0
    %v1383 = vadd.f32 %v1262, %v1382
    %v1384 = vpop.f32.mrb[0].mxu0
    %1385 = vmatprep.mubr.bf16.mxu0 0
    %1386 = vmatmul.mubr.bf16.gmra.mrb[0].mxu0 %v1310
    %v1387 = vpop.f32.mrb[0].mxu0
    %v1388 = vadd.f32 %v1267, %v1387
    %v1389 = vpop.f32.mrb[0].mxu0
    %v1390 = vpop.f32.mrb[0].mxu0
    %v1391 = vadd.f32 %v1270, %v1390
    %v1392 = vpop.f32.mrb[0].mxu0
    %1393 = vmatprep.mubr.bf16.mxu0 0
    %1394 = vmatmul.mubr.bf16.gmra.mrb[0].mxu0 %v1313
    %v1395 = vpop.f32.mrb[0].mxu0
    %v1396 = vadd.f32 %v1275, %v1395
    %v1397 = vpop.f32.mrb[0].mxu0
    %v1398 = vpop.f32.mrb[0].mxu0
    %v1399 = vadd.f32 %v1278, %v1398
    %v1400 = vpop.f32.mrb[0].mxu0
    %1401 = vmatprep.mubr.bf16.mxu0 0
    %1402 = vmatmul.mubr.bf16.gmra.mrb[0].mxu0 %v1316
    %v1403 = vpop.f32.mrb[0].mxu0
    %v1404 = vadd.f32 %v1283, %v1403
    %v1405 = vpop.f32.mrb[0].mxu0
    %v1406 = vpop.f32.mrb[0].mxu0
    %v1407 = vadd.f32 %v1286, %v1406
    %v1408 = vpop.f32.mrb[0].mxu0
    %1409 = vmatprep.mubr.bf16.mxu0 0
    %1410 = vmatmul.mubr.bf16.gmra.mrb[0].mxu0 %v1319
    %v1411 = vpop.f32.mrb[0].mxu0
    %v1412 = vadd.f32 %v1291, %v1411
    %v1413 = vpop.f32.mrb[0].mxu0
    %v1414 = vpop.f32.mrb[0].mxu0
    %v1415 = vadd.f32 %v1294, %v1414
    %v1416 = vpop.f32.mrb[0].mxu0
    %1417 = vdwg.mxu0
    %v1418 = vadd.f32 %v1356, %v851
    %v1419 = vadd.f32 %v1359, %v852
    %v1420 = vadd.f32 %v1364, %v853
    %v1421 = vadd.f32 %v1367, %v854
    %v1422 = vadd.f32 %v1372, %v855
    %v1423 = vadd.f32 %v1375, %v856
    %v1424 = vadd.f32 %v1380, %v857
    %v1425 = vadd.f32 %v1383, %v858
    %v1426 = vadd.f32 %v1388, %v859
    %v1427 = vadd.f32 %v1391, %v860
    %v1428 = vadd.f32 %v1396, %v861
    %v1429 = vadd.f32 %v1399, %v862
    %v1430 = vadd.f32 %v1404, %v863
    %v1431 = vadd.f32 %v1407, %v864
    %v1432 = vadd.f32 %v1412, %v865
    %v1433 = vadd.f32 %v1415, %v866
    %s1434 = scalar_lea.vmem [#allocation3], 320
    %v1435 = vld [vmem:[%s1434] sm:$0xf]
    %v1436 = vld [vmem:[%s1434 + $0x4] sm:$0xf]
    %v1437 = vld [vmem:[%s1434 + $0x8] sm:$0xf]
    %v1438 = vld [vmem:[%s1434 + $0xc] sm:$0xf]
    %v1439 = vld [vmem:[%s1434 + $0x10] sm:$0xf]
    %v1440 = vld [vmem:[%s1434 + $0x14] sm:$0xf]
    %v1441 = vld [vmem:[%s1434 + $0x18] sm:$0xf]
    %v1442 = vld [vmem:[%s1434 + $0x1c] sm:$0xf]
    %v1443 = vld [vmem:[%s1434 + $0x20] sm:$0xf]
    %v1444 = vld [vmem:[%s1434 + $0x24] sm:$0xf]
    %v1445 = vld [vmem:[%s1434 + $0x28] sm:$0xf]
    %v1446 = vld [vmem:[%s1434 + $0x2c] sm:$0xf]
    %v1447 = vld [vmem:[%s1434 + $0x30] sm:$0xf]
    %v1448 = vld [vmem:[%s1434 + $0x34] sm:$0xf]
    %v1449 = vld [vmem:[%s1434 + $0x38] sm:$0xf]
    %v1450 = vld [vmem:[%s1434 + $0x3c] sm:$0xf]
    %v1451 = vpack.c.bf16 %v1419, %v1418
    %v1452 = vpack.c.bf16 %v1421, %v1420
    %v1453 = vpack.c.bf16 %v1423, %v1422
    %v1454 = vpack.c.bf16 %v1425, %v1424
    %v1455 = vpack.c.bf16 %v1427, %v1426
    %v1456 = vpack.c.bf16 %v1429, %v1428
    %v1457 = vpack.c.bf16 %v1431, %v1430
    %v1458 = vpack.c.bf16 %v1433, %v1432
    %v1459 = vld [vmem:[%s6] sm:$0x1]
    %v1461 = vlaneseq
    %v1462 = vshrl.u32 %v1461, 7
    %v1463 = vsub.s32 0, %v1462
    %v1464 = vrot.slane %v1459, %v1463
    %v1482 = vunpack.c.l.b16 %v1435
    %v1483 = vunpack.c.l.b16 %v1436
    %v1484 = vunpack.c.l.b16 %v1437
    %v1485 = vunpack.c.l.b16 %v1438
    %v1486 = vunpack.c.l.b16 %v1439
    %v1487 = vunpack.c.l.b16 %v1440
    %v1488 = vunpack.c.l.b16 %v1441
    %v1489 = vunpack.c.l.b16 %v1442
    %v1490 = vunpack.c.l.b16 %v1443
    %v1491 = vunpack.c.l.b16 %v1444
    %v1492 = vunpack.c.l.b16 %v1445
    %v1493 = vunpack.c.l.b16 %v1446
    %v1494 = vunpack.c.l.b16 %v1447
    %v1495 = vunpack.c.l.b16 %v1448
    %v1496 = vunpack.c.l.b16 %v1449
    %v1497 = vunpack.c.l.b16 %v1450
    %v1498 = vpack.c.b16 %v1483, %v1482
    %v1499 = vpack.c.b16 %v1485, %v1484
    %v1500 = vpack.c.b16 %v1487, %v1486
    %v1501 = vpack.c.b16 %v1489, %v1488
    %v1502 = vpack.c.b16 %v1491, %v1490
    %v1503 = vpack.c.b16 %v1493, %v1492
    %v1504 = vpack.c.b16 %v1495, %v1494
    %v1505 = vpack.c.b16 %v1497, %v1496
    %1514 = vmatprep.subr.bf16.mxu0 0
    %1515 = vmatpush1.bf16.msra.mxu0 %v1498
    %1516 = vmatprep.subr.bf16.mxu0 0
    %1517 = vmatpush1.bf16.msra.mxu0 %v1499
    %1518 = vmatprep.subr.bf16.mxu0 0
    %1519 = vmatpush1.bf16.msra.mxu0 %v1500
    %1520 = vmatprep.subr.bf16.mxu0 0
    %1521 = vmatpush1.bf16.msra.mxu0 %v1501
    %1522 = vmatprep.subr.bf16.mxu0 0
    %1523 = vmatpush1.bf16.msra.mxu0 %v1502
    %1524 = vmatprep.subr.bf16.mxu0 0
    %1525 = vmatpush1.bf16.msra.mxu0 %v1503
    %1526 = vmatprep.subr.bf16.mxu0 0
    %1527 = vmatpush1.bf16.msra.mxu0 %v1504
    %1528 = vmatprep.subr.bf16.mxu0 0
    %1529 = vmatpush1.bf16.msra.mxu0 %v1505
    %1530 = vmatprep.subr.bf16.mxu0 0
    %1531 = vmatpush1.bf16.msra.mxu0 0
    %1532 = vmatprep.subr.bf16.mxu0 0
    %1533 = vmatpush1.bf16.msra.mxu0 0
    %1534 = vmatprep.subr.bf16.mxu0 0
    %1535 = vmatpush1.bf16.msra.mxu0 0
    %1536 = vmatprep.subr.bf16.mxu0 0
    %1537 = vmatpush1.bf16.msra.mxu0 0
    %1538 = vmatprep.subr.bf16.mxu0 0
    %1539 = vmatpush1.bf16.msra.mxu0 0
    %1540 = vmatprep.subr.bf16.mxu0 0
    %1541 = vmatpush1.bf16.msra.mxu0 0
    %1542 = vmatprep.subr.bf16.mxu0 0
    %1543 = vmatpush1.bf16.msra.mxu0 0
    %1544 = vmatprep.subr.bf16.mxu0 0
    %1545 = vmatpush1.bf16.msra.mxu0 0
    %1546 = vmatprep.mubr.bf16.mxu0 0
    %1547 = vmatmul.mubr.bf16.gmra.mrb[0].mxu0 %v1451
    %v1548 = vpop.f32.mrb[0].mxu0
    %v1549 = vadd.f32 %v1464, %v1548
    %v1550 = vpop.f32.mrb[0].mxu0
    %v1551 = vpop.f32.mrb[0].mxu0
    %v1552 = vadd.f32 %v1464, %v1551
    %v1553 = vpop.f32.mrb[0].mxu0
    %1554 = vmatprep.mubr.bf16.mxu0 0
    %1555 = vmatmul.mubr.bf16.gmra.mrb[0].mxu0 %v1452
    %v1556 = vpop.f32.mrb[0].mxu0
    %v1557 = vadd.f32 %v1464, %v1556
    %v1558 = vpop.f32.mrb[0].mxu0
    %v1559 = vpop.f32.mrb[0].mxu0
    %v1560 = vadd.f32 %v1464, %v1559
    %v1561 = vpop.f32.mrb[0].mxu0
    %1562 = vmatprep.mubr.bf16.mxu0 0
    %1563 = vmatmul.mubr.bf16.gmra.mrb[0].mxu0 %v1453
    %v1564 = vpop.f32.mrb[0].mxu0
    %v1565 = vadd.f32 %v1464, %v1564
    %v1566 = vpop.f32.mrb[0].mxu0
    %v1567 = vpop.f32.mrb[0].mxu0
    %v1568 = vadd.f32 %v1464, %v1567
    %v1569 = vpop.f32.mrb[0].mxu0
    %1570 = vmatprep.mubr.bf16.mxu0 0
    %1571 = vmatmul.mubr.bf16.gmra.mrb[0].mxu0 %v1454
    %v1572 = vpop.f32.mrb[0].mxu0
    %v1573 = vadd.f32 %v1464, %v1572
    %v1574 = vpop.f32.mrb[0].mxu0
    %v1575 = vpop.f32.mrb[0].mxu0
    %v1576 = vadd.f32 %v1464, %v1575
    %v1577 = vpop.f32.mrb[0].mxu0
    %1578 = vmatprep.mubr.bf16.mxu0 0
    %1579 = vmatmul.mubr.bf16.gmra.mrb[0].mxu0 %v1455
    %v1580 = vpop.f32.mrb[0].mxu0
    %v1581 = vadd.f32 %v1464, %v1580
    %v1582 = vpop.f32.mrb[0].mxu0
    %v1583 = vpop.f32.mrb[0].mxu0
    %v1584 = vadd.f32 %v1464, %v1583
    %v1585 = vpop.f32.mrb[0].mxu0
    %1586 = vmatprep.mubr.bf16.mxu0 0
    %1587 = vmatmul.mubr.bf16.gmra.mrb[0].mxu0 %v1456
    %v1588 = vpop.f32.mrb[0].mxu0
    %v1589 = vadd.f32 %v1464, %v1588
    %v1590 = vpop.f32.mrb[0].mxu0
    %v1591 = vpop.f32.mrb[0].mxu0
    %v1592 = vadd.f32 %v1464, %v1591
    %v1593 = vpop.f32.mrb[0].mxu0
    %1594 = vmatprep.mubr.bf16.mxu0 0
    %1595 = vmatmul.mubr.bf16.gmra.mrb[0].mxu0 %v1457
    %v1596 = vpop.f32.mrb[0].mxu0
    %v1597 = vadd.f32 %v1464, %v1596
    %v1598 = vpop.f32.mrb[0].mxu0
    %v1599 = vpop.f32.mrb[0].mxu0
    %v1600 = vadd.f32 %v1464, %v1599
    %v1601 = vpop.f32.mrb[0].mxu0
    %1602 = vmatprep.mubr.bf16.mxu0 0
    %1603 = vmatmul.mubr.bf16.gmra.mrb[0].mxu0 %v1458
    %v1604 = vpop.f32.mrb[0].mxu0
    %v1605 = vadd.f32 %v1464, %v1604
    %v1606 = vpop.f32.mrb[0].mxu0
    %v1607 = vpop.f32.mrb[0].mxu0
    %v1608 = vadd.f32 %v1464, %v1607
    %v1609 = vpop.f32.mrb[0].mxu0
    %1610 = vdwg.mxu0
    %v1611 = vmax.f32 %v1549, 0.0
    %v1612 = vmax.f32 %v1552, 0.0
    %v1613 = vmax.f32 %v1557, 0.0
    %v1614 = vmax.f32 %v1560, 0.0
    %v1615 = vmax.f32 %v1565, 0.0
    %v1616 = vmax.f32 %v1568, 0.0
    %v1617 = vmax.f32 %v1573, 0.0
    %v1618 = vmax.f32 %v1576, 0.0
    %v1619 = vmax.f32 %v1581, 0.0
    %v1620 = vmax.f32 %v1584, 0.0
    %v1621 = vmax.f32 %v1589, 0.0
    %v1622 = vmax.f32 %v1592, 0.0
    %v1623 = vmax.f32 %v1597, 0.0
    %v1624 = vmax.f32 %v1600, 0.0
    %v1625 = vmax.f32 %v1605, 0.0
    %v1626 = vmax.f32 %v1608, 0.0
    %s1627 = scalar_lea.vmem [#allocation3], 384
    %v1628 = vld [vmem:[%s1627] sm:$0xf]
    %v1629 = vld [vmem:[%s1627 + $0x4] sm:$0xf]
    %v1630 = vld [vmem:[%s1627 + $0x8] sm:$0xf]
    %v1631 = vld [vmem:[%s1627 + $0xc] sm:$0xf]
    %v1632 = vld [vmem:[%s1627 + $0x10] sm:$0xf]
    %v1633 = vld [vmem:[%s1627 + $0x14] sm:$0xf]
    %v1634 = vld [vmem:[%s1627 + $0x18] sm:$0xf]
    %v1635 = vld [vmem:[%s1627 + $0x1c] sm:$0xf]
    %v1636 = vld [vmem:[%s1627 + $0x20] sm:$0xf]
    %v1637 = vld [vmem:[%s1627 + $0x24] sm:$0xf]
    %v1638 = vld [vmem:[%s1627 + $0x28] sm:$0xf]
    %v1639 = vld [vmem:[%s1627 + $0x2c] sm:$0xf]
    %v1640 = vld [vmem:[%s1627 + $0x30] sm:$0xf]
    %v1641 = vld [vmem:[%s1627 + $0x34] sm:$0xf]
    %v1642 = vld [vmem:[%s1627 + $0x38] sm:$0xf]
    %v1643 = vld [vmem:[%s1627 + $0x3c] sm:$0xf]
    %v1644 = vpack.c.bf16 %v1612, %v1611
    %v1645 = vpack.c.bf16 %v1614, %v1613
    %v1646 = vpack.c.bf16 %v1616, %v1615
    %v1647 = vpack.c.bf16 %v1618, %v1617
    %v1648 = vpack.c.bf16 %v1620, %v1619
    %v1649 = vpack.c.bf16 %v1622, %v1621
    %v1650 = vpack.c.bf16 %v1624, %v1623
    %v1651 = vpack.c.bf16 %v1626, %v1625
    %s1652 = scalar_lea.vmem %s6, 1
    %v1653 = vld [vmem:[%s1652] sm:$0x1]
    %v1655 = vlaneseq
    %v1656 = vshrl.u32 %v1655, 7
    %v1657 = vsub.s32 0, %v1656
    %v1658 = vrot.slane %v1653, %v1657
    %v1676 = vunpack.c.l.b16 %v1628
    %v1677 = vunpack.c.l.b16 %v1629
    %v1678 = vunpack.c.l.b16 %v1630
    %v1679 = vunpack.c.l.b16 %v1631
    %v1680 = vunpack.c.l.b16 %v1632
    %v1681 = vunpack.c.l.b16 %v1633
    %v1682 = vunpack.c.l.b16 %v1634
    %v1683 = vunpack.c.l.b16 %v1635
    %v1684 = vunpack.c.l.b16 %v1636
    %v1685 = vunpack.c.l.b16 %v1637
    %v1686 = vunpack.c.l.b16 %v1638
    %v1687 = vunpack.c.l.b16 %v1639
    %v1688 = vunpack.c.l.b16 %v1640
    %v1689 = vunpack.c.l.b16 %v1641
    %v1690 = vunpack.c.l.b16 %v1642
    %v1691 = vunpack.c.l.b16 %v1643
    %v1692 = vpack.c.b16 %v1677, %v1676
    %v1693 = vpack.c.b16 %v1679, %v1678
    %v1694 = vpack.c.b16 %v1681, %v1680
    %v1695 = vpack.c.b16 %v1683, %v1682
    %v1696 = vpack.c.b16 %v1685, %v1684
    %v1697 = vpack.c.b16 %v1687, %v1686
    %v1698 = vpack.c.b16 %v1689, %v1688
    %v1699 = vpack.c.b16 %v1691, %v1690
    %1708 = vmatprep.subr.bf16.mxu0 0
    %1709 = vmatpush1.bf16.msra.mxu0 %v1692
    %1710 = vmatprep.subr.bf16.mxu0 0
    %1711 = vmatpush1.bf16.msra.mxu0 %v1693
    %1712 = vmatprep.subr.bf16.mxu0 0
    %1713 = vmatpush1.bf16.msra.mxu0 %v1694
    %1714 = vmatprep.subr.bf16.mxu0 0
    %1715 = vmatpush1.bf16.msra.mxu0 %v1695
    %1716 = vmatprep.subr.bf16.mxu0 0
    %1717 = vmatpush1.bf16.msra.mxu0 %v1696
    %1718 = vmatprep.subr.bf16.mxu0 0
    %1719 = vmatpush1.bf16.msra.mxu0 %v1697
    %1720 = vmatprep.subr.bf16.mxu0 0
    %1721 = vmatpush1.bf16.msra.mxu0 %v1698
    %1722 = vmatprep.subr.bf16.mxu0 0
    %1723 = vmatpush1.bf16.msra.mxu0 %v1699
    %1724 = vmatprep.subr.bf16.mxu0 0
    %1725 = vmatpush1.bf16.msra.mxu0 0
    %1726 = vmatprep.subr.bf16.mxu0 0
    %1727 = vmatpush1.bf16.msra.mxu0 0
    %1728 = vmatprep.subr.bf16.mxu0 0
    %1729 = vmatpush1.bf16.msra.mxu0 0
    %1730 = vmatprep.subr.bf16.mxu0 0
    %1731 = vmatpush1.bf16.msra.mxu0 0
    %1732 = vmatprep.subr.bf16.mxu0 0
    %1733 = vmatpush1.bf16.msra.mxu0 0
    %1734 = vmatprep.subr.bf16.mxu0 0
    %1735 = vmatpush1.bf16.msra.mxu0 0
    %1736 = vmatprep.subr.bf16.mxu0 0
    %1737 = vmatpush1.bf16.msra.mxu0 0
    %1738 = vmatprep.subr.bf16.mxu0 0
    %1739 = vmatpush1.bf16.msra.mxu0 0
    %1740 = vmatprep.mubr.bf16.mxu0 0
    %1741 = vmatmul.mubr.bf16.gmra.mrb[0].mxu0 %v1644
    %v1742 = vpop.f32.mrb[0].mxu0
    %v1743 = vadd.f32 %v1658, %v1742
    %v1744 = vpop.f32.mrb[0].mxu0
    %v1745 = vpop.f32.mrb[0].mxu0
    %v1746 = vadd.f32 %v1658, %v1745
    %v1747 = vpop.f32.mrb[0].mxu0
    %1748 = vmatprep.mubr.bf16.mxu0 0
    %1749 = vmatmul.mubr.bf16.gmra.mrb[0].mxu0 %v1645
    %v1750 = vpop.f32.mrb[0].mxu0
    %v1751 = vadd.f32 %v1658, %v1750
    %v1752 = vpop.f32.mrb[0].mxu0
    %v1753 = vpop.f32.mrb[0].mxu0
    %v1754 = vadd.f32 %v1658, %v1753
    %v1755 = vpop.f32.mrb[0].mxu0
    %1756 = vmatprep.mubr.bf16.mxu0 0
    %1757 = vmatmul.mubr.bf16.gmra.mrb[0].mxu0 %v1646
    %v1758 = vpop.f32.mrb[0].mxu0
    %v1759 = vadd.f32 %v1658, %v1758
    %v1760 = vpop.f32.mrb[0].mxu0
    %v1761 = vpop.f32.mrb[0].mxu0
    %v1762 = vadd.f32 %v1658, %v1761
    %v1763 = vpop.f32.mrb[0].mxu0
    %1764 = vmatprep.mubr.bf16.mxu0 0
    %1765 = vmatmul.mubr.bf16.gmra.mrb[0].mxu0 %v1647
    %v1766 = vpop.f32.mrb[0].mxu0
    %v1767 = vadd.f32 %v1658, %v1766
    %v1768 = vpop.f32.mrb[0].mxu0
    %v1769 = vpop.f32.mrb[0].mxu0
    %v1770 = vadd.f32 %v1658, %v1769
    %v1771 = vpop.f32.mrb[0].mxu0
    %1772 = vmatprep.mubr.bf16.mxu0 0
    %1773 = vmatmul.mubr.bf16.gmra.mrb[0].mxu0 %v1648
    %v1774 = vpop.f32.mrb[0].mxu0
    %v1775 = vadd.f32 %v1658, %v1774
    %v1776 = vpop.f32.mrb[0].mxu0
    %v1777 = vpop.f32.mrb[0].mxu0
    %v1778 = vadd.f32 %v1658, %v1777
    %v1779 = vpop.f32.mrb[0].mxu0
    %1780 = vmatprep.mubr.bf16.mxu0 0
    %1781 = vmatmul.mubr.bf16.gmra.mrb[0].mxu0 %v1649
    %v1782 = vpop.f32.mrb[0].mxu0
    %v1783 = vadd.f32 %v1658, %v1782
    %v1784 = vpop.f32.mrb[0].mxu0
    %v1785 = vpop.f32.mrb[0].mxu0
    %v1786 = vadd.f32 %v1658, %v1785
    %v1787 = vpop.f32.mrb[0].mxu0
    %1788 = vmatprep.mubr.bf16.mxu0 0
    %1789 = vmatmul.mubr.bf16.gmra.mrb[0].mxu0 %v1650
    %v1790 = vpop.f32.mrb[0].mxu0
    %v1791 = vadd.f32 %v1658, %v1790
    %v1792 = vpop.f32.mrb[0].mxu0
    %v1793 = vpop.f32.mrb[0].mxu0
    %v1794 = vadd.f32 %v1658, %v1793
    %v1795 = vpop.f32.mrb[0].mxu0
    %1796 = vmatprep.mubr.bf16.mxu0 0
    %1797 = vmatmul.mubr.bf16.gmra.mrb[0].mxu0 %v1651
    %v1798 = vpop.f32.mrb[0].mxu0
    %v1799 = vadd.f32 %v1658, %v1798
    %v1800 = vpop.f32.mrb[0].mxu0
    %v1801 = vpop.f32.mrb[0].mxu0
    %v1802 = vadd.f32 %v1658, %v1801
    %v1803 = vpop.f32.mrb[0].mxu0
    %1804 = vdwg.mxu0
    %v1805 = vmax.f32 %v1743, 0.0
    %v1806 = vmax.f32 %v1746, 0.0
    %v1807 = vmax.f32 %v1751, 0.0
    %v1808 = vmax.f32 %v1754, 0.0
    %v1809 = vmax.f32 %v1759, 0.0
    %v1810 = vmax.f32 %v1762, 0.0
    %v1811 = vmax.f32 %v1767, 0.0
    %v1812 = vmax.f32 %v1770, 0.0
    %v1813 = vmax.f32 %v1775, 0.0
    %v1814 = vmax.f32 %v1778, 0.0
    %v1815 = vmax.f32 %v1783, 0.0
    %v1816 = vmax.f32 %v1786, 0.0
    %v1817 = vmax.f32 %v1791, 0.0
    %v1818 = vmax.f32 %v1794, 0.0
    %v1819 = vmax.f32 %v1799, 0.0
    %v1820 = vmax.f32 %v1802, 0.0
    %s1821 = scalar_lea.vmem [#allocation3], 448
    %v1822 = vld [vmem:[%s1821] sm:$0xf]
    %v1823 = vld [vmem:[%s1821 + $0x4] sm:$0xf]
    %v1824 = vld [vmem:[%s1821 + $0x8] sm:$0xf]
    %v1825 = vld [vmem:[%s1821 + $0xc] sm:$0xf]
    %v1826 = vld [vmem:[%s1821 + $0x10] sm:$0xf]
    %v1827 = vld [vmem:[%s1821 + $0x14] sm:$0xf]
    %v1828 = vld [vmem:[%s1821 + $0x18] sm:$0xf]
    %v1829 = vld [vmem:[%s1821 + $0x1c] sm:$0xf]
    %v1830 = vld [vmem:[%s1821 + $0x20] sm:$0xf]
    %v1831 = vld [vmem:[%s1821 + $0x24] sm:$0xf]
    %v1832 = vld [vmem:[%s1821 + $0x28] sm:$0xf]
    %v1833 = vld [vmem:[%s1821 + $0x2c] sm:$0xf]
    %v1834 = vld [vmem:[%s1821 + $0x30] sm:$0xf]
    %v1835 = vld [vmem:[%s1821 + $0x34] sm:$0xf]
    %v1836 = vld [vmem:[%s1821 + $0x38] sm:$0xf]
    %v1837 = vld [vmem:[%s1821 + $0x3c] sm:$0xf]
    %v1838 = vpack.c.bf16 %v1806, %v1805
    %v1839 = vpack.c.bf16 %v1808, %v1807
    %v1840 = vpack.c.bf16 %v1810, %v1809
    %v1841 = vpack.c.bf16 %v1812, %v1811
    %v1842 = vpack.c.bf16 %v1814, %v1813
    %v1843 = vpack.c.bf16 %v1816, %v1815
    %v1844 = vpack.c.bf16 %v1818, %v1817
    %v1845 = vpack.c.bf16 %v1820, %v1819
    %s1846 = scalar_lea.vmem %s6, 2
    %v1847 = vld [vmem:[%s1846] sm:$0x1]
    %v1849 = vlaneseq
    %v1850 = vshrl.u32 %v1849, 7
    %v1851 = vsub.s32 0, %v1850
    %v1852 = vrot.slane %v1847, %v1851
    %v1870 = vunpack.c.l.b16 %v1822
    %v1871 = vunpack.c.l.b16 %v1823
    %v1872 = vunpack.c.l.b16 %v1824
    %v1873 = vunpack.c.l.b16 %v1825
    %v1874 = vunpack.c.l.b16 %v1826
    %v1875 = vunpack.c.l.b16 %v1827
    %v1876 = vunpack.c.l.b16 %v1828
    %v1877 = vunpack.c.l.b16 %v1829
    %v1878 = vunpack.c.l.b16 %v1830
    %v1879 = vunpack.c.l.b16 %v1831
    %v1880 = vunpack.c.l.b16 %v1832
    %v1881 = vunpack.c.l.b16 %v1833
    %v1882 = vunpack.c.l.b16 %v1834
    %v1883 = vunpack.c.l.b16 %v1835
    %v1884 = vunpack.c.l.b16 %v1836
    %v1885 = vunpack.c.l.b16 %v1837
    %v1886 = vpack.c.b16 %v1871, %v1870
    %v1887 = vpack.c.b16 %v1873, %v1872
    %v1888 = vpack.c.b16 %v1875, %v1874
    %v1889 = vpack.c.b16 %v1877, %v1876
    %v1890 = vpack.c.b16 %v1879, %v1878
    %v1891 = vpack.c.b16 %v1881, %v1880
    %v1892 = vpack.c.b16 %v1883, %v1882
    %v1893 = vpack.c.b16 %v1885, %v1884
    %1902 = vmatprep.subr.bf16.mxu0 0
    %1903 = vmatpush1.bf16.msra.mxu0 %v1886
    %1904 = vmatprep.subr.bf16.mxu0 0
    %1905 = vmatpush1.bf16.msra.mxu0 %v1887
    %1906 = vmatprep.subr.bf16.mxu0 0
    %1907 = vmatpush1.bf16.msra.mxu0 %v1888
    %1908 = vmatprep.subr.bf16.mxu0 0
    %1909 = vmatpush1.bf16.msra.mxu0 %v1889
    %1910 = vmatprep.subr.bf16.mxu0 0
    %1911 = vmatpush1.bf16.msra.mxu0 %v1890
    %1912 = vmatprep.subr.bf16.mxu0 0
    %1913 = vmatpush1.bf16.msra.mxu0 %v1891
    %1914 = vmatprep.subr.bf16.mxu0 0
    %1915 = vmatpush1.bf16.msra.mxu0 %v1892
    %1916 = vmatprep.subr.bf16.mxu0 0
    %1917 = vmatpush1.bf16.msra.mxu0 %v1893
    %1918 = vmatprep.subr.bf16.mxu0 0
    %1919 = vmatpush1.bf16.msra.mxu0 0
    %1920 = vmatprep.subr.bf16.mxu0 0
    %1921 = vmatpush1.bf16.msra.mxu0 0
    %1922 = vmatprep.subr.bf16.mxu0 0
    %1923 = vmatpush1.bf16.msra.mxu0 0
    %1924 = vmatprep.subr.bf16.mxu0 0
    %1925 = vmatpush1.bf16.msra.mxu0 0
    %1926 = vmatprep.subr.bf16.mxu0 0
    %1927 = vmatpush1.bf16.msra.mxu0 0
    %1928 = vmatprep.subr.bf16.mxu0 0
    %1929 = vmatpush1.bf16.msra.mxu0 0
    %1930 = vmatprep.subr.bf16.mxu0 0
    %1931 = vmatpush1.bf16.msra.mxu0 0
    %1932 = vmatprep.subr.bf16.mxu0 0
    %1933 = vmatpush1.bf16.msra.mxu0 0
    %1934 = vmatprep.mubr.bf16.mxu0 0
    %1935 = vmatmul.mubr.bf16.gmra.mrb[0].mxu0 %v1838
    %v1936 = vpop.f32.mrb[0].mxu0
    %v1937 = vadd.f32 %v1852, %v1936
    %v1938 = vpop.f32.mrb[0].mxu0
    %v1939 = vpop.f32.mrb[0].mxu0
    %v1940 = vadd.f32 %v1852, %v1939
    %v1941 = vpop.f32.mrb[0].mxu0
    %1942 = vmatprep.mubr.bf16.mxu0 0
    %1943 = vmatmul.mubr.bf16.gmra.mrb[0].mxu0 %v1839
    %v1944 = vpop.f32.mrb[0].mxu0
    %v1945 = vadd.f32 %v1852, %v1944
    %v1946 = vpop.f32.mrb[0].mxu0
    %v1947 = vpop.f32.mrb[0].mxu0
    %v1948 = vadd.f32 %v1852, %v1947
    %v1949 = vpop.f32.mrb[0].mxu0
    %1950 = vmatprep.mubr.bf16.mxu0 0
    %1951 = vmatmul.mubr.bf16.gmra.mrb[0].mxu0 %v1840
    %v1952 = vpop.f32.mrb[0].mxu0
    %v1953 = vadd.f32 %v1852, %v1952
    %v1954 = vpop.f32.mrb[0].mxu0
    %v1955 = vpop.f32.mrb[0].mxu0
    %v1956 = vadd.f32 %v1852, %v1955
    %v1957 = vpop.f32.mrb[0].mxu0
    %1958 = vmatprep.mubr.bf16.mxu0 0
    %1959 = vmatmul.mubr.bf16.gmra.mrb[0].mxu0 %v1841
    %v1960 = vpop.f32.mrb[0].mxu0
    %v1961 = vadd.f32 %v1852, %v1960
    %v1962 = vpop.f32.mrb[0].mxu0
    %v1963 = vpop.f32.mrb[0].mxu0
    %v1964 = vadd.f32 %v1852, %v1963
    %v1965 = vpop.f32.mrb[0].mxu0
    %1966 = vmatprep.mubr.bf16.mxu0 0
    %1967 = vmatmul.mubr.bf16.gmra.mrb[0].mxu0 %v1842
    %v1968 = vpop.f32.mrb[0].mxu0
    %v1969 = vadd.f32 %v1852, %v1968
    %v1970 = vpop.f32.mrb[0].mxu0
    %v1971 = vpop.f32.mrb[0].mxu0
    %v1972 = vadd.f32 %v1852, %v1971
    %v1973 = vpop.f32.mrb[0].mxu0
    %1974 = vmatprep.mubr.bf16.mxu0 0
    %1975 = vmatmul.mubr.bf16.gmra.mrb[0].mxu0 %v1843
    %v1976 = vpop.f32.mrb[0].mxu0
    %v1977 = vadd.f32 %v1852, %v1976
    %v1978 = vpop.f32.mrb[0].mxu0
    %v1979 = vpop.f32.mrb[0].mxu0
    %v1980 = vadd.f32 %v1852, %v1979
    %v1981 = vpop.f32.mrb[0].mxu0
    %1982 = vmatprep.mubr.bf16.mxu0 0
    %1983 = vmatmul.mubr.bf16.gmra.mrb[0].mxu0 %v1844
    %v1984 = vpop.f32.mrb[0].mxu0
    %v1985 = vadd.f32 %v1852, %v1984
    %v1986 = vpop.f32.mrb[0].mxu0
    %v1987 = vpop.f32.mrb[0].mxu0
    %v1988 = vadd.f32 %v1852, %v1987
    %v1989 = vpop.f32.mrb[0].mxu0
    %1990 = vmatprep.mubr.bf16.mxu0 0
    %1991 = vmatmul.mubr.bf16.gmra.mrb[0].mxu0 %v1845
    %v1992 = vpop.f32.mrb[0].mxu0
    %v1993 = vadd.f32 %v1852, %v1992
    %v1994 = vpop.f32.mrb[0].mxu0
    %v1995 = vpop.f32.mrb[0].mxu0
    %v1996 = vadd.f32 %v1852, %v1995
    %v1997 = vpop.f32.mrb[0].mxu0
    %1998 = vdwg.mxu0
    %v1999 = vpack.c.bf16 %v1940, %v1937
    %v2000 = vpack.c.bf16 %v1948, %v1945
    %v2001 = vpack.c.bf16 %v1956, %v1953
    %v2002 = vpack.c.bf16 %v1964, %v1961
    %v2003 = vpack.c.bf16 %v1972, %v1969
    %v2004 = vpack.c.bf16 %v1980, %v1977
    %v2005 = vpack.c.bf16 %v1988, %v1985
    %v2006 = vpack.c.bf16 %v1996, %v1993
    %v2007 = vunpack.c.l.bf16 %v1999
    %v2008 = vunpack.c.h.bf16 %v1999
    %v2009 = vunpack.c.l.bf16 %v2000
    %v2010 = vunpack.c.h.bf16 %v2000
    %v2011 = vunpack.c.l.bf16 %v2001
    %v2012 = vunpack.c.h.bf16 %v2001
    %v2013 = vunpack.c.l.bf16 %v2002
    %v2014 = vunpack.c.h.bf16 %v2002
    %v2015 = vunpack.c.l.bf16 %v2003
    %v2016 = vunpack.c.h.bf16 %v2003
    %v2017 = vunpack.c.l.bf16 %v2004
    %v2018 = vunpack.c.h.bf16 %v2004
    %v2019 = vunpack.c.l.bf16 %v2005
    %v2020 = vunpack.c.h.bf16 %v2005
    %v2021 = vunpack.c.l.bf16 %v2006
    %v2022 = vunpack.c.h.bf16 %v2006
    %v2023 = vsub.f32 %v1937, %v2007
    %v2024 = vsub.f32 %v1940, %v2008
    %v2025 = vsub.f32 %v1945, %v2009
    %v2026 = vsub.f32 %v1948, %v2010
    %v2027 = vsub.f32 %v1953, %v2011
    %v2028 = vsub.f32 %v1956, %v2012
    %v2029 = vsub.f32 %v1961, %v2013
    %v2030 = vsub.f32 %v1964, %v2014
    %v2031 = vsub.f32 %v1969, %v2015
    %v2032 = vsub.f32 %v1972, %v2016
    %v2033 = vsub.f32 %v1977, %v2017
    %v2034 = vsub.f32 %v1980, %v2018
    %v2035 = vsub.f32 %v1985, %v2019
    %v2036 = vsub.f32 %v1988, %v2020
    %v2037 = vsub.f32 %v1993, %v2021
    %v2038 = vsub.f32 %v1996, %v2022
    %v2039 = vpack.c.bf16 %v2024, %v2023
    %v2040 = vpack.c.bf16 %v2026, %v2025
    %v2041 = vpack.c.bf16 %v2028, %v2027
    %v2042 = vpack.c.bf16 %v2030, %v2029
    %v2043 = vpack.c.bf16 %v2032, %v2031
    %v2044 = vpack.c.bf16 %v2034, %v2033
    %v2045 = vpack.c.bf16 %v2036, %v2035
    %v2046 = vpack.c.bf16 %v2038, %v2037
    %2047 = vmatprep.subr.bf16.mxu0 0
    %2048 = vmatpush1.bf16.msra.mxu0 %v2039
    %2049 = vmatprep.subr.bf16.mxu0 0
    %2050 = vmatpush1.bf16.msra.mxu0 %v2040
    %2051 = vmatprep.subr.bf16.mxu0 0
    %2052 = vmatpush1.bf16.msra.mxu0 %v2041
    %2053 = vmatprep.subr.bf16.mxu0 0
    %2054 = vmatpush1.bf16.msra.mxu0 %v2042
    %2055 = vmatprep.subr.bf16.mxu0 0
    %2056 = vmatpush1.bf16.msra.mxu0 %v2043
    %2057 = vmatprep.subr.bf16.mxu0 0
    %2058 = vmatpush1.bf16.msra.mxu0 %v2044
    %2059 = vmatprep.subr.bf16.mxu0 0
    %2060 = vmatpush1.bf16.msra.mxu0 %v2045
    %2061 = vmatprep.subr.bf16.mxu0 0
    %2062 = vmatpush1.bf16.msra.mxu0 %v2046
    %2063 = vmatprep.subr.bf16.mxu0 0
    %2064 = vmatpush1.bf16.msra.mxu0 0
    %2065 = vmatprep.subr.bf16.mxu0 0
    %2066 = vmatpush1.bf16.msra.mxu0 0
    %2067 = vmatprep.subr.bf16.mxu0 0
    %2068 = vmatpush1.bf16.msra.mxu0 0
    %2069 = vmatprep.subr.bf16.mxu0 0
    %2070 = vmatpush1.bf16.msra.mxu0 0
    %2071 = vmatprep.subr.bf16.mxu0 0
    %2072 = vmatpush1.bf16.msra.mxu0 0
    %2073 = vmatprep.subr.bf16.mxu0 0
    %2074 = vmatpush1.bf16.msra.mxu0 0
    %2075 = vmatprep.subr.bf16.mxu0 0
    %2076 = vmatpush1.bf16.msra.mxu0 0
    %2077 = vmatprep.subr.bf16.mxu0 0
    %2078 = vmatpush1.bf16.msra.mxu0 0
    %2079 = vmatprep.mubr.bf16.mxu0 0
    %2080 = vmatmul.mubr.bf16.gmra.mrb[0].mxu0 %v1147
    %v2081 = vpop.f32.mrb[0].mxu0
    %v2082 = vadd.f32 0.0, %v2081
    %v2083 = vpop.f32.mrb[0].mxu0
    %v2084 = vpop.f32.mrb[0].mxu0
    %v2085 = vadd.f32 0.0, %v2084
    %v2086 = vpop.f32.mrb[0].mxu0
    %2087 = vmatprep.mubr.bf16.mxu0 0
    %2088 = vmatmul.mubr.bf16.gmra.mrb[0].mxu0 %v1148
    %v2089 = vpop.f32.mrb[0].mxu0
    %v2090 = vadd.f32 0.0, %v2089
    %v2091 = vpop.f32.mrb[0].mxu0
    %v2092 = vpop.f32.mrb[0].mxu0
    %v2093 = vadd.f32 0.0, %v2092
    %v2094 = vpop.f32.mrb[0].mxu0
    %2095 = vmatprep.mubr.bf16.mxu0 0
    %2096 = vmatmul.mubr.bf16.gmra.mrb[0].mxu0 %v1149
    %v2097 = vpop.f32.mrb[0].mxu0
    %v2098 = vadd.f32 0.0, %v2097
    %v2099 = vpop.f32.mrb[0].mxu0
    %v2100 = vpop.f32.mrb[0].mxu0
    %v2101 = vadd.f32 0.0, %v2100
    %v2102 = vpop.f32.mrb[0].mxu0
    %2103 = vmatprep.mubr.bf16.mxu0 0
    %2104 = vmatmul.mubr.bf16.gmra.mrb[0].mxu0 %v1150
    %v2105 = vpop.f32.mrb[0].mxu0
    %v2106 = vadd.f32 0.0, %v2105
    %v2107 = vpop.f32.mrb[0].mxu0
    %v2108 = vpop.f32.mrb[0].mxu0
    %v2109 = vadd.f32 0.0, %v2108
    %v2110 = vpop.f32.mrb[0].mxu0
    %2111 = vdwg.mxu0
    %2112 = vmatprep.subr.bf16.mxu0 0
    %2113 = vmatpush1.bf16.msra.mxu0 %v1999
    %2114 = vmatprep.subr.bf16.mxu0 0
    %2115 = vmatpush1.bf16.msra.mxu0 %v2000
    %2116 = vmatprep.subr.bf16.mxu0 0
    %2117 = vmatpush1.bf16.msra.mxu0 %v2001
    %2118 = vmatprep.subr.bf16.mxu0 0
    %2119 = vmatpush1.bf16.msra.mxu0 %v2002
    %2120 = vmatprep.subr.bf16.mxu0 0
    %2121 = vmatpush1.bf16.msra.mxu0 %v2003
    %2122 = vmatprep.subr.bf16.mxu0 0
    %2123 = vmatpush1.bf16.msra.mxu0 %v2004
    %2124 = vmatprep.subr.bf16.mxu0 0
    %2125 = vmatpush1.bf16.msra.mxu0 %v2005
    %2126 = vmatprep.subr.bf16.mxu0 0
    %2127 = vmatpush1.bf16.msra.mxu0 %v2006
    %2128 = vmatprep.subr.bf16.mxu0 0
    %2129 = vmatpush1.bf16.msra.mxu0 0
    %2130 = vmatprep.subr.bf16.mxu0 0
    %2131 = vmatpush1.bf16.msra.mxu0 0
    %2132 = vmatprep.subr.bf16.mxu0 0
    %2133 = vmatpush1.bf16.msra.mxu0 0
    %2134 = vmatprep.subr.bf16.mxu0 0
    %2135 = vmatpush1.bf16.msra.mxu0 0
    %2136 = vmatprep.subr.bf16.mxu0 0
    %2137 = vmatpush1.bf16.msra.mxu0 0
    %2138 = vmatprep.subr.bf16.mxu0 0
    %2139 = vmatpush1.bf16.msra.mxu0 0
    %2140 = vmatprep.subr.bf16.mxu0 0
    %2141 = vmatpush1.bf16.msra.mxu0 0
    %2142 = vmatprep.subr.bf16.mxu0 0
    %2143 = vmatpush1.bf16.msra.mxu0 0
    %2144 = vmatprep.mubr.bf16.mxu0 0
    %2145 = vmatmul.mubr.bf16.gmra.mrb[0].mxu0 %v1147
    %v2146 = vpop.f32.mrb[0].mxu0
    %v2147 = vadd.f32 %v2082, %v2146
    %v2148 = vpop.f32.mrb[0].mxu0
    %v2149 = vpop.f32.mrb[0].mxu0
    %v2150 = vadd.f32 %v2085, %v2149
    %v2151 = vpop.f32.mrb[0].mxu0
    %2152 = vmatprep.mubr.bf16.mxu0 0
    %2153 = vmatmul.mubr.bf16.gmra.mrb[0].mxu0 %v1148
    %v2154 = vpop.f32.mrb[0].mxu0
    %v2155 = vadd.f32 %v2090, %v2154
    %v2156 = vpop.f32.mrb[0].mxu0
    %v2157 = vpop.f32.mrb[0].mxu0
    %v2158 = vadd.f32 %v2093, %v2157
    %v2159 = vpop.f32.mrb[0].mxu0
    %2160 = vmatprep.mubr.bf16.mxu0 0
    %2161 = vmatmul.mubr.bf16.gmra.mrb[0].mxu0 %v1149
    %v2162 = vpop.f32.mrb[0].mxu0
    %v2163 = vadd.f32 %v2098, %v2162
    %v2164 = vpop.f32.mrb[0].mxu0
    %v2165 = vpop.f32.mrb[0].mxu0
    %v2166 = vadd.f32 %v2101, %v2165
    %v2167 = vpop.f32.mrb[0].mxu0
    %2168 = vmatprep.mubr.bf16.mxu0 0
    %2169 = vmatmul.mubr.bf16.gmra.mrb[0].mxu0 %v1150
    %v2170 = vpop.f32.mrb[0].mxu0
    %v2171 = vadd.f32 %v2106, %v2170
    %v2172 = vpop.f32.mrb[0].mxu0
    %v2173 = vpop.f32.mrb[0].mxu0
    %v2174 = vadd.f32 %v2109, %v2173
    %v2175 = vpop.f32.mrb[0].mxu0
    %2176 = vdwg.mxu0
    %v2177 = vadd.f32 %v471, %v2147
    %v2178 = vadd.f32 %v472, %v2150
    %v2179 = vadd.f32 %v473, %v2155
    %v2180 = vadd.f32 %v474, %v2158
    %v2181 = vadd.f32 %v475, %v2163
    %v2182 = vadd.f32 %v476, %v2166
    %v2183 = vadd.f32 %v477, %v2171
    %v2184 = vadd.f32 %v478, %v2174
    %s2185 = scalar_lea.vmem [#allocation3], 512
    %v2186 = vld [vmem:[%s2185] sm:$0xf]
    %v2187 = vld [vmem:[%s2185 + $0x4] sm:$0xf]
    %v2188 = vld [vmem:[%s2185 + $0x8] sm:$0xf]
    %v2189 = vld [vmem:[%s2185 + $0xc] sm:$0xf]
    %v2190 = vld [vmem:[%s2185 + $0x10] sm:$0xf]
    %v2191 = vld [vmem:[%s2185 + $0x14] sm:$0xf]
    %v2192 = vld [vmem:[%s2185 + $0x18] sm:$0xf]
    %v2193 = vld [vmem:[%s2185 + $0x1c] sm:$0xf]
    %v2194 = vld [vmem:[%s2185 + $0x20] sm:$0xf]
    %v2195 = vld [vmem:[%s2185 + $0x24] sm:$0xf]
    %v2196 = vld [vmem:[%s2185 + $0x28] sm:$0xf]
    %v2197 = vld [vmem:[%s2185 + $0x2c] sm:$0xf]
    %v2198 = vld [vmem:[%s2185 + $0x30] sm:$0xf]
    %v2199 = vld [vmem:[%s2185 + $0x34] sm:$0xf]
    %v2200 = vld [vmem:[%s2185 + $0x38] sm:$0xf]
    %v2201 = vld [vmem:[%s2185 + $0x3c] sm:$0xf]
    %v2202 = vpack.c.bf16 %v2178, %v2177
    %v2203 = vpack.c.bf16 %v2180, %v2179
    %v2204 = vpack.c.bf16 %v2182, %v2181
    %v2205 = vpack.c.bf16 %v2184, %v2183
    %s2206 = scalar_lea.vmem %s6, 3
    %v2207 = vld [vmem:[%s2206] sm:$0x1]
    %v2209 = vlaneseq
    %v2210 = vshrl.u32 %v2209, 7
    %v2211 = vsub.s32 0, %v2210
    %v2212 = vrot.slane %v2207, %v2211
    %v2230 = vunpack.c.l.b16 %v2186
    %v2231 = vunpack.c.l.b16 %v2187
    %v2232 = vunpack.c.l.b16 %v2188
    %v2233 = vunpack.c.l.b16 %v2189
    %v2234 = vunpack.c.l.b16 %v2190
    %v2235 = vunpack.c.l.b16 %v2191
    %v2236 = vunpack.c.l.b16 %v2192
    %v2237 = vunpack.c.l.b16 %v2193
    %v2238 = vunpack.c.l.b16 %v2194
    %v2239 = vunpack.c.l.b16 %v2195
    %v2240 = vunpack.c.l.b16 %v2196
    %v2241 = vunpack.c.l.b16 %v2197
    %v2242 = vunpack.c.l.b16 %v2198
    %v2243 = vunpack.c.l.b16 %v2199
    %v2244 = vunpack.c.l.b16 %v2200
    %v2245 = vunpack.c.l.b16 %v2201
    %v2246 = vpack.c.b16 %v2231, %v2230
    %v2247 = vpack.c.b16 %v2233, %v2232
    %v2248 = vpack.c.b16 %v2235, %v2234
    %v2249 = vpack.c.b16 %v2237, %v2236
    %v2250 = vpack.c.b16 %v2239, %v2238
    %v2251 = vpack.c.b16 %v2241, %v2240
    %v2252 = vpack.c.b16 %v2243, %v2242
    %v2253 = vpack.c.b16 %v2245, %v2244
    %2262 = vmatprep.subr.bf16.mxu0 0
    %2263 = vmatpush1.bf16.msra.mxu0 %v2246
    %2264 = vmatprep.subr.bf16.mxu0 0
    %2265 = vmatpush1.bf16.msra.mxu0 %v2247
    %2266 = vmatprep.subr.bf16.mxu0 0
    %2267 = vmatpush1.bf16.msra.mxu0 %v2248
    %2268 = vmatprep.subr.bf16.mxu0 0
    %2269 = vmatpush1.bf16.msra.mxu0 %v2249
    %2270 = vmatprep.subr.bf16.mxu0 0
    %2271 = vmatpush1.bf16.msra.mxu0 %v2250
    %2272 = vmatprep.subr.bf16.mxu0 0
    %2273 = vmatpush1.bf16.msra.mxu0 %v2251
    %2274 = vmatprep.subr.bf16.mxu0 0
    %2275 = vmatpush1.bf16.msra.mxu0 %v2252
    %2276 = vmatprep.subr.bf16.mxu0 0
    %2277 = vmatpush1.bf16.msra.mxu0 %v2253
    %2278 = vmatprep.subr.bf16.mxu0 0
    %2279 = vmatpush1.bf16.msra.mxu0 0
    %2280 = vmatprep.subr.bf16.mxu0 0
    %2281 = vmatpush1.bf16.msra.mxu0 0
    %2282 = vmatprep.subr.bf16.mxu0 0
    %2283 = vmatpush1.bf16.msra.mxu0 0
    %2284 = vmatprep.subr.bf16.mxu0 0
    %2285 = vmatpush1.bf16.msra.mxu0 0
    %2286 = vmatprep.subr.bf16.mxu0 0
    %2287 = vmatpush1.bf16.msra.mxu0 0
    %2288 = vmatprep.subr.bf16.mxu0 0
    %2289 = vmatpush1.bf16.msra.mxu0 0
    %2290 = vmatprep.subr.bf16.mxu0 0
    %2291 = vmatpush1.bf16.msra.mxu0 0
    %2292 = vmatprep.subr.bf16.mxu0 0
    %2293 = vmatpush1.bf16.msra.mxu0 0
    %2294 = vmatprep.mubr.bf16.mxu0 0
    %2295 = vmatmul.mubr.bf16.gmra.mrb[0].mxu0 %v2202
    %v2296 = vpop.f32.mrb[0].mxu0
    %v2297 = vadd.f32 %v2212, %v2296
    %v2298 = vpop.f32.mrb[0].mxu0
    %v2299 = vpop.f32.mrb[0].mxu0
    %v2300 = vadd.f32 %v2212, %v2299
    %v2301 = vpop.f32.mrb[0].mxu0
    %2302 = vmatprep.mubr.bf16.mxu0 0
    %2303 = vmatmul.mubr.bf16.gmra.mrb[0].mxu0 %v2203
    %v2304 = vpop.f32.mrb[0].mxu0
    %v2305 = vadd.f32 %v2212, %v2304
    %v2306 = vpop.f32.mrb[0].mxu0
    %v2307 = vpop.f32.mrb[0].mxu0
    %v2308 = vadd.f32 %v2212, %v2307
    %v2309 = vpop.f32.mrb[0].mxu0
    %2310 = vmatprep.mubr.bf16.mxu0 0
    %2311 = vmatmul.mubr.bf16.gmra.mrb[0].mxu0 %v2204
    %v2312 = vpop.f32.mrb[0].mxu0
    %v2313 = vadd.f32 %v2212, %v2312
    %v2314 = vpop.f32.mrb[0].mxu0
    %v2315 = vpop.f32.mrb[0].mxu0
    %v2316 = vadd.f32 %v2212, %v2315
    %v2317 = vpop.f32.mrb[0].mxu0
    %2318 = vmatprep.mubr.bf16.mxu0 0
    %2319 = vmatmul.mubr.bf16.gmra.mrb[0].mxu0 %v2205
    %v2320 = vpop.f32.mrb[0].mxu0
    %v2321 = vadd.f32 %v2212, %v2320
    %v2322 = vpop.f32.mrb[0].mxu0
    %v2323 = vpop.f32.mrb[0].mxu0
    %v2324 = vadd.f32 %v2212, %v2323
    %v2325 = vpop.f32.mrb[0].mxu0
    %2326 = vdwg.mxu0
    %v2327 = vmax.f32 %v2297, 0.0
    %v2328 = vmax.f32 %v2300, 0.0
    %v2329 = vmax.f32 %v2305, 0.0
    %v2330 = vmax.f32 %v2308, 0.0
    %v2331 = vmax.f32 %v2313, 0.0
    %v2332 = vmax.f32 %v2316, 0.0
    %v2333 = vmax.f32 %v2321, 0.0
    %v2334 = vmax.f32 %v2324, 0.0
    %s2335 = scalar_lea.vmem [#allocation3], 576
    %v2336 = vld [vmem:[%s2335] sm:$0xf]
    %v2337 = vld [vmem:[%s2335 + $0x4] sm:$0xf]
    %v2338 = vld [vmem:[%s2335 + $0x8] sm:$0xf]
    %v2339 = vld [vmem:[%s2335 + $0xc] sm:$0xf]
    %v2340 = vld [vmem:[%s2335 + $0x10] sm:$0xf]
    %v2341 = vld [vmem:[%s2335 + $0x14] sm:$0xf]
    %v2342 = vld [vmem:[%s2335 + $0x18] sm:$0xf]
    %v2343 = vld [vmem:[%s2335 + $0x1c] sm:$0xf]
    %v2344 = vld [vmem:[%s2335 + $0x20] sm:$0xf]
    %v2345 = vld [vmem:[%s2335 + $0x24] sm:$0xf]
    %v2346 = vld [vmem:[%s2335 + $0x28] sm:$0xf]
    %v2347 = vld [vmem:[%s2335 + $0x2c] sm:$0xf]
    %v2348 = vld [vmem:[%s2335 + $0x30] sm:$0xf]
    %v2349 = vld [vmem:[%s2335 + $0x34] sm:$0xf]
    %v2350 = vld [vmem:[%s2335 + $0x38] sm:$0xf]
    %v2351 = vld [vmem:[%s2335 + $0x3c] sm:$0xf]
    %v2352 = vpack.c.bf16 %v2328, %v2327
    %v2353 = vpack.c.bf16 %v2330, %v2329
    %v2354 = vpack.c.bf16 %v2332, %v2331
    %v2355 = vpack.c.bf16 %v2334, %v2333
    %s2356 = scalar_lea.vmem %s6, 4
    %v2357 = vld [vmem:[%s2356] sm:$0x1]
    %v2359 = vlaneseq
    %v2360 = vshrl.u32 %v2359, 7
    %v2361 = vsub.s32 0, %v2360
    %v2362 = vrot.slane %v2357, %v2361
    %v2380 = vunpack.c.l.b16 %v2336
    %v2381 = vunpack.c.l.b16 %v2337
    %v2382 = vunpack.c.l.b16 %v2338
    %v2383 = vunpack.c.l.b16 %v2339
    %v2384 = vunpack.c.l.b16 %v2340
    %v2385 = vunpack.c.l.b16 %v2341
    %v2386 = vunpack.c.l.b16 %v2342
    %v2387 = vunpack.c.l.b16 %v2343
    %v2388 = vunpack.c.l.b16 %v2344
    %v2389 = vunpack.c.l.b16 %v2345
    %v2390 = vunpack.c.l.b16 %v2346
    %v2391 = vunpack.c.l.b16 %v2347
    %v2392 = vunpack.c.l.b16 %v2348
    %v2393 = vunpack.c.l.b16 %v2349
    %v2394 = vunpack.c.l.b16 %v2350
    %v2395 = vunpack.c.l.b16 %v2351
    %v2396 = vpack.c.b16 %v2381, %v2380
    %v2397 = vpack.c.b16 %v2383, %v2382
    %v2398 = vpack.c.b16 %v2385, %v2384
    %v2399 = vpack.c.b16 %v2387, %v2386
    %v2400 = vpack.c.b16 %v2389, %v2388
    %v2401 = vpack.c.b16 %v2391, %v2390
    %v2402 = vpack.c.b16 %v2393, %v2392
    %v2403 = vpack.c.b16 %v2395, %v2394
    %2412 = vmatprep.subr.bf16.mxu0 0
    %2413 = vmatpush1.bf16.msra.mxu0 %v2396
    %2414 = vmatprep.subr.bf16.mxu0 0
    %2415 = vmatpush1.bf16.msra.mxu0 %v2397
    %2416 = vmatprep.subr.bf16.mxu0 0
    %2417 = vmatpush1.bf16.msra.mxu0 %v2398
    %2418 = vmatprep.subr.bf16.mxu0 0
    %2419 = vmatpush1.bf16.msra.mxu0 %v2399
    %2420 = vmatprep.subr.bf16.mxu0 0
    %2421 = vmatpush1.bf16.msra.mxu0 %v2400
    %2422 = vmatprep.subr.bf16.mxu0 0
    %2423 = vmatpush1.bf16.msra.mxu0 %v2401
    %2424 = vmatprep.subr.bf16.mxu0 0
    %2425 = vmatpush1.bf16.msra.mxu0 %v2402
    %2426 = vmatprep.subr.bf16.mxu0 0
    %2427 = vmatpush1.bf16.msra.mxu0 %v2403
    %2428 = vmatprep.subr.bf16.mxu0 0
    %2429 = vmatpush1.bf16.msra.mxu0 0
    %2430 = vmatprep.subr.bf16.mxu0 0
    %2431 = vmatpush1.bf16.msra.mxu0 0
    %2432 = vmatprep.subr.bf16.mxu0 0
    %2433 = vmatpush1.bf16.msra.mxu0 0
    %2434 = vmatprep.subr.bf16.mxu0 0
    %2435 = vmatpush1.bf16.msra.mxu0 0
    %2436 = vmatprep.subr.bf16.mxu0 0
    %2437 = vmatpush1.bf16.msra.mxu0 0
    %2438 = vmatprep.subr.bf16.mxu0 0
    %2439 = vmatpush1.bf16.msra.mxu0 0
    %2440 = vmatprep.subr.bf16.mxu0 0
    %2441 = vmatpush1.bf16.msra.mxu0 0
    %2442 = vmatprep.subr.bf16.mxu0 0
    %2443 = vmatpush1.bf16.msra.mxu0 0
    %2444 = vmatprep.mubr.bf16.mxu0 0
    %2445 = vmatmul.mubr.bf16.gmra.mrb[0].mxu0 %v2352
    %v2446 = vpop.f32.mrb[0].mxu0
    %v2447 = vadd.f32 %v2362, %v2446
    %v2448 = vpop.f32.mrb[0].mxu0
    %v2449 = vpop.f32.mrb[0].mxu0
    %v2450 = vadd.f32 %v2362, %v2449
    %v2451 = vpop.f32.mrb[0].mxu0
    %2452 = vmatprep.mubr.bf16.mxu0 0
    %2453 = vmatmul.mubr.bf16.gmra.mrb[0].mxu0 %v2353
    %v2454 = vpop.f32.mrb[0].mxu0
    %v2455 = vadd.f32 %v2362, %v2454
    %v2456 = vpop.f32.mrb[0].mxu0
    %v2457 = vpop.f32.mrb[0].mxu0
    %v2458 = vadd.f32 %v2362, %v2457
    %v2459 = vpop.f32.mrb[0].mxu0
    %2460 = vmatprep.mubr.bf16.mxu0 0
    %2461 = vmatmul.mubr.bf16.gmra.mrb[0].mxu0 %v2354
    %v2462 = vpop.f32.mrb[0].mxu0
    %v2463 = vadd.f32 %v2362, %v2462
    %v2464 = vpop.f32.mrb[0].mxu0
    %v2465 = vpop.f32.mrb[0].mxu0
    %v2466 = vadd.f32 %v2362, %v2465
    %v2467 = vpop.f32.mrb[0].mxu0
    %2468 = vmatprep.mubr.bf16.mxu0 0
    %2469 = vmatmul.mubr.bf16.gmra.mrb[0].mxu0 %v2355
    %v2470 = vpop.f32.mrb[0].mxu0
    %v2471 = vadd.f32 %v2362, %v2470
    %v2472 = vpop.f32.mrb[0].mxu0
    %v2473 = vpop.f32.mrb[0].mxu0
    %v2474 = vadd.f32 %v2362, %v2473
    %v2475 = vpop.f32.mrb[0].mxu0
    %2476 = vdwg.mxu0
    %v2477 = vmax.f32 %v2447, 0.0
    %v2478 = vmax.f32 %v2450, 0.0
    %v2479 = vmax.f32 %v2455, 0.0
    %v2480 = vmax.f32 %v2458, 0.0
    %v2481 = vmax.f32 %v2463, 0.0
    %v2482 = vmax.f32 %v2466, 0.0
    %v2483 = vmax.f32 %v2471, 0.0
    %v2484 = vmax.f32 %v2474, 0.0
    %s2485 = scalar_lea.vmem [#allocation3], 640
    %v2486 = vld [vmem:[%s2485] sm:$0xf]
    %v2487 = vld [vmem:[%s2485 + $0x4] sm:$0xf]
    %v2488 = vld [vmem:[%s2485 + $0x8] sm:$0xf]
    %v2489 = vld [vmem:[%s2485 + $0xc] sm:$0xf]
    %v2490 = vld [vmem:[%s2485 + $0x10] sm:$0xf]
    %v2491 = vld [vmem:[%s2485 + $0x14] sm:$0xf]
    %v2492 = vld [vmem:[%s2485 + $0x18] sm:$0xf]
    %v2493 = vld [vmem:[%s2485 + $0x1c] sm:$0xf]
    %v2494 = vld [vmem:[%s2485 + $0x20] sm:$0xf]
    %v2495 = vld [vmem:[%s2485 + $0x24] sm:$0xf]
    %v2496 = vld [vmem:[%s2485 + $0x28] sm:$0xf]
    %v2497 = vld [vmem:[%s2485 + $0x2c] sm:$0xf]
    %v2498 = vld [vmem:[%s2485 + $0x30] sm:$0xf]
    %v2499 = vld [vmem:[%s2485 + $0x34] sm:$0xf]
    %v2500 = vld [vmem:[%s2485 + $0x38] sm:$0xf]
    %v2501 = vld [vmem:[%s2485 + $0x3c] sm:$0xf]
    %v2502 = vpack.c.bf16 %v2478, %v2477
    %v2503 = vpack.c.bf16 %v2480, %v2479
    %v2504 = vpack.c.bf16 %v2482, %v2481
    %v2505 = vpack.c.bf16 %v2484, %v2483
    %s2506 = scalar_lea.vmem %s6, 5
    %v2507 = vld [vmem:[%s2506] sm:$0x1]
    %v2509 = vlaneseq
    %v2510 = vshrl.u32 %v2509, 7
    %v2511 = vsub.s32 0, %v2510
    %v2512 = vrot.slane %v2507, %v2511
    %v2530 = vunpack.c.l.b16 %v2486
    %v2531 = vunpack.c.l.b16 %v2487
    %v2532 = vunpack.c.l.b16 %v2488
    %v2533 = vunpack.c.l.b16 %v2489
    %v2534 = vunpack.c.l.b16 %v2490
    %v2535 = vunpack.c.l.b16 %v2491
    %v2536 = vunpack.c.l.b16 %v2492
    %v2537 = vunpack.c.l.b16 %v2493
    %v2538 = vunpack.c.l.b16 %v2494
    %v2539 = vunpack.c.l.b16 %v2495
    %v2540 = vunpack.c.l.b16 %v2496
    %v2541 = vunpack.c.l.b16 %v2497
    %v2542 = vunpack.c.l.b16 %v2498
    %v2543 = vunpack.c.l.b16 %v2499
    %v2544 = vunpack.c.l.b16 %v2500
    %v2545 = vunpack.c.l.b16 %v2501
    %v2546 = vpack.c.b16 %v2531, %v2530
    %v2547 = vpack.c.b16 %v2533, %v2532
    %v2548 = vpack.c.b16 %v2535, %v2534
    %v2549 = vpack.c.b16 %v2537, %v2536
    %v2550 = vpack.c.b16 %v2539, %v2538
    %v2551 = vpack.c.b16 %v2541, %v2540
    %v2552 = vpack.c.b16 %v2543, %v2542
    %v2553 = vpack.c.b16 %v2545, %v2544
    %2562 = vmatprep.subr.bf16.mxu0 0
    %2563 = vmatpush1.bf16.msra.mxu0 %v2546
    %2564 = vmatprep.subr.bf16.mxu0 0
    %2565 = vmatpush1.bf16.msra.mxu0 %v2547
    %2566 = vmatprep.subr.bf16.mxu0 0
    %2567 = vmatpush1.bf16.msra.mxu0 %v2548
    %2568 = vmatprep.subr.bf16.mxu0 0
    %2569 = vmatpush1.bf16.msra.mxu0 %v2549
    %2570 = vmatprep.subr.bf16.mxu0 0
    %2571 = vmatpush1.bf16.msra.mxu0 %v2550
    %2572 = vmatprep.subr.bf16.mxu0 0
    %2573 = vmatpush1.bf16.msra.mxu0 %v2551
    %2574 = vmatprep.subr.bf16.mxu0 0
    %2575 = vmatpush1.bf16.msra.mxu0 %v2552
    %2576 = vmatprep.subr.bf16.mxu0 0
    %2577 = vmatpush1.bf16.msra.mxu0 %v2553
    %2578 = vmatprep.subr.bf16.mxu0 0
    %2579 = vmatpush1.bf16.msra.mxu0 0
    %2580 = vmatprep.subr.bf16.mxu0 0
    %2581 = vmatpush1.bf16.msra.mxu0 0
    %2582 = vmatprep.subr.bf16.mxu0 0
    %2583 = vmatpush1.bf16.msra.mxu0 0
    %2584 = vmatprep.subr.bf16.mxu0 0
    %2585 = vmatpush1.bf16.msra.mxu0 0
    %2586 = vmatprep.subr.bf16.mxu0 0
    %2587 = vmatpush1.bf16.msra.mxu0 0
    %2588 = vmatprep.subr.bf16.mxu0 0
    %2589 = vmatpush1.bf16.msra.mxu0 0
    %2590 = vmatprep.subr.bf16.mxu0 0
    %2591 = vmatpush1.bf16.msra.mxu0 0
    %2592 = vmatprep.subr.bf16.mxu0 0
    %2593 = vmatpush1.bf16.msra.mxu0 0
    %2594 = vmatprep.mubr.bf16.mxu0 0
    %2595 = vmatmul.mubr.bf16.gmra.mrb[0].mxu0 %v2502
    %v2596 = vpop.f32.mrb[0].mxu0
    %v2597 = vadd.f32 %v2512, %v2596
    %v2598 = vpop.f32.mrb[0].mxu0
    %v2599 = vpop.f32.mrb[0].mxu0
    %v2600 = vadd.f32 %v2512, %v2599
    %v2601 = vpop.f32.mrb[0].mxu0
    %2602 = vmatprep.mubr.bf16.mxu0 0
    %2603 = vmatmul.mubr.bf16.gmra.mrb[0].mxu0 %v2503
    %v2604 = vpop.f32.mrb[0].mxu0
    %v2605 = vadd.f32 %v2512, %v2604
    %v2606 = vpop.f32.mrb[0].mxu0
    %v2607 = vpop.f32.mrb[0].mxu0
    %v2608 = vadd.f32 %v2512, %v2607
    %v2609 = vpop.f32.mrb[0].mxu0
    %2610 = vmatprep.mubr.bf16.mxu0 0
    %2611 = vmatmul.mubr.bf16.gmra.mrb[0].mxu0 %v2504
    %v2612 = vpop.f32.mrb[0].mxu0
    %v2613 = vadd.f32 %v2512, %v2612
    %v2614 = vpop.f32.mrb[0].mxu0
    %v2615 = vpop.f32.mrb[0].mxu0
    %v2616 = vadd.f32 %v2512, %v2615
    %v2617 = vpop.f32.mrb[0].mxu0
    %2618 = vmatprep.mubr.bf16.mxu0 0
    %2619 = vmatmul.mubr.bf16.gmra.mrb[0].mxu0 %v2505
    %v2620 = vpop.f32.mrb[0].mxu0
    %v2621 = vadd.f32 %v2512, %v2620
    %v2622 = vpop.f32.mrb[0].mxu0
    %v2623 = vpop.f32.mrb[0].mxu0
    %v2624 = vadd.f32 %v2512, %v2623
    %v2625 = vpop.f32.mrb[0].mxu0
    %2626 = vdwg.mxu0
    %v2627 = vmul.f32 %v471, 0.70710677
    %v2628 = vmul.f32 %v472, 0.70710677
    %v2629 = vmul.f32 %v473, 0.70710677
    %v2630 = vmul.f32 %v474, 0.70710677
    %v2631 = vmul.f32 %v475, 0.70710677
    %v2632 = vmul.f32 %v476, 0.70710677
    %v2633 = vmul.f32 %v477, 0.70710677
    %v2634 = vmul.f32 %v478, 0.70710677
    %v2635 = vmax.f32 %v2597, 0.0
    %v2636 = vmax.f32 %v2600, 0.0
    %v2637 = vmax.f32 %v2605, 0.0
    %v2638 = vmax.f32 %v2608, 0.0
    %v2639 = vmax.f32 %v2613, 0.0
    %v2640 = vmax.f32 %v2616, 0.0
    %v2641 = vmax.f32 %v2621, 0.0
    %v2642 = vmax.f32 %v2624, 0.0
    %v2643 = vmul.f32 %v2635, 0.70710677
    %v2644 = vmul.f32 %v2636, 0.70710677
    %v2645 = vmul.f32 %v2637, 0.70710677
    %v2646 = vmul.f32 %v2638, 0.70710677
    %v2647 = vmul.f32 %v2639, 0.70710677
    %v2648 = vmul.f32 %v2640, 0.70710677
    %v2649 = vmul.f32 %v2641, 0.70710677
    %v2650 = vmul.f32 %v2642, 0.70710677
    %v2651 = vadd.f32 %v2627, %v2643
    %v2652 = vadd.f32 %v2628, %v2644
    %v2653 = vadd.f32 %v2629, %v2645
    %v2654 = vadd.f32 %v2630, %v2646
    %v2655 = vadd.f32 %v2631, %v2647
    %v2656 = vadd.f32 %v2632, %v2648
    %v2657 = vadd.f32 %v2633, %v2649
    %v2658 = vadd.f32 %v2634, %v2650
    %v2659 = vpack.c.bf16 %v2652, %v2651
    %v2660 = vpack.c.bf16 %v2654, %v2653
    %v2661 = vpack.c.bf16 %v2656, %v2655
    %v2662 = vpack.c.bf16 %v2658, %v2657
    %2663 = vrot.lane.b32.xlu0 %v2651, 5
    %v2664 = vpop.permute.xlu0 %2663
    %2665 = vrot.lane.b32.xlu0 %v2652, 5
    %v2666 = vpop.permute.xlu0 %2665
    %2667 = vrot.lane.b32.xlu0 %v2653, 5
    %v2668 = vpop.permute.xlu0 %2667
    %2669 = vrot.lane.b32.xlu0 %v2654, 5
    %v2670 = vpop.permute.xlu0 %2669
    %2671 = vrot.lane.b32.xlu0 %v2655, 5
    %v2672 = vpop.permute.xlu0 %2671
    %2673 = vrot.lane.b32.xlu0 %v2656, 5
    %v2674 = vpop.permute.xlu0 %2673
    %2675 = vrot.lane.b32.xlu0 %v2657, 5
    %v2676 = vpop.permute.xlu0 %2675
    %2677 = vrot.lane.b32.xlu0 %v2658, 5
    %v2678 = vpop.permute.xlu0 %2677
    %v2679 = vpack.c.bf16 %v2666, %v2664
    %v2680 = vpack.c.bf16 %v2670, %v2668
    %v2681 = vpack.c.bf16 %v2674, %v2672
    %v2682 = vpack.c.bf16 %v2678, %v2676
    %2683 = vmatprep.subr.bf16.mxu0 0
    %2684 = vmatpush1.bf16.msra.mxu0 %v2679
    %2685 = vmatprep.subr.bf16.mxu0 0
    %2686 = vmatpush1.bf16.msra.mxu0 %v2680
    %2687 = vmatprep.subr.bf16.mxu0 0
    %2688 = vmatpush1.bf16.msra.mxu0 %v2681
    %2689 = vmatprep.subr.bf16.mxu0 0
    %2690 = vmatpush1.bf16.msra.mxu0 %v2682
    %2691 = vmatprep.subr.bf16.mxu0 0
    %2692 = vmatpush1.bf16.msra.mxu0 0
    %2693 = vmatprep.subr.bf16.mxu0 0
    %2694 = vmatpush1.bf16.msra.mxu0 0
    %2695 = vmatprep.subr.bf16.mxu0 0
    %2696 = vmatpush1.bf16.msra.mxu0 0
    %2697 = vmatprep.subr.bf16.mxu0 0
    %2698 = vmatpush1.bf16.msra.mxu0 0
    %2699 = vmatprep.subr.bf16.mxu0 0
    %2700 = vmatpush1.bf16.msra.mxu0 0
    %2701 = vmatprep.subr.bf16.mxu0 0
    %2702 = vmatpush1.bf16.msra.mxu0 0
    %2703 = vmatprep.subr.bf16.mxu0 0
    %2704 = vmatpush1.bf16.msra.mxu0 0
    %2705 = vmatprep.subr.bf16.mxu0 0
    %2706 = vmatpush1.bf16.msra.mxu0 0
    %2707 = vmatprep.subr.bf16.mxu0 0
    %2708 = vmatpush1.bf16.msra.mxu0 0
    %2709 = vmatprep.subr.bf16.mxu0 0
    %2710 = vmatpush1.bf16.msra.mxu0 0
    %2711 = vmatprep.subr.bf16.mxu0 0
    %2712 = vmatpush1.bf16.msra.mxu0 0
    %2713 = vmatprep.subr.bf16.mxu0 0
    %2714 = vmatpush1.bf16.msra.mxu0 0
    %2715 = vmatprep.mubr.bf16.mxu0 0
    %2716 = vmatmul.mubr.bf16.gmra.mrb[0].mxu0 %v1177
    %v2717 = vpop.f32.mrb[0].mxu0
    %v2718 = vadd.f32 0.0, %v2717
    %v2719 = vpop.f32.mrb[0].mxu0
    %v2720 = vpop.f32.mrb[0].mxu0
    %v2721 = vadd.f32 0.0, %v2720
    %v2722 = vpop.f32.mrb[0].mxu0
    %2723 = vmatprep.mubr.bf16.mxu0 0
    %2724 = vmatmul.mubr.bf16.gmra.mrb[0].mxu0 %v1180
    %v2725 = vpop.f32.mrb[0].mxu0
    %v2726 = vadd.f32 0.0, %v2725
    %v2727 = vpop.f32.mrb[0].mxu0
    %v2728 = vpop.f32.mrb[0].mxu0
    %v2729 = vadd.f32 0.0, %v2728
    %v2730 = vpop.f32.mrb[0].mxu0
    %2731 = vmatprep.mubr.bf16.mxu0 0
    %2732 = vmatmul.mubr.bf16.gmra.mrb[0].mxu0 %v1183
    %v2733 = vpop.f32.mrb[0].mxu0
    %v2734 = vadd.f32 0.0, %v2733
    %v2735 = vpop.f32.mrb[0].mxu0
    %v2736 = vpop.f32.mrb[0].mxu0
    %v2737 = vadd.f32 0.0, %v2736
    %v2738 = vpop.f32.mrb[0].mxu0
    %2739 = vmatprep.mubr.bf16.mxu0 0
    %2740 = vmatmul.mubr.bf16.gmra.mrb[0].mxu0 %v1186
    %v2741 = vpop.f32.mrb[0].mxu0
    %v2742 = vadd.f32 0.0, %v2741
    %v2743 = vpop.f32.mrb[0].mxu0
    %v2744 = vpop.f32.mrb[0].mxu0
    %v2745 = vadd.f32 0.0, %v2744
    %v2746 = vpop.f32.mrb[0].mxu0
    %2747 = vmatprep.mubr.bf16.mxu0 0
    %2748 = vmatmul.mubr.bf16.gmra.mrb[0].mxu0 %v1189
    %v2749 = vpop.f32.mrb[0].mxu0
    %v2750 = vadd.f32 0.0, %v2749
    %v2751 = vpop.f32.mrb[0].mxu0
    %v2752 = vpop.f32.mrb[0].mxu0
    %v2753 = vadd.f32 0.0, %v2752
    %v2754 = vpop.f32.mrb[0].mxu0
    %2755 = vmatprep.mubr.bf16.mxu0 0
    %2756 = vmatmul.mubr.bf16.gmra.mrb[0].mxu0 %v1192
    %v2757 = vpop.f32.mrb[0].mxu0
    %v2758 = vadd.f32 0.0, %v2757
    %v2759 = vpop.f32.mrb[0].mxu0
    %v2760 = vpop.f32.mrb[0].mxu0
    %v2761 = vadd.f32 0.0, %v2760
    %v2762 = vpop.f32.mrb[0].mxu0
    %2763 = vmatprep.mubr.bf16.mxu0 0
    %2764 = vmatmul.mubr.bf16.gmra.mrb[0].mxu0 %v1195
    %v2765 = vpop.f32.mrb[0].mxu0
    %v2766 = vadd.f32 0.0, %v2765
    %v2767 = vpop.f32.mrb[0].mxu0
    %v2768 = vpop.f32.mrb[0].mxu0
    %v2769 = vadd.f32 0.0, %v2768
    %v2770 = vpop.f32.mrb[0].mxu0
    %2771 = vmatprep.mubr.bf16.mxu0 0
    %2772 = vmatmul.mubr.bf16.gmra.mrb[0].mxu0 %v1198
    %v2773 = vpop.f32.mrb[0].mxu0
    %v2774 = vadd.f32 0.0, %v2773
    %v2775 = vpop.f32.mrb[0].mxu0
    %v2776 = vpop.f32.mrb[0].mxu0
    %v2777 = vadd.f32 0.0, %v2776
    %v2778 = vpop.f32.mrb[0].mxu0
    %2779 = vdwg.mxu0
    %2780 = vmatprep.subr.bf16.mxu0 0
    %2781 = vmatpush1.bf16.msra.mxu0 %v2659
    %2782 = vmatprep.subr.bf16.mxu0 0
    %2783 = vmatpush1.bf16.msra.mxu0 %v2660
    %2784 = vmatprep.subr.bf16.mxu0 0
    %2785 = vmatpush1.bf16.msra.mxu0 %v2661
    %2786 = vmatprep.subr.bf16.mxu0 0
    %2787 = vmatpush1.bf16.msra.mxu0 %v2662
    %2788 = vmatprep.subr.bf16.mxu0 0
    %2789 = vmatpush1.bf16.msra.mxu0 0
    %2790 = vmatprep.subr.bf16.mxu0 0
    %2791 = vmatpush1.bf16.msra.mxu0 0
    %2792 = vmatprep.subr.bf16.mxu0 0
    %2793 = vmatpush1.bf16.msra.mxu0 0
    %2794 = vmatprep.subr.bf16.mxu0 0
    %2795 = vmatpush1.bf16.msra.mxu0 0
    %2796 = vmatprep.subr.bf16.mxu0 0
    %2797 = vmatpush1.bf16.msra.mxu0 0
    %2798 = vmatprep.subr.bf16.mxu0 0
    %2799 = vmatpush1.bf16.msra.mxu0 0
    %2800 = vmatprep.subr.bf16.mxu0 0
    %2801 = vmatpush1.bf16.msra.mxu0 0
    %2802 = vmatprep.subr.bf16.mxu0 0
    %2803 = vmatpush1.bf16.msra.mxu0 0
    %2804 = vmatprep.subr.bf16.mxu0 0
    %2805 = vmatpush1.bf16.msra.mxu0 0
    %2806 = vmatprep.subr.bf16.mxu0 0
    %2807 = vmatpush1.bf16.msra.mxu0 0
    %2808 = vmatprep.subr.bf16.mxu0 0
    %2809 = vmatpush1.bf16.msra.mxu0 0
    %2810 = vmatprep.subr.bf16.mxu0 0
    %2811 = vmatpush1.bf16.msra.mxu0 0
    %2812 = vmatprep.mubr.bf16.mxu0 0
    %2813 = vmatmul.mubr.bf16.gmra.mrb[0].mxu0 %v1298
    %v2814 = vpop.f32.mrb[0].mxu0
    %v2815 = vadd.f32 %v2718, %v2814
    %v2816 = vpop.f32.mrb[0].mxu0
    %v2817 = vpop.f32.mrb[0].mxu0
    %v2818 = vadd.f32 %v2721, %v2817
    %v2819 = vpop.f32.mrb[0].mxu0
    %2820 = vmatprep.mubr.bf16.mxu0 0
    %2821 = vmatmul.mubr.bf16.gmra.mrb[0].mxu0 %v1301
    %v2822 = vpop.f32.mrb[0].mxu0
    %v2823 = vadd.f32 %v2726, %v2822
    %v2824 = vpop.f32.mrb[0].mxu0
    %v2825 = vpop.f32.mrb[0].mxu0
    %v2826 = vadd.f32 %v2729, %v2825
    %v2827 = vpop.f32.mrb[0].mxu0
    %2828 = vmatprep.mubr.bf16.mxu0 0
    %2829 = vmatmul.mubr.bf16.gmra.mrb[0].mxu0 %v1304
    %v2830 = vpop.f32.mrb[0].mxu0
    %v2831 = vadd.f32 %v2734, %v2830
    %v2832 = vpop.f32.mrb[0].mxu0
    %v2833 = vpop.f32.mrb[0].mxu0
    %v2834 = vadd.f32 %v2737, %v2833
    %v2835 = vpop.f32.mrb[0].mxu0
    %2836 = vmatprep.mubr.bf16.mxu0 0
    %2837 = vmatmul.mubr.bf16.gmra.mrb[0].mxu0 %v1307
    %v2838 = vpop.f32.mrb[0].mxu0
    %v2839 = vadd.f32 %v2742, %v2838
    %v2840 = vpop.f32.mrb[0].mxu0
    %v2841 = vpop.f32.mrb[0].mxu0
    %v2842 = vadd.f32 %v2745, %v2841
    %v2843 = vpop.f32.mrb[0].mxu0
    %2844 = vmatprep.mubr.bf16.mxu0 0
    %2845 = vmatmul.mubr.bf16.gmra.mrb[0].mxu0 %v1310
    %v2846 = vpop.f32.mrb[0].mxu0
    %v2847 = vadd.f32 %v2750, %v2846
    %v2848 = vpop.f32.mrb[0].mxu0
    %v2849 = vpop.f32.mrb[0].mxu0
    %v2850 = vadd.f32 %v2753, %v2849
    %v2851 = vpop.f32.mrb[0].mxu0
    %2852 = vmatprep.mubr.bf16.mxu0 0
    %2853 = vmatmul.mubr.bf16.gmra.mrb[0].mxu0 %v1313
    %v2854 = vpop.f32.mrb[0].mxu0
    %v2855 = vadd.f32 %v2758, %v2854
    %v2856 = vpop.f32.mrb[0].mxu0
    %v2857 = vpop.f32.mrb[0].mxu0
    %v2858 = vadd.f32 %v2761, %v2857
    %v2859 = vpop.f32.mrb[0].mxu0
    %2860 = vmatprep.mubr.bf16.mxu0 0
    %2861 = vmatmul.mubr.bf16.gmra.mrb[0].mxu0 %v1316
    %v2862 = vpop.f32.mrb[0].mxu0
    %v2863 = vadd.f32 %v2766, %v2862
    %v2864 = vpop.f32.mrb[0].mxu0
    %v2865 = vpop.f32.mrb[0].mxu0
    %v2866 = vadd.f32 %v2769, %v2865
    %v2867 = vpop.f32.mrb[0].mxu0
    %2868 = vmatprep.mubr.bf16.mxu0 0
    %2869 = vmatmul.mubr.bf16.gmra.mrb[0].mxu0 %v1319
    %v2870 = vpop.f32.mrb[0].mxu0
    %v2871 = vadd.f32 %v2774, %v2870
    %v2872 = vpop.f32.mrb[0].mxu0
    %v2873 = vpop.f32.mrb[0].mxu0
    %v2874 = vadd.f32 %v2777, %v2873
    %v2875 = vpop.f32.mrb[0].mxu0
    %2876 = vdwg.mxu0
    %v2877 = vadd.f32 %v2815, %v1937
    %v2878 = vadd.f32 %v2818, %v1940
    %v2879 = vadd.f32 %v2823, %v1945
    %v2880 = vadd.f32 %v2826, %v1948
    %v2881 = vadd.f32 %v2831, %v1953
    %v2882 = vadd.f32 %v2834, %v1956
    %v2883 = vadd.f32 %v2839, %v1961
    %v2884 = vadd.f32 %v2842, %v1964
    %v2885 = vadd.f32 %v2847, %v1969
    %v2886 = vadd.f32 %v2850, %v1972
    %v2887 = vadd.f32 %v2855, %v1977
    %v2888 = vadd.f32 %v2858, %v1980
    %v2889 = vadd.f32 %v2863, %v1985
    %v2890 = vadd.f32 %v2866, %v1988
    %v2891 = vadd.f32 %v2871, %v1993
    %v2892 = vadd.f32 %v2874, %v1996
    %s2893 = scalar_lea.vmem [#allocation3], 704
    %v2894 = vld [vmem:[%s2893] sm:$0xf]
    %v2895 = vld [vmem:[%s2893 + $0x4] sm:$0xf]
    %v2896 = vld [vmem:[%s2893 + $0x8] sm:$0xf]
    %v2897 = vld [vmem:[%s2893 + $0xc] sm:$0xf]
    %v2898 = vld [vmem:[%s2893 + $0x10] sm:$0xf]
    %v2899 = vld [vmem:[%s2893 + $0x14] sm:$0xf]
    %v2900 = vld [vmem:[%s2893 + $0x18] sm:$0xf]
    %v2901 = vld [vmem:[%s2893 + $0x1c] sm:$0xf]
    %v2902 = vld [vmem:[%s2893 + $0x20] sm:$0xf]
    %v2903 = vld [vmem:[%s2893 + $0x24] sm:$0xf]
    %v2904 = vld [vmem:[%s2893 + $0x28] sm:$0xf]
    %v2905 = vld [vmem:[%s2893 + $0x2c] sm:$0xf]
    %v2906 = vld [vmem:[%s2893 + $0x30] sm:$0xf]
    %v2907 = vld [vmem:[%s2893 + $0x34] sm:$0xf]
    %v2908 = vld [vmem:[%s2893 + $0x38] sm:$0xf]
    %v2909 = vld [vmem:[%s2893 + $0x3c] sm:$0xf]
    %v2910 = vpack.c.bf16 %v2878, %v2877
    %v2911 = vpack.c.bf16 %v2880, %v2879
    %v2912 = vpack.c.bf16 %v2882, %v2881
    %v2913 = vpack.c.bf16 %v2884, %v2883
    %v2914 = vpack.c.bf16 %v2886, %v2885
    %v2915 = vpack.c.bf16 %v2888, %v2887
    %v2916 = vpack.c.bf16 %v2890, %v2889
    %v2917 = vpack.c.bf16 %v2892, %v2891
    %s2918 = scalar_lea.vmem %s6, 6
    %v2919 = vld [vmem:[%s2918] sm:$0x1]
    %v2921 = vlaneseq
    %v2922 = vshrl.u32 %v2921, 7
    %v2923 = vsub.s32 0, %v2922
    %v2924 = vrot.slane %v2919, %v2923
    %v2942 = vunpack.c.l.b16 %v2894
    %v2943 = vunpack.c.l.b16 %v2895
    %v2944 = vunpack.c.l.b16 %v2896
    %v2945 = vunpack.c.l.b16 %v2897
    %v2946 = vunpack.c.l.b16 %v2898
    %v2947 = vunpack.c.l.b16 %v2899
    %v2948 = vunpack.c.l.b16 %v2900
    %v2949 = vunpack.c.l.b16 %v2901
    %v2950 = vunpack.c.l.b16 %v2902
    %v2951 = vunpack.c.l.b16 %v2903
    %v2952 = vunpack.c.l.b16 %v2904
    %v2953 = vunpack.c.l.b16 %v2905
    %v2954 = vunpack.c.l.b16 %v2906
    %v2955 = vunpack.c.l.b16 %v2907
    %v2956 = vunpack.c.l.b16 %v2908
    %v2957 = vunpack.c.l.b16 %v2909
    %v2958 = vpack.c.b16 %v2943, %v2942
    %v2959 = vpack.c.b16 %v2945, %v2944
    %v2960 = vpack.c.b16 %v2947, %v2946
    %v2961 = vpack.c.b16 %v2949, %v2948
    %v2962 = vpack.c.b16 %v2951, %v2950
    %v2963 = vpack.c.b16 %v2953, %v2952
    %v2964 = vpack.c.b16 %v2955, %v2954
    %v2965 = vpack.c.b16 %v2957, %v2956
    %2974 = vmatprep.subr.bf16.mxu0 0
    %2975 = vmatpush1.bf16.msra.mxu0 %v2958
    %2976 = vmatprep.subr.bf16.mxu0 0
    %2977 = vmatpush1.bf16.msra.mxu0 %v2959
    %2978 = vmatprep.subr.bf16.mxu0 0
    %2979 = vmatpush1.bf16.msra.mxu0 %v2960
    %2980 = vmatprep.subr.bf16.mxu0 0
    %2981 = vmatpush1.bf16.msra.mxu0 %v2961
    %2982 = vmatprep.subr.bf16.mxu0 0
    %2983 = vmatpush1.bf16.msra.mxu0 %v2962
    %2984 = vmatprep.subr.bf16.mxu0 0
    %2985 = vmatpush1.bf16.msra.mxu0 %v2963
    %2986 = vmatprep.subr.bf16.mxu0 0
    %2987 = vmatpush1.bf16.msra.mxu0 %v2964
    %2988 = vmatprep.subr.bf16.mxu0 0
    %2989 = vmatpush1.bf16.msra.mxu0 %v2965
    %2990 = vmatprep.subr.bf16.mxu0 0
    %2991 = vmatpush1.bf16.msra.mxu0 0
    %2992 = vmatprep.subr.bf16.mxu0 0
    %2993 = vmatpush1.bf16.msra.mxu0 0
    %2994 = vmatprep.subr.bf16.mxu0 0
    %2995 = vmatpush1.bf16.msra.mxu0 0
    %2996 = vmatprep.subr.bf16.mxu0 0
    %2997 = vmatpush1.bf16.msra.mxu0 0
    %2998 = vmatprep.subr.bf16.mxu0 0
    %2999 = vmatpush1.bf16.msra.mxu0 0
    %3000 = vmatprep.subr.bf16.mxu0 0
    %3001 = vmatpush1.bf16.msra.mxu0 0
    %3002 = vmatprep.subr.bf16.mxu0 0
    %3003 = vmatpush1.bf16.msra.mxu0 0
    %3004 = vmatprep.subr.bf16.mxu0 0
    %3005 = vmatpush1.bf16.msra.mxu0 0
    %3006 = vmatprep.mubr.bf16.mxu0 0
    %3007 = vmatmul.mubr.bf16.gmra.mrb[0].mxu0 %v2910
    %v3008 = vpop.f32.mrb[0].mxu0
    %v3009 = vadd.f32 %v2924, %v3008
    %v3010 = vpop.f32.mrb[0].mxu0
    %v3011 = vpop.f32.mrb[0].mxu0
    %v3012 = vadd.f32 %v2924, %v3011
    %v3013 = vpop.f32.mrb[0].mxu0
    %3014 = vmatprep.mubr.bf16.mxu0 0
    %3015 = vmatmul.mubr.bf16.gmra.mrb[0].mxu0 %v2911
    %v3016 = vpop.f32.mrb[0].mxu0
    %v3017 = vadd.f32 %v2924, %v3016
    %v3018 = vpop.f32.mrb[0].mxu0
    %v3019 = vpop.f32.mrb[0].mxu0
    %v3020 = vadd.f32 %v2924, %v3019
    %v3021 = vpop.f32.mrb[0].mxu0
    %3022 = vmatprep.mubr.bf16.mxu0 0
    %3023 = vmatmul.mubr.bf16.gmra.mrb[0].mxu0 %v2912
    %v3024 = vpop.f32.mrb[0].mxu0
    %v3025 = vadd.f32 %v2924, %v3024
    %v3026 = vpop.f32.mrb[0].mxu0
    %v3027 = vpop.f32.mrb[0].mxu0
    %v3028 = vadd.f32 %v2924, %v3027
    %v3029 = vpop.f32.mrb[0].mxu0
    %3030 = vmatprep.mubr.bf16.mxu0 0
    %3031 = vmatmul.mubr.bf16.gmra.mrb[0].mxu0 %v2913
    %v3032 = vpop.f32.mrb[0].mxu0
    %v3033 = vadd.f32 %v2924, %v3032
    %v3034 = vpop.f32.mrb[0].mxu0
    %v3035 = vpop.f32.mrb[0].mxu0
    %v3036 = vadd.f32 %v2924, %v3035
    %v3037 = vpop.f32.mrb[0].mxu0
    %3038 = vmatprep.mubr.bf16.mxu0 0
    %3039 = vmatmul.mubr.bf16.gmra.mrb[0].mxu0 %v2914
    %v3040 = vpop.f32.mrb[0].mxu0
    %v3041 = vadd.f32 %v2924, %v3040
    %v3042 = vpop.f32.mrb[0].mxu0
    %v3043 = vpop.f32.mrb[0].mxu0
    %v3044 = vadd.f32 %v2924, %v3043
    %v3045 = vpop.f32.mrb[0].mxu0
    %3046 = vmatprep.mubr.bf16.mxu0 0
    %3047 = vmatmul.mubr.bf16.gmra.mrb[0].mxu0 %v2915
    %v3048 = vpop.f32.mrb[0].mxu0
    %v3049 = vadd.f32 %v2924, %v3048
    %v3050 = vpop.f32.mrb[0].mxu0
    %v3051 = vpop.f32.mrb[0].mxu0
    %v3052 = vadd.f32 %v2924, %v3051
    %v3053 = vpop.f32.mrb[0].mxu0
    %3054 = vmatprep.mubr.bf16.mxu0 0
    %3055 = vmatmul.mubr.bf16.gmra.mrb[0].mxu0 %v2916
    %v3056 = vpop.f32.mrb[0].mxu0
    %v3057 = vadd.f32 %v2924, %v3056
    %v3058 = vpop.f32.mrb[0].mxu0
    %v3059 = vpop.f32.mrb[0].mxu0
    %v3060 = vadd.f32 %v2924, %v3059
    %v3061 = vpop.f32.mrb[0].mxu0
    %3062 = vmatprep.mubr.bf16.mxu0 0
    %3063 = vmatmul.mubr.bf16.gmra.mrb[0].mxu0 %v2917
    %v3064 = vpop.f32.mrb[0].mxu0
    %v3065 = vadd.f32 %v2924, %v3064
    %v3066 = vpop.f32.mrb[0].mxu0
    %v3067 = vpop.f32.mrb[0].mxu0
    %v3068 = vadd.f32 %v2924, %v3067
    %v3069 = vpop.f32.mrb[0].mxu0
    %3070 = vdwg.mxu0
    %v3071 = vmax.f32 %v3009, 0.0
    %v3072 = vmax.f32 %v3012, 0.0
    %v3073 = vmax.f32 %v3017, 0.0
    %v3074 = vmax.f32 %v3020, 0.0
    %v3075 = vmax.f32 %v3025, 0.0
    %v3076 = vmax.f32 %v3028, 0.0
    %v3077 = vmax.f32 %v3033, 0.0
    %v3078 = vmax.f32 %v3036, 0.0
    %v3079 = vmax.f32 %v3041, 0.0
    %v3080 = vmax.f32 %v3044, 0.0
    %v3081 = vmax.f32 %v3049, 0.0
    %v3082 = vmax.f32 %v3052, 0.0
    %v3083 = vmax.f32 %v3057, 0.0
    %v3084 = vmax.f32 %v3060, 0.0
    %v3085 = vmax.f32 %v3065, 0.0
    %v3086 = vmax.f32 %v3068, 0.0
    %s3087 = scalar_lea.vmem [#allocation3], 768
    %v3088 = vld [vmem:[%s3087] sm:$0xf]
    %v3089 = vld [vmem:[%s3087 + $0x4] sm:$0xf]
    %v3090 = vld [vmem:[%s3087 + $0x8] sm:$0xf]
    %v3091 = vld [vmem:[%s3087 + $0xc] sm:$0xf]
    %v3092 = vld [vmem:[%s3087 + $0x10] sm:$0xf]
    %v3093 = vld [vmem:[%s3087 + $0x14] sm:$0xf]
    %v3094 = vld [vmem:[%s3087 + $0x18] sm:$0xf]
    %v3095 = vld [vmem:[%s3087 + $0x1c] sm:$0xf]
    %v3096 = vld [vmem:[%s3087 + $0x20] sm:$0xf]
    %v3097 = vld [vmem:[%s3087 + $0x24] sm:$0xf]
    %v3098 = vld [vmem:[%s3087 + $0x28] sm:$0xf]
    %v3099 = vld [vmem:[%s3087 + $0x2c] sm:$0xf]
    %v3100 = vld [vmem:[%s3087 + $0x30] sm:$0xf]
    %v3101 = vld [vmem:[%s3087 + $0x34] sm:$0xf]
    %v3102 = vld [vmem:[%s3087 + $0x38] sm:$0xf]
    %v3103 = vld [vmem:[%s3087 + $0x3c] sm:$0xf]
    %v3104 = vpack.c.bf16 %v3072, %v3071
    %v3105 = vpack.c.bf16 %v3074, %v3073
    %v3106 = vpack.c.bf16 %v3076, %v3075
    %v3107 = vpack.c.bf16 %v3078, %v3077
    %v3108 = vpack.c.bf16 %v3080, %v3079
    %v3109 = vpack.c.bf16 %v3082, %v3081
    %v3110 = vpack.c.bf16 %v3084, %v3083
    %v3111 = vpack.c.bf16 %v3086, %v3085
    %s3112 = scalar_lea.vmem %s6, 7
    %v3113 = vld [vmem:[%s3112] sm:$0x1]
    %v3115 = vlaneseq
    %v3116 = vshrl.u32 %v3115, 7
    %v3117 = vsub.s32 0, %v3116
    %v3118 = vrot.slane %v3113, %v3117
    %v3136 = vunpack.c.l.b16 %v3088
    %v3137 = vunpack.c.l.b16 %v3089
    %v3138 = vunpack.c.l.b16 %v3090
    %v3139 = vunpack.c.l.b16 %v3091
    %v3140 = vunpack.c.l.b16 %v3092
    %v3141 = vunpack.c.l.b16 %v3093
    %v3142 = vunpack.c.l.b16 %v3094
    %v3143 = vunpack.c.l.b16 %v3095
    %v3144 = vunpack.c.l.b16 %v3096
    %v3145 = vunpack.c.l.b16 %v3097
    %v3146 = vunpack.c.l.b16 %v3098
    %v3147 = vunpack.c.l.b16 %v3099
    %v3148 = vunpack.c.l.b16 %v3100
    %v3149 = vunpack.c.l.b16 %v3101
    %v3150 = vunpack.c.l.b16 %v3102
    %v3151 = vunpack.c.l.b16 %v3103
    %v3152 = vpack.c.b16 %v3137, %v3136
    %v3153 = vpack.c.b16 %v3139, %v3138
    %v3154 = vpack.c.b16 %v3141, %v3140
    %v3155 = vpack.c.b16 %v3143, %v3142
    %v3156 = vpack.c.b16 %v3145, %v3144
    %v3157 = vpack.c.b16 %v3147, %v3146
    %v3158 = vpack.c.b16 %v3149, %v3148
    %v3159 = vpack.c.b16 %v3151, %v3150
    %3168 = vmatprep.subr.bf16.mxu0 0
    %3169 = vmatpush1.bf16.msra.mxu0 %v3152
    %3170 = vmatprep.subr.bf16.mxu0 0
    %3171 = vmatpush1.bf16.msra.mxu0 %v3153
    %3172 = vmatprep.subr.bf16.mxu0 0
    %3173 = vmatpush1.bf16.msra.mxu0 %v3154
    %3174 = vmatprep.subr.bf16.mxu0 0
    %3175 = vmatpush1.bf16.msra.mxu0 %v3155
    %3176 = vmatprep.subr.bf16.mxu0 0
    %3177 = vmatpush1.bf16.msra.mxu0 %v3156
    %3178 = vmatprep.subr.bf16.mxu0 0
    %3179 = vmatpush1.bf16.msra.mxu0 %v3157
    %3180 = vmatprep.subr.bf16.mxu0 0
    %3181 = vmatpush1.bf16.msra.mxu0 %v3158
    %3182 = vmatprep.subr.bf16.mxu0 0
    %3183 = vmatpush1.bf16.msra.mxu0 %v3159
    %3184 = vmatprep.subr.bf16.mxu0 0
    %3185 = vmatpush1.bf16.msra.mxu0 0
    %3186 = vmatprep.subr.bf16.mxu0 0
    %3187 = vmatpush1.bf16.msra.mxu0 0
    %3188 = vmatprep.subr.bf16.mxu0 0
    %3189 = vmatpush1.bf16.msra.mxu0 0
    %3190 = vmatprep.subr.bf16.mxu0 0
    %3191 = vmatpush1.bf16.msra.mxu0 0
    %3192 = vmatprep.subr.bf16.mxu0 0
    %3193 = vmatpush1.bf16.msra.mxu0 0
    %3194 = vmatprep.subr.bf16.mxu0 0
    %3195 = vmatpush1.bf16.msra.mxu0 0
    %3196 = vmatprep.subr.bf16.mxu0 0
    %3197 = vmatpush1.bf16.msra.mxu0 0
    %3198 = vmatprep.subr.bf16.mxu0 0
    %3199 = vmatpush1.bf16.msra.mxu0 0
    %3200 = vmatprep.mubr.bf16.mxu0 0
    %3201 = vmatmul.mubr.bf16.gmra.mrb[0].mxu0 %v3104
    %v3202 = vpop.f32.mrb[0].mxu0
    %v3203 = vadd.f32 %v3118, %v3202
    %v3204 = vpop.f32.mrb[0].mxu0
    %v3205 = vpop.f32.mrb[0].mxu0
    %v3206 = vadd.f32 %v3118, %v3205
    %v3207 = vpop.f32.mrb[0].mxu0
    %3208 = vmatprep.mubr.bf16.mxu0 0
    %3209 = vmatmul.mubr.bf16.gmra.mrb[0].mxu0 %v3105
    %v3210 = vpop.f32.mrb[0].mxu0
    %v3211 = vadd.f32 %v3118, %v3210
    %v3212 = vpop.f32.mrb[0].mxu0
    %v3213 = vpop.f32.mrb[0].mxu0
    %v3214 = vadd.f32 %v3118, %v3213
    %v3215 = vpop.f32.mrb[0].mxu0
    %3216 = vmatprep.mubr.bf16.mxu0 0
    %3217 = vmatmul.mubr.bf16.gmra.mrb[0].mxu0 %v3106
    %v3218 = vpop.f32.mrb[0].mxu0
    %v3219 = vadd.f32 %v3118, %v3218
    %v3220 = vpop.f32.mrb[0].mxu0
    %v3221 = vpop.f32.mrb[0].mxu0
    %v3222 = vadd.f32 %v3118, %v3221
    %v3223 = vpop.f32.mrb[0].mxu0
    %3224 = vmatprep.mubr.bf16.mxu0 0
    %3225 = vmatmul.mubr.bf16.gmra.mrb[0].mxu0 %v3107
    %v3226 = vpop.f32.mrb[0].mxu0
    %v3227 = vadd.f32 %v3118, %v3226
    %v3228 = vpop.f32.mrb[0].mxu0
    %v3229 = vpop.f32.mrb[0].mxu0
    %v3230 = vadd.f32 %v3118, %v3229
    %v3231 = vpop.f32.mrb[0].mxu0
    %3232 = vmatprep.mubr.bf16.mxu0 0
    %3233 = vmatmul.mubr.bf16.gmra.mrb[0].mxu0 %v3108
    %v3234 = vpop.f32.mrb[0].mxu0
    %v3235 = vadd.f32 %v3118, %v3234
    %v3236 = vpop.f32.mrb[0].mxu0
    %v3237 = vpop.f32.mrb[0].mxu0
    %v3238 = vadd.f32 %v3118, %v3237
    %v3239 = vpop.f32.mrb[0].mxu0
    %3240 = vmatprep.mubr.bf16.mxu0 0
    %3241 = vmatmul.mubr.bf16.gmra.mrb[0].mxu0 %v3109
    %v3242 = vpop.f32.mrb[0].mxu0
    %v3243 = vadd.f32 %v3118, %v3242
    %v3244 = vpop.f32.mrb[0].mxu0
    %v3245 = vpop.f32.mrb[0].mxu0
    %v3246 = vadd.f32 %v3118, %v3245
    %v3247 = vpop.f32.mrb[0].mxu0
    %3248 = vmatprep.mubr.bf16.mxu0 0
    %3249 = vmatmul.mubr.bf16.gmra.mrb[0].mxu0 %v3110
    %v3250 = vpop.f32.mrb[0].mxu0
    %v3251 = vadd.f32 %v3118, %v3250
    %v3252 = vpop.f32.mrb[0].mxu0
    %v3253 = vpop.f32.mrb[0].mxu0
    %v3254 = vadd.f32 %v3118, %v3253
    %v3255 = vpop.f32.mrb[0].mxu0
    %3256 = vmatprep.mubr.bf16.mxu0 0
    %3257 = vmatmul.mubr.bf16.gmra.mrb[0].mxu0 %v3111
    %v3258 = vpop.f32.mrb[0].mxu0
    %v3259 = vadd.f32 %v3118, %v3258
    %v3260 = vpop.f32.mrb[0].mxu0
    %v3261 = vpop.f32.mrb[0].mxu0
    %v3262 = vadd.f32 %v3118, %v3261
    %v3263 = vpop.f32.mrb[0].mxu0
    %3264 = vdwg.mxu0
    %v3265 = vmax.f32 %v3203, 0.0
    %v3266 = vmax.f32 %v3206, 0.0
    %v3267 = vmax.f32 %v3211, 0.0
    %v3268 = vmax.f32 %v3214, 0.0
    %v3269 = vmax.f32 %v3219, 0.0
    %v3270 = vmax.f32 %v3222, 0.0
    %v3271 = vmax.f32 %v3227, 0.0
    %v3272 = vmax.f32 %v3230, 0.0
    %v3273 = vmax.f32 %v3235, 0.0
    %v3274 = vmax.f32 %v3238, 0.0
    %v3275 = vmax.f32 %v3243, 0.0
    %v3276 = vmax.f32 %v3246, 0.0
    %v3277 = vmax.f32 %v3251, 0.0
    %v3278 = vmax.f32 %v3254, 0.0
    %v3279 = vmax.f32 %v3259, 0.0
    %v3280 = vmax.f32 %v3262, 0.0
    %s3281 = scalar_lea.vmem [#allocation3], 832
    %v3282 = vld [vmem:[%s3281] sm:$0xf]
    %v3283 = vld [vmem:[%s3281 + $0x4] sm:$0xf]
    %v3284 = vld [vmem:[%s3281 + $0x8] sm:$0xf]
    %v3285 = vld [vmem:[%s3281 + $0xc] sm:$0xf]
    %v3286 = vld [vmem:[%s3281 + $0x10] sm:$0xf]
    %v3287 = vld [vmem:[%s3281 + $0x14] sm:$0xf]
    %v3288 = vld [vmem:[%s3281 + $0x18] sm:$0xf]
    %v3289 = vld [vmem:[%s3281 + $0x1c] sm:$0xf]
    %v3290 = vld [vmem:[%s3281 + $0x20] sm:$0xf]
    %v3291 = vld [vmem:[%s3281 + $0x24] sm:$0xf]
    %v3292 = vld [vmem:[%s3281 + $0x28] sm:$0xf]
    %v3293 = vld [vmem:[%s3281 + $0x2c] sm:$0xf]
    %v3294 = vld [vmem:[%s3281 + $0x30] sm:$0xf]
    %v3295 = vld [vmem:[%s3281 + $0x34] sm:$0xf]
    %v3296 = vld [vmem:[%s3281 + $0x38] sm:$0xf]
    %v3297 = vld [vmem:[%s3281 + $0x3c] sm:$0xf]
    %v3298 = vpack.c.bf16 %v3266, %v3265
    %v3299 = vpack.c.bf16 %v3268, %v3267
    %v3300 = vpack.c.bf16 %v3270, %v3269
    %v3301 = vpack.c.bf16 %v3272, %v3271
    %v3302 = vpack.c.bf16 %v3274, %v3273
    %v3303 = vpack.c.bf16 %v3276, %v3275
    %v3304 = vpack.c.bf16 %v3278, %v3277
    %v3305 = vpack.c.bf16 %v3280, %v3279
    %s3306 = scalar_lea.vmem %s6, 8
    %v3307 = vld [vmem:[%s3306] sm:$0x1]
    %v3309 = vlaneseq
    %v3310 = vshrl.u32 %v3309, 7
    %v3311 = vsub.s32 0, %v3310
    %v3312 = vrot.slane %v3307, %v3311
    %v3330 = vunpack.c.l.b16 %v3282
    %v3331 = vunpack.c.l.b16 %v3283
    %v3332 = vunpack.c.l.b16 %v3284
    %v3333 = vunpack.c.l.b16 %v3285
    %v3334 = vunpack.c.l.b16 %v3286
    %v3335 = vunpack.c.l.b16 %v3287
    %v3336 = vunpack.c.l.b16 %v3288
    %v3337 = vunpack.c.l.b16 %v3289
    %v3338 = vunpack.c.l.b16 %v3290
    %v3339 = vunpack.c.l.b16 %v3291
    %v3340 = vunpack.c.l.b16 %v3292
    %v3341 = vunpack.c.l.b16 %v3293
    %v3342 = vunpack.c.l.b16 %v3294
    %v3343 = vunpack.c.l.b16 %v3295
    %v3344 = vunpack.c.l.b16 %v3296
    %v3345 = vunpack.c.l.b16 %v3297
    %v3346 = vpack.c.b16 %v3331, %v3330
    %v3347 = vpack.c.b16 %v3333, %v3332
    %v3348 = vpack.c.b16 %v3335, %v3334
    %v3349 = vpack.c.b16 %v3337, %v3336
    %v3350 = vpack.c.b16 %v3339, %v3338
    %v3351 = vpack.c.b16 %v3341, %v3340
    %v3352 = vpack.c.b16 %v3343, %v3342
    %v3353 = vpack.c.b16 %v3345, %v3344
    %3362 = vmatprep.subr.bf16.mxu0 0
    %3363 = vmatpush1.bf16.msra.mxu0 %v3346
    %3364 = vmatprep.subr.bf16.mxu0 0
    %3365 = vmatpush1.bf16.msra.mxu0 %v3347
    %3366 = vmatprep.subr.bf16.mxu0 0
    %3367 = vmatpush1.bf16.msra.mxu0 %v3348
    %3368 = vmatprep.subr.bf16.mxu0 0
    %3369 = vmatpush1.bf16.msra.mxu0 %v3349
    %3370 = vmatprep.subr.bf16.mxu0 0
    %3371 = vmatpush1.bf16.msra.mxu0 %v3350
    %3372 = vmatprep.subr.bf16.mxu0 0
    %3373 = vmatpush1.bf16.msra.mxu0 %v3351
    %3374 = vmatprep.subr.bf16.mxu0 0
    %3375 = vmatpush1.bf16.msra.mxu0 %v3352
    %3376 = vmatprep.subr.bf16.mxu0 0
    %3377 = vmatpush1.bf16.msra.mxu0 %v3353
    %3378 = vmatprep.subr.bf16.mxu0 0
    %3379 = vmatpush1.bf16.msra.mxu0 0
    %3380 = vmatprep.subr.bf16.mxu0 0
    %3381 = vmatpush1.bf16.msra.mxu0 0
    %3382 = vmatprep.subr.bf16.mxu0 0
    %3383 = vmatpush1.bf16.msra.mxu0 0
    %3384 = vmatprep.subr.bf16.mxu0 0
    %3385 = vmatpush1.bf16.msra.mxu0 0
    %3386 = vmatprep.subr.bf16.mxu0 0
    %3387 = vmatpush1.bf16.msra.mxu0 0
    %3388 = vmatprep.subr.bf16.mxu0 0
    %3389 = vmatpush1.bf16.msra.mxu0 0
    %3390 = vmatprep.subr.bf16.mxu0 0
    %3391 = vmatpush1.bf16.msra.mxu0 0
    %3392 = vmatprep.subr.bf16.mxu0 0
    %3393 = vmatpush1.bf16.msra.mxu0 0
    %3394 = vmatprep.mubr.bf16.mxu0 0
    %3395 = vmatmul.mubr.bf16.gmra.mrb[0].mxu0 %v3298
    %v3396 = vpop.f32.mrb[0].mxu0
    %v3397 = vadd.f32 %v3312, %v3396
    %v3398 = vpop.f32.mrb[0].mxu0
    %v3399 = vpop.f32.mrb[0].mxu0
    %v3400 = vadd.f32 %v3312, %v3399
    %v3401 = vpop.f32.mrb[0].mxu0
    %3402 = vmatprep.mubr.bf16.mxu0 0
    %3403 = vmatmul.mubr.bf16.gmra.mrb[0].mxu0 %v3299
    %v3404 = vpop.f32.mrb[0].mxu0
    %v3405 = vadd.f32 %v3312, %v3404
    %v3406 = vpop.f32.mrb[0].mxu0
    %v3407 = vpop.f32.mrb[0].mxu0
    %v3408 = vadd.f32 %v3312, %v3407
    %v3409 = vpop.f32.mrb[0].mxu0
    %3410 = vmatprep.mubr.bf16.mxu0 0
    %3411 = vmatmul.mubr.bf16.gmra.mrb[0].mxu0 %v3300
    %v3412 = vpop.f32.mrb[0].mxu0
    %v3413 = vadd.f32 %v3312, %v3412
    %v3414 = vpop.f32.mrb[0].mxu0
    %v3415 = vpop.f32.mrb[0].mxu0
    %v3416 = vadd.f32 %v3312, %v3415
    %v3417 = vpop.f32.mrb[0].mxu0
    %3418 = vmatprep.mubr.bf16.mxu0 0
    %3419 = vmatmul.mubr.bf16.gmra.mrb[0].mxu0 %v3301
    %v3420 = vpop.f32.mrb[0].mxu0
    %v3421 = vadd.f32 %v3312, %v3420
    %v3422 = vpop.f32.mrb[0].mxu0
    %v3423 = vpop.f32.mrb[0].mxu0
    %v3424 = vadd.f32 %v3312, %v3423
    %v3425 = vpop.f32.mrb[0].mxu0
    %3426 = vmatprep.mubr.bf16.mxu0 0
    %3427 = vmatmul.mubr.bf16.gmra.mrb[0].mxu0 %v3302
    %v3428 = vpop.f32.mrb[0].mxu0
    %v3429 = vadd.f32 %v3312, %v3428
    %v3430 = vpop.f32.mrb[0].mxu0
    %v3431 = vpop.f32.mrb[0].mxu0
    %v3432 = vadd.f32 %v3312, %v3431
    %v3433 = vpop.f32.mrb[0].mxu0
    %3434 = vmatprep.mubr.bf16.mxu0 0
    %3435 = vmatmul.mubr.bf16.gmra.mrb[0].mxu0 %v3303
    %v3436 = vpop.f32.mrb[0].mxu0
    %v3437 = vadd.f32 %v3312, %v3436
    %v3438 = vpop.f32.mrb[0].mxu0
    %v3439 = vpop.f32.mrb[0].mxu0
    %v3440 = vadd.f32 %v3312, %v3439
    %v3441 = vpop.f32.mrb[0].mxu0
    %3442 = vmatprep.mubr.bf16.mxu0 0
    %3443 = vmatmul.mubr.bf16.gmra.mrb[0].mxu0 %v3304
    %v3444 = vpop.f32.mrb[0].mxu0
    %v3445 = vadd.f32 %v3312, %v3444
    %v3446 = vpop.f32.mrb[0].mxu0
    %v3447 = vpop.f32.mrb[0].mxu0
    %v3448 = vadd.f32 %v3312, %v3447
    %v3449 = vpop.f32.mrb[0].mxu0
    %3450 = vmatprep.mubr.bf16.mxu0 0
    %3451 = vmatmul.mubr.bf16.gmra.mrb[0].mxu0 %v3305
    %v3452 = vpop.f32.mrb[0].mxu0
    %v3453 = vadd.f32 %v3312, %v3452
    %v3454 = vpop.f32.mrb[0].mxu0
    %v3455 = vpop.f32.mrb[0].mxu0
    %v3456 = vadd.f32 %v3312, %v3455
    %v3457 = vpop.f32.mrb[0].mxu0
    %3458 = vdwg.mxu0
    %v3459 = vpack.c.bf16 %v3400, %v3397
    %v3460 = vpack.c.bf16 %v3408, %v3405
    %v3461 = vpack.c.bf16 %v3416, %v3413
    %v3462 = vpack.c.bf16 %v3424, %v3421
    %v3463 = vpack.c.bf16 %v3432, %v3429
    %v3464 = vpack.c.bf16 %v3440, %v3437
    %v3465 = vpack.c.bf16 %v3448, %v3445
    %v3466 = vpack.c.bf16 %v3456, %v3453
    %v3467 = vunpack.c.l.bf16 %v3459
    %v3468 = vunpack.c.h.bf16 %v3459
    %v3469 = vunpack.c.l.bf16 %v3460
    %v3470 = vunpack.c.h.bf16 %v3460
    %v3471 = vunpack.c.l.bf16 %v3461
    %v3472 = vunpack.c.h.bf16 %v3461
    %v3473 = vunpack.c.l.bf16 %v3462
    %v3474 = vunpack.c.h.bf16 %v3462
    %v3475 = vunpack.c.l.bf16 %v3463
    %v3476 = vunpack.c.h.bf16 %v3463
    %v3477 = vunpack.c.l.bf16 %v3464
    %v3478 = vunpack.c.h.bf16 %v3464
    %v3479 = vunpack.c.l.bf16 %v3465
    %v3480 = vunpack.c.h.bf16 %v3465
    %v3481 = vunpack.c.l.bf16 %v3466
    %v3482 = vunpack.c.h.bf16 %v3466
    %v3483 = vsub.f32 %v3397, %v3467
    %v3484 = vsub.f32 %v3400, %v3468
    %v3485 = vsub.f32 %v3405, %v3469
    %v3486 = vsub.f32 %v3408, %v3470
    %v3487 = vsub.f32 %v3413, %v3471
    %v3488 = vsub.f32 %v3416, %v3472
    %v3489 = vsub.f32 %v3421, %v3473
    %v3490 = vsub.f32 %v3424, %v3474
    %v3491 = vsub.f32 %v3429, %v3475
    %v3492 = vsub.f32 %v3432, %v3476
    %v3493 = vsub.f32 %v3437, %v3477
    %v3494 = vsub.f32 %v3440, %v3478
    %v3495 = vsub.f32 %v3445, %v3479
    %v3496 = vsub.f32 %v3448, %v3480
    %v3497 = vsub.f32 %v3453, %v3481
    %v3498 = vsub.f32 %v3456, %v3482
    %v3499 = vpack.c.bf16 %v3484, %v3483
    %v3500 = vpack.c.bf16 %v3486, %v3485
    %v3501 = vpack.c.bf16 %v3488, %v3487
    %v3502 = vpack.c.bf16 %v3490, %v3489
    %v3503 = vpack.c.bf16 %v3492, %v3491
    %v3504 = vpack.c.bf16 %v3494, %v3493
    %v3505 = vpack.c.bf16 %v3496, %v3495
    %v3506 = vpack.c.bf16 %v3498, %v3497
    %3507 = vmatprep.subr.bf16.mxu0 0
    %3508 = vmatpush1.bf16.msra.mxu0 %v3499
    %3509 = vmatprep.subr.bf16.mxu0 0
    %3510 = vmatpush1.bf16.msra.mxu0 %v3500
    %3511 = vmatprep.subr.bf16.mxu0 0
    %3512 = vmatpush1.bf16.msra.mxu0 %v3501
    %3513 = vmatprep.subr.bf16.mxu0 0
    %3514 = vmatpush1.bf16.msra.mxu0 %v3502
    %3515 = vmatprep.subr.bf16.mxu0 0
    %3516 = vmatpush1.bf16.msra.mxu0 %v3503
    %3517 = vmatprep.subr.bf16.mxu0 0
    %3518 = vmatpush1.bf16.msra.mxu0 %v3504
    %3519 = vmatprep.subr.bf16.mxu0 0
    %3520 = vmatpush1.bf16.msra.mxu0 %v3505
    %3521 = vmatprep.subr.bf16.mxu0 0
    %3522 = vmatpush1.bf16.msra.mxu0 %v3506
    %3523 = vmatprep.subr.bf16.mxu0 0
    %3524 = vmatpush1.bf16.msra.mxu0 0
    %3525 = vmatprep.subr.bf16.mxu0 0
    %3526 = vmatpush1.bf16.msra.mxu0 0
    %3527 = vmatprep.subr.bf16.mxu0 0
    %3528 = vmatpush1.bf16.msra.mxu0 0
    %3529 = vmatprep.subr.bf16.mxu0 0
    %3530 = vmatpush1.bf16.msra.mxu0 0
    %3531 = vmatprep.subr.bf16.mxu0 0
    %3532 = vmatpush1.bf16.msra.mxu0 0
    %3533 = vmatprep.subr.bf16.mxu0 0
    %3534 = vmatpush1.bf16.msra.mxu0 0
    %3535 = vmatprep.subr.bf16.mxu0 0
    %3536 = vmatpush1.bf16.msra.mxu0 0
    %3537 = vmatprep.subr.bf16.mxu0 0
    %3538 = vmatpush1.bf16.msra.mxu0 0
    %3539 = vmatprep.mubr.bf16.mxu0 0
    %3540 = vmatmul.mubr.bf16.gmra.mrb[0].mxu0 %v1147
    %v3541 = vpop.f32.mrb[0].mxu0
    %v3542 = vadd.f32 0.0, %v3541
    %v3543 = vpop.f32.mrb[0].mxu0
    %v3544 = vpop.f32.mrb[0].mxu0
    %v3545 = vadd.f32 0.0, %v3544
    %v3546 = vpop.f32.mrb[0].mxu0
    %3547 = vmatprep.mubr.bf16.mxu0 0
    %3548 = vmatmul.mubr.bf16.gmra.mrb[0].mxu0 %v1148
    %v3549 = vpop.f32.mrb[0].mxu0
    %v3550 = vadd.f32 0.0, %v3549
    %v3551 = vpop.f32.mrb[0].mxu0
    %v3552 = vpop.f32.mrb[0].mxu0
    %v3553 = vadd.f32 0.0, %v3552
    %v3554 = vpop.f32.mrb[0].mxu0
    %3555 = vmatprep.mubr.bf16.mxu0 0
    %3556 = vmatmul.mubr.bf16.gmra.mrb[0].mxu0 %v1149
    %v3557 = vpop.f32.mrb[0].mxu0
    %v3558 = vadd.f32 0.0, %v3557
    %v3559 = vpop.f32.mrb[0].mxu0
    %v3560 = vpop.f32.mrb[0].mxu0
    %v3561 = vadd.f32 0.0, %v3560
    %v3562 = vpop.f32.mrb[0].mxu0
    %3563 = vmatprep.mubr.bf16.mxu0 0
    %3564 = vmatmul.mubr.bf16.gmra.mrb[0].mxu0 %v1150
    %v3565 = vpop.f32.mrb[0].mxu0
    %v3566 = vadd.f32 0.0, %v3565
    %v3567 = vpop.f32.mrb[0].mxu0
    %v3568 = vpop.f32.mrb[0].mxu0
    %v3569 = vadd.f32 0.0, %v3568
    %v3570 = vpop.f32.mrb[0].mxu0
    %3571 = vdwg.mxu0
    %3572 = vmatprep.subr.bf16.mxu0 0
    %3573 = vmatpush1.bf16.msra.mxu0 %v3459
    %3574 = vmatprep.subr.bf16.mxu0 0
    %3575 = vmatpush1.bf16.msra.mxu0 %v3460
    %3576 = vmatprep.subr.bf16.mxu0 0
    %3577 = vmatpush1.bf16.msra.mxu0 %v3461
    %3578 = vmatprep.subr.bf16.mxu0 0
    %3579 = vmatpush1.bf16.msra.mxu0 %v3462
    %3580 = vmatprep.subr.bf16.mxu0 0
    %3581 = vmatpush1.bf16.msra.mxu0 %v3463
    %3582 = vmatprep.subr.bf16.mxu0 0
    %3583 = vmatpush1.bf16.msra.mxu0 %v3464
    %3584 = vmatprep.subr.bf16.mxu0 0
    %3585 = vmatpush1.bf16.msra.mxu0 %v3465
    %3586 = vmatprep.subr.bf16.mxu0 0
    %3587 = vmatpush1.bf16.msra.mxu0 %v3466
    %3588 = vmatprep.subr.bf16.mxu0 0
    %3589 = vmatpush1.bf16.msra.mxu0 0
    %3590 = vmatprep.subr.bf16.mxu0 0
    %3591 = vmatpush1.bf16.msra.mxu0 0
    %3592 = vmatprep.subr.bf16.mxu0 0
    %3593 = vmatpush1.bf16.msra.mxu0 0
    %3594 = vmatprep.subr.bf16.mxu0 0
    %3595 = vmatpush1.bf16.msra.mxu0 0
    %3596 = vmatprep.subr.bf16.mxu0 0
    %3597 = vmatpush1.bf16.msra.mxu0 0
    %3598 = vmatprep.subr.bf16.mxu0 0
    %3599 = vmatpush1.bf16.msra.mxu0 0
    %3600 = vmatprep.subr.bf16.mxu0 0
    %3601 = vmatpush1.bf16.msra.mxu0 0
    %3602 = vmatprep.subr.bf16.mxu0 0
    %3603 = vmatpush1.bf16.msra.mxu0 0
    %3604 = vmatprep.mubr.bf16.mxu0 0
    %3605 = vmatmul.mubr.bf16.gmra.mrb[0].mxu0 %v1147
    %v3606 = vpop.f32.mrb[0].mxu0
    %v3607 = vadd.f32 %v3542, %v3606
    %v3608 = vpop.f32.mrb[0].mxu0
    %v3609 = vpop.f32.mrb[0].mxu0
    %v3610 = vadd.f32 %v3545, %v3609
    %v3611 = vpop.f32.mrb[0].mxu0
    %3612 = vmatprep.mubr.bf16.mxu0 0
    %3613 = vmatmul.mubr.bf16.gmra.mrb[0].mxu0 %v1148
    %v3614 = vpop.f32.mrb[0].mxu0
    %v3615 = vadd.f32 %v3550, %v3614
    %v3616 = vpop.f32.mrb[0].mxu0
    %v3617 = vpop.f32.mrb[0].mxu0
    %v3618 = vadd.f32 %v3553, %v3617
    %v3619 = vpop.f32.mrb[0].mxu0
    %3620 = vmatprep.mubr.bf16.mxu0 0
    %3621 = vmatmul.mubr.bf16.gmra.mrb[0].mxu0 %v1149
    %v3622 = vpop.f32.mrb[0].mxu0
    %v3623 = vadd.f32 %v3558, %v3622
    %v3624 = vpop.f32.mrb[0].mxu0
    %v3625 = vpop.f32.mrb[0].mxu0
    %v3626 = vadd.f32 %v3561, %v3625
    %v3627 = vpop.f32.mrb[0].mxu0
    %3628 = vmatprep.mubr.bf16.mxu0 0
    %3629 = vmatmul.mubr.bf16.gmra.mrb[0].mxu0 %v1150
    %v3630 = vpop.f32.mrb[0].mxu0
    %v3631 = vadd.f32 %v3566, %v3630
    %v3632 = vpop.f32.mrb[0].mxu0
    %v3633 = vpop.f32.mrb[0].mxu0
    %v3634 = vadd.f32 %v3569, %v3633
    %v3635 = vpop.f32.mrb[0].mxu0
    %3636 = vdwg.mxu0
    %v3637 = vadd.f32 %v2651, %v3607
    %v3638 = vadd.f32 %v2652, %v3610
    %v3639 = vadd.f32 %v2653, %v3615
    %v3640 = vadd.f32 %v2654, %v3618
    %v3641 = vadd.f32 %v2655, %v3623
    %v3642 = vadd.f32 %v2656, %v3626
    %v3643 = vadd.f32 %v2657, %v3631
    %v3644 = vadd.f32 %v2658, %v3634
    %s3645 = scalar_lea.vmem [#allocation3], 896
    %v3646 = vld [vmem:[%s3645] sm:$0xf]
    %v3647 = vld [vmem:[%s3645 + $0x4] sm:$0xf]
    %v3648 = vld [vmem:[%s3645 + $0x8] sm:$0xf]
    %v3649 = vld [vmem:[%s3645 + $0xc] sm:$0xf]
    %v3650 = vld [vmem:[%s3645 + $0x10] sm:$0xf]
    %v3651 = vld [vmem:[%s3645 + $0x14] sm:$0xf]
    %v3652 = vld [vmem:[%s3645 + $0x18] sm:$0xf]
    %v3653 = vld [vmem:[%s3645 + $0x1c] sm:$0xf]
    %v3654 = vld [vmem:[%s3645 + $0x20] sm:$0xf]
    %v3655 = vld [vmem:[%s3645 + $0x24] sm:$0xf]
    %v3656 = vld [vmem:[%s3645 + $0x28] sm:$0xf]
    %v3657 = vld [vmem:[%s3645 + $0x2c] sm:$0xf]
    %v3658 = vld [vmem:[%s3645 + $0x30] sm:$0xf]
    %v3659 = vld [vmem:[%s3645 + $0x34] sm:$0xf]
    %v3660 = vld [vmem:[%s3645 + $0x38] sm:$0xf]
    %v3661 = vld [vmem:[%s3645 + $0x3c] sm:$0xf]
    %v3662 = vpack.c.bf16 %v3638, %v3637
    %v3663 = vpack.c.bf16 %v3640, %v3639
    %v3664 = vpack.c.bf16 %v3642, %v3641
    %v3665 = vpack.c.bf16 %v3644, %v3643
    %s3666 = scalar_lea.vmem %s6, 9
    %v3667 = vld [vmem:[%s3666] sm:$0x1]
    %v3669 = vlaneseq
    %v3670 = vshrl.u32 %v3669, 7
    %v3671 = vsub.s32 0, %v3670
    %v3672 = vrot.slane %v3667, %v3671
    %v3690 = vunpack.c.l.b16 %v3646
    %v3691 = vunpack.c.l.b16 %v3647
    %v3692 = vunpack.c.l.b16 %v3648
    %v3693 = vunpack.c.l.b16 %v3649
    %v3694 = vunpack.c.l.b16 %v3650
    %v3695 = vunpack.c.l.b16 %v3651
    %v3696 = vunpack.c.l.b16 %v3652
    %v3697 = vunpack.c.l.b16 %v3653
    %v3698 = vunpack.c.l.b16 %v3654
    %v3699 = vunpack.c.l.b16 %v3655
    %v3700 = vunpack.c.l.b16 %v3656
    %v3701 = vunpack.c.l.b16 %v3657
    %v3702 = vunpack.c.l.b16 %v3658
    %v3703 = vunpack.c.l.b16 %v3659
    %v3704 = vunpack.c.l.b16 %v3660
    %v3705 = vunpack.c.l.b16 %v3661
    %v3706 = vpack.c.b16 %v3691, %v3690
    %v3707 = vpack.c.b16 %v3693, %v3692
    %v3708 = vpack.c.b16 %v3695, %v3694
    %v3709 = vpack.c.b16 %v3697, %v3696
    %v3710 = vpack.c.b16 %v3699, %v3698
    %v3711 = vpack.c.b16 %v3701, %v3700
    %v3712 = vpack.c.b16 %v3703, %v3702
    %v3713 = vpack.c.b16 %v3705, %v3704
    %3722 = vmatprep.subr.bf16.mxu0 0
    %3723 = vmatpush1.bf16.msra.mxu0 %v3706
    %3724 = vmatprep.subr.bf16.mxu0 0
    %3725 = vmatpush1.bf16.msra.mxu0 %v3707
    %3726 = vmatprep.subr.bf16.mxu0 0
    %3727 = vmatpush1.bf16.msra.mxu0 %v3708
    %3728 = vmatprep.subr.bf16.mxu0 0
    %3729 = vmatpush1.bf16.msra.mxu0 %v3709
    %3730 = vmatprep.subr.bf16.mxu0 0
    %3731 = vmatpush1.bf16.msra.mxu0 %v3710
    %3732 = vmatprep.subr.bf16.mxu0 0
    %3733 = vmatpush1.bf16.msra.mxu0 %v3711
    %3734 = vmatprep.subr.bf16.mxu0 0
    %3735 = vmatpush1.bf16.msra.mxu0 %v3712
    %3736 = vmatprep.subr.bf16.mxu0 0
    %3737 = vmatpush1.bf16.msra.mxu0 %v3713
    %3738 = vmatprep.subr.bf16.mxu0 0
    %3739 = vmatpush1.bf16.msra.mxu0 0
    %3740 = vmatprep.subr.bf16.mxu0 0
    %3741 = vmatpush1.bf16.msra.mxu0 0
    %3742 = vmatprep.subr.bf16.mxu0 0
    %3743 = vmatpush1.bf16.msra.mxu0 0
    %3744 = vmatprep.subr.bf16.mxu0 0
    %3745 = vmatpush1.bf16.msra.mxu0 0
    %3746 = vmatprep.subr.bf16.mxu0 0
    %3747 = vmatpush1.bf16.msra.mxu0 0
    %3748 = vmatprep.subr.bf16.mxu0 0
    %3749 = vmatpush1.bf16.msra.mxu0 0
    %3750 = vmatprep.subr.bf16.mxu0 0
    %3751 = vmatpush1.bf16.msra.mxu0 0
    %3752 = vmatprep.subr.bf16.mxu0 0
    %3753 = vmatpush1.bf16.msra.mxu0 0
    %3754 = vmatprep.mubr.bf16.mxu0 0
    %3755 = vmatmul.mubr.bf16.gmra.mrb[0].mxu0 %v3662
    %v3756 = vpop.f32.mrb[0].mxu0
    %v3757 = vadd.f32 %v3672, %v3756
    %v3758 = vpop.f32.mrb[0].mxu0
    %v3759 = vpop.f32.mrb[0].mxu0
    %v3760 = vadd.f32 %v3672, %v3759
    %v3761 = vpop.f32.mrb[0].mxu0
    %3762 = vmatprep.mubr.bf16.mxu0 0
    %3763 = vmatmul.mubr.bf16.gmra.mrb[0].mxu0 %v3663
    %v3764 = vpop.f32.mrb[0].mxu0
    %v3765 = vadd.f32 %v3672, %v3764
    %v3766 = vpop.f32.mrb[0].mxu0
    %v3767 = vpop.f32.mrb[0].mxu0
    %v3768 = vadd.f32 %v3672, %v3767
    %v3769 = vpop.f32.mrb[0].mxu0
    %3770 = vmatprep.mubr.bf16.mxu0 0
    %3771 = vmatmul.mubr.bf16.gmra.mrb[0].mxu0 %v3664
    %v3772 = vpop.f32.mrb[0].mxu0
    %v3773 = vadd.f32 %v3672, %v3772
    %v3774 = vpop.f32.mrb[0].mxu0
    %v3775 = vpop.f32.mrb[0].mxu0
    %v3776 = vadd.f32 %v3672, %v3775
    %v3777 = vpop.f32.mrb[0].mxu0
    %3778 = vmatprep.mubr.bf16.mxu0 0
    %3779 = vmatmul.mubr.bf16.gmra.mrb[0].mxu0 %v3665
    %v3780 = vpop.f32.mrb[0].mxu0
    %v3781 = vadd.f32 %v3672, %v3780
    %v3782 = vpop.f32.mrb[0].mxu0
    %v3783 = vpop.f32.mrb[0].mxu0
    %v3784 = vadd.f32 %v3672, %v3783
    %v3785 = vpop.f32.mrb[0].mxu0
    %3786 = vdwg.mxu0
    %v3787 = vmax.f32 %v3757, 0.0
    %v3788 = vmax.f32 %v3760, 0.0
    %v3789 = vmax.f32 %v3765, 0.0
    %v3790 = vmax.f32 %v3768, 0.0
    %v3791 = vmax.f32 %v3773, 0.0
    %v3792 = vmax.f32 %v3776, 0.0
    %v3793 = vmax.f32 %v3781, 0.0
    %v3794 = vmax.f32 %v3784, 0.0
    %s3795 = scalar_lea.vmem [#allocation3], 960
    %v3796 = vld [vmem:[%s3795] sm:$0xf]
    %v3797 = vld [vmem:[%s3795 + $0x4] sm:$0xf]
    %v3798 = vld [vmem:[%s3795 + $0x8] sm:$0xf]
    %v3799 = vld [vmem:[%s3795 + $0xc] sm:$0xf]
    %v3800 = vld [vmem:[%s3795 + $0x10] sm:$0xf]
    %v3801 = vld [vmem:[%s3795 + $0x14] sm:$0xf]
    %v3802 = vld [vmem:[%s3795 + $0x18] sm:$0xf]
    %v3803 = vld [vmem:[%s3795 + $0x1c] sm:$0xf]
    %v3804 = vld [vmem:[%s3795 + $0x20] sm:$0xf]
    %v3805 = vld [vmem:[%s3795 + $0x24] sm:$0xf]
    %v3806 = vld [vmem:[%s3795 + $0x28] sm:$0xf]
    %v3807 = vld [vmem:[%s3795 + $0x2c] sm:$0xf]
    %v3808 = vld [vmem:[%s3795 + $0x30] sm:$0xf]
    %v3809 = vld [vmem:[%s3795 + $0x34] sm:$0xf]
    %v3810 = vld [vmem:[%s3795 + $0x38] sm:$0xf]
    %v3811 = vld [vmem:[%s3795 + $0x3c] sm:$0xf]
    %v3812 = vpack.c.bf16 %v3788, %v3787
    %v3813 = vpack.c.bf16 %v3790, %v3789
    %v3814 = vpack.c.bf16 %v3792, %v3791
    %v3815 = vpack.c.bf16 %v3794, %v3793
    %s3816 = scalar_lea.vmem %s6, 10
    %v3817 = vld [vmem:[%s3816] sm:$0x1]
    %v3819 = vlaneseq
    %v3820 = vshrl.u32 %v3819, 7
    %v3821 = vsub.s32 0, %v3820
    %v3822 = vrot.slane %v3817, %v3821
    %v3840 = vunpack.c.l.b16 %v3796
    %v3841 = vunpack.c.l.b16 %v3797
    %v3842 = vunpack.c.l.b16 %v3798
    %v3843 = vunpack.c.l.b16 %v3799
    %v3844 = vunpack.c.l.b16 %v3800
    %v3845 = vunpack.c.l.b16 %v3801
    %v3846 = vunpack.c.l.b16 %v3802
    %v3847 = vunpack.c.l.b16 %v3803
    %v3848 = vunpack.c.l.b16 %v3804
    %v3849 = vunpack.c.l.b16 %v3805
    %v3850 = vunpack.c.l.b16 %v3806
    %v3851 = vunpack.c.l.b16 %v3807
    %v3852 = vunpack.c.l.b16 %v3808
    %v3853 = vunpack.c.l.b16 %v3809
    %v3854 = vunpack.c.l.b16 %v3810
    %v3855 = vunpack.c.l.b16 %v3811
    %v3856 = vpack.c.b16 %v3841, %v3840
    %v3857 = vpack.c.b16 %v3843, %v3842
    %v3858 = vpack.c.b16 %v3845, %v3844
    %v3859 = vpack.c.b16 %v3847, %v3846
    %v3860 = vpack.c.b16 %v3849, %v3848
    %v3861 = vpack.c.b16 %v3851, %v3850
    %v3862 = vpack.c.b16 %v3853, %v3852
    %v3863 = vpack.c.b16 %v3855, %v3854
    %3872 = vmatprep.subr.bf16.mxu0 0
    %3873 = vmatpush1.bf16.msra.mxu0 %v3856
    %3874 = vmatprep.subr.bf16.mxu0 0
    %3875 = vmatpush1.bf16.msra.mxu0 %v3857
    %3876 = vmatprep.subr.bf16.mxu0 0
    %3877 = vmatpush1.bf16.msra.mxu0 %v3858
    %3878 = vmatprep.subr.bf16.mxu0 0
    %3879 = vmatpush1.bf16.msra.mxu0 %v3859
    %3880 = vmatprep.subr.bf16.mxu0 0
    %3881 = vmatpush1.bf16.msra.mxu0 %v3860
    %3882 = vmatprep.subr.bf16.mxu0 0
    %3883 = vmatpush1.bf16.msra.mxu0 %v3861
    %3884 = vmatprep.subr.bf16.mxu0 0
    %3885 = vmatpush1.bf16.msra.mxu0 %v3862
    %3886 = vmatprep.subr.bf16.mxu0 0
    %3887 = vmatpush1.bf16.msra.mxu0 %v3863
    %3888 = vmatprep.subr.bf16.mxu0 0
    %3889 = vmatpush1.bf16.msra.mxu0 0
    %3890 = vmatprep.subr.bf16.mxu0 0
    %3891 = vmatpush1.bf16.msra.mxu0 0
    %3892 = vmatprep.subr.bf16.mxu0 0
    %3893 = vmatpush1.bf16.msra.mxu0 0
    %3894 = vmatprep.subr.bf16.mxu0 0
    %3895 = vmatpush1.bf16.msra.mxu0 0
    %3896 = vmatprep.subr.bf16.mxu0 0
    %3897 = vmatpush1.bf16.msra.mxu0 0
    %3898 = vmatprep.subr.bf16.mxu0 0
    %3899 = vmatpush1.bf16.msra.mxu0 0
    %3900 = vmatprep.subr.bf16.mxu0 0
    %3901 = vmatpush1.bf16.msra.mxu0 0
    %3902 = vmatprep.subr.bf16.mxu0 0
    %3903 = vmatpush1.bf16.msra.mxu0 0
    %3904 = vmatprep.mubr.bf16.mxu0 0
    %3905 = vmatmul.mubr.bf16.gmra.mrb[0].mxu0 %v3812
    %v3906 = vpop.f32.mrb[0].mxu0
    %v3907 = vadd.f32 %v3822, %v3906
    %v3908 = vpop.f32.mrb[0].mxu0
    %v3909 = vpop.f32.mrb[0].mxu0
    %v3910 = vadd.f32 %v3822, %v3909
    %v3911 = vpop.f32.mrb[0].mxu0
    %3912 = vmatprep.mubr.bf16.mxu0 0
    %3913 = vmatmul.mubr.bf16.gmra.mrb[0].mxu0 %v3813
    %v3914 = vpop.f32.mrb[0].mxu0
    %v3915 = vadd.f32 %v3822, %v3914
    %v3916 = vpop.f32.mrb[0].mxu0
    %v3917 = vpop.f32.mrb[0].mxu0
    %v3918 = vadd.f32 %v3822, %v3917
    %v3919 = vpop.f32.mrb[0].mxu0
    %3920 = vmatprep.mubr.bf16.mxu0 0
    %3921 = vmatmul.mubr.bf16.gmra.mrb[0].mxu0 %v3814
    %v3922 = vpop.f32.mrb[0].mxu0
    %v3923 = vadd.f32 %v3822, %v3922
    %v3924 = vpop.f32.mrb[0].mxu0
    %v3925 = vpop.f32.mrb[0].mxu0
    %v3926 = vadd.f32 %v3822, %v3925
    %v3927 = vpop.f32.mrb[0].mxu0
    %3928 = vmatprep.mubr.bf16.mxu0 0
    %3929 = vmatmul.mubr.bf16.gmra.mrb[0].mxu0 %v3815
    %v3930 = vpop.f32.mrb[0].mxu0
    %v3931 = vadd.f32 %v3822, %v3930
    %v3932 = vpop.f32.mrb[0].mxu0
    %v3933 = vpop.f32.mrb[0].mxu0
    %v3934 = vadd.f32 %v3822, %v3933
    %v3935 = vpop.f32.mrb[0].mxu0
    %3936 = vdwg.mxu0
    %v3937 = vmax.f32 %v3907, 0.0
    %v3938 = vmax.f32 %v3910, 0.0
    %v3939 = vmax.f32 %v3915, 0.0
    %v3940 = vmax.f32 %v3918, 0.0
    %v3941 = vmax.f32 %v3923, 0.0
    %v3942 = vmax.f32 %v3926, 0.0
    %v3943 = vmax.f32 %v3931, 0.0
    %v3944 = vmax.f32 %v3934, 0.0
    %s3945 = scalar_lea.vmem [#allocation3], 1024
    %v3946 = vld [vmem:[%s3945] sm:$0xf]
    %v3947 = vld [vmem:[%s3945 + $0x4] sm:$0xf]
    %v3948 = vld [vmem:[%s3945 + $0x8] sm:$0xf]
    %v3949 = vld [vmem:[%s3945 + $0xc] sm:$0xf]
    %v3950 = vld [vmem:[%s3945 + $0x10] sm:$0xf]
    %v3951 = vld [vmem:[%s3945 + $0x14] sm:$0xf]
    %v3952 = vld [vmem:[%s3945 + $0x18] sm:$0xf]
    %v3953 = vld [vmem:[%s3945 + $0x1c] sm:$0xf]
    %v3954 = vld [vmem:[%s3945 + $0x20] sm:$0xf]
    %v3955 = vld [vmem:[%s3945 + $0x24] sm:$0xf]
    %v3956 = vld [vmem:[%s3945 + $0x28] sm:$0xf]
    %v3957 = vld [vmem:[%s3945 + $0x2c] sm:$0xf]
    %v3958 = vld [vmem:[%s3945 + $0x30] sm:$0xf]
    %v3959 = vld [vmem:[%s3945 + $0x34] sm:$0xf]
    %v3960 = vld [vmem:[%s3945 + $0x38] sm:$0xf]
    %v3961 = vld [vmem:[%s3945 + $0x3c] sm:$0xf]
    %v3962 = vpack.c.bf16 %v3938, %v3937
    %v3963 = vpack.c.bf16 %v3940, %v3939
    %v3964 = vpack.c.bf16 %v3942, %v3941
    %v3965 = vpack.c.bf16 %v3944, %v3943
    %s3966 = scalar_lea.vmem %s6, 11
    %v3967 = vld [vmem:[%s3966] sm:$0x1]
    %v3969 = vlaneseq
    %v3970 = vshrl.u32 %v3969, 7
    %v3971 = vsub.s32 0, %v3970
    %v3972 = vrot.slane %v3967, %v3971
    %v3990 = vunpack.c.l.b16 %v3946
    %v3991 = vunpack.c.l.b16 %v3947
    %v3992 = vunpack.c.l.b16 %v3948
    %v3993 = vunpack.c.l.b16 %v3949
    %v3994 = vunpack.c.l.b16 %v3950
    %v3995 = vunpack.c.l.b16 %v3951
    %v3996 = vunpack.c.l.b16 %v3952
    %v3997 = vunpack.c.l.b16 %v3953
    %v3998 = vunpack.c.l.b16 %v3954
    %v3999 = vunpack.c.l.b16 %v3955
    %v4000 = vunpack.c.l.b16 %v3956
    %v4001 = vunpack.c.l.b16 %v3957
    %v4002 = vunpack.c.l.b16 %v3958
    %v4003 = vunpack.c.l.b16 %v3959
    %v4004 = vunpack.c.l.b16 %v3960
    %v4005 = vunpack.c.l.b16 %v3961
    %v4006 = vpack.c.b16 %v3991, %v3990
    %v4007 = vpack.c.b16 %v3993, %v3992
    %v4008 = vpack.c.b16 %v3995, %v3994
    %v4009 = vpack.c.b16 %v3997, %v3996
    %v4010 = vpack.c.b16 %v3999, %v3998
    %v4011 = vpack.c.b16 %v4001, %v4000
    %v4012 = vpack.c.b16 %v4003, %v4002
    %v4013 = vpack.c.b16 %v4005, %v4004
    %4022 = vmatprep.subr.bf16.mxu0 0
    %4023 = vmatpush1.bf16.msra.mxu0 %v4006
    %4024 = vmatprep.subr.bf16.mxu0 0
    %4025 = vmatpush1.bf16.msra.mxu0 %v4007
    %4026 = vmatprep.subr.bf16.mxu0 0
    %4027 = vmatpush1.bf16.msra.mxu0 %v4008
    %4028 = vmatprep.subr.bf16.mxu0 0
    %4029 = vmatpush1.bf16.msra.mxu0 %v4009
    %4030 = vmatprep.subr.bf16.mxu0 0
    %4031 = vmatpush1.bf16.msra.mxu0 %v4010
    %4032 = vmatprep.subr.bf16.mxu0 0
    %4033 = vmatpush1.bf16.msra.mxu0 %v4011
    %4034 = vmatprep.subr.bf16.mxu0 0
    %4035 = vmatpush1.bf16.msra.mxu0 %v4012
    %4036 = vmatprep.subr.bf16.mxu0 0
    %4037 = vmatpush1.bf16.msra.mxu0 %v4013
    %4038 = vmatprep.subr.bf16.mxu0 0
    %4039 = vmatpush1.bf16.msra.mxu0 0
    %4040 = vmatprep.subr.bf16.mxu0 0
    %4041 = vmatpush1.bf16.msra.mxu0 0
    %4042 = vmatprep.subr.bf16.mxu0 0
    %4043 = vmatpush1.bf16.msra.mxu0 0
    %4044 = vmatprep.subr.bf16.mxu0 0
    %4045 = vmatpush1.bf16.msra.mxu0 0
    %4046 = vmatprep.subr.bf16.mxu0 0
    %4047 = vmatpush1.bf16.msra.mxu0 0
    %4048 = vmatprep.subr.bf16.mxu0 0
    %4049 = vmatpush1.bf16.msra.mxu0 0
    %4050 = vmatprep.subr.bf16.mxu0 0
    %4051 = vmatpush1.bf16.msra.mxu0 0
    %4052 = vmatprep.subr.bf16.mxu0 0
    %4053 = vmatpush1.bf16.msra.mxu0 0
    %4054 = vmatprep.mubr.bf16.mxu0 0
    %4055 = vmatmul.mubr.bf16.gmra.mrb[0].mxu0 %v3962
    %v4056 = vpop.f32.mrb[0].mxu0
    %v4057 = vadd.f32 %v3972, %v4056
    %v4058 = vpop.f32.mrb[0].mxu0
    %v4059 = vpop.f32.mrb[0].mxu0
    %v4060 = vadd.f32 %v3972, %v4059
    %v4061 = vpop.f32.mrb[0].mxu0
    %4062 = vmatprep.mubr.bf16.mxu0 0
    %4063 = vmatmul.mubr.bf16.gmra.mrb[0].mxu0 %v3963
    %v4064 = vpop.f32.mrb[0].mxu0
    %v4065 = vadd.f32 %v3972, %v4064
    %v4066 = vpop.f32.mrb[0].mxu0
    %v4067 = vpop.f32.mrb[0].mxu0
    %v4068 = vadd.f32 %v3972, %v4067
    %v4069 = vpop.f32.mrb[0].mxu0
    %4070 = vmatprep.mubr.bf16.mxu0 0
    %4071 = vmatmul.mubr.bf16.gmra.mrb[0].mxu0 %v3964
    %v4072 = vpop.f32.mrb[0].mxu0
    %v4073 = vadd.f32 %v3972, %v4072
    %v4074 = vpop.f32.mrb[0].mxu0
    %v4075 = vpop.f32.mrb[0].mxu0
    %v4076 = vadd.f32 %v3972, %v4075
    %v4077 = vpop.f32.mrb[0].mxu0
    %4078 = vmatprep.mubr.bf16.mxu0 0
    %4079 = vmatmul.mubr.bf16.gmra.mrb[0].mxu0 %v3965
    %v4080 = vpop.f32.mrb[0].mxu0
    %v4081 = vadd.f32 %v3972, %v4080
    %v4082 = vpop.f32.mrb[0].mxu0
    %v4083 = vpop.f32.mrb[0].mxu0
    %v4084 = vadd.f32 %v3972, %v4083
    %v4085 = vpop.f32.mrb[0].mxu0
    %4086 = vdwg.mxu0
    %v4087 = vmul.f32 %v2651, 0.70710677
    %v4088 = vmul.f32 %v2652, 0.70710677
    %v4089 = vmul.f32 %v2653, 0.70710677
    %v4090 = vmul.f32 %v2654, 0.70710677
    %v4091 = vmul.f32 %v2655, 0.70710677
    %v4092 = vmul.f32 %v2656, 0.70710677
    %v4093 = vmul.f32 %v2657, 0.70710677
    %v4094 = vmul.f32 %v2658, 0.70710677
    %v4095 = vmax.f32 %v4057, 0.0
    %v4096 = vmax.f32 %v4060, 0.0
    %v4097 = vmax.f32 %v4065, 0.0
    %v4098 = vmax.f32 %v4068, 0.0
    %v4099 = vmax.f32 %v4073, 0.0
    %v4100 = vmax.f32 %v4076, 0.0
    %v4101 = vmax.f32 %v4081, 0.0
    %v4102 = vmax.f32 %v4084, 0.0
    %v4103 = vmul.f32 %v4095, 0.70710677
    %v4104 = vmul.f32 %v4096, 0.70710677
    %v4105 = vmul.f32 %v4097, 0.70710677
    %v4106 = vmul.f32 %v4098, 0.70710677
    %v4107 = vmul.f32 %v4099, 0.70710677
    %v4108 = vmul.f32 %v4100, 0.70710677
    %v4109 = vmul.f32 %v4101, 0.70710677
    %v4110 = vmul.f32 %v4102, 0.70710677
    %v4111 = vadd.f32 %v4087, %v4103
    %v4112 = vadd.f32 %v4088, %v4104
    %v4113 = vadd.f32 %v4089, %v4105
    %v4114 = vadd.f32 %v4090, %v4106
    %v4115 = vadd.f32 %v4091, %v4107
    %v4116 = vadd.f32 %v4092, %v4108
    %v4117 = vadd.f32 %v4093, %v4109
    %v4118 = vadd.f32 %v4094, %v4110
    %v4119 = vpack.c.bf16 %v4112, %v4111
    %v4120 = vpack.c.bf16 %v4114, %v4113
    %v4121 = vpack.c.bf16 %v4116, %v4115
    %v4122 = vpack.c.bf16 %v4118, %v4117
    %4123 = vrot.lane.b32.xlu0 %v4111, 5
    %v4124 = vpop.permute.xlu0 %4123
    %4125 = vrot.lane.b32.xlu0 %v4112, 5
    %v4126 = vpop.permute.xlu0 %4125
    %4127 = vrot.lane.b32.xlu0 %v4113, 5
    %v4128 = vpop.permute.xlu0 %4127
    %4129 = vrot.lane.b32.xlu0 %v4114, 5
    %v4130 = vpop.permute.xlu0 %4129
    %4131 = vrot.lane.b32.xlu0 %v4115, 5
    %v4132 = vpop.permute.xlu0 %4131
    %4133 = vrot.lane.b32.xlu0 %v4116, 5
    %v4134 = vpop.permute.xlu0 %4133
    %4135 = vrot.lane.b32.xlu0 %v4117, 5
    %v4136 = vpop.permute.xlu0 %4135
    %4137 = vrot.lane.b32.xlu0 %v4118, 5
    %v4138 = vpop.permute.xlu0 %4137
    %v4139 = vpack.c.bf16 %v4126, %v4124
    %v4140 = vpack.c.bf16 %v4130, %v4128
    %v4141 = vpack.c.bf16 %v4134, %v4132
    %v4142 = vpack.c.bf16 %v4138, %v4136
    %4143 = vmatprep.subr.bf16.mxu0 0
    %4144 = vmatpush1.bf16.msra.mxu0 %v4139
    %4145 = vmatprep.subr.bf16.mxu0 0
    %4146 = vmatpush1.bf16.msra.mxu0 %v4140
    %4147 = vmatprep.subr.bf16.mxu0 0
    %4148 = vmatpush1.bf16.msra.mxu0 %v4141
    %4149 = vmatprep.subr.bf16.mxu0 0
    %4150 = vmatpush1.bf16.msra.mxu0 %v4142
    %4151 = vmatprep.subr.bf16.mxu0 0
    %4152 = vmatpush1.bf16.msra.mxu0 0
    %4153 = vmatprep.subr.bf16.mxu0 0
    %4154 = vmatpush1.bf16.msra.mxu0 0
    %4155 = vmatprep.subr.bf16.mxu0 0
    %4156 = vmatpush1.bf16.msra.mxu0 0
    %4157 = vmatprep.subr.bf16.mxu0 0
    %4158 = vmatpush1.bf16.msra.mxu0 0
    %4159 = vmatprep.subr.bf16.mxu0 0
    %4160 = vmatpush1.bf16.msra.mxu0 0
    %4161 = vmatprep.subr.bf16.mxu0 0
    %4162 = vmatpush1.bf16.msra.mxu0 0
    %4163 = vmatprep.subr.bf16.mxu0 0
    %4164 = vmatpush1.bf16.msra.mxu0 0
    %4165 = vmatprep.subr.bf16.mxu0 0
    %4166 = vmatpush1.bf16.msra.mxu0 0
    %4167 = vmatprep.subr.bf16.mxu0 0
    %4168 = vmatpush1.bf16.msra.mxu0 0
    %4169 = vmatprep.subr.bf16.mxu0 0
    %4170 = vmatpush1.bf16.msra.mxu0 0
    %4171 = vmatprep.subr.bf16.mxu0 0
    %4172 = vmatpush1.bf16.msra.mxu0 0
    %4173 = vmatprep.subr.bf16.mxu0 0
    %4174 = vmatpush1.bf16.msra.mxu0 0
    %4175 = vmatprep.mubr.bf16.mxu0 0
    %4176 = vmatmul.mubr.bf16.gmra.mrb[0].mxu0 %v1177
    %v4177 = vpop.f32.mrb[0].mxu0
    %v4178 = vadd.f32 0.0, %v4177
    %v4179 = vpop.f32.mrb[0].mxu0
    %v4180 = vpop.f32.mrb[0].mxu0
    %v4181 = vadd.f32 0.0, %v4180
    %v4182 = vpop.f32.mrb[0].mxu0
    %4183 = vmatprep.mubr.bf16.mxu0 0
    %4184 = vmatmul.mubr.bf16.gmra.mrb[0].mxu0 %v1180
    %v4185 = vpop.f32.mrb[0].mxu0
    %v4186 = vadd.f32 0.0, %v4185
    %v4187 = vpop.f32.mrb[0].mxu0
    %v4188 = vpop.f32.mrb[0].mxu0
    %v4189 = vadd.f32 0.0, %v4188
    %v4190 = vpop.f32.mrb[0].mxu0
    %4191 = vmatprep.mubr.bf16.mxu0 0
    %4192 = vmatmul.mubr.bf16.gmra.mrb[0].mxu0 %v1183
    %v4193 = vpop.f32.mrb[0].mxu0
    %v4194 = vadd.f32 0.0, %v4193
    %v4195 = vpop.f32.mrb[0].mxu0
    %v4196 = vpop.f32.mrb[0].mxu0
    %v4197 = vadd.f32 0.0, %v4196
    %v4198 = vpop.f32.mrb[0].mxu0
    %4199 = vmatprep.mubr.bf16.mxu0 0
    %4200 = vmatmul.mubr.bf16.gmra.mrb[0].mxu0 %v1186
    %v4201 = vpop.f32.mrb[0].mxu0
    %v4202 = vadd.f32 0.0, %v4201
    %v4203 = vpop.f32.mrb[0].mxu0
    %v4204 = vpop.f32.mrb[0].mxu0
    %v4205 = vadd.f32 0.0, %v4204
    %v4206 = vpop.f32.mrb[0].mxu0
    %4207 = vmatprep.mubr.bf16.mxu0 0
    %4208 = vmatmul.mubr.bf16.gmra.mrb[0].mxu0 %v1189
    %v4209 = vpop.f32.mrb[0].mxu0
    %v4210 = vadd.f32 0.0, %v4209
    %v4211 = vpop.f32.mrb[0].mxu0
    %v4212 = vpop.f32.mrb[0].mxu0
    %v4213 = vadd.f32 0.0, %v4212
    %v4214 = vpop.f32.mrb[0].mxu0
    %4215 = vmatprep.mubr.bf16.mxu0 0
    %4216 = vmatmul.mubr.bf16.gmra.mrb[0].mxu0 %v1192
    %v4217 = vpop.f32.mrb[0].mxu0
    %v4218 = vadd.f32 0.0, %v4217
    %v4219 = vpop.f32.mrb[0].mxu0
    %v4220 = vpop.f32.mrb[0].mxu0
    %v4221 = vadd.f32 0.0, %v4220
    %v4222 = vpop.f32.mrb[0].mxu0
    %4223 = vmatprep.mubr.bf16.mxu0 0
    %4224 = vmatmul.mubr.bf16.gmra.mrb[0].mxu0 %v1195
    %v4225 = vpop.f32.mrb[0].mxu0
    %v4226 = vadd.f32 0.0, %v4225
    %v4227 = vpop.f32.mrb[0].mxu0
    %v4228 = vpop.f32.mrb[0].mxu0
    %v4229 = vadd.f32 0.0, %v4228
    %v4230 = vpop.f32.mrb[0].mxu0
    %4231 = vmatprep.mubr.bf16.mxu0 0
    %4232 = vmatmul.mubr.bf16.gmra.mrb[0].mxu0 %v1198
    %v4233 = vpop.f32.mrb[0].mxu0
    %v4234 = vadd.f32 0.0, %v4233
    %v4235 = vpop.f32.mrb[0].mxu0
    %v4236 = vpop.f32.mrb[0].mxu0
    %v4237 = vadd.f32 0.0, %v4236
    %v4238 = vpop.f32.mrb[0].mxu0
    %4239 = vdwg.mxu0
    %4240 = vmatprep.subr.bf16.mxu0 0
    %4241 = vmatpush1.bf16.msra.mxu0 %v4119
    %4242 = vmatprep.subr.bf16.mxu0 0
    %4243 = vmatpush1.bf16.msra.mxu0 %v4120
    %4244 = vmatprep.subr.bf16.mxu0 0
    %4245 = vmatpush1.bf16.msra.mxu0 %v4121
    %4246 = vmatprep.subr.bf16.mxu0 0
    %4247 = vmatpush1.bf16.msra.mxu0 %v4122
    %4248 = vmatprep.subr.bf16.mxu0 0
    %4249 = vmatpush1.bf16.msra.mxu0 0
    %4250 = vmatprep.subr.bf16.mxu0 0
    %4251 = vmatpush1.bf16.msra.mxu0 0
    %4252 = vmatprep.subr.bf16.mxu0 0
    %4253 = vmatpush1.bf16.msra.mxu0 0
    %4254 = vmatprep.subr.bf16.mxu0 0
    %4255 = vmatpush1.bf16.msra.mxu0 0
    %4256 = vmatprep.subr.bf16.mxu0 0
    %4257 = vmatpush1.bf16.msra.mxu0 0
    %4258 = vmatprep.subr.bf16.mxu0 0
    %4259 = vmatpush1.bf16.msra.mxu0 0
    %4260 = vmatprep.subr.bf16.mxu0 0
    %4261 = vmatpush1.bf16.msra.mxu0 0
    %4262 = vmatprep.subr.bf16.mxu0 0
    %4263 = vmatpush1.bf16.msra.mxu0 0
    %4264 = vmatprep.subr.bf16.mxu0 0
    %4265 = vmatpush1.bf16.msra.mxu0 0
    %4266 = vmatprep.subr.bf16.mxu0 0
    %4267 = vmatpush1.bf16.msra.mxu0 0
    %4268 = vmatprep.subr.bf16.mxu0 0
    %4269 = vmatpush1.bf16.msra.mxu0 0
    %4270 = vmatprep.subr.bf16.mxu0 0
    %4271 = vmatpush1.bf16.msra.mxu0 0
    %4272 = vmatprep.mubr.bf16.mxu0 0
    %4273 = vmatmul.mubr.bf16.gmra.mrb[0].mxu0 %v1298
    %v4274 = vpop.f32.mrb[0].mxu0
    %v4275 = vadd.f32 %v4178, %v4274
    %v4276 = vpop.f32.mrb[0].mxu0
    %v4277 = vpop.f32.mrb[0].mxu0
    %v4278 = vadd.f32 %v4181, %v4277
    %v4279 = vpop.f32.mrb[0].mxu0
    %4280 = vmatprep.mubr.bf16.mxu0 0
    %4281 = vmatmul.mubr.bf16.gmra.mrb[0].mxu0 %v1301
    %v4282 = vpop.f32.mrb[0].mxu0
    %v4283 = vadd.f32 %v4186, %v4282
    %v4284 = vpop.f32.mrb[0].mxu0
    %v4285 = vpop.f32.mrb[0].mxu0
    %v4286 = vadd.f32 %v4189, %v4285
    %v4287 = vpop.f32.mrb[0].mxu0
    %4288 = vmatprep.mubr.bf16.mxu0 0
    %4289 = vmatmul.mubr.bf16.gmra.mrb[0].mxu0 %v1304
    %v4290 = vpop.f32.mrb[0].mxu0
    %v4291 = vadd.f32 %v4194, %v4290
    %v4292 = vpop.f32.mrb[0].mxu0
    %v4293 = vpop.f32.mrb[0].mxu0
    %v4294 = vadd.f32 %v4197, %v4293
    %v4295 = vpop.f32.mrb[0].mxu0
    %4296 = vmatprep.mubr.bf16.mxu0 0
    %4297 = vmatmul.mubr.bf16.gmra.mrb[0].mxu0 %v1307
    %v4298 = vpop.f32.mrb[0].mxu0
    %v4299 = vadd.f32 %v4202, %v4298
    %v4300 = vpop.f32.mrb[0].mxu0
    %v4301 = vpop.f32.mrb[0].mxu0
    %v4302 = vadd.f32 %v4205, %v4301
    %v4303 = vpop.f32.mrb[0].mxu0
    %4304 = vmatprep.mubr.bf16.mxu0 0
    %4305 = vmatmul.mubr.bf16.gmra.mrb[0].mxu0 %v1310
    %v4306 = vpop.f32.mrb[0].mxu0
    %v4307 = vadd.f32 %v4210, %v4306
    %v4308 = vpop.f32.mrb[0].mxu0
    %v4309 = vpop.f32.mrb[0].mxu0
    %v4310 = vadd.f32 %v4213, %v4309
    %v4311 = vpop.f32.mrb[0].mxu0
    %4312 = vmatprep.mubr.bf16.mxu0 0
    %4313 = vmatmul.mubr.bf16.gmra.mrb[0].mxu0 %v1313
    %v4314 = vpop.f32.mrb[0].mxu0
    %v4315 = vadd.f32 %v4218, %v4314
    %v4316 = vpop.f32.mrb[0].mxu0
    %v4317 = vpop.f32.mrb[0].mxu0
    %v4318 = vadd.f32 %v4221, %v4317
    %v4319 = vpop.f32.mrb[0].mxu0
    %4320 = vmatprep.mubr.bf16.mxu0 0
    %4321 = vmatmul.mubr.bf16.gmra.mrb[0].mxu0 %v1316
    %v4322 = vpop.f32.mrb[0].mxu0
    %v4323 = vadd.f32 %v4226, %v4322
    %v4324 = vpop.f32.mrb[0].mxu0
    %v4325 = vpop.f32.mrb[0].mxu0
    %v4326 = vadd.f32 %v4229, %v4325
    %v4327 = vpop.f32.mrb[0].mxu0
    %4328 = vmatprep.mubr.bf16.mxu0 0
    %4329 = vmatmul.mubr.bf16.gmra.mrb[0].mxu0 %v1319
    %v4330 = vpop.f32.mrb[0].mxu0
    %v4331 = vadd.f32 %v4234, %v4330
    %v4332 = vpop.f32.mrb[0].mxu0
    %v4333 = vpop.f32.mrb[0].mxu0
    %v4334 = vadd.f32 %v4237, %v4333
    %v4335 = vpop.f32.mrb[0].mxu0
    %4336 = vdwg.mxu0
    %v4337 = vadd.f32 %v4275, %v3397
    %v4338 = vadd.f32 %v4278, %v3400
    %v4339 = vadd.f32 %v4283, %v3405
    %v4340 = vadd.f32 %v4286, %v3408
    %v4341 = vadd.f32 %v4291, %v3413
    %v4342 = vadd.f32 %v4294, %v3416
    %v4343 = vadd.f32 %v4299, %v3421
    %v4344 = vadd.f32 %v4302, %v3424
    %v4345 = vadd.f32 %v4307, %v3429
    %v4346 = vadd.f32 %v4310, %v3432
    %v4347 = vadd.f32 %v4315, %v3437
    %v4348 = vadd.f32 %v4318, %v3440
    %v4349 = vadd.f32 %v4323, %v3445
    %v4350 = vadd.f32 %v4326, %v3448
    %v4351 = vadd.f32 %v4331, %v3453
    %v4352 = vadd.f32 %v4334, %v3456
    %s4353 = scalar_lea.vmem [#allocation3], 1088
    %v4354 = vld [vmem:[%s4353] sm:$0xf]
    %v4355 = vld [vmem:[%s4353 + $0x4] sm:$0xf]
    %v4356 = vld [vmem:[%s4353 + $0x8] sm:$0xf]
    %v4357 = vld [vmem:[%s4353 + $0xc] sm:$0xf]
    %v4358 = vld [vmem:[%s4353 + $0x10] sm:$0xf]
    %v4359 = vld [vmem:[%s4353 + $0x14] sm:$0xf]
    %v4360 = vld [vmem:[%s4353 + $0x18] sm:$0xf]
    %v4361 = vld [vmem:[%s4353 + $0x1c] sm:$0xf]
    %v4362 = vld [vmem:[%s4353 + $0x20] sm:$0xf]
    %v4363 = vld [vmem:[%s4353 + $0x24] sm:$0xf]
    %v4364 = vld [vmem:[%s4353 + $0x28] sm:$0xf]
    %v4365 = vld [vmem:[%s4353 + $0x2c] sm:$0xf]
    %v4366 = vld [vmem:[%s4353 + $0x30] sm:$0xf]
    %v4367 = vld [vmem:[%s4353 + $0x34] sm:$0xf]
    %v4368 = vld [vmem:[%s4353 + $0x38] sm:$0xf]
    %v4369 = vld [vmem:[%s4353 + $0x3c] sm:$0xf]
    %v4370 = vpack.c.bf16 %v4338, %v4337
    %v4371 = vpack.c.bf16 %v4340, %v4339
    %v4372 = vpack.c.bf16 %v4342, %v4341
    %v4373 = vpack.c.bf16 %v4344, %v4343
    %v4374 = vpack.c.bf16 %v4346, %v4345
    %v4375 = vpack.c.bf16 %v4348, %v4347
    %v4376 = vpack.c.bf16 %v4350, %v4349
    %v4377 = vpack.c.bf16 %v4352, %v4351
    %s4378 = scalar_lea.vmem %s6, 12
    %v4379 = vld [vmem:[%s4378] sm:$0x1]
    %v4381 = vlaneseq
    %v4382 = vshrl.u32 %v4381, 7
    %v4383 = vsub.s32 0, %v4382
    %v4384 = vrot.slane %v4379, %v4383
    %v4402 = vunpack.c.l.b16 %v4354
    %v4403 = vunpack.c.l.b16 %v4355
    %v4404 = vunpack.c.l.b16 %v4356
    %v4405 = vunpack.c.l.b16 %v4357
    %v4406 = vunpack.c.l.b16 %v4358
    %v4407 = vunpack.c.l.b16 %v4359
    %v4408 = vunpack.c.l.b16 %v4360
    %v4409 = vunpack.c.l.b16 %v4361
    %v4410 = vunpack.c.l.b16 %v4362
    %v4411 = vunpack.c.l.b16 %v4363
    %v4412 = vunpack.c.l.b16 %v4364
    %v4413 = vunpack.c.l.b16 %v4365
    %v4414 = vunpack.c.l.b16 %v4366
    %v4415 = vunpack.c.l.b16 %v4367
    %v4416 = vunpack.c.l.b16 %v4368
    %v4417 = vunpack.c.l.b16 %v4369
    %v4418 = vpack.c.b16 %v4403, %v4402
    %v4419 = vpack.c.b16 %v4405, %v4404
    %v4420 = vpack.c.b16 %v4407, %v4406
    %v4421 = vpack.c.b16 %v4409, %v4408
    %v4422 = vpack.c.b16 %v4411, %v4410
    %v4423 = vpack.c.b16 %v4413, %v4412
    %v4424 = vpack.c.b16 %v4415, %v4414
    %v4425 = vpack.c.b16 %v4417, %v4416
    %4434 = vmatprep.subr.bf16.mxu0 0
    %4435 = vmatpush1.bf16.msra.mxu0 %v4418
    %4436 = vmatprep.subr.bf16.mxu0 0
    %4437 = vmatpush1.bf16.msra.mxu0 %v4419
    %4438 = vmatprep.subr.bf16.mxu0 0
    %4439 = vmatpush1.bf16.msra.mxu0 %v4420
    %4440 = vmatprep.subr.bf16.mxu0 0
    %4441 = vmatpush1.bf16.msra.mxu0 %v4421
    %4442 = vmatprep.subr.bf16.mxu0 0
    %4443 = vmatpush1.bf16.msra.mxu0 %v4422
    %4444 = vmatprep.subr.bf16.mxu0 0
    %4445 = vmatpush1.bf16.msra.mxu0 %v4423
    %4446 = vmatprep.subr.bf16.mxu0 0
    %4447 = vmatpush1.bf16.msra.mxu0 %v4424
    %4448 = vmatprep.subr.bf16.mxu0 0
    %4449 = vmatpush1.bf16.msra.mxu0 %v4425
    %4450 = vmatprep.subr.bf16.mxu0 0
    %4451 = vmatpush1.bf16.msra.mxu0 0
    %4452 = vmatprep.subr.bf16.mxu0 0
    %4453 = vmatpush1.bf16.msra.mxu0 0
    %4454 = vmatprep.subr.bf16.mxu0 0
    %4455 = vmatpush1.bf16.msra.mxu0 0
    %4456 = vmatprep.subr.bf16.mxu0 0
    %4457 = vmatpush1.bf16.msra.mxu0 0
    %4458 = vmatprep.subr.bf16.mxu0 0
    %4459 = vmatpush1.bf16.msra.mxu0 0
    %4460 = vmatprep.subr.bf16.mxu0 0
    %4461 = vmatpush1.bf16.msra.mxu0 0
    %4462 = vmatprep.subr.bf16.mxu0 0
    %4463 = vmatpush1.bf16.msra.mxu0 0
    %4464 = vmatprep.subr.bf16.mxu0 0
    %4465 = vmatpush1.bf16.msra.mxu0 0
    %4466 = vmatprep.mubr.bf16.mxu0 0
    %4467 = vmatmul.mubr.bf16.gmra.mrb[0].mxu0 %v4370
    %v4468 = vpop.f32.mrb[0].mxu0
    %v4469 = vadd.f32 %v4384, %v4468
    %v4470 = vpop.f32.mrb[0].mxu0
    %v4471 = vpop.f32.mrb[0].mxu0
    %v4472 = vadd.f32 %v4384, %v4471
    %v4473 = vpop.f32.mrb[0].mxu0
    %4474 = vmatprep.mubr.bf16.mxu0 0
    %4475 = vmatmul.mubr.bf16.gmra.mrb[0].mxu0 %v4371
    %v4476 = vpop.f32.mrb[0].mxu0
    %v4477 = vadd.f32 %v4384, %v4476
    %v4478 = vpop.f32.mrb[0].mxu0
    %v4479 = vpop.f32.mrb[0].mxu0
    %v4480 = vadd.f32 %v4384, %v4479
    %v4481 = vpop.f32.mrb[0].mxu0
    %4482 = vmatprep.mubr.bf16.mxu0 0
    %4483 = vmatmul.mubr.bf16.gmra.mrb[0].mxu0 %v4372
    %v4484 = vpop.f32.mrb[0].mxu0
    %v4485 = vadd.f32 %v4384, %v4484
    %v4486 = vpop.f32.mrb[0].mxu0
    %v4487 = vpop.f32.mrb[0].mxu0
    %v4488 = vadd.f32 %v4384, %v4487
    %v4489 = vpop.f32.mrb[0].mxu0
    %4490 = vmatprep.mubr.bf16.mxu0 0
    %4491 = vmatmul.mubr.bf16.gmra.mrb[0].mxu0 %v4373
    %v4492 = vpop.f32.mrb[0].mxu0
    %v4493 = vadd.f32 %v4384, %v4492
    %v4494 = vpop.f32.mrb[0].mxu0
    %v4495 = vpop.f32.mrb[0].mxu0
    %v4496 = vadd.f32 %v4384, %v4495
    %v4497 = vpop.f32.mrb[0].mxu0
    %4498 = vmatprep.mubr.bf16.mxu0 0
    %4499 = vmatmul.mubr.bf16.gmra.mrb[0].mxu0 %v4374
    %v4500 = vpop.f32.mrb[0].mxu0
    %v4501 = vadd.f32 %v4384, %v4500
    %v4502 = vpop.f32.mrb[0].mxu0
    %v4503 = vpop.f32.mrb[0].mxu0
    %v4504 = vadd.f32 %v4384, %v4503
    %v4505 = vpop.f32.mrb[0].mxu0
    %4506 = vmatprep.mubr.bf16.mxu0 0
    %4507 = vmatmul.mubr.bf16.gmra.mrb[0].mxu0 %v4375
    %v4508 = vpop.f32.mrb[0].mxu0
    %v4509 = vadd.f32 %v4384, %v4508
    %v4510 = vpop.f32.mrb[0].mxu0
    %v4511 = vpop.f32.mrb[0].mxu0
    %v4512 = vadd.f32 %v4384, %v4511
    %v4513 = vpop.f32.mrb[0].mxu0
    %4514 = vmatprep.mubr.bf16.mxu0 0
    %4515 = vmatmul.mubr.bf16.gmra.mrb[0].mxu0 %v4376
    %v4516 = vpop.f32.mrb[0].mxu0
    %v4517 = vadd.f32 %v4384, %v4516
    %v4518 = vpop.f32.mrb[0].mxu0
    %v4519 = vpop.f32.mrb[0].mxu0
    %v4520 = vadd.f32 %v4384, %v4519
    %v4521 = vpop.f32.mrb[0].mxu0
    %4522 = vmatprep.mubr.bf16.mxu0 0
    %4523 = vmatmul.mubr.bf16.gmra.mrb[0].mxu0 %v4377
    %v4524 = vpop.f32.mrb[0].mxu0
    %v4525 = vadd.f32 %v4384, %v4524
    %v4526 = vpop.f32.mrb[0].mxu0
    %v4527 = vpop.f32.mrb[0].mxu0
    %v4528 = vadd.f32 %v4384, %v4527
    %v4529 = vpop.f32.mrb[0].mxu0
    %4530 = vdwg.mxu0
    %v4531 = vmax.f32 %v4469, 0.0
    %v4532 = vmax.f32 %v4472, 0.0
    %v4533 = vmax.f32 %v4477, 0.0
    %v4534 = vmax.f32 %v4480, 0.0
    %v4535 = vmax.f32 %v4485, 0.0
    %v4536 = vmax.f32 %v4488, 0.0
    %v4537 = vmax.f32 %v4493, 0.0
    %v4538 = vmax.f32 %v4496, 0.0
    %v4539 = vmax.f32 %v4501, 0.0
    %v4540 = vmax.f32 %v4504, 0.0
    %v4541 = vmax.f32 %v4509, 0.0
    %v4542 = vmax.f32 %v4512, 0.0
    %v4543 = vmax.f32 %v4517, 0.0
    %v4544 = vmax.f32 %v4520, 0.0
    %v4545 = vmax.f32 %v4525, 0.0
    %v4546 = vmax.f32 %v4528, 0.0
    %s4547 = scalar_lea.vmem [#allocation3], 1152
    %v4548 = vld [vmem:[%s4547] sm:$0xf]
    %v4549 = vld [vmem:[%s4547 + $0x4] sm:$0xf]
    %v4550 = vld [vmem:[%s4547 + $0x8] sm:$0xf]
    %v4551 = vld [vmem:[%s4547 + $0xc] sm:$0xf]
    %v4552 = vld [vmem:[%s4547 + $0x10] sm:$0xf]
    %v4553 = vld [vmem:[%s4547 + $0x14] sm:$0xf]
    %v4554 = vld [vmem:[%s4547 + $0x18] sm:$0xf]
    %v4555 = vld [vmem:[%s4547 + $0x1c] sm:$0xf]
    %v4556 = vld [vmem:[%s4547 + $0x20] sm:$0xf]
    %v4557 = vld [vmem:[%s4547 + $0x24] sm:$0xf]
    %v4558 = vld [vmem:[%s4547 + $0x28] sm:$0xf]
    %v4559 = vld [vmem:[%s4547 + $0x2c] sm:$0xf]
    %v4560 = vld [vmem:[%s4547 + $0x30] sm:$0xf]
    %v4561 = vld [vmem:[%s4547 + $0x34] sm:$0xf]
    %v4562 = vld [vmem:[%s4547 + $0x38] sm:$0xf]
    %v4563 = vld [vmem:[%s4547 + $0x3c] sm:$0xf]
    %v4564 = vpack.c.bf16 %v4532, %v4531
    %v4565 = vpack.c.bf16 %v4534, %v4533
    %v4566 = vpack.c.bf16 %v4536, %v4535
    %v4567 = vpack.c.bf16 %v4538, %v4537
    %v4568 = vpack.c.bf16 %v4540, %v4539
    %v4569 = vpack.c.bf16 %v4542, %v4541
    %v4570 = vpack.c.bf16 %v4544, %v4543
    %v4571 = vpack.c.bf16 %v4546, %v4545
    %s4572 = scalar_lea.vmem %s6, 13
    %v4573 = vld [vmem:[%s4572] sm:$0x1]
    %v4575 = vlaneseq
    %v4576 = vshrl.u32 %v4575, 7
    %v4577 = vsub.s32 0, %v4576
    %v4578 = vrot.slane %v4573, %v4577
    %v4596 = vunpack.c.l.b16 %v4548
    %v4597 = vunpack.c.l.b16 %v4549
    %v4598 = vunpack.c.l.b16 %v4550
    %v4599 = vunpack.c.l.b16 %v4551
    %v4600 = vunpack.c.l.b16 %v4552
    %v4601 = vunpack.c.l.b16 %v4553
    %v4602 = vunpack.c.l.b16 %v4554
    %v4603 = vunpack.c.l.b16 %v4555
    %v4604 = vunpack.c.l.b16 %v4556
    %v4605 = vunpack.c.l.b16 %v4557
    %v4606 = vunpack.c.l.b16 %v4558
    %v4607 = vunpack.c.l.b16 %v4559
    %v4608 = vunpack.c.l.b16 %v4560
    %v4609 = vunpack.c.l.b16 %v4561
    %v4610 = vunpack.c.l.b16 %v4562
    %v4611 = vunpack.c.l.b16 %v4563
    %v4612 = vpack.c.b16 %v4597, %v4596
    %v4613 = vpack.c.b16 %v4599, %v4598
    %v4614 = vpack.c.b16 %v4601, %v4600
    %v4615 = vpack.c.b16 %v4603, %v4602
    %v4616 = vpack.c.b16 %v4605, %v4604
    %v4617 = vpack.c.b16 %v4607, %v4606
    %v4618 = vpack.c.b16 %v4609, %v4608
    %v4619 = vpack.c.b16 %v4611, %v4610
    %4628 = vmatprep.subr.bf16.mxu0 0
    %4629 = vmatpush1.bf16.msra.mxu0 %v4612
    %4630 = vmatprep.subr.bf16.mxu0 0
    %4631 = vmatpush1.bf16.msra.mxu0 %v4613
    %4632 = vmatprep.subr.bf16.mxu0 0
    %4633 = vmatpush1.bf16.msra.mxu0 %v4614
    %4634 = vmatprep.subr.bf16.mxu0 0
    %4635 = vmatpush1.bf16.msra.mxu0 %v4615
    %4636 = vmatprep.subr.bf16.mxu0 0
    %4637 = vmatpush1.bf16.msra.mxu0 %v4616
    %4638 = vmatprep.subr.bf16.mxu0 0
    %4639 = vmatpush1.bf16.msra.mxu0 %v4617
    %4640 = vmatprep.subr.bf16.mxu0 0
    %4641 = vmatpush1.bf16.msra.mxu0 %v4618
    %4642 = vmatprep.subr.bf16.mxu0 0
    %4643 = vmatpush1.bf16.msra.mxu0 %v4619
    %4644 = vmatprep.subr.bf16.mxu0 0
    %4645 = vmatpush1.bf16.msra.mxu0 0
    %4646 = vmatprep.subr.bf16.mxu0 0
    %4647 = vmatpush1.bf16.msra.mxu0 0
    %4648 = vmatprep.subr.bf16.mxu0 0
    %4649 = vmatpush1.bf16.msra.mxu0 0
    %4650 = vmatprep.subr.bf16.mxu0 0
    %4651 = vmatpush1.bf16.msra.mxu0 0
    %4652 = vmatprep.subr.bf16.mxu0 0
    %4653 = vmatpush1.bf16.msra.mxu0 0
    %4654 = vmatprep.subr.bf16.mxu0 0
    %4655 = vmatpush1.bf16.msra.mxu0 0
    %4656 = vmatprep.subr.bf16.mxu0 0
    %4657 = vmatpush1.bf16.msra.mxu0 0
    %4658 = vmatprep.subr.bf16.mxu0 0
    %4659 = vmatpush1.bf16.msra.mxu0 0
    %4660 = vmatprep.mubr.bf16.mxu0 0
    %4661 = vmatmul.mubr.bf16.gmra.mrb[0].mxu0 %v4564
    %v4662 = vpop.f32.mrb[0].mxu0
    %v4663 = vadd.f32 %v4578, %v4662
    %v4664 = vpop.f32.mrb[0].mxu0
    %v4665 = vpop.f32.mrb[0].mxu0
    %v4666 = vadd.f32 %v4578, %v4665
    %v4667 = vpop.f32.mrb[0].mxu0
    %4668 = vmatprep.mubr.bf16.mxu0 0
    %4669 = vmatmul.mubr.bf16.gmra.mrb[0].mxu0 %v4565
    %v4670 = vpop.f32.mrb[0].mxu0
    %v4671 = vadd.f32 %v4578, %v4670
    %v4672 = vpop.f32.mrb[0].mxu0
    %v4673 = vpop.f32.mrb[0].mxu0
    %v4674 = vadd.f32 %v4578, %v4673
    %v4675 = vpop.f32.mrb[0].mxu0
    %4676 = vmatprep.mubr.bf16.mxu0 0
    %4677 = vmatmul.mubr.bf16.gmra.mrb[0].mxu0 %v4566
    %v4678 = vpop.f32.mrb[0].mxu0
    %v4679 = vadd.f32 %v4578, %v4678
    %v4680 = vpop.f32.mrb[0].mxu0
    %v4681 = vpop.f32.mrb[0].mxu0
    %v4682 = vadd.f32 %v4578, %v4681
    %v4683 = vpop.f32.mrb[0].mxu0
    %4684 = vmatprep.mubr.bf16.mxu0 0
    %4685 = vmatmul.mubr.bf16.gmra.mrb[0].mxu0 %v4567
    %v4686 = vpop.f32.mrb[0].mxu0
    %v4687 = vadd.f32 %v4578, %v4686
    %v4688 = vpop.f32.mrb[0].mxu0
    %v4689 = vpop.f32.mrb[0].mxu0
    %v4690 = vadd.f32 %v4578, %v4689
    %v4691 = vpop.f32.mrb[0].mxu0
    %4692 = vmatprep.mubr.bf16.mxu0 0
    %4693 = vmatmul.mubr.bf16.gmra.mrb[0].mxu0 %v4568
    %v4694 = vpop.f32.mrb[0].mxu0
    %v4695 = vadd.f32 %v4578, %v4694
    %v4696 = vpop.f32.mrb[0].mxu0
    %v4697 = vpop.f32.mrb[0].mxu0
    %v4698 = vadd.f32 %v4578, %v4697
    %v4699 = vpop.f32.mrb[0].mxu0
    %4700 = vmatprep.mubr.bf16.mxu0 0
    %4701 = vmatmul.mubr.bf16.gmra.mrb[0].mxu0 %v4569
    %v4702 = vpop.f32.mrb[0].mxu0
    %v4703 = vadd.f32 %v4578, %v4702
    %v4704 = vpop.f32.mrb[0].mxu0
    %v4705 = vpop.f32.mrb[0].mxu0
    %v4706 = vadd.f32 %v4578, %v4705
    %v4707 = vpop.f32.mrb[0].mxu0
    %4708 = vmatprep.mubr.bf16.mxu0 0
    %4709 = vmatmul.mubr.bf16.gmra.mrb[0].mxu0 %v4570
    %v4710 = vpop.f32.mrb[0].mxu0
    %v4711 = vadd.f32 %v4578, %v4710
    %v4712 = vpop.f32.mrb[0].mxu0
    %v4713 = vpop.f32.mrb[0].mxu0
    %v4714 = vadd.f32 %v4578, %v4713
    %v4715 = vpop.f32.mrb[0].mxu0
    %4716 = vmatprep.mubr.bf16.mxu0 0
    %4717 = vmatmul.mubr.bf16.gmra.mrb[0].mxu0 %v4571
    %v4718 = vpop.f32.mrb[0].mxu0
    %v4719 = vadd.f32 %v4578, %v4718
    %v4720 = vpop.f32.mrb[0].mxu0
    %v4721 = vpop.f32.mrb[0].mxu0
    %v4722 = vadd.f32 %v4578, %v4721
    %v4723 = vpop.f32.mrb[0].mxu0
    %4724 = vdwg.mxu0
    %v4725 = vmax.f32 %v4663, 0.0
    %v4726 = vmax.f32 %v4666, 0.0
    %v4727 = vmax.f32 %v4671, 0.0
    %v4728 = vmax.f32 %v4674, 0.0
    %v4729 = vmax.f32 %v4679, 0.0
    %v4730 = vmax.f32 %v4682, 0.0
    %v4731 = vmax.f32 %v4687, 0.0
    %v4732 = vmax.f32 %v4690, 0.0
    %v4733 = vmax.f32 %v4695, 0.0
    %v4734 = vmax.f32 %v4698, 0.0
    %v4735 = vmax.f32 %v4703, 0.0
    %v4736 = vmax.f32 %v4706, 0.0
    %v4737 = vmax.f32 %v4711, 0.0
    %v4738 = vmax.f32 %v4714, 0.0
    %v4739 = vmax.f32 %v4719, 0.0
    %v4740 = vmax.f32 %v4722, 0.0
    %s4741 = scalar_lea.vmem [#allocation3], 1216
    %v4742 = vld [vmem:[%s4741] sm:$0xf]
    %v4743 = vld [vmem:[%s4741 + $0x4] sm:$0xf]
    %v4744 = vld [vmem:[%s4741 + $0x8] sm:$0xf]
    %v4745 = vld [vmem:[%s4741 + $0xc] sm:$0xf]
    %v4746 = vld [vmem:[%s4741 + $0x10] sm:$0xf]
    %v4747 = vld [vmem:[%s4741 + $0x14] sm:$0xf]
    %v4748 = vld [vmem:[%s4741 + $0x18] sm:$0xf]
    %v4749 = vld [vmem:[%s4741 + $0x1c] sm:$0xf]
    %v4750 = vld [vmem:[%s4741 + $0x20] sm:$0xf]
    %v4751 = vld [vmem:[%s4741 + $0x24] sm:$0xf]
    %v4752 = vld [vmem:[%s4741 + $0x28] sm:$0xf]
    %v4753 = vld [vmem:[%s4741 + $0x2c] sm:$0xf]
    %v4754 = vld [vmem:[%s4741 + $0x30] sm:$0xf]
    %v4755 = vld [vmem:[%s4741 + $0x34] sm:$0xf]
    %v4756 = vld [vmem:[%s4741 + $0x38] sm:$0xf]
    %v4757 = vld [vmem:[%s4741 + $0x3c] sm:$0xf]
    %v4758 = vpack.c.bf16 %v4726, %v4725
    %v4759 = vpack.c.bf16 %v4728, %v4727
    %v4760 = vpack.c.bf16 %v4730, %v4729
    %v4761 = vpack.c.bf16 %v4732, %v4731
    %v4762 = vpack.c.bf16 %v4734, %v4733
    %v4763 = vpack.c.bf16 %v4736, %v4735
    %v4764 = vpack.c.bf16 %v4738, %v4737
    %v4765 = vpack.c.bf16 %v4740, %v4739
    %s4766 = scalar_lea.vmem %s6, 14
    %v4767 = vld [vmem:[%s4766] sm:$0x1]
    %v4769 = vlaneseq
    %v4770 = vshrl.u32 %v4769, 7
    %v4771 = vsub.s32 0, %v4770
    %v4772 = vrot.slane %v4767, %v4771
    %v4790 = vunpack.c.l.b16 %v4742
    %v4791 = vunpack.c.l.b16 %v4743
    %v4792 = vunpack.c.l.b16 %v4744
    %v4793 = vunpack.c.l.b16 %v4745
    %v4794 = vunpack.c.l.b16 %v4746
    %v4795 = vunpack.c.l.b16 %v4747
    %v4796 = vunpack.c.l.b16 %v4748
    %v4797 = vunpack.c.l.b16 %v4749
    %v4798 = vunpack.c.l.b16 %v4750
    %v4799 = vunpack.c.l.b16 %v4751
    %v4800 = vunpack.c.l.b16 %v4752
    %v4801 = vunpack.c.l.b16 %v4753
    %v4802 = vunpack.c.l.b16 %v4754
    %v4803 = vunpack.c.l.b16 %v4755
    %v4804 = vunpack.c.l.b16 %v4756
    %v4805 = vunpack.c.l.b16 %v4757
    %v4806 = vpack.c.b16 %v4791, %v4790
    %v4807 = vpack.c.b16 %v4793, %v4792
    %v4808 = vpack.c.b16 %v4795, %v4794
    %v4809 = vpack.c.b16 %v4797, %v4796
    %v4810 = vpack.c.b16 %v4799, %v4798
    %v4811 = vpack.c.b16 %v4801, %v4800
    %v4812 = vpack.c.b16 %v4803, %v4802
    %v4813 = vpack.c.b16 %v4805, %v4804
    %4822 = vmatprep.subr.bf16.mxu0 0
    %4823 = vmatpush1.bf16.msra.mxu0 %v4806
    %4824 = vmatprep.subr.bf16.mxu0 0
    %4825 = vmatpush1.bf16.msra.mxu0 %v4807
    %4826 = vmatprep.subr.bf16.mxu0 0
    %4827 = vmatpush1.bf16.msra.mxu0 %v4808
    %4828 = vmatprep.subr.bf16.mxu0 0
    %4829 = vmatpush1.bf16.msra.mxu0 %v4809
    %4830 = vmatprep.subr.bf16.mxu0 0
    %4831 = vmatpush1.bf16.msra.mxu0 %v4810
    %4832 = vmatprep.subr.bf16.mxu0 0
    %4833 = vmatpush1.bf16.msra.mxu0 %v4811
    %4834 = vmatprep.subr.bf16.mxu0 0
    %4835 = vmatpush1.bf16.msra.mxu0 %v4812
    %4836 = vmatprep.subr.bf16.mxu0 0
    %4837 = vmatpush1.bf16.msra.mxu0 %v4813
    %4838 = vmatprep.subr.bf16.mxu0 0
    %4839 = vmatpush1.bf16.msra.mxu0 0
    %4840 = vmatprep.subr.bf16.mxu0 0
    %4841 = vmatpush1.bf16.msra.mxu0 0
    %4842 = vmatprep.subr.bf16.mxu0 0
    %4843 = vmatpush1.bf16.msra.mxu0 0
    %4844 = vmatprep.subr.bf16.mxu0 0
    %4845 = vmatpush1.bf16.msra.mxu0 0
    %4846 = vmatprep.subr.bf16.mxu0 0
    %4847 = vmatpush1.bf16.msra.mxu0 0
    %4848 = vmatprep.subr.bf16.mxu0 0
    %4849 = vmatpush1.bf16.msra.mxu0 0
    %4850 = vmatprep.subr.bf16.mxu0 0
    %4851 = vmatpush1.bf16.msra.mxu0 0
    %4852 = vmatprep.subr.bf16.mxu0 0
    %4853 = vmatpush1.bf16.msra.mxu0 0
    %4854 = vmatprep.mubr.bf16.mxu0 0
    %4855 = vmatmul.mubr.bf16.gmra.mrb[0].mxu0 %v4758
    %v4856 = vpop.f32.mrb[0].mxu0
    %v4857 = vadd.f32 %v4772, %v4856
    %v4858 = vpop.f32.mrb[0].mxu0
    %v4859 = vpop.f32.mrb[0].mxu0
    %v4860 = vadd.f32 %v4772, %v4859
    %v4861 = vpop.f32.mrb[0].mxu0
    %4862 = vmatprep.mubr.bf16.mxu0 0
    %4863 = vmatmul.mubr.bf16.gmra.mrb[0].mxu0 %v4759
    %v4864 = vpop.f32.mrb[0].mxu0
    %v4865 = vadd.f32 %v4772, %v4864
    %v4866 = vpop.f32.mrb[0].mxu0
    %v4867 = vpop.f32.mrb[0].mxu0
    %v4868 = vadd.f32 %v4772, %v4867
    %v4869 = vpop.f32.mrb[0].mxu0
    %4870 = vmatprep.mubr.bf16.mxu0 0
    %4871 = vmatmul.mubr.bf16.gmra.mrb[0].mxu0 %v4760
    %v4872 = vpop.f32.mrb[0].mxu0
    %v4873 = vadd.f32 %v4772, %v4872
    %v4874 = vpop.f32.mrb[0].mxu0
    %v4875 = vpop.f32.mrb[0].mxu0
    %v4876 = vadd.f32 %v4772, %v4875
    %v4877 = vpop.f32.mrb[0].mxu0
    %4878 = vmatprep.mubr.bf16.mxu0 0
    %4879 = vmatmul.mubr.bf16.gmra.mrb[0].mxu0 %v4761
    %v4880 = vpop.f32.mrb[0].mxu0
    %v4881 = vadd.f32 %v4772, %v4880
    %v4882 = vpop.f32.mrb[0].mxu0
    %v4883 = vpop.f32.mrb[0].mxu0
    %v4884 = vadd.f32 %v4772, %v4883
    %v4885 = vpop.f32.mrb[0].mxu0
    %4886 = vmatprep.mubr.bf16.mxu0 0
    %4887 = vmatmul.mubr.bf16.gmra.mrb[0].mxu0 %v4762
    %v4888 = vpop.f32.mrb[0].mxu0
    %v4889 = vadd.f32 %v4772, %v4888
    %v4890 = vpop.f32.mrb[0].mxu0
    %v4891 = vpop.f32.mrb[0].mxu0
    %v4892 = vadd.f32 %v4772, %v4891
    %v4893 = vpop.f32.mrb[0].mxu0
    %4894 = vmatprep.mubr.bf16.mxu0 0
    %4895 = vmatmul.mubr.bf16.gmra.mrb[0].mxu0 %v4763
    %v4896 = vpop.f32.mrb[0].mxu0
    %v4897 = vadd.f32 %v4772, %v4896
    %v4898 = vpop.f32.mrb[0].mxu0
    %v4899 = vpop.f32.mrb[0].mxu0
    %v4900 = vadd.f32 %v4772, %v4899
    %v4901 = vpop.f32.mrb[0].mxu0
    %4902 = vmatprep.mubr.bf16.mxu0 0
    %4903 = vmatmul.mubr.bf16.gmra.mrb[0].mxu0 %v4764
    %v4904 = vpop.f32.mrb[0].mxu0
    %v4905 = vadd.f32 %v4772, %v4904
    %v4906 = vpop.f32.mrb[0].mxu0
    %v4907 = vpop.f32.mrb[0].mxu0
    %v4908 = vadd.f32 %v4772, %v4907
    %v4909 = vpop.f32.mrb[0].mxu0
    %4910 = vmatprep.mubr.bf16.mxu0 0
    %4911 = vmatmul.mubr.bf16.gmra.mrb[0].mxu0 %v4765
    %v4912 = vpop.f32.mrb[0].mxu0
    %v4913 = vadd.f32 %v4772, %v4912
    %v4914 = vpop.f32.mrb[0].mxu0
    %v4915 = vpop.f32.mrb[0].mxu0
    %v4916 = vadd.f32 %v4772, %v4915
    %v4917 = vpop.f32.mrb[0].mxu0
    %4918 = vdwg.mxu0
    %v4919 = vpack.c.bf16 %v4860, %v4857
    %v4920 = vpack.c.bf16 %v4868, %v4865
    %v4921 = vpack.c.bf16 %v4876, %v4873
    %v4922 = vpack.c.bf16 %v4884, %v4881
    %v4923 = vpack.c.bf16 %v4892, %v4889
    %v4924 = vpack.c.bf16 %v4900, %v4897
    %v4925 = vpack.c.bf16 %v4908, %v4905
    %v4926 = vpack.c.bf16 %v4916, %v4913
    %v4927 = vunpack.c.l.bf16 %v4919
    %v4928 = vunpack.c.h.bf16 %v4919
    %v4929 = vunpack.c.l.bf16 %v4920
    %v4930 = vunpack.c.h.bf16 %v4920
    %v4931 = vunpack.c.l.bf16 %v4921
    %v4932 = vunpack.c.h.bf16 %v4921
    %v4933 = vunpack.c.l.bf16 %v4922
    %v4934 = vunpack.c.h.bf16 %v4922
    %v4935 = vunpack.c.l.bf16 %v4923
    %v4936 = vunpack.c.h.bf16 %v4923
    %v4937 = vunpack.c.l.bf16 %v4924
    %v4938 = vunpack.c.h.bf16 %v4924
    %v4939 = vunpack.c.l.bf16 %v4925
    %v4940 = vunpack.c.h.bf16 %v4925
    %v4941 = vunpack.c.l.bf16 %v4926
    %v4942 = vunpack.c.h.bf16 %v4926
    %v4943 = vsub.f32 %v4857, %v4927
    %v4944 = vsub.f32 %v4860, %v4928
    %v4945 = vsub.f32 %v4865, %v4929
    %v4946 = vsub.f32 %v4868, %v4930
    %v4947 = vsub.f32 %v4873, %v4931
    %v4948 = vsub.f32 %v4876, %v4932
    %v4949 = vsub.f32 %v4881, %v4933
    %v4950 = vsub.f32 %v4884, %v4934
    %v4951 = vsub.f32 %v4889, %v4935
    %v4952 = vsub.f32 %v4892, %v4936
    %v4953 = vsub.f32 %v4897, %v4937
    %v4954 = vsub.f32 %v4900, %v4938
    %v4955 = vsub.f32 %v4905, %v4939
    %v4956 = vsub.f32 %v4908, %v4940
    %v4957 = vsub.f32 %v4913, %v4941
    %v4958 = vsub.f32 %v4916, %v4942
    %v4959 = vpack.c.bf16 %v4944, %v4943
    %v4960 = vpack.c.bf16 %v4946, %v4945
    %v4961 = vpack.c.bf16 %v4948, %v4947
    %v4962 = vpack.c.bf16 %v4950, %v4949
    %v4963 = vpack.c.bf16 %v4952, %v4951
    %v4964 = vpack.c.bf16 %v4954, %v4953
    %v4965 = vpack.c.bf16 %v4956, %v4955
    %v4966 = vpack.c.bf16 %v4958, %v4957
    %4967 = vmatprep.subr.bf16.mxu0 0
    %4968 = vmatpush1.bf16.msra.mxu0 %v4959
    %4969 = vmatprep.subr.bf16.mxu0 0
    %4970 = vmatpush1.bf16.msra.mxu0 %v4960
    %4971 = vmatprep.subr.bf16.mxu0 0
    %4972 = vmatpush1.bf16.msra.mxu0 %v4961
    %4973 = vmatprep.subr.bf16.mxu0 0
    %4974 = vmatpush1.bf16.msra.mxu0 %v4962
    %4975 = vmatprep.subr.bf16.mxu0 0
    %4976 = vmatpush1.bf16.msra.mxu0 %v4963
    %4977 = vmatprep.subr.bf16.mxu0 0
    %4978 = vmatpush1.bf16.msra.mxu0 %v4964
    %4979 = vmatprep.subr.bf16.mxu0 0
    %4980 = vmatpush1.bf16.msra.mxu0 %v4965
    %4981 = vmatprep.subr.bf16.mxu0 0
    %4982 = vmatpush1.bf16.msra.mxu0 %v4966
    %4983 = vmatprep.subr.bf16.mxu0 0
    %4984 = vmatpush1.bf16.msra.mxu0 0
    %4985 = vmatprep.subr.bf16.mxu0 0
    %4986 = vmatpush1.bf16.msra.mxu0 0
    %4987 = vmatprep.subr.bf16.mxu0 0
    %4988 = vmatpush1.bf16.msra.mxu0 0
    %4989 = vmatprep.subr.bf16.mxu0 0
    %4990 = vmatpush1.bf16.msra.mxu0 0
    %4991 = vmatprep.subr.bf16.mxu0 0
    %4992 = vmatpush1.bf16.msra.mxu0 0
    %4993 = vmatprep.subr.bf16.mxu0 0
    %4994 = vmatpush1.bf16.msra.mxu0 0
    %4995 = vmatprep.subr.bf16.mxu0 0
    %4996 = vmatpush1.bf16.msra.mxu0 0
    %4997 = vmatprep.subr.bf16.mxu0 0
    %4998 = vmatpush1.bf16.msra.mxu0 0
    %4999 = vmatprep.mubr.bf16.mxu0 0
    %5000 = vmatmul.mubr.bf16.gmra.mrb[0].mxu0 %v1147
    %v5001 = vpop.f32.mrb[0].mxu0
    %v5002 = vadd.f32 0.0, %v5001
    %v5003 = vpop.f32.mrb[0].mxu0
    %v5004 = vpop.f32.mrb[0].mxu0
    %v5005 = vadd.f32 0.0, %v5004
    %v5006 = vpop.f32.mrb[0].mxu0
    %5007 = vmatprep.mubr.bf16.mxu0 0
    %5008 = vmatmul.mubr.bf16.gmra.mrb[0].mxu0 %v1148
    %v5009 = vpop.f32.mrb[0].mxu0
    %v5010 = vadd.f32 0.0, %v5009
    %v5011 = vpop.f32.mrb[0].mxu0
    %v5012 = vpop.f32.mrb[0].mxu0
    %v5013 = vadd.f32 0.0, %v5012
    %v5014 = vpop.f32.mrb[0].mxu0
    %5015 = vmatprep.mubr.bf16.mxu0 0
    %5016 = vmatmul.mubr.bf16.gmra.mrb[0].mxu0 %v1149
    %v5017 = vpop.f32.mrb[0].mxu0
    %v5018 = vadd.f32 0.0, %v5017
    %v5019 = vpop.f32.mrb[0].mxu0
    %v5020 = vpop.f32.mrb[0].mxu0
    %v5021 = vadd.f32 0.0, %v5020
    %v5022 = vpop.f32.mrb[0].mxu0
    %5023 = vmatprep.mubr.bf16.mxu0 0
    %5024 = vmatmul.mubr.bf16.gmra.mrb[0].mxu0 %v1150
    %v5025 = vpop.f32.mrb[0].mxu0
    %v5026 = vadd.f32 0.0, %v5025
    %v5027 = vpop.f32.mrb[0].mxu0
    %v5028 = vpop.f32.mrb[0].mxu0
    %v5029 = vadd.f32 0.0, %v5028
    %v5030 = vpop.f32.mrb[0].mxu0
    %5031 = vdwg.mxu0
    %5032 = vmatprep.subr.bf16.mxu0 0
    %5033 = vmatpush1.bf16.msra.mxu0 %v4919
    %5034 = vmatprep.subr.bf16.mxu0 0
    %5035 = vmatpush1.bf16.msra.mxu0 %v4920
    %5036 = vmatprep.subr.bf16.mxu0 0
    %5037 = vmatpush1.bf16.msra.mxu0 %v4921
    %5038 = vmatprep.subr.bf16.mxu0 0
    %5039 = vmatpush1.bf16.msra.mxu0 %v4922
    %5040 = vmatprep.subr.bf16.mxu0 0
    %5041 = vmatpush1.bf16.msra.mxu0 %v4923
    %5042 = vmatprep.subr.bf16.mxu0 0
    %5043 = vmatpush1.bf16.msra.mxu0 %v4924
    %5044 = vmatprep.subr.bf16.mxu0 0
    %5045 = vmatpush1.bf16.msra.mxu0 %v4925
    %5046 = vmatprep.subr.bf16.mxu0 0
    %5047 = vmatpush1.bf16.msra.mxu0 %v4926
    %5048 = vmatprep.subr.bf16.mxu0 0
    %5049 = vmatpush1.bf16.msra.mxu0 0
    %5050 = vmatprep.subr.bf16.mxu0 0
    %5051 = vmatpush1.bf16.msra.mxu0 0
    %5052 = vmatprep.subr.bf16.mxu0 0
    %5053 = vmatpush1.bf16.msra.mxu0 0
    %5054 = vmatprep.subr.bf16.mxu0 0
    %5055 = vmatpush1.bf16.msra.mxu0 0
    %5056 = vmatprep.subr.bf16.mxu0 0
    %5057 = vmatpush1.bf16.msra.mxu0 0
    %5058 = vmatprep.subr.bf16.mxu0 0
    %5059 = vmatpush1.bf16.msra.mxu0 0
    %5060 = vmatprep.subr.bf16.mxu0 0
    %5061 = vmatpush1.bf16.msra.mxu0 0
    %5062 = vmatprep.subr.bf16.mxu0 0
    %5063 = vmatpush1.bf16.msra.mxu0 0
    %5064 = vmatprep.mubr.bf16.mxu0 0
    %5065 = vmatmul.mubr.bf16.gmra.mrb[0].mxu0 %v1147
    %v5066 = vpop.f32.mrb[0].mxu0
    %v5067 = vadd.f32 %v5002, %v5066
    %v5068 = vpop.f32.mrb[0].mxu0
    %v5069 = vpop.f32.mrb[0].mxu0
    %v5070 = vadd.f32 %v5005, %v5069
    %v5071 = vpop.f32.mrb[0].mxu0
    %5072 = vmatprep.mubr.bf16.mxu0 0
    %5073 = vmatmul.mubr.bf16.gmra.mrb[0].mxu0 %v1148
    %v5074 = vpop.f32.mrb[0].mxu0
    %v5075 = vadd.f32 %v5010, %v5074
    %v5076 = vpop.f32.mrb[0].mxu0
    %v5077 = vpop.f32.mrb[0].mxu0
    %v5078 = vadd.f32 %v5013, %v5077
    %v5079 = vpop.f32.mrb[0].mxu0
    %5080 = vmatprep.mubr.bf16.mxu0 0
    %5081 = vmatmul.mubr.bf16.gmra.mrb[0].mxu0 %v1149
    %v5082 = vpop.f32.mrb[0].mxu0
    %v5083 = vadd.f32 %v5018, %v5082
    %v5084 = vpop.f32.mrb[0].mxu0
    %v5085 = vpop.f32.mrb[0].mxu0
    %v5086 = vadd.f32 %v5021, %v5085
    %v5087 = vpop.f32.mrb[0].mxu0
    %5088 = vmatprep.mubr.bf16.mxu0 0
    %5089 = vmatmul.mubr.bf16.gmra.mrb[0].mxu0 %v1150
    %v5090 = vpop.f32.mrb[0].mxu0
    %v5091 = vadd.f32 %v5026, %v5090
    %v5092 = vpop.f32.mrb[0].mxu0
    %v5093 = vpop.f32.mrb[0].mxu0
    %v5094 = vadd.f32 %v5029, %v5093
    %v5095 = vpop.f32.mrb[0].mxu0
    %5096 = vdwg.mxu0
    %v5097 = vadd.f32 %v4111, %v5067
    %v5098 = vadd.f32 %v4112, %v5070
    %v5099 = vadd.f32 %v4113, %v5075
    %v5100 = vadd.f32 %v4114, %v5078
    %v5101 = vadd.f32 %v4115, %v5083
    %v5102 = vadd.f32 %v4116, %v5086
    %v5103 = vadd.f32 %v4117, %v5091
    %v5104 = vadd.f32 %v4118, %v5094
    %s5105 = scalar_lea.vmem [#allocation3], 1280
    %v5106 = vld [vmem:[%s5105] sm:$0xf]
    %v5107 = vld [vmem:[%s5105 + $0x4] sm:$0xf]
    %v5108 = vld [vmem:[%s5105 + $0x8] sm:$0xf]
    %v5109 = vld [vmem:[%s5105 + $0xc] sm:$0xf]
    %v5110 = vld [vmem:[%s5105 + $0x10] sm:$0xf]
    %v5111 = vld [vmem:[%s5105 + $0x14] sm:$0xf]
    %v5112 = vld [vmem:[%s5105 + $0x18] sm:$0xf]
    %v5113 = vld [vmem:[%s5105 + $0x1c] sm:$0xf]
    %v5114 = vld [vmem:[%s5105 + $0x20] sm:$0xf]
    %v5115 = vld [vmem:[%s5105 + $0x24] sm:$0xf]
    %v5116 = vld [vmem:[%s5105 + $0x28] sm:$0xf]
    %v5117 = vld [vmem:[%s5105 + $0x2c] sm:$0xf]
    %v5118 = vld [vmem:[%s5105 + $0x30] sm:$0xf]
    %v5119 = vld [vmem:[%s5105 + $0x34] sm:$0xf]
    %v5120 = vld [vmem:[%s5105 + $0x38] sm:$0xf]
    %v5121 = vld [vmem:[%s5105 + $0x3c] sm:$0xf]
    %v5122 = vpack.c.bf16 %v5098, %v5097
    %v5123 = vpack.c.bf16 %v5100, %v5099
    %v5124 = vpack.c.bf16 %v5102, %v5101
    %v5125 = vpack.c.bf16 %v5104, %v5103
    %s5126 = scalar_lea.vmem %s6, 15
    %v5127 = vld [vmem:[%s5126] sm:$0x1]
    %v5129 = vlaneseq
    %v5130 = vshrl.u32 %v5129, 7
    %v5131 = vsub.s32 0, %v5130
    %v5132 = vrot.slane %v5127, %v5131
    %v5150 = vunpack.c.l.b16 %v5106
    %v5151 = vunpack.c.l.b16 %v5107
    %v5152 = vunpack.c.l.b16 %v5108
    %v5153 = vunpack.c.l.b16 %v5109
    %v5154 = vunpack.c.l.b16 %v5110
    %v5155 = vunpack.c.l.b16 %v5111
    %v5156 = vunpack.c.l.b16 %v5112
    %v5157 = vunpack.c.l.b16 %v5113
    %v5158 = vunpack.c.l.b16 %v5114
    %v5159 = vunpack.c.l.b16 %v5115
    %v5160 = vunpack.c.l.b16 %v5116
    %v5161 = vunpack.c.l.b16 %v5117
    %v5162 = vunpack.c.l.b16 %v5118
    %v5163 = vunpack.c.l.b16 %v5119
    %v5164 = vunpack.c.l.b16 %v5120
    %v5165 = vunpack.c.l.b16 %v5121
    %v5166 = vpack.c.b16 %v5151, %v5150
    %v5167 = vpack.c.b16 %v5153, %v5152
    %v5168 = vpack.c.b16 %v5155, %v5154
    %v5169 = vpack.c.b16 %v5157, %v5156
    %v5170 = vpack.c.b16 %v5159, %v5158
    %v5171 = vpack.c.b16 %v5161, %v5160
    %v5172 = vpack.c.b16 %v5163, %v5162
    %v5173 = vpack.c.b16 %v5165, %v5164
    %5182 = vmatprep.subr.bf16.mxu0 0
    %5183 = vmatpush1.bf16.msra.mxu0 %v5166
    %5184 = vmatprep.subr.bf16.mxu0 0
    %5185 = vmatpush1.bf16.msra.mxu0 %v5167
    %5186 = vmatprep.subr.bf16.mxu0 0
    %5187 = vmatpush1.bf16.msra.mxu0 %v5168
    %5188 = vmatprep.subr.bf16.mxu0 0
    %5189 = vmatpush1.bf16.msra.mxu0 %v5169
    %5190 = vmatprep.subr.bf16.mxu0 0
    %5191 = vmatpush1.bf16.msra.mxu0 %v5170
    %5192 = vmatprep.subr.bf16.mxu0 0
    %5193 = vmatpush1.bf16.msra.mxu0 %v5171
    %5194 = vmatprep.subr.bf16.mxu0 0
    %5195 = vmatpush1.bf16.msra.mxu0 %v5172
    %5196 = vmatprep.subr.bf16.mxu0 0
    %5197 = vmatpush1.bf16.msra.mxu0 %v5173
    %5198 = vmatprep.subr.bf16.mxu0 0
    %5199 = vmatpush1.bf16.msra.mxu0 0
    %5200 = vmatprep.subr.bf16.mxu0 0
    %5201 = vmatpush1.bf16.msra.mxu0 0
    %5202 = vmatprep.subr.bf16.mxu0 0
    %5203 = vmatpush1.bf16.msra.mxu0 0
    %5204 = vmatprep.subr.bf16.mxu0 0
    %5205 = vmatpush1.bf16.msra.mxu0 0
    %5206 = vmatprep.subr.bf16.mxu0 0
    %5207 = vmatpush1.bf16.msra.mxu0 0
    %5208 = vmatprep.subr.bf16.mxu0 0
    %5209 = vmatpush1.bf16.msra.mxu0 0
    %5210 = vmatprep.subr.bf16.mxu0 0
    %5211 = vmatpush1.bf16.msra.mxu0 0
    %5212 = vmatprep.subr.bf16.mxu0 0
    %5213 = vmatpush1.bf16.msra.mxu0 0
    %5214 = vmatprep.mubr.bf16.mxu0 0
    %5215 = vmatmul.mubr.bf16.gmra.mrb[0].mxu0 %v5122
    %v5216 = vpop.f32.mrb[0].mxu0
    %v5217 = vadd.f32 %v5132, %v5216
    %v5218 = vpop.f32.mrb[0].mxu0
    %v5219 = vpop.f32.mrb[0].mxu0
    %v5220 = vadd.f32 %v5132, %v5219
    %v5221 = vpop.f32.mrb[0].mxu0
    %5222 = vmatprep.mubr.bf16.mxu0 0
    %5223 = vmatmul.mubr.bf16.gmra.mrb[0].mxu0 %v5123
    %v5224 = vpop.f32.mrb[0].mxu0
    %v5225 = vadd.f32 %v5132, %v5224
    %v5226 = vpop.f32.mrb[0].mxu0
    %v5227 = vpop.f32.mrb[0].mxu0
    %v5228 = vadd.f32 %v5132, %v5227
    %v5229 = vpop.f32.mrb[0].mxu0
    %5230 = vmatprep.mubr.bf16.mxu0 0
    %5231 = vmatmul.mubr.bf16.gmra.mrb[0].mxu0 %v5124
    %v5232 = vpop.f32.mrb[0].mxu0
    %v5233 = vadd.f32 %v5132, %v5232
    %v5234 = vpop.f32.mrb[0].mxu0
    %v5235 = vpop.f32.mrb[0].mxu0
    %v5236 = vadd.f32 %v5132, %v5235
    %v5237 = vpop.f32.mrb[0].mxu0
    %5238 = vmatprep.mubr.bf16.mxu0 0
    %5239 = vmatmul.mubr.bf16.gmra.mrb[0].mxu0 %v5125
    %v5240 = vpop.f32.mrb[0].mxu0
    %v5241 = vadd.f32 %v5132, %v5240
    %v5242 = vpop.f32.mrb[0].mxu0
    %v5243 = vpop.f32.mrb[0].mxu0
    %v5244 = vadd.f32 %v5132, %v5243
    %v5245 = vpop.f32.mrb[0].mxu0
    %5246 = vdwg.mxu0
    %v5247 = vmax.f32 %v5217, 0.0
    %v5248 = vmax.f32 %v5220, 0.0
    %v5249 = vmax.f32 %v5225, 0.0
    %v5250 = vmax.f32 %v5228, 0.0
    %v5251 = vmax.f32 %v5233, 0.0
    %v5252 = vmax.f32 %v5236, 0.0
    %v5253 = vmax.f32 %v5241, 0.0
    %v5254 = vmax.f32 %v5244, 0.0
    %s5255 = scalar_lea.vmem [#allocation3], 1344
    %v5256 = vld [vmem:[%s5255] sm:$0xf]
    %v5257 = vld [vmem:[%s5255 + $0x4] sm:$0xf]
    %v5258 = vld [vmem:[%s5255 + $0x8] sm:$0xf]
    %v5259 = vld [vmem:[%s5255 + $0xc] sm:$0xf]
    %v5260 = vld [vmem:[%s5255 + $0x10] sm:$0xf]
    %v5261 = vld [vmem:[%s5255 + $0x14] sm:$0xf]
    %v5262 = vld [vmem:[%s5255 + $0x18] sm:$0xf]
    %v5263 = vld [vmem:[%s5255 + $0x1c] sm:$0xf]
    %v5264 = vld [vmem:[%s5255 + $0x20] sm:$0xf]
    %v5265 = vld [vmem:[%s5255 + $0x24] sm:$0xf]
    %v5266 = vld [vmem:[%s5255 + $0x28] sm:$0xf]
    %v5267 = vld [vmem:[%s5255 + $0x2c] sm:$0xf]
    %v5268 = vld [vmem:[%s5255 + $0x30] sm:$0xf]
    %v5269 = vld [vmem:[%s5255 + $0x34] sm:$0xf]
    %v5270 = vld [vmem:[%s5255 + $0x38] sm:$0xf]
    %v5271 = vld [vmem:[%s5255 + $0x3c] sm:$0xf]
    %v5272 = vpack.c.bf16 %v5248, %v5247
    %v5273 = vpack.c.bf16 %v5250, %v5249
    %v5274 = vpack.c.bf16 %v5252, %v5251
    %v5275 = vpack.c.bf16 %v5254, %v5253
    %s5276 = scalar_lea.vmem %s6, 16
    %v5277 = vld [vmem:[%s5276] sm:$0x1]
    %v5279 = vlaneseq
    %v5280 = vshrl.u32 %v5279, 7
    %v5281 = vsub.s32 0, %v5280
    %v5282 = vrot.slane %v5277, %v5281
    %v5300 = vunpack.c.l.b16 %v5256
    %v5301 = vunpack.c.l.b16 %v5257
    %v5302 = vunpack.c.l.b16 %v5258
    %v5303 = vunpack.c.l.b16 %v5259
    %v5304 = vunpack.c.l.b16 %v5260
    %v5305 = vunpack.c.l.b16 %v5261
    %v5306 = vunpack.c.l.b16 %v5262
    %v5307 = vunpack.c.l.b16 %v5263
    %v5308 = vunpack.c.l.b16 %v5264
    %v5309 = vunpack.c.l.b16 %v5265
    %v5310 = vunpack.c.l.b16 %v5266
    %v5311 = vunpack.c.l.b16 %v5267
    %v5312 = vunpack.c.l.b16 %v5268
    %v5313 = vunpack.c.l.b16 %v5269
    %v5314 = vunpack.c.l.b16 %v5270
    %v5315 = vunpack.c.l.b16 %v5271
    %v5316 = vpack.c.b16 %v5301, %v5300
    %v5317 = vpack.c.b16 %v5303, %v5302
    %v5318 = vpack.c.b16 %v5305, %v5304
    %v5319 = vpack.c.b16 %v5307, %v5306
    %v5320 = vpack.c.b16 %v5309, %v5308
    %v5321 = vpack.c.b16 %v5311, %v5310
    %v5322 = vpack.c.b16 %v5313, %v5312
    %v5323 = vpack.c.b16 %v5315, %v5314
    %5332 = vmatprep.subr.bf16.mxu0 0
    %5333 = vmatpush1.bf16.msra.mxu0 %v5316
    %5334 = vmatprep.subr.bf16.mxu0 0
    %5335 = vmatpush1.bf16.msra.mxu0 %v5317
    %5336 = vmatprep.subr.bf16.mxu0 0
    %5337 = vmatpush1.bf16.msra.mxu0 %v5318
    %5338 = vmatprep.subr.bf16.mxu0 0
    %5339 = vmatpush1.bf16.msra.mxu0 %v5319
    %5340 = vmatprep.subr.bf16.mxu0 0
    %5341 = vmatpush1.bf16.msra.mxu0 %v5320
    %5342 = vmatprep.subr.bf16.mxu0 0
    %5343 = vmatpush1.bf16.msra.mxu0 %v5321
    %5344 = vmatprep.subr.bf16.mxu0 0
    %5345 = vmatpush1.bf16.msra.mxu0 %v5322
    %5346 = vmatprep.subr.bf16.mxu0 0
    %5347 = vmatpush1.bf16.msra.mxu0 %v5323
    %5348 = vmatprep.subr.bf16.mxu0 0
    %5349 = vmatpush1.bf16.msra.mxu0 0
    %5350 = vmatprep.subr.bf16.mxu0 0
    %5351 = vmatpush1.bf16.msra.mxu0 0
    %5352 = vmatprep.subr.bf16.mxu0 0
    %5353 = vmatpush1.bf16.msra.mxu0 0
    %5354 = vmatprep.subr.bf16.mxu0 0
    %5355 = vmatpush1.bf16.msra.mxu0 0
    %5356 = vmatprep.subr.bf16.mxu0 0
    %5357 = vmatpush1.bf16.msra.mxu0 0
    %5358 = vmatprep.subr.bf16.mxu0 0
    %5359 = vmatpush1.bf16.msra.mxu0 0
    %5360 = vmatprep.subr.bf16.mxu0 0
    %5361 = vmatpush1.bf16.msra.mxu0 0
    %5362 = vmatprep.subr.bf16.mxu0 0
    %5363 = vmatpush1.bf16.msra.mxu0 0
    %5364 = vmatprep.mubr.bf16.mxu0 0
    %5365 = vmatmul.mubr.bf16.gmra.mrb[0].mxu0 %v5272
    %v5366 = vpop.f32.mrb[0].mxu0
    %v5367 = vadd.f32 %v5282, %v5366
    %v5368 = vpop.f32.mrb[0].mxu0
    %v5369 = vpop.f32.mrb[0].mxu0
    %v5370 = vadd.f32 %v5282, %v5369
    %v5371 = vpop.f32.mrb[0].mxu0
    %5372 = vmatprep.mubr.bf16.mxu0 0
    %5373 = vmatmul.mubr.bf16.gmra.mrb[0].mxu0 %v5273
    %v5374 = vpop.f32.mrb[0].mxu0
    %v5375 = vadd.f32 %v5282, %v5374
    %v5376 = vpop.f32.mrb[0].mxu0
    %v5377 = vpop.f32.mrb[0].mxu0
    %v5378 = vadd.f32 %v5282, %v5377
    %v5379 = vpop.f32.mrb[0].mxu0
    %5380 = vmatprep.mubr.bf16.mxu0 0
    %5381 = vmatmul.mubr.bf16.gmra.mrb[0].mxu0 %v5274
    %v5382 = vpop.f32.mrb[0].mxu0
    %v5383 = vadd.f32 %v5282, %v5382
    %v5384 = vpop.f32.mrb[0].mxu0
    %v5385 = vpop.f32.mrb[0].mxu0
    %v5386 = vadd.f32 %v5282, %v5385
    %v5387 = vpop.f32.mrb[0].mxu0
    %5388 = vmatprep.mubr.bf16.mxu0 0
    %5389 = vmatmul.mubr.bf16.gmra.mrb[0].mxu0 %v5275
    %v5390 = vpop.f32.mrb[0].mxu0
    %v5391 = vadd.f32 %v5282, %v5390
    %v5392 = vpop.f32.mrb[0].mxu0
    %v5393 = vpop.f32.mrb[0].mxu0
    %v5394 = vadd.f32 %v5282, %v5393
    %v5395 = vpop.f32.mrb[0].mxu0
    %5396 = vdwg.mxu0
    %v5397 = vmax.f32 %v5367, 0.0
    %v5398 = vmax.f32 %v5370, 0.0
    %v5399 = vmax.f32 %v5375, 0.0
    %v5400 = vmax.f32 %v5378, 0.0
    %v5401 = vmax.f32 %v5383, 0.0
    %v5402 = vmax.f32 %v5386, 0.0
    %v5403 = vmax.f32 %v5391, 0.0
    %v5404 = vmax.f32 %v5394, 0.0
    %s5405 = scalar_lea.vmem [#allocation3], 1408
    %v5406 = vld [vmem:[%s5405] sm:$0xf]
    %v5407 = vld [vmem:[%s5405 + $0x4] sm:$0xf]
    %v5408 = vld [vmem:[%s5405 + $0x8] sm:$0xf]
    %v5409 = vld [vmem:[%s5405 + $0xc] sm:$0xf]
    %v5410 = vld [vmem:[%s5405 + $0x10] sm:$0xf]
    %v5411 = vld [vmem:[%s5405 + $0x14] sm:$0xf]
    %v5412 = vld [vmem:[%s5405 + $0x18] sm:$0xf]
    %v5413 = vld [vmem:[%s5405 + $0x1c] sm:$0xf]
    %v5414 = vld [vmem:[%s5405 + $0x20] sm:$0xf]
    %v5415 = vld [vmem:[%s5405 + $0x24] sm:$0xf]
    %v5416 = vld [vmem:[%s5405 + $0x28] sm:$0xf]
    %v5417 = vld [vmem:[%s5405 + $0x2c] sm:$0xf]
    %v5418 = vld [vmem:[%s5405 + $0x30] sm:$0xf]
    %v5419 = vld [vmem:[%s5405 + $0x34] sm:$0xf]
    %v5420 = vld [vmem:[%s5405 + $0x38] sm:$0xf]
    %v5421 = vld [vmem:[%s5405 + $0x3c] sm:$0xf]
    %v5422 = vpack.c.bf16 %v5398, %v5397
    %v5423 = vpack.c.bf16 %v5400, %v5399
    %v5424 = vpack.c.bf16 %v5402, %v5401
    %v5425 = vpack.c.bf16 %v5404, %v5403
    %s5426 = scalar_lea.vmem %s6, 17
    %v5427 = vld [vmem:[%s5426] sm:$0x1]
    %v5429 = vlaneseq
    %v5430 = vshrl.u32 %v5429, 7
    %v5431 = vsub.s32 0, %v5430
    %v5432 = vrot.slane %v5427, %v5431
    %v5450 = vunpack.c.l.b16 %v5406
    %v5451 = vunpack.c.l.b16 %v5407
    %v5452 = vunpack.c.l.b16 %v5408
    %v5453 = vunpack.c.l.b16 %v5409
    %v5454 = vunpack.c.l.b16 %v5410
    %v5455 = vunpack.c.l.b16 %v5411
    %v5456 = vunpack.c.l.b16 %v5412
    %v5457 = vunpack.c.l.b16 %v5413
    %v5458 = vunpack.c.l.b16 %v5414
    %v5459 = vunpack.c.l.b16 %v5415
    %v5460 = vunpack.c.l.b16 %v5416
    %v5461 = vunpack.c.l.b16 %v5417
    %v5462 = vunpack.c.l.b16 %v5418
    %v5463 = vunpack.c.l.b16 %v5419
    %v5464 = vunpack.c.l.b16 %v5420
    %v5465 = vunpack.c.l.b16 %v5421
    %v5466 = vpack.c.b16 %v5451, %v5450
    %v5467 = vpack.c.b16 %v5453, %v5452
    %v5468 = vpack.c.b16 %v5455, %v5454
    %v5469 = vpack.c.b16 %v5457, %v5456
    %v5470 = vpack.c.b16 %v5459, %v5458
    %v5471 = vpack.c.b16 %v5461, %v5460
    %v5472 = vpack.c.b16 %v5463, %v5462
    %v5473 = vpack.c.b16 %v5465, %v5464
    %5482 = vmatprep.subr.bf16.mxu0 0
    %5483 = vmatpush1.bf16.msra.mxu0 %v5466
    %5484 = vmatprep.subr.bf16.mxu0 0
    %5485 = vmatpush1.bf16.msra.mxu0 %v5467
    %5486 = vmatprep.subr.bf16.mxu0 0
    %5487 = vmatpush1.bf16.msra.mxu0 %v5468
    %5488 = vmatprep.subr.bf16.mxu0 0
    %5489 = vmatpush1.bf16.msra.mxu0 %v5469
    %5490 = vmatprep.subr.bf16.mxu0 0
    %5491 = vmatpush1.bf16.msra.mxu0 %v5470
    %5492 = vmatprep.subr.bf16.mxu0 0
    %5493 = vmatpush1.bf16.msra.mxu0 %v5471
    %5494 = vmatprep.subr.bf16.mxu0 0
    %5495 = vmatpush1.bf16.msra.mxu0 %v5472
    %5496 = vmatprep.subr.bf16.mxu0 0
    %5497 = vmatpush1.bf16.msra.mxu0 %v5473
    %5498 = vmatprep.subr.bf16.mxu0 0
    %5499 = vmatpush1.bf16.msra.mxu0 0
    %5500 = vmatprep.subr.bf16.mxu0 0
    %5501 = vmatpush1.bf16.msra.mxu0 0
    %5502 = vmatprep.subr.bf16.mxu0 0
    %5503 = vmatpush1.bf16.msra.mxu0 0
    %5504 = vmatprep.subr.bf16.mxu0 0
    %5505 = vmatpush1.bf16.msra.mxu0 0
    %5506 = vmatprep.subr.bf16.mxu0 0
    %5507 = vmatpush1.bf16.msra.mxu0 0
    %5508 = vmatprep.subr.bf16.mxu0 0
    %5509 = vmatpush1.bf16.msra.mxu0 0
    %5510 = vmatprep.subr.bf16.mxu0 0
    %5511 = vmatpush1.bf16.msra.mxu0 0
    %5512 = vmatprep.subr.bf16.mxu0 0
    %5513 = vmatpush1.bf16.msra.mxu0 0
    %5514 = vmatprep.mubr.bf16.mxu0 0
    %5515 = vmatmul.mubr.bf16.gmra.mrb[0].mxu0 %v5422
    %v5516 = vpop.f32.mrb[0].mxu0
    %v5517 = vadd.f32 %v5432, %v5516
    %v5518 = vpop.f32.mrb[0].mxu0
    %v5519 = vpop.f32.mrb[0].mxu0
    %v5520 = vadd.f32 %v5432, %v5519
    %v5521 = vpop.f32.mrb[0].mxu0
    %5522 = vmatprep.mubr.bf16.mxu0 0
    %5523 = vmatmul.mubr.bf16.gmra.mrb[0].mxu0 %v5423
    %v5524 = vpop.f32.mrb[0].mxu0
    %v5525 = vadd.f32 %v5432, %v5524
    %v5526 = vpop.f32.mrb[0].mxu0
    %v5527 = vpop.f32.mrb[0].mxu0
    %v5528 = vadd.f32 %v5432, %v5527
    %v5529 = vpop.f32.mrb[0].mxu0
    %5530 = vmatprep.mubr.bf16.mxu0 0
    %5531 = vmatmul.mubr.bf16.gmra.mrb[0].mxu0 %v5424
    %v5532 = vpop.f32.mrb[0].mxu0
    %v5533 = vadd.f32 %v5432, %v5532
    %v5534 = vpop.f32.mrb[0].mxu0
    %v5535 = vpop.f32.mrb[0].mxu0
    %v5536 = vadd.f32 %v5432, %v5535
    %v5537 = vpop.f32.mrb[0].mxu0
    %5538 = vmatprep.mubr.bf16.mxu0 0
    %5539 = vmatmul.mubr.bf16.gmra.mrb[0].mxu0 %v5425
    %v5540 = vpop.f32.mrb[0].mxu0
    %v5541 = vadd.f32 %v5432, %v5540
    %v5542 = vpop.f32.mrb[0].mxu0
    %v5543 = vpop.f32.mrb[0].mxu0
    %v5544 = vadd.f32 %v5432, %v5543
    %v5545 = vpop.f32.mrb[0].mxu0
    %5546 = vdwg.mxu0
    %v5547 = vmul.f32 %v4111, 0.70710677
    %v5548 = vmul.f32 %v4112, 0.70710677
    %v5549 = vmul.f32 %v4113, 0.70710677
    %v5550 = vmul.f32 %v4114, 0.70710677
    %v5551 = vmul.f32 %v4115, 0.70710677
    %v5552 = vmul.f32 %v4116, 0.70710677
    %v5553 = vmul.f32 %v4117, 0.70710677
    %v5554 = vmul.f32 %v4118, 0.70710677
    %v5555 = vmax.f32 %v5517, 0.0
    %v5556 = vmax.f32 %v5520, 0.0
    %v5557 = vmax.f32 %v5525, 0.0
    %v5558 = vmax.f32 %v5528, 0.0
    %v5559 = vmax.f32 %v5533, 0.0
    %v5560 = vmax.f32 %v5536, 0.0
    %v5561 = vmax.f32 %v5541, 0.0
    %v5562 = vmax.f32 %v5544, 0.0
    %v5563 = vmul.f32 %v5555, 0.70710677
    %v5564 = vmul.f32 %v5556, 0.70710677
    %v5565 = vmul.f32 %v5557, 0.70710677
    %v5566 = vmul.f32 %v5558, 0.70710677
    %v5567 = vmul.f32 %v5559, 0.70710677
    %v5568 = vmul.f32 %v5560, 0.70710677
    %v5569 = vmul.f32 %v5561, 0.70710677
    %v5570 = vmul.f32 %v5562, 0.70710677
    %v5571 = vadd.f32 %v5547, %v5563
    %v5572 = vadd.f32 %v5548, %v5564
    %v5573 = vadd.f32 %v5549, %v5565
    %v5574 = vadd.f32 %v5550, %v5566
    %v5575 = vadd.f32 %v5551, %v5567
    %v5576 = vadd.f32 %v5552, %v5568
    %v5577 = vadd.f32 %v5553, %v5569
    %v5578 = vadd.f32 %v5554, %v5570
    %s5579 = scalar_lea.vmem [#allocation3], 1472
    %v5580 = vld [vmem:[%s5579] sm:$0xf]
    %v5581 = vld [vmem:[%s5579 + $0x4] sm:$0xf]
    %v5582 = vld [vmem:[%s5579 + $0x8] sm:$0xf]
    %v5583 = vld [vmem:[%s5579 + $0xc] sm:$0xf]
    %v5584 = vld [vmem:[%s5579 + $0x10] sm:$0xf]
    %v5585 = vld [vmem:[%s5579 + $0x14] sm:$0xf]
    %v5586 = vld [vmem:[%s5579 + $0x18] sm:$0xf]
    %v5587 = vld [vmem:[%s5579 + $0x1c] sm:$0xf]
    %v5588 = vld [vmem:[%s5579 + $0x20] sm:$0xf]
    %v5589 = vld [vmem:[%s5579 + $0x24] sm:$0xf]
    %v5590 = vld [vmem:[%s5579 + $0x28] sm:$0xf]
    %v5591 = vld [vmem:[%s5579 + $0x2c] sm:$0xf]
    %v5592 = vld [vmem:[%s5579 + $0x30] sm:$0xf]
    %v5593 = vld [vmem:[%s5579 + $0x34] sm:$0xf]
    %v5594 = vld [vmem:[%s5579 + $0x38] sm:$0xf]
    %v5595 = vld [vmem:[%s5579 + $0x3c] sm:$0xf]
    %v5596 = vpack.c.bf16 %v5572, %v5571
    %v5597 = vpack.c.bf16 %v5574, %v5573
    %v5598 = vpack.c.bf16 %v5576, %v5575
    %v5599 = vpack.c.bf16 %v5578, %v5577
    %s5600 = scalar_lea.vmem %s6, 18
    %v5601 = vld [vmem:[%s5600] sm:$0x1]
    %v5603 = vlaneseq
    %v5604 = vshrl.u32 %v5603, 7
    %v5605 = vsub.s32 0, %v5604
    %v5606 = vrot.slane %v5601, %v5605
    %v5624 = vunpack.c.l.b16 %v5580
    %v5625 = vunpack.c.l.b16 %v5581
    %v5626 = vunpack.c.l.b16 %v5582
    %v5627 = vunpack.c.l.b16 %v5583
    %v5628 = vunpack.c.l.b16 %v5584
    %v5629 = vunpack.c.l.b16 %v5585
    %v5630 = vunpack.c.l.b16 %v5586
    %v5631 = vunpack.c.l.b16 %v5587
    %v5632 = vunpack.c.l.b16 %v5588
    %v5633 = vunpack.c.l.b16 %v5589
    %v5634 = vunpack.c.l.b16 %v5590
    %v5635 = vunpack.c.l.b16 %v5591
    %v5636 = vunpack.c.l.b16 %v5592
    %v5637 = vunpack.c.l.b16 %v5593
    %v5638 = vunpack.c.l.b16 %v5594
    %v5639 = vunpack.c.l.b16 %v5595
    %v5640 = vpack.c.b16 %v5625, %v5624
    %v5641 = vpack.c.b16 %v5627, %v5626
    %v5642 = vpack.c.b16 %v5629, %v5628
    %v5643 = vpack.c.b16 %v5631, %v5630
    %v5644 = vpack.c.b16 %v5633, %v5632
    %v5645 = vpack.c.b16 %v5635, %v5634
    %v5646 = vpack.c.b16 %v5637, %v5636
    %v5647 = vpack.c.b16 %v5639, %v5638
    %5656 = vmatprep.subr.bf16.mxu0 0
    %5657 = vmatpush1.bf16.msra.mxu0 %v5640
    %5658 = vmatprep.subr.bf16.mxu0 0
    %5659 = vmatpush1.bf16.msra.mxu0 %v5641
    %5660 = vmatprep.subr.bf16.mxu0 0
    %5661 = vmatpush1.bf16.msra.mxu0 %v5642
    %5662 = vmatprep.subr.bf16.mxu0 0
    %5663 = vmatpush1.bf16.msra.mxu0 %v5643
    %5664 = vmatprep.subr.bf16.mxu0 0
    %5665 = vmatpush1.bf16.msra.mxu0 %v5644
    %5666 = vmatprep.subr.bf16.mxu0 0
    %5667 = vmatpush1.bf16.msra.mxu0 %v5645
    %5668 = vmatprep.subr.bf16.mxu0 0
    %5669 = vmatpush1.bf16.msra.mxu0 %v5646
    %5670 = vmatprep.subr.bf16.mxu0 0
    %5671 = vmatpush1.bf16.msra.mxu0 %v5647
    %5672 = vmatprep.subr.bf16.mxu0 0
    %5673 = vmatpush1.bf16.msra.mxu0 0
    %5674 = vmatprep.subr.bf16.mxu0 0
    %5675 = vmatpush1.bf16.msra.mxu0 0
    %5676 = vmatprep.subr.bf16.mxu0 0
    %5677 = vmatpush1.bf16.msra.mxu0 0
    %5678 = vmatprep.subr.bf16.mxu0 0
    %5679 = vmatpush1.bf16.msra.mxu0 0
    %5680 = vmatprep.subr.bf16.mxu0 0
    %5681 = vmatpush1.bf16.msra.mxu0 0
    %5682 = vmatprep.subr.bf16.mxu0 0
    %5683 = vmatpush1.bf16.msra.mxu0 0
    %5684 = vmatprep.subr.bf16.mxu0 0
    %5685 = vmatpush1.bf16.msra.mxu0 0
    %5686 = vmatprep.subr.bf16.mxu0 0
    %5687 = vmatpush1.bf16.msra.mxu0 0
    %5688 = vmatprep.mubr.bf16.mxu0 0
    %5689 = vmatmul.mubr.bf16.gmra.mrb[0].mxu0 %v5596
    %v5690 = vpop.f32.mrb[0].mxu0
    %v5691 = vadd.f32 %v5606, %v5690
    %v5692 = vpop.f32.mrb[0].mxu0
    %v5693 = vpop.f32.mrb[0].mxu0
    %v5694 = vadd.f32 %v5606, %v5693
    %v5695 = vpop.f32.mrb[0].mxu0
    %5696 = vmatprep.mubr.bf16.mxu0 0
    %5697 = vmatmul.mubr.bf16.gmra.mrb[0].mxu0 %v5597
    %v5698 = vpop.f32.mrb[0].mxu0
    %v5699 = vadd.f32 %v5606, %v5698
    %v5700 = vpop.f32.mrb[0].mxu0
    %v5701 = vpop.f32.mrb[0].mxu0
    %v5702 = vadd.f32 %v5606, %v5701
    %v5703 = vpop.f32.mrb[0].mxu0
    %5704 = vmatprep.mubr.bf16.mxu0 0
    %5705 = vmatmul.mubr.bf16.gmra.mrb[0].mxu0 %v5598
    %v5706 = vpop.f32.mrb[0].mxu0
    %v5707 = vadd.f32 %v5606, %v5706
    %v5708 = vpop.f32.mrb[0].mxu0
    %v5709 = vpop.f32.mrb[0].mxu0
    %v5710 = vadd.f32 %v5606, %v5709
    %v5711 = vpop.f32.mrb[0].mxu0
    %5712 = vmatprep.mubr.bf16.mxu0 0
    %5713 = vmatmul.mubr.bf16.gmra.mrb[0].mxu0 %v5599
    %v5714 = vpop.f32.mrb[0].mxu0
    %v5715 = vadd.f32 %v5606, %v5714
    %v5716 = vpop.f32.mrb[0].mxu0
    %v5717 = vpop.f32.mrb[0].mxu0
    %v5718 = vadd.f32 %v5606, %v5717
    %v5719 = vpop.f32.mrb[0].mxu0
    %5720 = vdwg.mxu0
    %v5721 = vmax.f32 %v5691, 0.0
    %v5722 = vmax.f32 %v5694, 0.0
    %v5723 = vmax.f32 %v5699, 0.0
    %v5724 = vmax.f32 %v5702, 0.0
    %v5725 = vmax.f32 %v5707, 0.0
    %v5726 = vmax.f32 %v5710, 0.0
    %v5727 = vmax.f32 %v5715, 0.0
    %v5728 = vmax.f32 %v5718, 0.0
    %s5729 = scalar_lea.vmem [#allocation3], 1536
    %v5730 = vld [vmem:[%s5729] sm:$0xf]
    %v5731 = vld [vmem:[%s5729 + $0x4] sm:$0xf]
    %v5732 = vld [vmem:[%s5729 + $0x8] sm:$0xf]
    %v5733 = vld [vmem:[%s5729 + $0xc] sm:$0xf]
    %v5734 = vld [vmem:[%s5729 + $0x10] sm:$0xf]
    %v5735 = vld [vmem:[%s5729 + $0x14] sm:$0xf]
    %v5736 = vld [vmem:[%s5729 + $0x18] sm:$0xf]
    %v5737 = vld [vmem:[%s5729 + $0x1c] sm:$0xf]
    %v5738 = vld [vmem:[%s5729 + $0x20] sm:$0xf]
    %v5739 = vld [vmem:[%s5729 + $0x24] sm:$0xf]
    %v5740 = vld [vmem:[%s5729 + $0x28] sm:$0xf]
    %v5741 = vld [vmem:[%s5729 + $0x2c] sm:$0xf]
    %v5742 = vld [vmem:[%s5729 + $0x30] sm:$0xf]
    %v5743 = vld [vmem:[%s5729 + $0x34] sm:$0xf]
    %v5744 = vld [vmem:[%s5729 + $0x38] sm:$0xf]
    %v5745 = vld [vmem:[%s5729 + $0x3c] sm:$0xf]
    %v5746 = vpack.c.bf16 %v5722, %v5721
    %v5747 = vpack.c.bf16 %v5724, %v5723
    %v5748 = vpack.c.bf16 %v5726, %v5725
    %v5749 = vpack.c.bf16 %v5728, %v5727
    %s5750 = scalar_lea.vmem %s6, 19
    %v5751 = vld [vmem:[%s5750] sm:$0x1]
    %v5753 = vlaneseq
    %v5754 = vshrl.u32 %v5753, 7
    %v5755 = vsub.s32 0, %v5754
    %v5756 = vrot.slane %v5751, %v5755
    %v5774 = vunpack.c.l.b16 %v5730
    %v5775 = vunpack.c.l.b16 %v5731
    %v5776 = vunpack.c.l.b16 %v5732
    %v5777 = vunpack.c.l.b16 %v5733
    %v5778 = vunpack.c.l.b16 %v5734
    %v5779 = vunpack.c.l.b16 %v5735
    %v5780 = vunpack.c.l.b16 %v5736
    %v5781 = vunpack.c.l.b16 %v5737
    %v5782 = vunpack.c.l.b16 %v5738
    %v5783 = vunpack.c.l.b16 %v5739
    %v5784 = vunpack.c.l.b16 %v5740
    %v5785 = vunpack.c.l.b16 %v5741
    %v5786 = vunpack.c.l.b16 %v5742
    %v5787 = vunpack.c.l.b16 %v5743
    %v5788 = vunpack.c.l.b16 %v5744
    %v5789 = vunpack.c.l.b16 %v5745
    %v5790 = vpack.c.b16 %v5775, %v5774
    %v5791 = vpack.c.b16 %v5777, %v5776
    %v5792 = vpack.c.b16 %v5779, %v5778
    %v5793 = vpack.c.b16 %v5781, %v5780
    %v5794 = vpack.c.b16 %v5783, %v5782
    %v5795 = vpack.c.b16 %v5785, %v5784
    %v5796 = vpack.c.b16 %v5787, %v5786
    %v5797 = vpack.c.b16 %v5789, %v5788
    %5806 = vmatprep.subr.bf16.mxu0 0
    %5807 = vmatpush1.bf16.msra.mxu0 %v5790
    %5808 = vmatprep.subr.bf16.mxu0 0
    %5809 = vmatpush1.bf16.msra.mxu0 %v5791
    %5810 = vmatprep.subr.bf16.mxu0 0
    %5811 = vmatpush1.bf16.msra.mxu0 %v5792
    %5812 = vmatprep.subr.bf16.mxu0 0
    %5813 = vmatpush1.bf16.msra.mxu0 %v5793
    %5814 = vmatprep.subr.bf16.mxu0 0
    %5815 = vmatpush1.bf16.msra.mxu0 %v5794
    %5816 = vmatprep.subr.bf16.mxu0 0
    %5817 = vmatpush1.bf16.msra.mxu0 %v5795
    %5818 = vmatprep.subr.bf16.mxu0 0
    %5819 = vmatpush1.bf16.msra.mxu0 %v5796
    %5820 = vmatprep.subr.bf16.mxu0 0
    %5821 = vmatpush1.bf16.msra.mxu0 %v5797
    %5822 = vmatprep.subr.bf16.mxu0 0
    %5823 = vmatpush1.bf16.msra.mxu0 0
    %5824 = vmatprep.subr.bf16.mxu0 0
    %5825 = vmatpush1.bf16.msra.mxu0 0
    %5826 = vmatprep.subr.bf16.mxu0 0
    %5827 = vmatpush1.bf16.msra.mxu0 0
    %5828 = vmatprep.subr.bf16.mxu0 0
    %5829 = vmatpush1.bf16.msra.mxu0 0
    %5830 = vmatprep.subr.bf16.mxu0 0
    %5831 = vmatpush1.bf16.msra.mxu0 0
    %5832 = vmatprep.subr.bf16.mxu0 0
    %5833 = vmatpush1.bf16.msra.mxu0 0
    %5834 = vmatprep.subr.bf16.mxu0 0
    %5835 = vmatpush1.bf16.msra.mxu0 0
    %5836 = vmatprep.subr.bf16.mxu0 0
    %5837 = vmatpush1.bf16.msra.mxu0 0
    %5838 = vmatprep.mubr.bf16.mxu0 0
    %5839 = vmatmul.mubr.bf16.gmra.mrb[0].mxu0 %v5746
    %v5840 = vpop.f32.mrb[0].mxu0
    %v5841 = vadd.f32 %v5756, %v5840
    %v5842 = vpop.f32.mrb[0].mxu0
    %v5843 = vpop.f32.mrb[0].mxu0
    %v5844 = vadd.f32 %v5756, %v5843
    %v5845 = vpop.f32.mrb[0].mxu0
    %5846 = vmatprep.mubr.bf16.mxu0 0
    %5847 = vmatmul.mubr.bf16.gmra.mrb[0].mxu0 %v5747
    %v5848 = vpop.f32.mrb[0].mxu0
    %v5849 = vadd.f32 %v5756, %v5848
    %v5850 = vpop.f32.mrb[0].mxu0
    %v5851 = vpop.f32.mrb[0].mxu0
    %v5852 = vadd.f32 %v5756, %v5851
    %v5853 = vpop.f32.mrb[0].mxu0
    %5854 = vmatprep.mubr.bf16.mxu0 0
    %5855 = vmatmul.mubr.bf16.gmra.mrb[0].mxu0 %v5748
    %v5856 = vpop.f32.mrb[0].mxu0
    %v5857 = vadd.f32 %v5756, %v5856
    %v5858 = vpop.f32.mrb[0].mxu0
    %v5859 = vpop.f32.mrb[0].mxu0
    %v5860 = vadd.f32 %v5756, %v5859
    %v5861 = vpop.f32.mrb[0].mxu0
    %5862 = vmatprep.mubr.bf16.mxu0 0
    %5863 = vmatmul.mubr.bf16.gmra.mrb[0].mxu0 %v5749
    %v5864 = vpop.f32.mrb[0].mxu0
    %v5865 = vadd.f32 %v5756, %v5864
    %v5866 = vpop.f32.mrb[0].mxu0
    %v5867 = vpop.f32.mrb[0].mxu0
    %v5868 = vadd.f32 %v5756, %v5867
    %v5869 = vpop.f32.mrb[0].mxu0
    %5870 = vdwg.mxu0
    %v5871 = vmax.f32 %v5841, 0.0
    %v5872 = vmax.f32 %v5844, 0.0
    %v5873 = vmax.f32 %v5849, 0.0
    %v5874 = vmax.f32 %v5852, 0.0
    %v5875 = vmax.f32 %v5857, 0.0
    %v5876 = vmax.f32 %v5860, 0.0
    %v5877 = vmax.f32 %v5865, 0.0
    %v5878 = vmax.f32 %v5868, 0.0
    %s5879 = scalar_lea.vmem [#allocation3], 1600
    %v5880 = vld [vmem:[%s5879] sm:$0xf]
    %v5881 = vld [vmem:[%s5879 + $0x4] sm:$0xf]
    %v5882 = vld [vmem:[%s5879 + $0x8] sm:$0xf]
    %v5883 = vld [vmem:[%s5879 + $0xc] sm:$0xf]
    %v5884 = vld [vmem:[%s5879 + $0x10] sm:$0xf]
    %v5885 = vld [vmem:[%s5879 + $0x14] sm:$0xf]
    %v5886 = vld [vmem:[%s5879 + $0x18] sm:$0xf]
    %v5887 = vld [vmem:[%s5879 + $0x1c] sm:$0xf]
    %v5888 = vld [vmem:[%s5879 + $0x20] sm:$0xf]
    %v5889 = vld [vmem:[%s5879 + $0x24] sm:$0xf]
    %v5890 = vld [vmem:[%s5879 + $0x28] sm:$0xf]
    %v5891 = vld [vmem:[%s5879 + $0x2c] sm:$0xf]
    %v5892 = vld [vmem:[%s5879 + $0x30] sm:$0xf]
    %v5893 = vld [vmem:[%s5879 + $0x34] sm:$0xf]
    %v5894 = vld [vmem:[%s5879 + $0x38] sm:$0xf]
    %v5895 = vld [vmem:[%s5879 + $0x3c] sm:$0xf]
    %v5896 = vpack.c.bf16 %v5872, %v5871
    %v5897 = vpack.c.bf16 %v5874, %v5873
    %v5898 = vpack.c.bf16 %v5876, %v5875
    %v5899 = vpack.c.bf16 %v5878, %v5877
    %s5900 = scalar_lea.vmem %s6, 20
    %v5901 = vld [vmem:[%s5900] sm:$0x1]
    %v5903 = vlaneseq
    %v5904 = vshrl.u32 %v5903, 7
    %v5905 = vsub.s32 0, %v5904
    %v5906 = vrot.slane %v5901, %v5905
    %v5924 = vunpack.c.l.b16 %v5880
    %v5925 = vunpack.c.l.b16 %v5881
    %v5926 = vunpack.c.l.b16 %v5882
    %v5927 = vunpack.c.l.b16 %v5883
    %v5928 = vunpack.c.l.b16 %v5884
    %v5929 = vunpack.c.l.b16 %v5885
    %v5930 = vunpack.c.l.b16 %v5886
    %v5931 = vunpack.c.l.b16 %v5887
    %v5932 = vunpack.c.l.b16 %v5888
    %v5933 = vunpack.c.l.b16 %v5889
    %v5934 = vunpack.c.l.b16 %v5890
    %v5935 = vunpack.c.l.b16 %v5891
    %v5936 = vunpack.c.l.b16 %v5892
    %v5937 = vunpack.c.l.b16 %v5893
    %v5938 = vunpack.c.l.b16 %v5894
    %v5939 = vunpack.c.l.b16 %v5895
    %v5940 = vpack.c.b16 %v5925, %v5924
    %v5941 = vpack.c.b16 %v5927, %v5926
    %v5942 = vpack.c.b16 %v5929, %v5928
    %v5943 = vpack.c.b16 %v5931, %v5930
    %v5944 = vpack.c.b16 %v5933, %v5932
    %v5945 = vpack.c.b16 %v5935, %v5934
    %v5946 = vpack.c.b16 %v5937, %v5936
    %v5947 = vpack.c.b16 %v5939, %v5938
    %5956 = vmatprep.subr.bf16.mxu0 0
    %5957 = vmatpush1.bf16.msra.mxu0 %v5940
    %5958 = vmatprep.subr.bf16.mxu0 0
    %5959 = vmatpush1.bf16.msra.mxu0 %v5941
    %5960 = vmatprep.subr.bf16.mxu0 0
    %5961 = vmatpush1.bf16.msra.mxu0 %v5942
    %5962 = vmatprep.subr.bf16.mxu0 0
    %5963 = vmatpush1.bf16.msra.mxu0 %v5943
    %5964 = vmatprep.subr.bf16.mxu0 0
    %5965 = vmatpush1.bf16.msra.mxu0 %v5944
    %5966 = vmatprep.subr.bf16.mxu0 0
    %5967 = vmatpush1.bf16.msra.mxu0 %v5945
    %5968 = vmatprep.subr.bf16.mxu0 0
    %5969 = vmatpush1.bf16.msra.mxu0 %v5946
    %5970 = vmatprep.subr.bf16.mxu0 0
    %5971 = vmatpush1.bf16.msra.mxu0 %v5947
    %5972 = vmatprep.subr.bf16.mxu0 0
    %5973 = vmatpush1.bf16.msra.mxu0 0
    %5974 = vmatprep.subr.bf16.mxu0 0
    %5975 = vmatpush1.bf16.msra.mxu0 0
    %5976 = vmatprep.subr.bf16.mxu0 0
    %5977 = vmatpush1.bf16.msra.mxu0 0
    %5978 = vmatprep.subr.bf16.mxu0 0
    %5979 = vmatpush1.bf16.msra.mxu0 0
    %5980 = vmatprep.subr.bf16.mxu0 0
    %5981 = vmatpush1.bf16.msra.mxu0 0
    %5982 = vmatprep.subr.bf16.mxu0 0
    %5983 = vmatpush1.bf16.msra.mxu0 0
    %5984 = vmatprep.subr.bf16.mxu0 0
    %5985 = vmatpush1.bf16.msra.mxu0 0
    %5986 = vmatprep.subr.bf16.mxu0 0
    %5987 = vmatpush1.bf16.msra.mxu0 0
    %5988 = vmatprep.mubr.bf16.mxu0 0
    %5989 = vmatmul.mubr.bf16.gmra.mrb[0].mxu0 %v5896
    %v5990 = vpop.f32.mrb[0].mxu0
    %v5991 = vadd.f32 %v5906, %v5990
    %v5992 = vpop.f32.mrb[0].mxu0
    %v5993 = vpop.f32.mrb[0].mxu0
    %v5994 = vadd.f32 %v5906, %v5993
    %v5995 = vpop.f32.mrb[0].mxu0
    %5996 = vmatprep.mubr.bf16.mxu0 0
    %5997 = vmatmul.mubr.bf16.gmra.mrb[0].mxu0 %v5897
    %v5998 = vpop.f32.mrb[0].mxu0
    %v5999 = vadd.f32 %v5906, %v5998
    %v6000 = vpop.f32.mrb[0].mxu0
    %v6001 = vpop.f32.mrb[0].mxu0
    %v6002 = vadd.f32 %v5906, %v6001
    %v6003 = vpop.f32.mrb[0].mxu0
    %6004 = vmatprep.mubr.bf16.mxu0 0
    %6005 = vmatmul.mubr.bf16.gmra.mrb[0].mxu0 %v5898
    %v6006 = vpop.f32.mrb[0].mxu0
    %v6007 = vadd.f32 %v5906, %v6006
    %v6008 = vpop.f32.mrb[0].mxu0
    %v6009 = vpop.f32.mrb[0].mxu0
    %v6010 = vadd.f32 %v5906, %v6009
    %v6011 = vpop.f32.mrb[0].mxu0
    %6012 = vmatprep.mubr.bf16.mxu0 0
    %6013 = vmatmul.mubr.bf16.gmra.mrb[0].mxu0 %v5899
    %v6014 = vpop.f32.mrb[0].mxu0
    %v6015 = vadd.f32 %v5906, %v6014
    %v6016 = vpop.f32.mrb[0].mxu0
    %v6017 = vpop.f32.mrb[0].mxu0
    %v6018 = vadd.f32 %v5906, %v6017
    %v6019 = vpop.f32.mrb[0].mxu0
    %6020 = vdwg.mxu0
    %v6021 = vxor.u32 %v5991, 2147483648
    %v6022 = vxor.u32 %v5994, 2147483648
    %v6023 = vxor.u32 %v5999, 2147483648
    %v6024 = vxor.u32 %v6002, 2147483648
    %v6025 = vxor.u32 %v6007, 2147483648
    %v6026 = vxor.u32 %v6010, 2147483648
    %v6027 = vxor.u32 %v6015, 2147483648
    %v6028 = vxor.u32 %v6018, 2147483648
    %v6029 = vmul.f32 %v6021, 1.442695
    %v6030 = vpow.pop %v6029
    %v6031 = vmul.f32 %v6022, 1.442695
    %v6032 = vpow.pop %v6031
    %v6033 = vmul.f32 %v6023, 1.442695
    %v6034 = vpow.pop %v6033
    %v6035 = vmul.f32 %v6024, 1.442695
    %v6036 = vpow.pop %v6035
    %v6037 = vmul.f32 %v6025, 1.442695
    %v6038 = vpow.pop %v6037
    %v6039 = vmul.f32 %v6026, 1.442695
    %v6040 = vpow.pop %v6039
    %v6041 = vmul.f32 %v6027, 1.442695
    %v6042 = vpow.pop %v6041
    %v6043 = vmul.f32 %v6028, 1.442695
    %v6044 = vpow.pop %v6043
    %v6045 = vadd.f32 %v6030, 1.0
    %v6046 = vadd.f32 %v6032, 1.0
    %v6047 = vadd.f32 %v6034, 1.0
    %v6048 = vadd.f32 %v6036, 1.0
    %v6049 = vadd.f32 %v6038, 1.0
    %v6050 = vadd.f32 %v6040, 1.0
    %v6051 = vadd.f32 %v6042, 1.0
    %v6052 = vadd.f32 %v6044, 1.0
    %v6053 = vrcp.pop %v6045
    %v6054 = vmul.f32 1.0, %v6053
    %v6055 = vrcp.pop %v6046
    %v6056 = vmul.f32 1.0, %v6055
    %v6057 = vrcp.pop %v6047
    %v6058 = vmul.f32 1.0, %v6057
    %v6059 = vrcp.pop %v6048
    %v6060 = vmul.f32 1.0, %v6059
    %v6061 = vrcp.pop %v6049
    %v6062 = vmul.f32 1.0, %v6061
    %v6063 = vrcp.pop %v6050
    %v6064 = vmul.f32 1.0, %v6063
    %v6065 = vrcp.pop %v6051
    %v6066 = vmul.f32 1.0, %v6065
    %v6067 = vrcp.pop %v6052
    %v6068 = vmul.f32 1.0, %v6067
    %v6069 = vmul.f32 %v6054, 0.999998
    %v6070 = vmul.f32 %v6056, 0.999998
    %v6071 = vmul.f32 %v6058, 0.999998
    %v6072 = vmul.f32 %v6060, 0.999998
    %v6073 = vmul.f32 %v6062, 0.999998
    %v6074 = vmul.f32 %v6064, 0.999998
    %v6075 = vmul.f32 %v6066, 0.999998
    %v6076 = vmul.f32 %v6068, 0.999998
    %v6077 = vadd.f32 %v6069, 1e-06
    %v6078 = vadd.f32 %v6070, 1e-06
    %v6079 = vadd.f32 %v6071, 1e-06
    %v6080 = vadd.f32 %v6072, 1e-06
    %v6081 = vadd.f32 %v6073, 1e-06
    %v6082 = vadd.f32 %v6074, 1e-06
    %v6083 = vadd.f32 %v6075, 1e-06
    %v6084 = vadd.f32 %v6076, 1e-06
    %vm6085 = vcmp.eq.s32.totalorder %v868, 0
    %s6086 = sld [smem:[#allocation2]]
    %v6087 = vstv %s6086
    %v6088 = vmul.f32 %v5991, %v6087
    %v6089 = vmul.f32 %v5994, %v6087
    %v6090 = vmul.f32 %v5999, %v6087
    %v6091 = vmul.f32 %v6002, %v6087
    %v6092 = vmul.f32 %v6007, %v6087
    %v6093 = vmul.f32 %v6010, %v6087
    %v6094 = vmul.f32 %v6015, %v6087
    %v6095 = vmul.f32 %v6018, %v6087
    %v6096 = vsel %vm6085, %v6077, %v6088
    %v6097 = vsel %vm6085, %v6078, %v6089
    %v6098 = vsel %vm6085, %v6079, %v6090
    %v6099 = vsel %vm6085, %v6080, %v6091
    %v6100 = vsel %vm6085, %v6081, %v6092
    %v6101 = vsel %vm6085, %v6082, %v6093
    %v6102 = vsel %vm6085, %v6083, %v6094
    %v6103 = vsel %vm6085, %v6084, %v6095
    %6104 = vst [vmem:[#allocation6] sm:$0xff] %v6096
    %6105 = vst [vmem:[#allocation6 + $0x8] sm:$0xff] %v6097
    %6106 = vst [vmem:[#allocation6 + $0x10] sm:$0xff] %v6098
    %6107 = vst [vmem:[#allocation6 + $0x18] sm:$0xff] %v6099
    %6108 = vst [vmem:[#allocation6 + $0x20] sm:$0xff] %v6100
    %6109 = vst [vmem:[#allocation6 + $0x28] sm:$0xff] %v6101
    %6110 = vst [vmem:[#allocation6 + $0x30] sm:$0xff] %v6102
    %6111 = vst [vmem:[#allocation6 + $0x38] sm:$0xff] %v6103
    // Predicated region
    $region38: #{_pallas_forward.1} parent=1 // pred_check
      _
    $region39: #{_pallas_forward.1} parent=1 // pred_check_branch
      %6113 = sbr.rel (0) target = $region41
    $region40: #{_pallas_forward.1} parent=1 // pred_region
      %s6115 = ssub.s32 1024, 1024
      %6116 = vsyncadd [#allocation5], %s6115
      %s6117 = sshll.u32 [#allocation6], 4
      %s6118 = int_to_ptr.vmem [resolvable:$true] %s6117
      %6123 = dma.vmem_to_hbm [thread:$0]  %s6118, 1024, %s8, [#allocation5], 128, 128, 8
    $region41: #{_pallas_forward.1} parent=1 // pred_fallthru
      _
    // Predicated region
    $region42: #{_pallas_forward.1} parent=1 // pred_check
      _
    $region43: #{_pallas_forward.1} parent=1 // pred_check_branch
      %6125 = sbr.rel (0) target = $region45
    $region44: #{_pallas_forward.1} parent=1 // pred_region
      %6126 = dma.done [#allocation5], 1024
    $region45: #{_pallas_forward.1} parent=1 // pred_fallthru
      _
    %6127 = vsyncpa [#allocation4], 1
    %6128 = vsyncpa [#allocation5], 1

</llo_original>
